<compile_context>
chip_gen: v7x
topology: tpu7x:2x2x1
jax: 0.10.0
libtpu: 0.0.40
codegen_flags: <defaults>
</compile_context>

<pallas_src>
import functools

import jax
import jax.numpy as jnp
from jax.experimental import pallas as pl
from jax.experimental.pallas import tpu as pltpu


def _round_up(x, m):
    return (x + m - 1) // m * m


# ---------------------------------------------------------------------------
# Pallas kernel: one output row of one batch element.
#   row0_ref: (2, Wo+1, 2*Cin)  padded-input pair-row  ho      (bf16)
#   row1_ref: (2, Wo+1, 2*Cin)  padded-input pair-row  ho + 1  (bf16)
#   w_ref   : (8, 2*Cin, Cout_p) weight chunks, chunk j=(dhr,hc,dwr),
#             rows ordered (kw_parity, ci)                      (bf16)
#   b_ref   : (1, Cout_p)                                       (f32)
#   o_ref   : (Wo, Cout_p)                                      (bf16)
# ---------------------------------------------------------------------------
def _conv_row_kernel(row0_ref, row1_ref, w_ref, b_ref, o_ref, *, apply_relu):
    wo, cout_p = o_ref.shape
    acc = jnp.zeros((wo, cout_p), jnp.float32)
    j = 0
    for rows in (row0_ref, row1_ref):          # dhr = 0, 1  (kh pair)
        for hc in range(2):                    # kh parity
            for dwr in range(2):               # kw pair
                tap = rows[hc, dwr:dwr + wo, :]          # (Wo, 2*Cin), contiguous
                acc = acc + jnp.dot(tap, w_ref[j],
                                    preferred_element_type=jnp.float32)
                j += 1
    acc = acc + b_ref[...]
    if apply_relu:
        acc = jnp.where(acc > 0, acc, 0.2 * acc)         # LeakyReLU(0.2)
    o_ref[...] = acc.astype(o_ref.dtype)


# ---------------------------------------------------------------------------
# One Conv2d(k=4, s=2, p=1) [+ LeakyReLU] layer.
#   x_nhwc: (N, H, W, Cin_phys); channels >= w.shape[1] must be zero padding.
#   returns (N, Ho, Wo, Cout_p) bf16 with Cout_p = round_up(Cout, 128);
#   channels >= Cout are exactly zero.
# ---------------------------------------------------------------------------
def conv_layer_pallas(x_nhwc, w_oihw, b, apply_relu):
    N, H, W, cin_phys = x_nhwc.shape
    Cout, Cin, KH, KW = w_oihw.shape
    assert (KH, KW) == (4, 4) and cin_phys >= Cin
    assert H % 2 == 0 and W % 2 == 0
    Ho, Wo = H // 2, W // 2
    cout_p = _round_up(Cout, 128)
    cpair = 2 * cin_phys

    # ---- wrapper glue (one fused pad/reshape/cast copy; no im2col in HBM) ----
    xp = jnp.pad(x_nhwc.astype(jnp.bfloat16), ((0, 0), (1, 1), (1, 1), (0, 0)))
    # (N, 2*(Ho+1), 2*(Wo+1), Cin) -> (N, Ho+1, 2, Wo+1, 2*Cin): stride-2 taps
    # become contiguous slices of the last three dims.
    xr = xp.reshape(N, Ho + 1, 2, Wo + 1, cpair)

    # weight (Cout, Cin, 4, 4) -> (kh, kw, ci, co), zero-pad ci->cin_phys and
    # co->cout_p, then chunk as (8, 2*cin_phys, cout_p); chunk j = dhr*4+hc*2+dwr
    # holds K rows ordered (kw parity, ci) -- exactly matching the tap layout.
    wm = jnp.transpose(w_oihw, (2, 3, 1, 0)).astype(jnp.bfloat16)
    wm = jnp.pad(wm, ((0, 0), (0, 0), (0, cin_phys - Cin), (0, cout_p - Cout)))
    wm = wm.reshape(8, cpair, cout_p)
    bm = jnp.pad(b.astype(jnp.float32), (0, cout_p - Cout)).reshape(1, cout_p)

    kernel = functools.partial(_conv_row_kernel, apply_relu=apply_relu)

    # VMEM budget: double-buffered row pairs + resident weight + output row.
    bpe = 2  # bf16
    est = (2 * 2 * (2 * (Wo + 1) * cpair * bpe)   # two row-pair inputs x 2 bufs
           + 2 * (8 * cpair * cout_p * bpe)        # weight chunks
           + 2 * (cout_p * 4)                      # bias
           + 2 * (Wo * cout_p * bpe)               # output row
           + Wo * cout_p * 4 + (1 << 20))          # f32 accumulator + slack
    vmem_limit = int(min(64 * 1024 * 1024, max(32 * 1024 * 1024, 2 * est)))

    out = pl.pallas_call(
        kernel,
        out_shape=jax.ShapeDtypeStruct((N, Ho, Wo, cout_p), jnp.bfloat16),
        grid=(N, Ho),
        in_specs=[
            # pair-row ho of batch n
            pl.BlockSpec((None, None, 2, Wo + 1, cpair),
                         lambda n, i: (n, i, 0, 0, 0)),
            # pair-row ho+1 of batch n (overlapping window, separate spec)
            pl.BlockSpec((None, None, 2, Wo + 1, cpair),
                         lambda n, i: (n, i + 1, 0, 0, 0)),
            # resident weight chunks + bias
            pl.BlockSpec((8, cpair, cout_p), lambda n, i: (0, 0, 0)),
            pl.BlockSpec((1, cout_p), lambda n, i: (0, 0)),
        ],
        out_specs=pl.BlockSpec((None, None, Wo, cout_p),
                               lambda n, i: (n, i, 0, 0)),
        compiler_params=pltpu.CompilerParams(
            dimension_semantics=("parallel", "parallel"),
            vmem_limit_bytes=vmem_limit),
    )(xr, xr, wm, bm)
    return out


# ---------------------------------------------------------------------------
# FCDiscriminator forward (NCHW in / NCHW out, PyTorch convention)
# ---------------------------------------------------------------------------
def init_params(key, num_classes, ndf):
    """Deterministic synthetic init; shapes match the nn.Module."""
    chans = [(num_classes, ndf), (ndf, ndf * 2), (ndf * 2, ndf * 4),
             (ndf * 4, ndf * 8), (ndf * 8, 1)]
    params = []
    for i, (cin, cout) in enumerate(chans):
        kw_key, kb_key = jax.random.split(jax.random.fold_in(key, i))
        w = 0.05 * jax.random.normal(kw_key, (cout, cin, 4, 4), jnp.float32)
        b = 0.01 * jax.random.normal(kb_key, (cout,), jnp.float32)
        params.append((w, b))
    return params


def fc_discriminator_forward(x_nchw, params):
    x = jnp.transpose(x_nchw, (0, 2, 3, 1))      # NHWC inside
    n_layers = len(params)
    # TODO(synk): fuse the <=4x4-spatial tail (last 2-3 layers) into a single
    # multi-layer pallas_call so tiny activations never round-trip HBM.
    for i, (w, b) in enumerate(params):
        x = conv_layer_pallas(x, w, b, apply_relu=(i < n_layers - 1))
    # channels were kept zero-padded to a multiple of 128 for lane-dense
    # stores; slice out the single real classifier channel at the end.
    x = x[..., :params[-1][0].shape[0]].astype(jnp.float32)
    return jnp.transpose(x, (0, 3, 1, 2))


# ---------------------------------------------------------------------------
# Pure-JAX f32 reference (lax conv) for correctness check
# ---------------------------------------------------------------------------
def ref_forward(x_nchw, params):
    x = x_nchw
    n_layers = len(params)
    for i, (w, b) in enumerate(params):
        x = jax.lax.conv_general_dilated(
            x, w, window_strides=(2, 2), padding=((1, 1), (1, 1)),
            dimension_numbers=("NCHW", "OIHW", "NCHW"),
        ) + b[None, :, None, None]
        if i < n_layers - 1:
            x = jnp.where(x > 0, x, 0.2 * x)
    return x


if __name__ == "__main__":
    key = jax.random.PRNGKey(0)
    num_classes, ndf = 4, 8          # small ndf for the synthetic test
    N, H, W = 2, 32, 32              # 32 -> 16 -> 8 -> 4 -> 2 -> 1

    xkey, pkey = jax.random.split(key)
    x = jax.random.normal(xkey, (N, num_classes, H, W), jnp.float32)
    params = init_params(pkey, num_classes, ndf)

    fwd = jax.jit(fc_discriminator_forward)
    out = jax.block_until_ready(fwd(x, params))
    ref = jax.block_until_ready(ref_forward(x, params))

    assert out.shape == (N, 1, 1, 1), out.shape
    err = float(jnp.max(jnp.abs(out - ref)))
    tol = 5e-2 * float(jnp.max(jnp.abs(ref))) + 1e-4   # bf16 operands, f32 accum
    assert err <= tol, (err, tol)

    print("KERNEL_OK")
</pallas_src>

<mosaic_0001>
module attributes {stable_mosaic.version = 11 : i64} {
  func.func @_conv_row_kernel(%arg0: i32, %arg1: i32, %arg2: memref<1x1x2x17x8xbf16, #tpu.memory_space<vmem>>, %arg3: memref<1x1x2x17x8xbf16, #tpu.memory_space<vmem>>, %arg4: memref<8x8x128xbf16, #tpu.memory_space<vmem>>, %arg5: memref<1x128xf32, #tpu.memory_space<vmem>>, %arg6: memref<1x1x16x128xbf16, #tpu.memory_space<vmem>>) attributes {dimension_semantics = [#tpu.dimension_semantics<parallel>, #tpu.dimension_semantics<parallel>], iteration_bounds = array<i64: 2, 16>, scalar_prefetch = 0 : i64, scratch_operands = 0 : i64, tpu.core_type = #tpu.core_type<tc>, window_params = [{transform_indices = @transform_0, window_bounds = array<i64: 1, 1, 2, 17, 8>}, {transform_indices = @transform_1, window_bounds = array<i64: 1, 1, 2, 17, 8>}, {pipeline_mode = #tpu.pipeline_mode<synchronous>, transform_indices = @transform_2, window_bounds = array<i64: 8, 8, 128>}, {pipeline_mode = #tpu.pipeline_mode<synchronous>, transform_indices = @transform_3, window_bounds = array<i64: 1, 128>}, {transform_indices = @transform_4, window_bounds = array<i64: 1, 1, 16, 128>}]} {
    %cst = arith.constant 0.000000e+00 : f32
    %0 = vector.broadcast %cst : f32 to vector<16x128xf32>
    %c0 = arith.constant 0 : index
    %c0_0 = arith.constant 0 : index
    %c0_1 = arith.constant 0 : index
    %c0_2 = arith.constant 0 : index
    %c0_3 = arith.constant 0 : index
    %1 = vector.load %arg2[%c0, %c0_0, %c0_1, %c0_2, %c0_3] : memref<1x1x2x17x8xbf16, #tpu.memory_space<vmem>>, vector<1x1x1x16x8xbf16>
    %2 = vector.shape_cast %1 : vector<1x1x1x16x8xbf16> to vector<16x8xbf16>
    %c0_4 = arith.constant 0 : index
    %c0_5 = arith.constant 0 : index
    %c0_6 = arith.constant 0 : index
    %3 = vector.load %arg4[%c0_4, %c0_5, %c0_6] : memref<8x8x128xbf16, #tpu.memory_space<vmem>>, vector<1x8x128xbf16>
    %4 = vector.shape_cast %3 : vector<1x8x128xbf16> to vector<8x128xbf16>
    %cst_7 = arith.constant dense<0.000000e+00> : vector<16x128xf32>
    %5 = tpu.matmul %2, %4, %cst_7 {dimension_numbers = #tpu.dot_dimension_numbers<[1], [0], [0], [1], [0, 0, 1, 1], [], []>} : vector<16x8xbf16>, vector<8x128xbf16>, vector<16x128xf32> -> vector<16x128xf32>
    %6 = arith.addf %0, %5 : vector<16x128xf32>
    %c0_8 = arith.constant 0 : index
    %c0_9 = arith.constant 0 : index
    %c0_10 = arith.constant 0 : index
    %c1 = arith.constant 1 : index
    %c0_11 = arith.constant 0 : index
    %7 = vector.load %arg2[%c0_8, %c0_9, %c0_10, %c1, %c0_11] : memref<1x1x2x17x8xbf16, #tpu.memory_space<vmem>>, vector<1x1x1x16x8xbf16>
    %8 = vector.shape_cast %7 : vector<1x1x1x16x8xbf16> to vector<16x8xbf16>
    %c1_12 = arith.constant 1 : index
    %c0_13 = arith.constant 0 : index
    %c0_14 = arith.constant 0 : index
    %9 = vector.load %arg4[%c1_12, %c0_13, %c0_14] : memref<8x8x128xbf16, #tpu.memory_space<vmem>>, vector<1x8x128xbf16>
    %10 = vector.shape_cast %9 : vector<1x8x128xbf16> to vector<8x128xbf16>
    %cst_15 = arith.constant dense<0.000000e+00> : vector<16x128xf32>
    %11 = tpu.matmul %8, %10, %cst_15 {dimension_numbers = #tpu.dot_dimension_numbers<[1], [0], [0], [1], [0, 0, 1, 1], [], []>} : vector<16x8xbf16>, vector<8x128xbf16>, vector<16x128xf32> -> vector<16x128xf32>
    %12 = arith.addf %6, %11 : vector<16x128xf32>
    %c0_16 = arith.constant 0 : index
    %c0_17 = arith.constant 0 : index
    %c1_18 = arith.constant 1 : index
    %c0_19 = arith.constant 0 : index
    %c0_20 = arith.constant 0 : index
    %13 = vector.load %arg2[%c0_16, %c0_17, %c1_18, %c0_19, %c0_20] : memref<1x1x2x17x8xbf16, #tpu.memory_space<vmem>>, vector<1x1x1x16x8xbf16>
    %14 = vector.shape_cast %13 : vector<1x1x1x16x8xbf16> to vector<16x8xbf16>
    %c2 = arith.constant 2 : index
    %c0_21 = arith.constant 0 : index
    %c0_22 = arith.constant 0 : index
    %15 = vector.load %arg4[%c2, %c0_21, %c0_22] : memref<8x8x128xbf16, #tpu.memory_space<vmem>>, vector<1x8x128xbf16>
    %16 = vector.shape_cast %15 : vector<1x8x128xbf16> to vector<8x128xbf16>
    %cst_23 = arith.constant dense<0.000000e+00> : vector<16x128xf32>
    %17 = tpu.matmul %14, %16, %cst_23 {dimension_numbers = #tpu.dot_dimension_numbers<[1], [0], [0], [1], [0, 0, 1, 1], [], []>} : vector<16x8xbf16>, vector<8x128xbf16>, vector<16x128xf32> -> vector<16x128xf32>
    %18 = arith.addf %12, %17 : vector<16x128xf32>
    %c0_24 = arith.constant 0 : index
    %c0_25 = arith.constant 0 : index
    %c1_26 = arith.constant 1 : index
    %c1_27 = arith.constant 1 : index
    %c0_28 = arith.constant 0 : index
    %19 = vector.load %arg2[%c0_24, %c0_25, %c1_26, %c1_27, %c0_28] : memref<1x1x2x17x8xbf16, #tpu.memory_space<vmem>>, vector<1x1x1x16x8xbf16>
    %20 = vector.shape_cast %19 : vector<1x1x1x16x8xbf16> to vector<16x8xbf16>
    %c3 = arith.constant 3 : index
    %c0_29 = arith.constant 0 : index
    %c0_30 = arith.constant 0 : index
    %21 = vector.load %arg4[%c3, %c0_29, %c0_30] : memref<8x8x128xbf16, #tpu.memory_space<vmem>>, vector<1x8x128xbf16>
    %22 = vector.shape_cast %21 : vector<1x8x128xbf16> to vector<8x128xbf16>
    %cst_31 = arith.constant dense<0.000000e+00> : vector<16x128xf32>
    %23 = tpu.matmul %20, %22, %cst_31 {dimension_numbers = #tpu.dot_dimension_numbers<[1], [0], [0], [1], [0, 0, 1, 1], [], []>} : vector<16x8xbf16>, vector<8x128xbf16>, vector<16x128xf32> -> vector<16x128xf32>
    %24 = arith.addf %18, %23 : vector<16x128xf32>
    %c0_32 = arith.constant 0 : index
    %c0_33 = arith.constant 0 : index
    %c0_34 = arith.constant 0 : index
    %c0_35 = arith.constant 0 : index
    %c0_36 = arith.constant 0 : index
    %25 = vector.load %arg3[%c0_32, %c0_33, %c0_34, %c0_35, %c0_36] : memref<1x1x2x17x8xbf16, #tpu.memory_space<vmem>>, vector<1x1x1x16x8xbf16>
    %26 = vector.shape_cast %25 : vector<1x1x1x16x8xbf16> to vector<16x8xbf16>
    %c4 = arith.constant 4 : index
    %c0_37 = arith.constant 0 : index
    %c0_38 = arith.constant 0 : index
    %27 = vector.load %arg4[%c4, %c0_37, %c0_38] : memref<8x8x128xbf16, #tpu.memory_space<vmem>>, vector<1x8x128xbf16>
    %28 = vector.shape_cast %27 : vector<1x8x128xbf16> to vector<8x128xbf16>
    %cst_39 = arith.constant dense<0.000000e+00> : vector<16x128xf32>
    %29 = tpu.matmul %26, %28, %cst_39 {dimension_numbers = #tpu.dot_dimension_numbers<[1], [0], [0], [1], [0, 0, 1, 1], [], []>} : vector<16x8xbf16>, vector<8x128xbf16>, vector<16x128xf32> -> vector<16x128xf32>
    %30 = arith.addf %24, %29 : vector<16x128xf32>
    %c0_40 = arith.constant 0 : index
    %c0_41 = arith.constant 0 : index
    %c0_42 = arith.constant 0 : index
    %c1_43 = arith.constant 1 : index
    %c0_44 = arith.constant 0 : index
    %31 = vector.load %arg3[%c0_40, %c0_41, %c0_42, %c1_43, %c0_44] : memref<1x1x2x17x8xbf16, #tpu.memory_space<vmem>>, vector<1x1x1x16x8xbf16>
    %32 = vector.shape_cast %31 : vector<1x1x1x16x8xbf16> to vector<16x8xbf16>
    %c5 = arith.constant 5 : index
    %c0_45 = arith.constant 0 : index
    %c0_46 = arith.constant 0 : index
    %33 = vector.load %arg4[%c5, %c0_45, %c0_46] : memref<8x8x128xbf16, #tpu.memory_space<vmem>>, vector<1x8x128xbf16>
    %34 = vector.shape_cast %33 : vector<1x8x128xbf16> to vector<8x128xbf16>
    %cst_47 = arith.constant dense<0.000000e+00> : vector<16x128xf32>
    %35 = tpu.matmul %32, %34, %cst_47 {dimension_numbers = #tpu.dot_dimension_numbers<[1], [0], [0], [1], [0, 0, 1, 1], [], []>} : vector<16x8xbf16>, vector<8x128xbf16>, vector<16x128xf32> -> vector<16x128xf32>
    %36 = arith.addf %30, %35 : vector<16x128xf32>
    %c0_48 = arith.constant 0 : index
    %c0_49 = arith.constant 0 : index
    %c1_50 = arith.constant 1 : index
    %c0_51 = arith.constant 0 : index
    %c0_52 = arith.constant 0 : index
    %37 = vector.load %arg3[%c0_48, %c0_49, %c1_50, %c0_51, %c0_52] : memref<1x1x2x17x8xbf16, #tpu.memory_space<vmem>>, vector<1x1x1x16x8xbf16>
    %38 = vector.shape_cast %37 : vector<1x1x1x16x8xbf16> to vector<16x8xbf16>
    %c6 = arith.constant 6 : index
    %c0_53 = arith.constant 0 : index
    %c0_54 = arith.constant 0 : index
    %39 = vector.load %arg4[%c6, %c0_53, %c0_54] : memref<8x8x128xbf16, #tpu.memory_space<vmem>>, vector<1x8x128xbf16>
    %40 = vector.shape_cast %39 : vector<1x8x128xbf16> to vector<8x128xbf16>
    %cst_55 = arith.constant dense<0.000000e+00> : vector<16x128xf32>
    %41 = tpu.matmul %38, %40, %cst_55 {dimension_numbers = #tpu.dot_dimension_numbers<[1], [0], [0], [1], [0, 0, 1, 1], [], []>} : vector<16x8xbf16>, vector<8x128xbf16>, vector<16x128xf32> -> vector<16x128xf32>
    %42 = arith.addf %36, %41 : vector<16x128xf32>
    %c0_56 = arith.constant 0 : index
    %c0_57 = arith.constant 0 : index
    %c1_58 = arith.constant 1 : index
    %c1_59 = arith.constant 1 : index
    %c0_60 = arith.constant 0 : index
    %43 = vector.load %arg3[%c0_56, %c0_57, %c1_58, %c1_59, %c0_60] : memref<1x1x2x17x8xbf16, #tpu.memory_space<vmem>>, vector<1x1x1x16x8xbf16>
    %44 = vector.shape_cast %43 : vector<1x1x1x16x8xbf16> to vector<16x8xbf16>
    %c7 = arith.constant 7 : index
    %c0_61 = arith.constant 0 : index
    %c0_62 = arith.constant 0 : index
    %45 = vector.load %arg4[%c7, %c0_61, %c0_62] : memref<8x8x128xbf16, #tpu.memory_space<vmem>>, vector<1x8x128xbf16>
    %46 = vector.shape_cast %45 : vector<1x8x128xbf16> to vector<8x128xbf16>
    %cst_63 = arith.constant dense<0.000000e+00> : vector<16x128xf32>
    %47 = tpu.matmul %44, %46, %cst_63 {dimension_numbers = #tpu.dot_dimension_numbers<[1], [0], [0], [1], [0, 0, 1, 1], [], []>} : vector<16x8xbf16>, vector<8x128xbf16>, vector<16x128xf32> -> vector<16x128xf32>
    %48 = arith.addf %42, %47 : vector<16x128xf32>
    %c0_64 = arith.constant 0 : index
    %c0_65 = arith.constant 0 : index
    %49 = vector.load %arg5[%c0_64, %c0_65] : memref<1x128xf32, #tpu.memory_space<vmem>>, vector<1x128xf32>
    %50 = vector.broadcast %49 : vector<1x128xf32> to vector<16x128xf32>
    %51 = arith.addf %48, %50 : vector<16x128xf32>
    %cst_66 = arith.constant 0.000000e+00 : f32
    %52 = vector.broadcast %cst_66 : f32 to vector<16x128xf32>
    %53 = arith.cmpf ogt, %51, %52 : vector<16x128xf32>
    %cst_67 = arith.constant 2.000000e-01 : f32
    %54 = vector.broadcast %cst_67 : f32 to vector<16x128xf32>
    %55 = arith.mulf %54, %51 : vector<16x128xf32>
    %56 = arith.select %53, %51, %55 : vector<16x128xi1>, vector<16x128xf32>
    %57 = arith.truncf %56 : vector<16x128xf32> to vector<16x128xbf16>
    %c0_68 = arith.constant 0 : index
    %c0_69 = arith.constant 0 : index
    %c0_70 = arith.constant 0 : index
    %c0_71 = arith.constant 0 : index
    %58 = vector.load %arg6[%c0_68, %c0_69, %c0_70, %c0_71] : memref<1x1x16x128xbf16, #tpu.memory_space<vmem>>, vector<1x1x16x128xbf16>
    %59 = vector.shape_cast %58 : vector<1x1x16x128xbf16> to vector<16x128xbf16>
    %60 = vector.shape_cast %57 : vector<16x128xbf16> to vector<1x1x16x128xbf16>
    tpu.vector_store %arg6[%c0_68, %c0_69, %c0_70, %c0_71], %60 {strides = array<i32>} : memref<1x1x16x128xbf16, #tpu.memory_space<vmem>>, vector<1x1x16x128xbf16>,
    return
  }
  func.func @transform_0(%arg0: i32, %arg1: i32) -> (i32, i32, i32, i32, i32) {
    %c0_i32 = arith.constant 0 : i32
    %c0_i32_0 = arith.constant 0 : i32
    %c0_i32_1 = arith.constant 0 : i32
    %c0_i32_2 = arith.constant 0 : i32
    return %arg0, %arg1, %c0_i32, %c0_i32_0, %c0_i32_1 : i32, i32, i32, i32, i32
  }
  func.func @transform_1(%arg0: i32, %arg1: i32) -> (i32, i32, i32, i32, i32) {
    %c1_i32 = arith.constant 1 : i32
    %0 = arith.addi %arg1, %c1_i32 : i32
    %c0_i32 = arith.constant 0 : i32
    %c0_i32_0 = arith.constant 0 : i32
    %c0_i32_1 = arith.constant 0 : i32
    %c0_i32_2 = arith.constant 0 : i32
    return %arg0, %0, %c0_i32, %c0_i32_0, %c0_i32_1 : i32, i32, i32, i32, i32
  }
  func.func @transform_2(%arg0: i32, %arg1: i32) -> (i32, i32, i32) {
    %c0_i32 = arith.constant 0 : i32
    %c0_i32_0 = arith.constant 0 : i32
    %c0_i32_1 = arith.constant 0 : i32
    %c0_i32_2 = arith.constant 0 : i32
    return %c0_i32, %c0_i32_0, %c0_i32_1 : i32, i32, i32
  }
  func.func @transform_3(%arg0: i32, %arg1: i32) -> (i32, i32) {
    %c0_i32 = arith.constant 0 : i32
    %c0_i32_0 = arith.constant 0 : i32
    %c0_i32_1 = arith.constant 0 : i32
    return %c0_i32, %c0_i32_0 : i32, i32
  }
  func.func @transform_4(%arg0: i32, %arg1: i32) -> (i32, i32, i32, i32) {
    %c0_i32 = arith.constant 0 : i32
    %c0_i32_0 = arith.constant 0 : i32
    %c0_i32_1 = arith.constant 0 : i32
    return %arg0, %arg1, %c0_i32, %c0_i32_0 : i32, i32, i32, i32
  }
}

module attributes {stable_mosaic.version = 11 : i64} {
  func.func @_conv_row_kernel(%arg0: i32, %arg1: i32, %arg2: memref<1x1x2x9x256xbf16, #tpu.memory_space<vmem>>, %arg3: memref<1x1x2x9x256xbf16, #tpu.memory_space<vmem>>, %arg4: memref<8x256x128xbf16, #tpu.memory_space<vmem>>, %arg5: memref<1x128xf32, #tpu.memory_space<vmem>>, %arg6: memref<1x1x8x128xbf16, #tpu.memory_space<vmem>>) attributes {dimension_semantics = [#tpu.dimension_semantics<parallel>, #tpu.dimension_semantics<parallel>], iteration_bounds = array<i64: 2, 8>, scalar_prefetch = 0 : i64, scratch_operands = 0 : i64, tpu.core_type = #tpu.core_type<tc>, window_params = [{transform_indices = @transform_0, window_bounds = array<i64: 1, 1, 2, 9, 256>}, {transform_indices = @transform_1, window_bounds = array<i64: 1, 1, 2, 9, 256>}, {pipeline_mode = #tpu.pipeline_mode<synchronous>, transform_indices = @transform_2, window_bounds = array<i64: 8, 256, 128>}, {pipeline_mode = #tpu.pipeline_mode<synchronous>, transform_indices = @transform_3, window_bounds = array<i64: 1, 128>}, {transform_indices = @transform_4, window_bounds = array<i64: 1, 1, 8, 128>}]} {
    %cst = arith.constant 0.000000e+00 : f32
    %0 = vector.broadcast %cst : f32 to vector<8x128xf32>
    %c0 = arith.constant 0 : index
    %c0_0 = arith.constant 0 : index
    %c0_1 = arith.constant 0 : index
    %c0_2 = arith.constant 0 : index
    %c0_3 = arith.constant 0 : index
    %1 = vector.load %arg2[%c0, %c0_0, %c0_1, %c0_2, %c0_3] : memref<1x1x2x9x256xbf16, #tpu.memory_space<vmem>>, vector<1x1x1x8x256xbf16>
    %2 = vector.shape_cast %1 : vector<1x1x1x8x256xbf16> to vector<8x256xbf16>
    %c0_4 = arith.constant 0 : index
    %c0_5 = arith.constant 0 : index
    %c0_6 = arith.constant 0 : index
    %3 = vector.load %arg4[%c0_4, %c0_5, %c0_6] : memref<8x256x128xbf16, #tpu.memory_space<vmem>>, vector<1x256x128xbf16>
    %4 = vector.shape_cast %3 : vector<1x256x128xbf16> to vector<256x128xbf16>
    %cst_7 = arith.constant dense<0.000000e+00> : vector<8x128xf32>
    %5 = tpu.matmul %2, %4, %cst_7 {dimension_numbers = #tpu.dot_dimension_numbers<[1], [0], [0], [1], [0, 0, 1, 1], [], []>} : vector<8x256xbf16>, vector<256x128xbf16>, vector<8x128xf32> -> vector<8x128xf32>
    %6 = arith.addf %0, %5 : vector<8x128xf32>
    %c0_8 = arith.constant 0 : index
    %c0_9 = arith.constant 0 : index
    %c0_10 = arith.constant 0 : index
    %c1 = arith.constant 1 : index
    %c0_11 = arith.constant 0 : index
    %7 = vector.load %arg2[%c0_8, %c0_9, %c0_10, %c1, %c0_11] : memref<1x1x2x9x256xbf16, #tpu.memory_space<vmem>>, vector<1x1x1x8x256xbf16>
    %8 = vector.shape_cast %7 : vector<1x1x1x8x256xbf16> to vector<8x256xbf16>
    %c1_12 = arith.constant 1 : index
    %c0_13 = arith.constant 0 : index
    %c0_14 = arith.constant 0 : index
    %9 = vector.load %arg4[%c1_12, %c0_13, %c0_14] : memref<8x256x128xbf16, #tpu.memory_space<vmem>>, vector<1x256x128xbf16>
    %10 = vector.shape_cast %9 : vector<1x256x128xbf16> to vector<256x128xbf16>
    %cst_15 = arith.constant dense<0.000000e+00> : vector<8x128xf32>
    %11 = tpu.matmul %8, %10, %cst_15 {dimension_numbers = #tpu.dot_dimension_numbers<[1], [0], [0], [1], [0, 0, 1, 1], [], []>} : vector<8x256xbf16>, vector<256x128xbf16>, vector<8x128xf32> -> vector<8x128xf32>
    %12 = arith.addf %6, %11 : vector<8x128xf32>
    %c0_16 = arith.constant 0 : index
    %c0_17 = arith.constant 0 : index
    %c1_18 = arith.constant 1 : index
    %c0_19 = arith.constant 0 : index
    %c0_20 = arith.constant 0 : index
    %13 = vector.load %arg2[%c0_16, %c0_17, %c1_18, %c0_19, %c0_20] : memref<1x1x2x9x256xbf16, #tpu.memory_space<vmem>>, vector<1x1x1x8x256xbf16>
    %14 = vector.shape_cast %13 : vector<1x1x1x8x256xbf16> to vector<8x256xbf16>
    %c2 = arith.constant 2 : index
    %c0_21 = arith.constant 0 : index
    %c0_22 = arith.constant 0 : index
    %15 = vector.load %arg4[%c2, %c0_21, %c0_22] : memref<8x256x128xbf16, #tpu.memory_space<vmem>>, vector<1x256x128xbf16>
    %16 = vector.shape_cast %15 : vector<1x256x128xbf16> to vector<256x128xbf16>
    %cst_23 = arith.constant dense<0.000000e+00> : vector<8x128xf32>
    %17 = tpu.matmul %14, %16, %cst_23 {dimension_numbers = #tpu.dot_dimension_numbers<[1], [0], [0], [1], [0, 0, 1, 1], [], []>} : vector<8x256xbf16>, vector<256x128xbf16>, vector<8x128xf32> -> vector<8x128xf32>
    %18 = arith.addf %12, %17 : vector<8x128xf32>
    %c0_24 = arith.constant 0 : index
    %c0_25 = arith.constant 0 : index
    %c1_26 = arith.constant 1 : index
    %c1_27 = arith.constant 1 : index
    %c0_28 = arith.constant 0 : index
    %19 = vector.load %arg2[%c0_24, %c0_25, %c1_26, %c1_27, %c0_28] : memref<1x1x2x9x256xbf16, #tpu.memory_space<vmem>>, vector<1x1x1x8x256xbf16>
    %20 = vector.shape_cast %19 : vector<1x1x1x8x256xbf16> to vector<8x256xbf16>
    %c3 = arith.constant 3 : index
    %c0_29 = arith.constant 0 : index
    %c0_30 = arith.constant 0 : index
    %21 = vector.load %arg4[%c3, %c0_29, %c0_30] : memref<8x256x128xbf16, #tpu.memory_space<vmem>>, vector<1x256x128xbf16>
    %22 = vector.shape_cast %21 : vector<1x256x128xbf16> to vector<256x128xbf16>
    %cst_31 = arith.constant dense<0.000000e+00> : vector<8x128xf32>
    %23 = tpu.matmul %20, %22, %cst_31 {dimension_numbers = #tpu.dot_dimension_numbers<[1], [0], [0], [1], [0, 0, 1, 1], [], []>} : vector<8x256xbf16>, vector<256x128xbf16>, vector<8x128xf32> -> vector<8x128xf32>
    %24 = arith.addf %18, %23 : vector<8x128xf32>
    %c0_32 = arith.constant 0 : index
    %c0_33 = arith.constant 0 : index
    %c0_34 = arith.constant 0 : index
    %c0_35 = arith.constant 0 : index
    %c0_36 = arith.constant 0 : index
    %25 = vector.load %arg3[%c0_32, %c0_33, %c0_34, %c0_35, %c0_36] : memref<1x1x2x9x256xbf16, #tpu.memory_space<vmem>>, vector<1x1x1x8x256xbf16>
    %26 = vector.shape_cast %25 : vector<1x1x1x8x256xbf16> to vector<8x256xbf16>
    %c4 = arith.constant 4 : index
    %c0_37 = arith.constant 0 : index
    %c0_38 = arith.constant 0 : index
    %27 = vector.load %arg4[%c4, %c0_37, %c0_38] : memref<8x256x128xbf16, #tpu.memory_space<vmem>>, vector<1x256x128xbf16>
    %28 = vector.shape_cast %27 : vector<1x256x128xbf16> to vector<256x128xbf16>
    %cst_39 = arith.constant dense<0.000000e+00> : vector<8x128xf32>
    %29 = tpu.matmul %26, %28, %cst_39 {dimension_numbers = #tpu.dot_dimension_numbers<[1], [0], [0], [1], [0, 0, 1, 1], [], []>} : vector<8x256xbf16>, vector<256x128xbf16>, vector<8x128xf32> -> vector<8x128xf32>
    %30 = arith.addf %24, %29 : vector<8x128xf32>
    %c0_40 = arith.constant 0 : index
    %c0_41 = arith.constant 0 : index
    %c0_42 = arith.constant 0 : index
    %c1_43 = arith.constant 1 : index
    %c0_44 = arith.constant 0 : index
    %31 = vector.load %arg3[%c0_40, %c0_41, %c0_42, %c1_43, %c0_44] : memref<1x1x2x9x256xbf16, #tpu.memory_space<vmem>>, vector<1x1x1x8x256xbf16>
    %32 = vector.shape_cast %31 : vector<1x1x1x8x256xbf16> to vector<8x256xbf16>
    %c5 = arith.constant 5 : index
    %c0_45 = arith.constant 0 : index
    %c0_46 = arith.constant 0 : index
    %33 = vector.load %arg4[%c5, %c0_45, %c0_46] : memref<8x256x128xbf16, #tpu.memory_space<vmem>>, vector<1x256x128xbf16>
    %34 = vector.shape_cast %33 : vector<1x256x128xbf16> to vector<256x128xbf16>
    %cst_47 = arith.constant dense<0.000000e+00> : vector<8x128xf32>
    %35 = tpu.matmul %32, %34, %cst_47 {dimension_numbers = #tpu.dot_dimension_numbers<[1], [0], [0], [1], [0, 0, 1, 1], [], []>} : vector<8x256xbf16>, vector<256x128xbf16>, vector<8x128xf32> -> vector<8x128xf32>
    %36 = arith.addf %30, %35 : vector<8x128xf32>
    %c0_48 = arith.constant 0 : index
    %c0_49 = arith.constant 0 : index
    %c1_50 = arith.constant 1 : index
    %c0_51 = arith.constant 0 : index
    %c0_52 = arith.constant 0 : index
    %37 = vector.load %arg3[%c0_48, %c0_49, %c1_50, %c0_51, %c0_52] : memref<1x1x2x9x256xbf16, #tpu.memory_space<vmem>>, vector<1x1x1x8x256xbf16>
    %38 = vector.shape_cast %37 : vector<1x1x1x8x256xbf16> to vector<8x256xbf16>
    %c6 = arith.constant 6 : index
    %c0_53 = arith.constant 0 : index
    %c0_54 = arith.constant 0 : index
    %39 = vector.load %arg4[%c6, %c0_53, %c0_54] : memref<8x256x128xbf16, #tpu.memory_space<vmem>>, vector<1x256x128xbf16>
    %40 = vector.shape_cast %39 : vector<1x256x128xbf16> to vector<256x128xbf16>
    %cst_55 = arith.constant dense<0.000000e+00> : vector<8x128xf32>
    %41 = tpu.matmul %38, %40, %cst_55 {dimension_numbers = #tpu.dot_dimension_numbers<[1], [0], [0], [1], [0, 0, 1, 1], [], []>} : vector<8x256xbf16>, vector<256x128xbf16>, vector<8x128xf32> -> vector<8x128xf32>
    %42 = arith.addf %36, %41 : vector<8x128xf32>
    %c0_56 = arith.constant 0 : index
    %c0_57 = arith.constant 0 : index
    %c1_58 = arith.constant 1 : index
    %c1_59 = arith.constant 1 : index
    %c0_60 = arith.constant 0 : index
    %43 = vector.load %arg3[%c0_56, %c0_57, %c1_58, %c1_59, %c0_60] : memref<1x1x2x9x256xbf16, #tpu.memory_space<vmem>>, vector<1x1x1x8x256xbf16>
    %44 = vector.shape_cast %43 : vector<1x1x1x8x256xbf16> to vector<8x256xbf16>
    %c7 = arith.constant 7 : index
    %c0_61 = arith.constant 0 : index
    %c0_62 = arith.constant 0 : index
    %45 = vector.load %arg4[%c7, %c0_61, %c0_62] : memref<8x256x128xbf16, #tpu.memory_space<vmem>>, vector<1x256x128xbf16>
    %46 = vector.shape_cast %45 : vector<1x256x128xbf16> to vector<256x128xbf16>
    %cst_63 = arith.constant dense<0.000000e+00> : vector<8x128xf32>
    %47 = tpu.matmul %44, %46, %cst_63 {dimension_numbers = #tpu.dot_dimension_numbers<[1], [0], [0], [1], [0, 0, 1, 1], [], []>} : vector<8x256xbf16>, vector<256x128xbf16>, vector<8x128xf32> -> vector<8x128xf32>
    %48 = arith.addf %42, %47 : vector<8x128xf32>
    %c0_64 = arith.constant 0 : index
    %c0_65 = arith.constant 0 : index
    %49 = vector.load %arg5[%c0_64, %c0_65] : memref<1x128xf32, #tpu.memory_space<vmem>>, vector<1x128xf32>
    %50 = vector.broadcast %49 : vector<1x128xf32> to vector<8x128xf32>
    %51 = arith.addf %48, %50 : vector<8x128xf32>
    %cst_66 = arith.constant 0.000000e+00 : f32
    %52 = vector.broadcast %cst_66 : f32 to vector<8x128xf32>
    %53 = arith.cmpf ogt, %51, %52 : vector<8x128xf32>
    %cst_67 = arith.constant 2.000000e-01 : f32
    %54 = vector.broadcast %cst_67 : f32 to vector<8x128xf32>
    %55 = arith.mulf %54, %51 : vector<8x128xf32>
    %56 = arith.select %53, %51, %55 : vector<8x128xi1>, vector<8x128xf32>
    %57 = arith.truncf %56 : vector<8x128xf32> to vector<8x128xbf16>
    %c0_68 = arith.constant 0 : index
    %c0_69 = arith.constant 0 : index
    %c0_70 = arith.constant 0 : index
    %c0_71 = arith.constant 0 : index
    %58 = vector.load %arg6[%c0_68, %c0_69, %c0_70, %c0_71] : memref<1x1x8x128xbf16, #tpu.memory_space<vmem>>, vector<1x1x8x128xbf16>
    %59 = vector.shape_cast %58 : vector<1x1x8x128xbf16> to vector<8x128xbf16>
    %60 = vector.shape_cast %57 : vector<8x128xbf16> to vector<1x1x8x128xbf16>
    tpu.vector_store %arg6[%c0_68, %c0_69, %c0_70, %c0_71], %60 {strides = array<i32>} : memref<1x1x8x128xbf16, #tpu.memory_space<vmem>>, vector<1x1x8x128xbf16>,
    return
  }
  func.func @transform_0(%arg0: i32, %arg1: i32) -> (i32, i32, i32, i32, i32) {
    %c0_i32 = arith.constant 0 : i32
    %c0_i32_0 = arith.constant 0 : i32
    %c0_i32_1 = arith.constant 0 : i32
    %c0_i32_2 = arith.constant 0 : i32
    return %arg0, %arg1, %c0_i32, %c0_i32_0, %c0_i32_1 : i32, i32, i32, i32, i32
  }
  func.func @transform_1(%arg0: i32, %arg1: i32) -> (i32, i32, i32, i32, i32) {
    %c1_i32 = arith.constant 1 : i32
    %0 = arith.addi %arg1, %c1_i32 : i32
    %c0_i32 = arith.constant 0 : i32
    %c0_i32_0 = arith.constant 0 : i32
    %c0_i32_1 = arith.constant 0 : i32
    %c0_i32_2 = arith.constant 0 : i32
    return %arg0, %0, %c0_i32, %c0_i32_0, %c0_i32_1 : i32, i32, i32, i32, i32
  }
  func.func @transform_2(%arg0: i32, %arg1: i32) -> (i32, i32, i32) {
    %c0_i32 = arith.constant 0 : i32
    %c0_i32_0 = arith.constant 0 : i32
    %c0_i32_1 = arith.constant 0 : i32
    %c0_i32_2 = arith.constant 0 : i32
    return %c0_i32, %c0_i32_0, %c0_i32_1 : i32, i32, i32
  }
  func.func @transform_3(%arg0: i32, %arg1: i32) -> (i32, i32) {
    %c0_i32 = arith.constant 0 : i32
    %c0_i32_0 = arith.constant 0 : i32
    %c0_i32_1 = arith.constant 0 : i32
    return %c0_i32, %c0_i32_0 : i32, i32
  }
  func.func @transform_4(%arg0: i32, %arg1: i32) -> (i32, i32, i32, i32) {
    %c0_i32 = arith.constant 0 : i32
    %c0_i32_0 = arith.constant 0 : i32
    %c0_i32_1 = arith.constant 0 : i32
    return %arg0, %arg1, %c0_i32, %c0_i32_0 : i32, i32, i32, i32
  }
}

module attributes {stable_mosaic.version = 11 : i64} {
  func.func @_conv_row_kernel(%arg0: i32, %arg1: i32, %arg2: memref<1x1x2x5x256xbf16, #tpu.memory_space<vmem>>, %arg3: memref<1x1x2x5x256xbf16, #tpu.memory_space<vmem>>, %arg4: memref<8x256x128xbf16, #tpu.memory_space<vmem>>, %arg5: memref<1x128xf32, #tpu.memory_space<vmem>>, %arg6: memref<1x1x4x128xbf16, #tpu.memory_space<vmem>>) attributes {dimension_semantics = [#tpu.dimension_semantics<parallel>, #tpu.dimension_semantics<parallel>], iteration_bounds = array<i64: 2, 4>, scalar_prefetch = 0 : i64, scratch_operands = 0 : i64, tpu.core_type = #tpu.core_type<tc>, window_params = [{transform_indices = @transform_0, window_bounds = array<i64: 1, 1, 2, 5, 256>}, {transform_indices = @transform_1, window_bounds = array<i64: 1, 1, 2, 5, 256>}, {pipeline_mode = #tpu.pipeline_mode<synchronous>, transform_indices = @transform_2, window_bounds = array<i64: 8, 256, 128>}, {pipeline_mode = #tpu.pipeline_mode<synchronous>, transform_indices = @transform_3, window_bounds = array<i64: 1, 128>}, {transform_indices = @transform_4, window_bounds = array<i64: 1, 1, 4, 128>}]} {
    %cst = arith.constant 0.000000e+00 : f32
    %0 = vector.broadcast %cst : f32 to vector<4x128xf32>
    %c0 = arith.constant 0 : index
    %c0_0 = arith.constant 0 : index
    %c0_1 = arith.constant 0 : index
    %c0_2 = arith.constant 0 : index
    %c0_3 = arith.constant 0 : index
    %1 = vector.load %arg2[%c0, %c0_0, %c0_1, %c0_2, %c0_3] : memref<1x1x2x5x256xbf16, #tpu.memory_space<vmem>>, vector<1x1x1x4x256xbf16>
    %2 = vector.shape_cast %1 : vector<1x1x1x4x256xbf16> to vector<4x256xbf16>
    %c0_4 = arith.constant 0 : index
    %c0_5 = arith.constant 0 : index
    %c0_6 = arith.constant 0 : index
    %3 = vector.load %arg4[%c0_4, %c0_5, %c0_6] : memref<8x256x128xbf16, #tpu.memory_space<vmem>>, vector<1x256x128xbf16>
    %4 = vector.shape_cast %3 : vector<1x256x128xbf16> to vector<256x128xbf16>
    %cst_7 = arith.constant dense<0.000000e+00> : vector<4x128xf32>
    %5 = tpu.matmul %2, %4, %cst_7 {dimension_numbers = #tpu.dot_dimension_numbers<[1], [0], [0], [1], [0, 0, 1, 1], [], []>} : vector<4x256xbf16>, vector<256x128xbf16>, vector<4x128xf32> -> vector<4x128xf32>
    %6 = arith.addf %0, %5 : vector<4x128xf32>
    %c0_8 = arith.constant 0 : index
    %c0_9 = arith.constant 0 : index
    %c0_10 = arith.constant 0 : index
    %c1 = arith.constant 1 : index
    %c0_11 = arith.constant 0 : index
    %7 = vector.load %arg2[%c0_8, %c0_9, %c0_10, %c1, %c0_11] : memref<1x1x2x5x256xbf16, #tpu.memory_space<vmem>>, vector<1x1x1x4x256xbf16>
    %8 = vector.shape_cast %7 : vector<1x1x1x4x256xbf16> to vector<4x256xbf16>
    %c1_12 = arith.constant 1 : index
    %c0_13 = arith.constant 0 : index
    %c0_14 = arith.constant 0 : index
    %9 = vector.load %arg4[%c1_12, %c0_13, %c0_14] : memref<8x256x128xbf16, #tpu.memory_space<vmem>>, vector<1x256x128xbf16>
    %10 = vector.shape_cast %9 : vector<1x256x128xbf16> to vector<256x128xbf16>
    %cst_15 = arith.constant dense<0.000000e+00> : vector<4x128xf32>
    %11 = tpu.matmul %8, %10, %cst_15 {dimension_numbers = #tpu.dot_dimension_numbers<[1], [0], [0], [1], [0, 0, 1, 1], [], []>} : vector<4x256xbf16>, vector<256x128xbf16>, vector<4x128xf32> -> vector<4x128xf32>
    %12 = arith.addf %6, %11 : vector<4x128xf32>
    %c0_16 = arith.constant 0 : index
    %c0_17 = arith.constant 0 : index
    %c1_18 = arith.constant 1 : index
    %c0_19 = arith.constant 0 : index
    %c0_20 = arith.constant 0 : index
    %13 = vector.load %arg2[%c0_16, %c0_17, %c1_18, %c0_19, %c0_20] : memref<1x1x2x5x256xbf16, #tpu.memory_space<vmem>>, vector<1x1x1x4x256xbf16>
    %14 = vector.shape_cast %13 : vector<1x1x1x4x256xbf16> to vector<4x256xbf16>
    %c2 = arith.constant 2 : index
    %c0_21 = arith.constant 0 : index
    %c0_22 = arith.constant 0 : index
    %15 = vector.load %arg4[%c2, %c0_21, %c0_22] : memref<8x256x128xbf16, #tpu.memory_space<vmem>>, vector<1x256x128xbf16>
    %16 = vector.shape_cast %15 : vector<1x256x128xbf16> to vector<256x128xbf16>
    %cst_23 = arith.constant dense<0.000000e+00> : vector<4x128xf32>
    %17 = tpu.matmul %14, %16, %cst_23 {dimension_numbers = #tpu.dot_dimension_numbers<[1], [0], [0], [1], [0, 0, 1, 1], [], []>} : vector<4x256xbf16>, vector<256x128xbf16>, vector<4x128xf32> -> vector<4x128xf32>
    %18 = arith.addf %12, %17 : vector<4x128xf32>
    %c0_24 = arith.constant 0 : index
    %c0_25 = arith.constant 0 : index
    %c1_26 = arith.constant 1 : index
    %c1_27 = arith.constant 1 : index
    %c0_28 = arith.constant 0 : index
    %19 = vector.load %arg2[%c0_24, %c0_25, %c1_26, %c1_27, %c0_28] : memref<1x1x2x5x256xbf16, #tpu.memory_space<vmem>>, vector<1x1x1x4x256xbf16>
    %20 = vector.shape_cast %19 : vector<1x1x1x4x256xbf16> to vector<4x256xbf16>
    %c3 = arith.constant 3 : index
    %c0_29 = arith.constant 0 : index
    %c0_30 = arith.constant 0 : index
    %21 = vector.load %arg4[%c3, %c0_29, %c0_30] : memref<8x256x128xbf16, #tpu.memory_space<vmem>>, vector<1x256x128xbf16>
    %22 = vector.shape_cast %21 : vector<1x256x128xbf16> to vector<256x128xbf16>
    %cst_31 = arith.constant dense<0.000000e+00> : vector<4x128xf32>
    %23 = tpu.matmul %20, %22, %cst_31 {dimension_numbers = #tpu.dot_dimension_numbers<[1], [0], [0], [1], [0, 0, 1, 1], [], []>} : vector<4x256xbf16>, vector<256x128xbf16>, vector<4x128xf32> -> vector<4x128xf32>
    %24 = arith.addf %18, %23 : vector<4x128xf32>
    %c0_32 = arith.constant 0 : index
    %c0_33 = arith.constant 0 : index
    %c0_34 = arith.constant 0 : index
    %c0_35 = arith.constant 0 : index
    %c0_36 = arith.constant 0 : index
    %25 = vector.load %arg3[%c0_32, %c0_33, %c0_34, %c0_35, %c0_36] : memref<1x1x2x5x256xbf16, #tpu.memory_space<vmem>>, vector<1x1x1x4x256xbf16>
    %26 = vector.shape_cast %25 : vector<1x1x1x4x256xbf16> to vector<4x256xbf16>
    %c4 = arith.constant 4 : index
    %c0_37 = arith.constant 0 : index
    %c0_38 = arith.constant 0 : index
    %27 = vector.load %arg4[%c4, %c0_37, %c0_38] : memref<8x256x128xbf16, #tpu.memory_space<vmem>>, vector<1x256x128xbf16>
    %28 = vector.shape_cast %27 : vector<1x256x128xbf16> to vector<256x128xbf16>
    %cst_39 = arith.constant dense<0.000000e+00> : vector<4x128xf32>
    %29 = tpu.matmul %26, %28, %cst_39 {dimension_numbers = #tpu.dot_dimension_numbers<[1], [0], [0], [1], [0, 0, 1, 1], [], []>} : vector<4x256xbf16>, vector<256x128xbf16>, vector<4x128xf32> -> vector<4x128xf32>
    %30 = arith.addf %24, %29 : vector<4x128xf32>
    %c0_40 = arith.constant 0 : index
    %c0_41 = arith.constant 0 : index
    %c0_42 = arith.constant 0 : index
    %c1_43 = arith.constant 1 : index
    %c0_44 = arith.constant 0 : index
    %31 = vector.load %arg3[%c0_40, %c0_41, %c0_42, %c1_43, %c0_44] : memref<1x1x2x5x256xbf16, #tpu.memory_space<vmem>>, vector<1x1x1x4x256xbf16>
    %32 = vector.shape_cast %31 : vector<1x1x1x4x256xbf16> to vector<4x256xbf16>
    %c5 = arith.constant 5 : index
    %c0_45 = arith.constant 0 : index
    %c0_46 = arith.constant 0 : index
    %33 = vector.load %arg4[%c5, %c0_45, %c0_46] : memref<8x256x128xbf16, #tpu.memory_space<vmem>>, vector<1x256x128xbf16>
    %34 = vector.shape_cast %33 : vector<1x256x128xbf16> to vector<256x128xbf16>
    %cst_47 = arith.constant dense<0.000000e+00> : vector<4x128xf32>
    %35 = tpu.matmul %32, %34, %cst_47 {dimension_numbers = #tpu.dot_dimension_numbers<[1], [0], [0], [1], [0, 0, 1, 1], [], []>} : vector<4x256xbf16>, vector<256x128xbf16>, vector<4x128xf32> -> vector<4x128xf32>
    %36 = arith.addf %30, %35 : vector<4x128xf32>
    %c0_48 = arith.constant 0 : index
    %c0_49 = arith.constant 0 : index
    %c1_50 = arith.constant 1 : index
    %c0_51 = arith.constant 0 : index
    %c0_52 = arith.constant 0 : index
    %37 = vector.load %arg3[%c0_48, %c0_49, %c1_50, %c0_51, %c0_52] : memref<1x1x2x5x256xbf16, #tpu.memory_space<vmem>>, vector<1x1x1x4x256xbf16>
    %38 = vector.shape_cast %37 : vector<1x1x1x4x256xbf16> to vector<4x256xbf16>
    %c6 = arith.constant 6 : index
    %c0_53 = arith.constant 0 : index
    %c0_54 = arith.constant 0 : index
    %39 = vector.load %arg4[%c6, %c0_53, %c0_54] : memref<8x256x128xbf16, #tpu.memory_space<vmem>>, vector<1x256x128xbf16>
    %40 = vector.shape_cast %39 : vector<1x256x128xbf16> to vector<256x128xbf16>
    %cst_55 = arith.constant dense<0.000000e+00> : vector<4x128xf32>
    %41 = tpu.matmul %38, %40, %cst_55 {dimension_numbers = #tpu.dot_dimension_numbers<[1], [0], [0], [1], [0, 0, 1, 1], [], []>} : vector<4x256xbf16>, vector<256x128xbf16>, vector<4x128xf32> -> vector<4x128xf32>
    %42 = arith.addf %36, %41 : vector<4x128xf32>
    %c0_56 = arith.constant 0 : index
    %c0_57 = arith.constant 0 : index
    %c1_58 = arith.constant 1 : index
    %c1_59 = arith.constant 1 : index
    %c0_60 = arith.constant 0 : index
    %43 = vector.load %arg3[%c0_56, %c0_57, %c1_58, %c1_59, %c0_60] : memref<1x1x2x5x256xbf16, #tpu.memory_space<vmem>>, vector<1x1x1x4x256xbf16>
    %44 = vector.shape_cast %43 : vector<1x1x1x4x256xbf16> to vector<4x256xbf16>
    %c7 = arith.constant 7 : index
    %c0_61 = arith.constant 0 : index
    %c0_62 = arith.constant 0 : index
    %45 = vector.load %arg4[%c7, %c0_61, %c0_62] : memref<8x256x128xbf16, #tpu.memory_space<vmem>>, vector<1x256x128xbf16>
    %46 = vector.shape_cast %45 : vector<1x256x128xbf16> to vector<256x128xbf16>
    %cst_63 = arith.constant dense<0.000000e+00> : vector<4x128xf32>
    %47 = tpu.matmul %44, %46, %cst_63 {dimension_numbers = #tpu.dot_dimension_numbers<[1], [0], [0], [1], [0, 0, 1, 1], [], []>} : vector<4x256xbf16>, vector<256x128xbf16>, vector<4x128xf32> -> vector<4x128xf32>
    %48 = arith.addf %42, %47 : vector<4x128xf32>
    %c0_64 = arith.constant 0 : index
    %c0_65 = arith.constant 0 : index
    %49 = vector.load %arg5[%c0_64, %c0_65] : memref<1x128xf32, #tpu.memory_space<vmem>>, vector<1x128xf32>
    %50 = vector.broadcast %49 : vector<1x128xf32> to vector<4x128xf32>
    %51 = arith.addf %48, %50 : vector<4x128xf32>
    %cst_66 = arith.constant 0.000000e+00 : f32
    %52 = vector.broadcast %cst_66 : f32 to vector<4x128xf32>
    %53 = arith.cmpf ogt, %51, %52 : vector<4x128xf32>
    %cst_67 = arith.constant 2.000000e-01 : f32
    %54 = vector.broadcast %cst_67 : f32 to vector<4x128xf32>
    %55 = arith.mulf %54, %51 : vector<4x128xf32>
    %56 = arith.select %53, %51, %55 : vector<4x128xi1>, vector<4x128xf32>
    %57 = arith.truncf %56 : vector<4x128xf32> to vector<4x128xbf16>
    %c0_68 = arith.constant 0 : index
    %c0_69 = arith.constant 0 : index
    %c0_70 = arith.constant 0 : index
    %c0_71 = arith.constant 0 : index
    %58 = vector.load %arg6[%c0_68, %c0_69, %c0_70, %c0_71] : memref<1x1x4x128xbf16, #tpu.memory_space<vmem>>, vector<1x1x4x128xbf16>
    %59 = vector.shape_cast %58 : vector<1x1x4x128xbf16> to vector<4x128xbf16>
    %60 = vector.shape_cast %57 : vector<4x128xbf16> to vector<1x1x4x128xbf16>
    tpu.vector_store %arg6[%c0_68, %c0_69, %c0_70, %c0_71], %60 {strides = array<i32>} : memref<1x1x4x128xbf16, #tpu.memory_space<vmem>>, vector<1x1x4x128xbf16>,
    return
  }
  func.func @transform_0(%arg0: i32, %arg1: i32) -> (i32, i32, i32, i32, i32) {
    %c0_i32 = arith.constant 0 : i32
    %c0_i32_0 = arith.constant 0 : i32
    %c0_i32_1 = arith.constant 0 : i32
    %c0_i32_2 = arith.constant 0 : i32
    return %arg0, %arg1, %c0_i32, %c0_i32_0, %c0_i32_1 : i32, i32, i32, i32, i32
  }
  func.func @transform_1(%arg0: i32, %arg1: i32) -> (i32, i32, i32, i32, i32) {
    %c1_i32 = arith.constant 1 : i32
    %0 = arith.addi %arg1, %c1_i32 : i32
    %c0_i32 = arith.constant 0 : i32
    %c0_i32_0 = arith.constant 0 : i32
    %c0_i32_1 = arith.constant 0 : i32
    %c0_i32_2 = arith.constant 0 : i32
    return %arg0, %0, %c0_i32, %c0_i32_0, %c0_i32_1 : i32, i32, i32, i32, i32
  }
  func.func @transform_2(%arg0: i32, %arg1: i32) -> (i32, i32, i32) {
    %c0_i32 = arith.constant 0 : i32
    %c0_i32_0 = arith.constant 0 : i32
    %c0_i32_1 = arith.constant 0 : i32
    %c0_i32_2 = arith.constant 0 : i32
    return %c0_i32, %c0_i32_0, %c0_i32_1 : i32, i32, i32
  }
  func.func @transform_3(%arg0: i32, %arg1: i32) -> (i32, i32) {
    %c0_i32 = arith.constant 0 : i32
    %c0_i32_0 = arith.constant 0 : i32
    %c0_i32_1 = arith.constant 0 : i32
    return %c0_i32, %c0_i32_0 : i32, i32
  }
  func.func @transform_4(%arg0: i32, %arg1: i32) -> (i32, i32, i32, i32) {
    %c0_i32 = arith.constant 0 : i32
    %c0_i32_0 = arith.constant 0 : i32
    %c0_i32_1 = arith.constant 0 : i32
    return %arg0, %arg1, %c0_i32, %c0_i32_0 : i32, i32, i32, i32
  }
}

module attributes {stable_mosaic.version = 11 : i64} {
  func.func @_conv_row_kernel(%arg0: i32, %arg1: i32, %arg2: memref<1x1x2x3x256xbf16, #tpu.memory_space<vmem>>, %arg3: memref<1x1x2x3x256xbf16, #tpu.memory_space<vmem>>, %arg4: memref<8x256x128xbf16, #tpu.memory_space<vmem>>, %arg5: memref<1x128xf32, #tpu.memory_space<vmem>>, %arg6: memref<1x1x2x128xbf16, #tpu.memory_space<vmem>>) attributes {dimension_semantics = [#tpu.dimension_semantics<parallel>, #tpu.dimension_semantics<parallel>], iteration_bounds = array<i64: 2, 2>, scalar_prefetch = 0 : i64, scratch_operands = 0 : i64, tpu.core_type = #tpu.core_type<tc>, window_params = [{transform_indices = @transform_0, window_bounds = array<i64: 1, 1, 2, 3, 256>}, {transform_indices = @transform_1, window_bounds = array<i64: 1, 1, 2, 3, 256>}, {pipeline_mode = #tpu.pipeline_mode<synchronous>, transform_indices = @transform_2, window_bounds = array<i64: 8, 256, 128>}, {pipeline_mode = #tpu.pipeline_mode<synchronous>, transform_indices = @transform_3, window_bounds = array<i64: 1, 128>}, {transform_indices = @transform_4, window_bounds = array<i64: 1, 1, 2, 128>}]} {
    %cst = arith.constant 0.000000e+00 : f32
    %0 = vector.broadcast %cst : f32 to vector<2x128xf32>
    %c0 = arith.constant 0 : index
    %c0_0 = arith.constant 0 : index
    %c0_1 = arith.constant 0 : index
    %c0_2 = arith.constant 0 : index
    %c0_3 = arith.constant 0 : index
    %1 = vector.load %arg2[%c0, %c0_0, %c0_1, %c0_2, %c0_3] : memref<1x1x2x3x256xbf16, #tpu.memory_space<vmem>>, vector<1x1x1x2x256xbf16>
    %2 = vector.shape_cast %1 : vector<1x1x1x2x256xbf16> to vector<2x256xbf16>
    %c0_4 = arith.constant 0 : index
    %c0_5 = arith.constant 0 : index
    %c0_6 = arith.constant 0 : index
    %3 = vector.load %arg4[%c0_4, %c0_5, %c0_6] : memref<8x256x128xbf16, #tpu.memory_space<vmem>>, vector<1x256x128xbf16>
    %4 = vector.shape_cast %3 : vector<1x256x128xbf16> to vector<256x128xbf16>
    %cst_7 = arith.constant dense<0.000000e+00> : vector<2x128xf32>
    %5 = tpu.matmul %2, %4, %cst_7 {dimension_numbers = #tpu.dot_dimension_numbers<[1], [0], [0], [1], [0, 0, 1, 1], [], []>} : vector<2x256xbf16>, vector<256x128xbf16>, vector<2x128xf32> -> vector<2x128xf32>
    %6 = arith.addf %0, %5 : vector<2x128xf32>
    %c0_8 = arith.constant 0 : index
    %c0_9 = arith.constant 0 : index
    %c0_10 = arith.constant 0 : index
    %c1 = arith.constant 1 : index
    %c0_11 = arith.constant 0 : index
    %7 = vector.load %arg2[%c0_8, %c0_9, %c0_10, %c1, %c0_11] : memref<1x1x2x3x256xbf16, #tpu.memory_space<vmem>>, vector<1x1x1x2x256xbf16>
    %8 = vector.shape_cast %7 : vector<1x1x1x2x256xbf16> to vector<2x256xbf16>
    %c1_12 = arith.constant 1 : index
    %c0_13 = arith.constant 0 : index
    %c0_14 = arith.constant 0 : index
    %9 = vector.load %arg4[%c1_12, %c0_13, %c0_14] : memref<8x256x128xbf16, #tpu.memory_space<vmem>>, vector<1x256x128xbf16>
    %10 = vector.shape_cast %9 : vector<1x256x128xbf16> to vector<256x128xbf16>
    %cst_15 = arith.constant dense<0.000000e+00> : vector<2x128xf32>
    %11 = tpu.matmul %8, %10, %cst_15 {dimension_numbers = #tpu.dot_dimension_numbers<[1], [0], [0], [1], [0, 0, 1, 1], [], []>} : vector<2x256xbf16>, vector<256x128xbf16>, vector<2x128xf32> -> vector<2x128xf32>
    %12 = arith.addf %6, %11 : vector<2x128xf32>
    %c0_16 = arith.constant 0 : index
    %c0_17 = arith.constant 0 : index
    %c1_18 = arith.constant 1 : index
    %c0_19 = arith.constant 0 : index
    %c0_20 = arith.constant 0 : index
    %13 = vector.load %arg2[%c0_16, %c0_17, %c1_18, %c0_19, %c0_20] : memref<1x1x2x3x256xbf16, #tpu.memory_space<vmem>>, vector<1x1x1x2x256xbf16>
    %14 = vector.shape_cast %13 : vector<1x1x1x2x256xbf16> to vector<2x256xbf16>
    %c2 = arith.constant 2 : index
    %c0_21 = arith.constant 0 : index
    %c0_22 = arith.constant 0 : index
    %15 = vector.load %arg4[%c2, %c0_21, %c0_22] : memref<8x256x128xbf16, #tpu.memory_space<vmem>>, vector<1x256x128xbf16>
    %16 = vector.shape_cast %15 : vector<1x256x128xbf16> to vector<256x128xbf16>
    %cst_23 = arith.constant dense<0.000000e+00> : vector<2x128xf32>
    %17 = tpu.matmul %14, %16, %cst_23 {dimension_numbers = #tpu.dot_dimension_numbers<[1], [0], [0], [1], [0, 0, 1, 1], [], []>} : vector<2x256xbf16>, vector<256x128xbf16>, vector<2x128xf32> -> vector<2x128xf32>
    %18 = arith.addf %12, %17 : vector<2x128xf32>
    %c0_24 = arith.constant 0 : index
    %c0_25 = arith.constant 0 : index
    %c1_26 = arith.constant 1 : index
    %c1_27 = arith.constant 1 : index
    %c0_28 = arith.constant 0 : index
    %19 = vector.load %arg2[%c0_24, %c0_25, %c1_26, %c1_27, %c0_28] : memref<1x1x2x3x256xbf16, #tpu.memory_space<vmem>>, vector<1x1x1x2x256xbf16>
    %20 = vector.shape_cast %19 : vector<1x1x1x2x256xbf16> to vector<2x256xbf16>
    %c3 = arith.constant 3 : index
    %c0_29 = arith.constant 0 : index
    %c0_30 = arith.constant 0 : index
    %21 = vector.load %arg4[%c3, %c0_29, %c0_30] : memref<8x256x128xbf16, #tpu.memory_space<vmem>>, vector<1x256x128xbf16>
    %22 = vector.shape_cast %21 : vector<1x256x128xbf16> to vector<256x128xbf16>
    %cst_31 = arith.constant dense<0.000000e+00> : vector<2x128xf32>
    %23 = tpu.matmul %20, %22, %cst_31 {dimension_numbers = #tpu.dot_dimension_numbers<[1], [0], [0], [1], [0, 0, 1, 1], [], []>} : vector<2x256xbf16>, vector<256x128xbf16>, vector<2x128xf32> -> vector<2x128xf32>
    %24 = arith.addf %18, %23 : vector<2x128xf32>
    %c0_32 = arith.constant 0 : index
    %c0_33 = arith.constant 0 : index
    %c0_34 = arith.constant 0 : index
    %c0_35 = arith.constant 0 : index
    %c0_36 = arith.constant 0 : index
    %25 = vector.load %arg3[%c0_32, %c0_33, %c0_34, %c0_35, %c0_36] : memref<1x1x2x3x256xbf16, #tpu.memory_space<vmem>>, vector<1x1x1x2x256xbf16>
    %26 = vector.shape_cast %25 : vector<1x1x1x2x256xbf16> to vector<2x256xbf16>
    %c4 = arith.constant 4 : index
    %c0_37 = arith.constant 0 : index
    %c0_38 = arith.constant 0 : index
    %27 = vector.load %arg4[%c4, %c0_37, %c0_38] : memref<8x256x128xbf16, #tpu.memory_space<vmem>>, vector<1x256x128xbf16>
    %28 = vector.shape_cast %27 : vector<1x256x128xbf16> to vector<256x128xbf16>
    %cst_39 = arith.constant dense<0.000000e+00> : vector<2x128xf32>
    %29 = tpu.matmul %26, %28, %cst_39 {dimension_numbers = #tpu.dot_dimension_numbers<[1], [0], [0], [1], [0, 0, 1, 1], [], []>} : vector<2x256xbf16>, vector<256x128xbf16>, vector<2x128xf32> -> vector<2x128xf32>
    %30 = arith.addf %24, %29 : vector<2x128xf32>
    %c0_40 = arith.constant 0 : index
    %c0_41 = arith.constant 0 : index
    %c0_42 = arith.constant 0 : index
    %c1_43 = arith.constant 1 : index
    %c0_44 = arith.constant 0 : index
    %31 = vector.load %arg3[%c0_40, %c0_41, %c0_42, %c1_43, %c0_44] : memref<1x1x2x3x256xbf16, #tpu.memory_space<vmem>>, vector<1x1x1x2x256xbf16>
    %32 = vector.shape_cast %31 : vector<1x1x1x2x256xbf16> to vector<2x256xbf16>
    %c5 = arith.constant 5 : index
    %c0_45 = arith.constant 0 : index
    %c0_46 = arith.constant 0 : index
    %33 = vector.load %arg4[%c5, %c0_45, %c0_46] : memref<8x256x128xbf16, #tpu.memory_space<vmem>>, vector<1x256x128xbf16>
    %34 = vector.shape_cast %33 : vector<1x256x128xbf16> to vector<256x128xbf16>
    %cst_47 = arith.constant dense<0.000000e+00> : vector<2x128xf32>
    %35 = tpu.matmul %32, %34, %cst_47 {dimension_numbers = #tpu.dot_dimension_numbers<[1], [0], [0], [1], [0, 0, 1, 1], [], []>} : vector<2x256xbf16>, vector<256x128xbf16>, vector<2x128xf32> -> vector<2x128xf32>
    %36 = arith.addf %30, %35 : vector<2x128xf32>
    %c0_48 = arith.constant 0 : index
    %c0_49 = arith.constant 0 : index
    %c1_50 = arith.constant 1 : index
    %c0_51 = arith.constant 0 : index
    %c0_52 = arith.constant 0 : index
    %37 = vector.load %arg3[%c0_48, %c0_49, %c1_50, %c0_51, %c0_52] : memref<1x1x2x3x256xbf16, #tpu.memory_space<vmem>>, vector<1x1x1x2x256xbf16>
    %38 = vector.shape_cast %37 : vector<1x1x1x2x256xbf16> to vector<2x256xbf16>
    %c6 = arith.constant 6 : index
    %c0_53 = arith.constant 0 : index
    %c0_54 = arith.constant 0 : index
    %39 = vector.load %arg4[%c6, %c0_53, %c0_54] : memref<8x256x128xbf16, #tpu.memory_space<vmem>>, vector<1x256x128xbf16>
    %40 = vector.shape_cast %39 : vector<1x256x128xbf16> to vector<256x128xbf16>
    %cst_55 = arith.constant dense<0.000000e+00> : vector<2x128xf32>
    %41 = tpu.matmul %38, %40, %cst_55 {dimension_numbers = #tpu.dot_dimension_numbers<[1], [0], [0], [1], [0, 0, 1, 1], [], []>} : vector<2x256xbf16>, vector<256x128xbf16>, vector<2x128xf32> -> vector<2x128xf32>
    %42 = arith.addf %36, %41 : vector<2x128xf32>
    %c0_56 = arith.constant 0 : index
    %c0_57 = arith.constant 0 : index
    %c1_58 = arith.constant 1 : index
    %c1_59 = arith.constant 1 : index
    %c0_60 = arith.constant 0 : index
    %43 = vector.load %arg3[%c0_56, %c0_57, %c1_58, %c1_59, %c0_60] : memref<1x1x2x3x256xbf16, #tpu.memory_space<vmem>>, vector<1x1x1x2x256xbf16>
    %44 = vector.shape_cast %43 : vector<1x1x1x2x256xbf16> to vector<2x256xbf16>
    %c7 = arith.constant 7 : index
    %c0_61 = arith.constant 0 : index
    %c0_62 = arith.constant 0 : index
    %45 = vector.load %arg4[%c7, %c0_61, %c0_62] : memref<8x256x128xbf16, #tpu.memory_space<vmem>>, vector<1x256x128xbf16>
    %46 = vector.shape_cast %45 : vector<1x256x128xbf16> to vector<256x128xbf16>
    %cst_63 = arith.constant dense<0.000000e+00> : vector<2x128xf32>
    %47 = tpu.matmul %44, %46, %cst_63 {dimension_numbers = #tpu.dot_dimension_numbers<[1], [0], [0], [1], [0, 0, 1, 1], [], []>} : vector<2x256xbf16>, vector<256x128xbf16>, vector<2x128xf32> -> vector<2x128xf32>
    %48 = arith.addf %42, %47 : vector<2x128xf32>
    %c0_64 = arith.constant 0 : index
    %c0_65 = arith.constant 0 : index
    %49 = vector.load %arg5[%c0_64, %c0_65] : memref<1x128xf32, #tpu.memory_space<vmem>>, vector<1x128xf32>
    %50 = vector.broadcast %49 : vector<1x128xf32> to vector<2x128xf32>
    %51 = arith.addf %48, %50 : vector<2x128xf32>
    %cst_66 = arith.constant 0.000000e+00 : f32
    %52 = vector.broadcast %cst_66 : f32 to vector<2x128xf32>
    %53 = arith.cmpf ogt, %51, %52 : vector<2x128xf32>
    %cst_67 = arith.constant 2.000000e-01 : f32
    %54 = vector.broadcast %cst_67 : f32 to vector<2x128xf32>
    %55 = arith.mulf %54, %51 : vector<2x128xf32>
    %56 = arith.select %53, %51, %55 : vector<2x128xi1>, vector<2x128xf32>
    %57 = arith.truncf %56 : vector<2x128xf32> to vector<2x128xbf16>
    %c0_68 = arith.constant 0 : index
    %c0_69 = arith.constant 0 : index
    %c0_70 = arith.constant 0 : index
    %c0_71 = arith.constant 0 : index
    %58 = vector.load %arg6[%c0_68, %c0_69, %c0_70, %c0_71] : memref<1x1x2x128xbf16, #tpu.memory_space<vmem>>, vector<1x1x2x128xbf16>
    %59 = vector.shape_cast %58 : vector<1x1x2x128xbf16> to vector<2x128xbf16>
    %60 = vector.shape_cast %57 : vector<2x128xbf16> to vector<1x1x2x128xbf16>
    tpu.vector_store %arg6[%c0_68, %c0_69, %c0_70, %c0_71], %60 {strides = array<i32>} : memref<1x1x2x128xbf16, #tpu.memory_space<vmem>>, vector<1x1x2x128xbf16>,
    return
  }
  func.func @transform_0(%arg0: i32, %arg1: i32) -> (i32, i32, i32, i32, i32) {
    %c0_i32 = arith.constant 0 : i32
    %c0_i32_0 = arith.constant 0 : i32
    %c0_i32_1 = arith.constant 0 : i32
    %c0_i32_2 = arith.constant 0 : i32
    return %arg0, %arg1, %c0_i32, %c0_i32_0, %c0_i32_1 : i32, i32, i32, i32, i32
  }
  func.func @transform_1(%arg0: i32, %arg1: i32) -> (i32, i32, i32, i32, i32) {
    %c1_i32 = arith.constant 1 : i32
    %0 = arith.addi %arg1, %c1_i32 : i32
    %c0_i32 = arith.constant 0 : i32
    %c0_i32_0 = arith.constant 0 : i32
    %c0_i32_1 = arith.constant 0 : i32
    %c0_i32_2 = arith.constant 0 : i32
    return %arg0, %0, %c0_i32, %c0_i32_0, %c0_i32_1 : i32, i32, i32, i32, i32
  }
  func.func @transform_2(%arg0: i32, %arg1: i32) -> (i32, i32, i32) {
    %c0_i32 = arith.constant 0 : i32
    %c0_i32_0 = arith.constant 0 : i32
    %c0_i32_1 = arith.constant 0 : i32
    %c0_i32_2 = arith.constant 0 : i32
    return %c0_i32, %c0_i32_0, %c0_i32_1 : i32, i32, i32
  }
  func.func @transform_3(%arg0: i32, %arg1: i32) -> (i32, i32) {
    %c0_i32 = arith.constant 0 : i32
    %c0_i32_0 = arith.constant 0 : i32
    %c0_i32_1 = arith.constant 0 : i32
    return %c0_i32, %c0_i32_0 : i32, i32
  }
  func.func @transform_4(%arg0: i32, %arg1: i32) -> (i32, i32, i32, i32) {
    %c0_i32 = arith.constant 0 : i32
    %c0_i32_0 = arith.constant 0 : i32
    %c0_i32_1 = arith.constant 0 : i32
    return %arg0, %arg1, %c0_i32, %c0_i32_0 : i32, i32, i32, i32
  }
}

module attributes {stable_mosaic.version = 11 : i64} {
  func.func @_conv_row_kernel(%arg0: i32, %arg1: i32, %arg2: memref<1x1x2x2x256xbf16, #tpu.memory_space<vmem>>, %arg3: memref<1x1x2x2x256xbf16, #tpu.memory_space<vmem>>, %arg4: memref<8x256x128xbf16, #tpu.memory_space<vmem>>, %arg5: memref<1x128xf32, #tpu.memory_space<vmem>>, %arg6: memref<1x1x1x128xbf16, #tpu.memory_space<vmem>>) attributes {dimension_semantics = [#tpu.dimension_semantics<parallel>, #tpu.dimension_semantics<parallel>], iteration_bounds = array<i64: 2, 1>, scalar_prefetch = 0 : i64, scratch_operands = 0 : i64, tpu.core_type = #tpu.core_type<tc>, window_params = [{transform_indices = @transform_0, window_bounds = array<i64: 1, 1, 2, 2, 256>}, {transform_indices = @transform_1, window_bounds = array<i64: 1, 1, 2, 2, 256>}, {pipeline_mode = #tpu.pipeline_mode<synchronous>, transform_indices = @transform_2, window_bounds = array<i64: 8, 256, 128>}, {pipeline_mode = #tpu.pipeline_mode<synchronous>, transform_indices = @transform_3, window_bounds = array<i64: 1, 128>}, {transform_indices = @transform_4, window_bounds = array<i64: 1, 1, 1, 128>}]} {
    %cst = arith.constant 0.000000e+00 : f32
    %0 = vector.broadcast %cst : f32 to vector<1x128xf32>
    %c0 = arith.constant 0 : index
    %c0_0 = arith.constant 0 : index
    %c0_1 = arith.constant 0 : index
    %c0_2 = arith.constant 0 : index
    %c0_3 = arith.constant 0 : index
    %1 = vector.load %arg2[%c0, %c0_0, %c0_1, %c0_2, %c0_3] : memref<1x1x2x2x256xbf16, #tpu.memory_space<vmem>>, vector<1x1x1x1x256xbf16>
    %2 = vector.shape_cast %1 : vector<1x1x1x1x256xbf16> to vector<1x256xbf16>
    %c0_4 = arith.constant 0 : index
    %c0_5 = arith.constant 0 : index
    %c0_6 = arith.constant 0 : index
    %3 = vector.load %arg4[%c0_4, %c0_5, %c0_6] : memref<8x256x128xbf16, #tpu.memory_space<vmem>>, vector<1x256x128xbf16>
    %4 = vector.shape_cast %3 : vector<1x256x128xbf16> to vector<256x128xbf16>
    %cst_7 = arith.constant dense<0.000000e+00> : vector<1x128xf32>
    %5 = tpu.matmul %2, %4, %cst_7 {dimension_numbers = #tpu.dot_dimension_numbers<[1], [0], [0], [1], [0, 0, 1, 1], [], []>} : vector<1x256xbf16>, vector<256x128xbf16>, vector<1x128xf32> -> vector<1x128xf32>
    %6 = arith.addf %0, %5 : vector<1x128xf32>
    %c0_8 = arith.constant 0 : index
    %c0_9 = arith.constant 0 : index
    %c0_10 = arith.constant 0 : index
    %c1 = arith.constant 1 : index
    %c0_11 = arith.constant 0 : index
    %7 = vector.load %arg2[%c0_8, %c0_9, %c0_10, %c1, %c0_11] : memref<1x1x2x2x256xbf16, #tpu.memory_space<vmem>>, vector<1x1x1x1x256xbf16>
    %8 = vector.shape_cast %7 : vector<1x1x1x1x256xbf16> to vector<1x256xbf16>
    %c1_12 = arith.constant 1 : index
    %c0_13 = arith.constant 0 : index
    %c0_14 = arith.constant 0 : index
    %9 = vector.load %arg4[%c1_12, %c0_13, %c0_14] : memref<8x256x128xbf16, #tpu.memory_space<vmem>>, vector<1x256x128xbf16>
    %10 = vector.shape_cast %9 : vector<1x256x128xbf16> to vector<256x128xbf16>
    %cst_15 = arith.constant dense<0.000000e+00> : vector<1x128xf32>
    %11 = tpu.matmul %8, %10, %cst_15 {dimension_numbers = #tpu.dot_dimension_numbers<[1], [0], [0], [1], [0, 0, 1, 1], [], []>} : vector<1x256xbf16>, vector<256x128xbf16>, vector<1x128xf32> -> vector<1x128xf32>
    %12 = arith.addf %6, %11 : vector<1x128xf32>
    %c0_16 = arith.constant 0 : index
    %c0_17 = arith.constant 0 : index
    %c1_18 = arith.constant 1 : index
    %c0_19 = arith.constant 0 : index
    %c0_20 = arith.constant 0 : index
    %13 = vector.load %arg2[%c0_16, %c0_17, %c1_18, %c0_19, %c0_20] : memref<1x1x2x2x256xbf16, #tpu.memory_space<vmem>>, vector<1x1x1x1x256xbf16>
    %14 = vector.shape_cast %13 : vector<1x1x1x1x256xbf16> to vector<1x256xbf16>
    %c2 = arith.constant 2 : index
    %c0_21 = arith.constant 0 : index
    %c0_22 = arith.constant 0 : index
    %15 = vector.load %arg4[%c2, %c0_21, %c0_22] : memref<8x256x128xbf16, #tpu.memory_space<vmem>>, vector<1x256x128xbf16>
    %16 = vector.shape_cast %15 : vector<1x256x128xbf16> to vector<256x128xbf16>
    %cst_23 = arith.constant dense<0.000000e+00> : vector<1x128xf32>
    %17 = tpu.matmul %14, %16, %cst_23 {dimension_numbers = #tpu.dot_dimension_numbers<[1], [0], [0], [1], [0, 0, 1, 1], [], []>} : vector<1x256xbf16>, vector<256x128xbf16>, vector<1x128xf32> -> vector<1x128xf32>
    %18 = arith.addf %12, %17 : vector<1x128xf32>
    %c0_24 = arith.constant 0 : index
    %c0_25 = arith.constant 0 : index
    %c1_26 = arith.constant 1 : index
    %c1_27 = arith.constant 1 : index
    %c0_28 = arith.constant 0 : index
    %19 = vector.load %arg2[%c0_24, %c0_25, %c1_26, %c1_27, %c0_28] : memref<1x1x2x2x256xbf16, #tpu.memory_space<vmem>>, vector<1x1x1x1x256xbf16>
    %20 = vector.shape_cast %19 : vector<1x1x1x1x256xbf16> to vector<1x256xbf16>
    %c3 = arith.constant 3 : index
    %c0_29 = arith.constant 0 : index
    %c0_30 = arith.constant 0 : index
    %21 = vector.load %arg4[%c3, %c0_29, %c0_30] : memref<8x256x128xbf16, #tpu.memory_space<vmem>>, vector<1x256x128xbf16>
    %22 = vector.shape_cast %21 : vector<1x256x128xbf16> to vector<256x128xbf16>
    %cst_31 = arith.constant dense<0.000000e+00> : vector<1x128xf32>
    %23 = tpu.matmul %20, %22, %cst_31 {dimension_numbers = #tpu.dot_dimension_numbers<[1], [0], [0], [1], [0, 0, 1, 1], [], []>} : vector<1x256xbf16>, vector<256x128xbf16>, vector<1x128xf32> -> vector<1x128xf32>
    %24 = arith.addf %18, %23 : vector<1x128xf32>
    %c0_32 = arith.constant 0 : index
    %c0_33 = arith.constant 0 : index
    %c0_34 = arith.constant 0 : index
    %c0_35 = arith.constant 0 : index
    %c0_36 = arith.constant 0 : index
    %25 = vector.load %arg3[%c0_32, %c0_33, %c0_34, %c0_35, %c0_36] : memref<1x1x2x2x256xbf16, #tpu.memory_space<vmem>>, vector<1x1x1x1x256xbf16>
    %26 = vector.shape_cast %25 : vector<1x1x1x1x256xbf16> to vector<1x256xbf16>
    %c4 = arith.constant 4 : index
    %c0_37 = arith.constant 0 : index
    %c0_38 = arith.constant 0 : index
    %27 = vector.load %arg4[%c4, %c0_37, %c0_38] : memref<8x256x128xbf16, #tpu.memory_space<vmem>>, vector<1x256x128xbf16>
    %28 = vector.shape_cast %27 : vector<1x256x128xbf16> to vector<256x128xbf16>
    %cst_39 = arith.constant dense<0.000000e+00> : vector<1x128xf32>
    %29 = tpu.matmul %26, %28, %cst_39 {dimension_numbers = #tpu.dot_dimension_numbers<[1], [0], [0], [1], [0, 0, 1, 1], [], []>} : vector<1x256xbf16>, vector<256x128xbf16>, vector<1x128xf32> -> vector<1x128xf32>
    %30 = arith.addf %24, %29 : vector<1x128xf32>
    %c0_40 = arith.constant 0 : index
    %c0_41 = arith.constant 0 : index
    %c0_42 = arith.constant 0 : index
    %c1_43 = arith.constant 1 : index
    %c0_44 = arith.constant 0 : index
    %31 = vector.load %arg3[%c0_40, %c0_41, %c0_42, %c1_43, %c0_44] : memref<1x1x2x2x256xbf16, #tpu.memory_space<vmem>>, vector<1x1x1x1x256xbf16>
    %32 = vector.shape_cast %31 : vector<1x1x1x1x256xbf16> to vector<1x256xbf16>
    %c5 = arith.constant 5 : index
    %c0_45 = arith.constant 0 : index
    %c0_46 = arith.constant 0 : index
    %33 = vector.load %arg4[%c5, %c0_45, %c0_46] : memref<8x256x128xbf16, #tpu.memory_space<vmem>>, vector<1x256x128xbf16>
    %34 = vector.shape_cast %33 : vector<1x256x128xbf16> to vector<256x128xbf16>
    %cst_47 = arith.constant dense<0.000000e+00> : vector<1x128xf32>
    %35 = tpu.matmul %32, %34, %cst_47 {dimension_numbers = #tpu.dot_dimension_numbers<[1], [0], [0], [1], [0, 0, 1, 1], [], []>} : vector<1x256xbf16>, vector<256x128xbf16>, vector<1x128xf32> -> vector<1x128xf32>
    %36 = arith.addf %30, %35 : vector<1x128xf32>
    %c0_48 = arith.constant 0 : index
    %c0_49 = arith.constant 0 : index
    %c1_50 = arith.constant 1 : index
    %c0_51 = arith.constant 0 : index
    %c0_52 = arith.constant 0 : index
    %37 = vector.load %arg3[%c0_48, %c0_49, %c1_50, %c0_51, %c0_52] : memref<1x1x2x2x256xbf16, #tpu.memory_space<vmem>>, vector<1x1x1x1x256xbf16>
    %38 = vector.shape_cast %37 : vector<1x1x1x1x256xbf16> to vector<1x256xbf16>
    %c6 = arith.constant 6 : index
    %c0_53 = arith.constant 0 : index
    %c0_54 = arith.constant 0 : index
    %39 = vector.load %arg4[%c6, %c0_53, %c0_54] : memref<8x256x128xbf16, #tpu.memory_space<vmem>>, vector<1x256x128xbf16>
    %40 = vector.shape_cast %39 : vector<1x256x128xbf16> to vector<256x128xbf16>
    %cst_55 = arith.constant dense<0.000000e+00> : vector<1x128xf32>
    %41 = tpu.matmul %38, %40, %cst_55 {dimension_numbers = #tpu.dot_dimension_numbers<[1], [0], [0], [1], [0, 0, 1, 1], [], []>} : vector<1x256xbf16>, vector<256x128xbf16>, vector<1x128xf32> -> vector<1x128xf32>
    %42 = arith.addf %36, %41 : vector<1x128xf32>
    %c0_56 = arith.constant 0 : index
    %c0_57 = arith.constant 0 : index
    %c1_58 = arith.constant 1 : index
    %c1_59 = arith.constant 1 : index
    %c0_60 = arith.constant 0 : index
    %43 = vector.load %arg3[%c0_56, %c0_57, %c1_58, %c1_59, %c0_60] : memref<1x1x2x2x256xbf16, #tpu.memory_space<vmem>>, vector<1x1x1x1x256xbf16>
    %44 = vector.shape_cast %43 : vector<1x1x1x1x256xbf16> to vector<1x256xbf16>
    %c7 = arith.constant 7 : index
    %c0_61 = arith.constant 0 : index
    %c0_62 = arith.constant 0 : index
    %45 = vector.load %arg4[%c7, %c0_61, %c0_62] : memref<8x256x128xbf16, #tpu.memory_space<vmem>>, vector<1x256x128xbf16>
    %46 = vector.shape_cast %45 : vector<1x256x128xbf16> to vector<256x128xbf16>
    %cst_63 = arith.constant dense<0.000000e+00> : vector<1x128xf32>
    %47 = tpu.matmul %44, %46, %cst_63 {dimension_numbers = #tpu.dot_dimension_numbers<[1], [0], [0], [1], [0, 0, 1, 1], [], []>} : vector<1x256xbf16>, vector<256x128xbf16>, vector<1x128xf32> -> vector<1x128xf32>
    %48 = arith.addf %42, %47 : vector<1x128xf32>
    %c0_64 = arith.constant 0 : index
    %c0_65 = arith.constant 0 : index
    %49 = vector.load %arg5[%c0_64, %c0_65] : memref<1x128xf32, #tpu.memory_space<vmem>>, vector<1x128xf32>
    %50 = arith.addf %48, %49 : vector<1x128xf32>
    %51 = arith.truncf %50 : vector<1x128xf32> to vector<1x128xbf16>
    %c0_66 = arith.constant 0 : index
    %c0_67 = arith.constant 0 : index
    %c0_68 = arith.constant 0 : index
    %c0_69 = arith.constant 0 : index
    %52 = vector.load %arg6[%c0_66, %c0_67, %c0_68, %c0_69] : memref<1x1x1x128xbf16, #tpu.memory_space<vmem>>, vector<1x1x1x128xbf16>
    %53 = vector.shape_cast %52 : vector<1x1x1x128xbf16> to vector<1x128xbf16>
    %54 = vector.shape_cast %51 : vector<1x128xbf16> to vector<1x1x1x128xbf16>
    tpu.vector_store %arg6[%c0_66, %c0_67, %c0_68, %c0_69], %54 {strides = array<i32>} : memref<1x1x1x128xbf16, #tpu.memory_space<vmem>>, vector<1x1x1x128xbf16>,
    return
  }
  func.func @transform_0(%arg0: i32, %arg1: i32) -> (i32, i32, i32, i32, i32) {
    %c0_i32 = arith.constant 0 : i32
    %c0_i32_0 = arith.constant 0 : i32
    %c0_i32_1 = arith.constant 0 : i32
    %c0_i32_2 = arith.constant 0 : i32
    return %arg0, %arg1, %c0_i32, %c0_i32_0, %c0_i32_1 : i32, i32, i32, i32, i32
  }
  func.func @transform_1(%arg0: i32, %arg1: i32) -> (i32, i32, i32, i32, i32) {
    %c1_i32 = arith.constant 1 : i32
    %0 = arith.addi %arg1, %c1_i32 : i32
    %c0_i32 = arith.constant 0 : i32
    %c0_i32_0 = arith.constant 0 : i32
    %c0_i32_1 = arith.constant 0 : i32
    %c0_i32_2 = arith.constant 0 : i32
    return %arg0, %0, %c0_i32, %c0_i32_0, %c0_i32_1 : i32, i32, i32, i32, i32
  }
  func.func @transform_2(%arg0: i32, %arg1: i32) -> (i32, i32, i32) {
    %c0_i32 = arith.constant 0 : i32
    %c0_i32_0 = arith.constant 0 : i32
    %c0_i32_1 = arith.constant 0 : i32
    %c0_i32_2 = arith.constant 0 : i32
    return %c0_i32, %c0_i32_0, %c0_i32_1 : i32, i32, i32
  }
  func.func @transform_3(%arg0: i32, %arg1: i32) -> (i32, i32) {
    %c0_i32 = arith.constant 0 : i32
    %c0_i32_0 = arith.constant 0 : i32
    %c0_i32_1 = arith.constant 0 : i32
    return %c0_i32, %c0_i32_0 : i32, i32
  }
  func.func @transform_4(%arg0: i32, %arg1: i32) -> (i32, i32, i32, i32) {
    %c0_i32 = arith.constant 0 : i32
    %c0_i32_0 = arith.constant 0 : i32
    %c0_i32_1 = arith.constant 0 : i32
    return %arg0, %arg1, %c0_i32, %c0_i32_0 : i32, i32, i32, i32
  }
}

</mosaic_0001>

<llo_original>
// kernel: fc_discriminator_forward.5
$region0: #{fc_discriminator_forward.5}
  #allocation0 [shape = 'u32[]', space=smem, size = 0x4, offset = 0x4, fixed_abs, tag = 'smem constant byte address 0x4 - core index']
  #allocation1 [shape = 'u32[144,128]{1,0:T(1,128)}', space=vmem, size = 0x12000, scoped, tag = 'internal scratch']
  %s0 = inlined_call_operand.vmem [shape: bf16[2,17,2,17,8], index: 0, kind: input, shape index: {}, may-alias: {0,1}]
  %s1 = inlined_call_operand.vmem [shape: bf16[2,17,2,17,8], index: 1, kind: input, shape index: {}, may-alias: {0,1}]
  %s2 = inlined_call_operand.vmem [shape: bf16[8,8,128], index: 2, kind: input, shape index: {}]
  %s3 = inlined_call_operand.vmem [shape: f32[1,128], index: 3, kind: input, shape index: {}]
  %s4 = inlined_call_operand.vmem [shape: bf16[2,16,16,128], index: 4, kind: output, shape index: {}]
  %s5 = sld [smem:[#allocation0]]
  $region49: #{fc_discriminator_forward.5} parent=0
    _
  %s7 = ssub.s32 1, %s5
  %s8 = scalar_select 0, %s7, %s5
  loop: start=0, step=1, limit=34
  $region2: #{fc_discriminator_forward.5} parent=0 // loop_pre_header
    _
  $region3: #{fc_discriminator_forward.5} parent=0 // loop_header
    %s10 = sphi 0, %s14
    %p11 = scmp.ge.s32.totalorder %s10, 34
    %s17 = sphi 0, %s29
    %s18 = sphi 0, %s25
    %s19 = sphi 0, %s17
    %s20 = sphi 0, %s18
    %s21 = sphi 0, %s19
    %s22 = sphi 0, %s20
    %s34 = sphi 0, %s36
    %s37 = sphi 0, %s34
    %s38 = sphi 0, %s37
    %s54 = sphi 0, %s38
    %s64 = sphi 0, %s66
    %s67 = sphi 0, %s64
    %s68 = sphi 0, %s67
    %s84 = sphi 0, %s68
    %s88 = sphi 0, %s88
    %s90 = sphi 0, %s88
    %s91 = sphi 0, %s90
    %s105 = sphi 0, %s91
    %s109 = sphi 0, %s109
    %s111 = sphi 0, %s109
    %s112 = sphi 0, %s111
    %s126 = sphi 0, %s112
    %s134 = sphi 0, %s136
    %s137 = sphi 0, %s134
    %s138 = sphi 0, %s137
    %s154 = sphi 0, %s138
  $region4: #{fc_discriminator_forward.5} parent=0 // loop_header_branch
    %13 = sbr.rel (%p11) target = $region8
  $region5: #{fc_discriminator_forward.5} parent=0 // loop_body
    %s15 = ssub.s32 %s10, 1
    %s16 = ssub.s32 %s10, 2
    %s23 = sadd.s32 1, %s18
    %p24 = scmp.ge.s32.totalorder %s23, 16
    %s25 = scalar_select %p24, 0, %s23
    %s26 = sadd.s32 1, %s17
    %s27 = scalar_select %p24, %s26, %s17
    %p28 = scmp.ge.s32.totalorder %s27, 2
    %s29 = scalar_select %p28, 0, %s27
    %s30 = ssub.s32 %s17, %s29
    %s31 = ssub.s32 %s18, %s25
    %s32 = sor.u32 %s30, %s31
    %p33 = scmp.eq.s32.totalorder %s32, 0
    %s35 = sadd.s32 %s34, 1
    %s36 = scalar_select %p33, %s34, %s35
    %p39 = pneg %p33
    %p40 = scmp.eq.s32.totalorder %s10, 31
    %p41 = por %p39, %p40
    %p42 = scmp.ne.s32.totalorder %s34, %s37
    %p43 = scmp.eq.s32.totalorder %s10, 0
    %p44 = por %p42, %p43
    %p45 = scmp.ne.s32.totalorder %s34, %s37
    %p46 = scmp.eq.s32.totalorder %s15, 31
    %p47 = por %p45, %p46
    %p48 = scmp.ne.s32.totalorder %s37, %s38
    %p49 = scmp.eq.s32.totalorder %s15, 0
    %p50 = por %p48, %p49
    %p51 = scmp.ne.s32.totalorder %s37, %s38
    %p52 = scmp.eq.s32.totalorder %s16, 31
    %p53 = por %p51, %p52
    %p55 = scmp.ne.s32.totalorder %s38, %s54
    %p56 = scmp.eq.s32.totalorder %s16, 0
    %p57 = por %p55, %p56
    %s58 = sadd.s32 %s18, 1
    %s59 = sadd.s32 %s25, 1
    %s60 = ssub.s32 %s17, %s29
    %s61 = ssub.s32 %s58, %s59
    %s62 = sor.u32 %s60, %s61
    %p63 = scmp.eq.s32.totalorder %s62, 0
    %s65 = sadd.s32 %s64, 1
    %s66 = scalar_select %p63, %s64, %s65
    %p69 = pneg %p63
    %p70 = scmp.eq.s32.totalorder %s10, 31
    %p71 = por %p69, %p70
    %p72 = scmp.ne.s32.totalorder %s64, %s67
    %p73 = scmp.eq.s32.totalorder %s10, 0
    %p74 = por %p72, %p73
    %p75 = scmp.ne.s32.totalorder %s64, %s67
    %p76 = scmp.eq.s32.totalorder %s15, 31
    %p77 = por %p75, %p76
    %p78 = scmp.ne.s32.totalorder %s67, %s68
    %p79 = scmp.eq.s32.totalorder %s15, 0
    %p80 = por %p78, %p79
    %p81 = scmp.ne.s32.totalorder %s67, %s68
    %p82 = scmp.eq.s32.totalorder %s16, 31
    %p83 = por %p81, %p82
    %p85 = scmp.ne.s32.totalorder %s68, %s84
    %p86 = scmp.eq.s32.totalorder %s16, 0
    %p87 = por %p85, %p86
    %s89 = sadd.s32 %s88, 1
    %p92 = scmp.eq.s32.totalorder %s10, 31
    %p93 = scmp.ne.s32.totalorder %s88, %s90
    %p94 = scmp.eq.s32.totalorder %s10, 0
    %p95 = por %p93, %p94
    %p96 = scmp.ne.s32.totalorder %s88, %s90
    %p97 = scmp.eq.s32.totalorder %s15, 31
    %p98 = por %p96, %p97
    %p99 = scmp.ne.s32.totalorder %s90, %s91
    %p100 = scmp.eq.s32.totalorder %s15, 0
    %p101 = por %p99, %p100
    %p102 = scmp.ne.s32.totalorder %s90, %s91
    %p103 = scmp.eq.s32.totalorder %s16, 31
    %p104 = por %p102, %p103
    %p106 = scmp.ne.s32.totalorder %s91, %s105
    %p107 = scmp.eq.s32.totalorder %s16, 0
    %p108 = por %p106, %p107
    %s110 = sadd.s32 %s109, 1
    %p113 = scmp.eq.s32.totalorder %s10, 31
    %p114 = scmp.ne.s32.totalorder %s109, %s111
    %p115 = scmp.eq.s32.totalorder %s10, 0
    %p116 = por %p114, %p115
    %p117 = scmp.ne.s32.totalorder %s109, %s111
    %p118 = scmp.eq.s32.totalorder %s15, 31
    %p119 = por %p117, %p118
    %p120 = scmp.ne.s32.totalorder %s111, %s112
    %p121 = scmp.eq.s32.totalorder %s15, 0
    %p122 = por %p120, %p121
    %p123 = scmp.ne.s32.totalorder %s111, %s112
    %p124 = scmp.eq.s32.totalorder %s16, 31
    %p125 = por %p123, %p124
    %p127 = scmp.ne.s32.totalorder %s112, %s126
    %p128 = scmp.eq.s32.totalorder %s16, 0
    %p129 = por %p127, %p128
    %s130 = ssub.s32 %s17, %s29
    %s131 = ssub.s32 %s18, %s25
    %s132 = sor.u32 %s130, %s131
    %p133 = scmp.eq.s32.totalorder %s132, 0
    %s135 = sadd.s32 %s134, 1
    %s136 = scalar_select %p133, %s134, %s135
    %p139 = pneg %p133
    %p140 = scmp.eq.s32.totalorder %s10, 31
    %p141 = por %p139, %p140
    %p142 = scmp.ne.s32.totalorder %s134, %s137
    %p143 = scmp.eq.s32.totalorder %s10, 0
    %p144 = por %p142, %p143
    %p145 = scmp.ne.s32.totalorder %s134, %s137
    %p146 = scmp.eq.s32.totalorder %s15, 31
    %p147 = por %p145, %p146
    %p148 = scmp.ne.s32.totalorder %s137, %s138
    %p149 = scmp.eq.s32.totalorder %s15, 0
    %p150 = por %p148, %p149
    %p151 = scmp.ne.s32.totalorder %s137, %s138
    %p152 = scmp.eq.s32.totalorder %s16, 31
    %p153 = por %p151, %p152
    %p155 = scmp.ne.s32.totalorder %s138, %s154
    %p156 = scmp.eq.s32.totalorder %s16, 0
    %p157 = por %p155, %p156
    %p158 = scmp.le.s32.totalorder 1, %s10
    %p159 = scmp.lt.s32.totalorder %s10, 33
    %p160 = pnand %p158, %p159
    %p161 = pneg %p160
    // Predicated region
    $region9: #{fc_discriminator_forward.5} parent=5 // pred_check
      _
    $region10: #{fc_discriminator_forward.5} parent=5 // pred_check_branch
      %163 = sbr.rel (%p160) target = $region12
    $region11: #{fc_discriminator_forward.5} parent=5 // pred_region
      %s164 = ssub.s32 %s10, 1
      // Predicated region
      $region13: #{fc_discriminator_forward.5} parent=11 // pred_check
        %p165 = pneg %p101
      $region14: #{fc_discriminator_forward.5} parent=11 // pred_check_branch
        %167 = sbr.rel (%p165) target = $region16
      $region15: #{fc_discriminator_forward.5} parent=11 // pred_region
        _
      $region16: #{fc_discriminator_forward.5} parent=11 // pred_fallthru
        _
      // Predicated region
      $region17: #{fc_discriminator_forward.5} parent=11 // pred_check
        %p168 = pneg %p122
      $region18: #{fc_discriminator_forward.5} parent=11 // pred_check_branch
        %170 = sbr.rel (%p168) target = $region20
      $region19: #{fc_discriminator_forward.5} parent=11 // pred_region
        _
      $region20: #{fc_discriminator_forward.5} parent=11 // pred_fallthru
        _
    $region12: #{fc_discriminator_forward.5} parent=5 // pred_fallthru
      _
    %p171 = scmp.lt.s32.totalorder %s10, 32
    // Predicated region
    $region21: #{fc_discriminator_forward.5} parent=5 // pred_check
      %p172 = pneg %p171
    $region22: #{fc_discriminator_forward.5} parent=5 // pred_check_branch
      %174 = sbr.rel (%p172) target = $region24
    $region23: #{fc_discriminator_forward.5} parent=5 // pred_region
      // Predicated region
      $region25: #{fc_discriminator_forward.5} parent=23 // pred_check
        %p175 = pneg %p44
      $region26: #{fc_discriminator_forward.5} parent=23 // pred_check_branch
        %177 = sbr.rel (%p175) target = $region28
      $region27: #{fc_discriminator_forward.5} parent=23 // pred_region
        %p178 = scmp.lt.s32.totalorder %s17, 1
        %s179 = scalar_select %p178, %s17, 1
        %p180 = scmp.lt.s32.totalorder %s18, 16
        %s181 = scalar_select %p180, %s18, 16
        %s182 = smul.addr %s181, 6
        %s183 = smul.addr %s179, 102
        %s184 = sadd.s32 %s182, %s183
        %s185 = smul.addr %s184, 4
        %s186 = scalar_lea.vmem %s0, %s185
      $region28: #{fc_discriminator_forward.5} parent=23 // pred_fallthru
        _
      // Predicated region
      $region29: #{fc_discriminator_forward.5} parent=23 // pred_check
        %p187 = pneg %p74
      $region30: #{fc_discriminator_forward.5} parent=23 // pred_check_branch
        %189 = sbr.rel (%p187) target = $region32
      $region31: #{fc_discriminator_forward.5} parent=23 // pred_region
        %s190 = sadd.s32 %s18, 1
        %p191 = scmp.lt.s32.totalorder %s17, 1
        %s192 = scalar_select %p191, %s17, 1
        %p193 = scmp.lt.s32.totalorder %s190, 16
        %s194 = scalar_select %p193, %s190, 16
        %s195 = smul.addr %s194, 6
        %s196 = smul.addr %s192, 102
        %s197 = sadd.s32 %s195, %s196
        %s198 = smul.addr %s197, 4
        %s199 = scalar_lea.vmem %s1, %s198
        %s200 = sadd.s32 %s18, 1
      $region32: #{fc_discriminator_forward.5} parent=23 // pred_fallthru
        _
    $region24: #{fc_discriminator_forward.5} parent=5 // pred_fallthru
      _
    %p201 = scmp.le.s32.totalorder 1, %s10
    %p202 = scmp.lt.s32.totalorder %s10, 33
    %p203 = pnand %p201, %p202
    %p204 = pneg %p203
    // Predicated region
    $region33: #{fc_discriminator_forward.5} parent=5 // pred_check
      _
    $region34: #{fc_discriminator_forward.5} parent=5 // pred_check_branch
      %206 = sbr.rel (%p203) target = $region36
    $region35: #{fc_discriminator_forward.5} parent=5 // pred_region
      %s207 = ssub.s32 %s10, 1
      %p208 = scmp.lt.s32.totalorder %s19, 1
      %s209 = scalar_select %p208, %s19, 1
      %p210 = scmp.lt.s32.totalorder %s20, 16
      %s211 = scalar_select %p210, %s20, 16
      %s212 = smul.addr %s211, 6
      %s213 = smul.addr %s209, 102
      %s214 = sadd.s32 %s212, %s213
      %s215 = smul.addr %s214, 4
      %s216 = scalar_lea.vmem %s0, %s215
      %p217 = pneg %p50
      %p218 = pneg %p47
      %s219 = sadd.s32 %s20, 1
      %p220 = scmp.lt.s32.totalorder %s19, 1
      %s221 = scalar_select %p220, %s19, 1
      %p222 = scmp.lt.s32.totalorder %s219, 16
      %s223 = scalar_select %p222, %s219, 16
      %s224 = smul.addr %s223, 6
      %s225 = smul.addr %s221, 102
      %s226 = sadd.s32 %s224, %s225
      %s227 = smul.addr %s226, 4
      %s228 = scalar_lea.vmem %s1, %s227
      %p229 = pneg %p80
      %p230 = pneg %p77
      %p231 = pneg %p101
      %p232 = pneg %p98
      %p233 = pneg %p122
      %p234 = pneg %p119
      %p235 = pneg %p150
      %p236 = pneg %p147
      %p237 = scmp.lt.s32.totalorder %s19, 1
      %s238 = scalar_select %p237, %s19, 1
      %p239 = scmp.lt.s32.totalorder %s20, 15
      %s240 = scalar_select %p239, %s20, 15
      %s241 = smul.addr %s240, 2
      %s242 = smul.addr %s238, 32
      %s243 = sadd.s32 %s241, %s242
      %s244 = smul.addr %s243, 4
      %s245 = scalar_lea.vmem %s4, %s244
      %p246 = scmp.lt.s32.totalorder %s19, 1
      %s247 = scalar_select %p246, %s19, 1
      %p248 = scmp.lt.s32.totalorder %s20, 16
      %s249 = scalar_select %p248, %s20, 16
      %s250 = smul.addr %s249, 6
      %s251 = smul.addr %s247, 102
      %s252 = sadd.s32 %s250, %s251
      %s253 = smul.addr %s252, 4
      %s254 = scalar_lea.vmem %s0, %s253
      %s255 = sadd.s32 %s20, 1
      %p256 = scmp.lt.s32.totalorder %s19, 1
      %s257 = scalar_select %p256, %s19, 1
      %p258 = scmp.lt.s32.totalorder %s255, 16
      %s259 = scalar_select %p258, %s255, 16
      %s260 = smul.addr %s259, 6
      %s261 = smul.addr %s257, 102
      %s262 = sadd.s32 %s260, %s261
      %s263 = smul.addr %s262, 4
      %s264 = scalar_lea.vmem %s1, %s263
      %s265 = sadd.s32 %s20, 1
      %p266 = scmp.lt.s32.totalorder %s19, 1
      %s267 = scalar_select %p266, %s19, 1
      %p268 = scmp.lt.s32.totalorder %s20, 15
      %s269 = scalar_select %p268, %s20, 15
      %s270 = smul.addr %s269, 2
      %s271 = smul.addr %s267, 32
      %s272 = sadd.s32 %s270, %s271
      %s273 = smul.addr %s272, 4
      %s274 = scalar_lea.vmem %s4, %s273
      %v276 = vld [vmem:[%s254] sm:$0xf]
      %v277 = vld [vmem:[%s254 + $0x4] sm:$0xf]
      %v278 = vld [vmem:[%s2] sm:$0xf]
      %v279 = vld [vmem:[%s254 + $0x8] sm:$0x1]
      %s280 = scalar_lea.vmem %s2, 4
      %v281 = vld [vmem:[%s280] sm:$0xf]
      %v285 = vunpack.c.l.b16 %v276
      %v286 = vunpack.c.l.b16 %v277
      %v287 = vunpack.c.l.b16 %v279
      %v288 = vpack.c.b16 %v286, %v285
      %v289 = vpack.c.b16 %v287, %v287
      %vm290 = vsmask.f32 7424
      %v292 = vshrl.u32 %v288, 16
      %v294 = vshll.u32 %v288, 16
      %v296 = vrot.slane %v294, 1
      %v297 = vor.u32 %v292, %v296
      %v299 = vshll.u32 %v289, 16
      %v301 = vrot.slane %v299, 1
      %v302 = vsel %vm290, %v297, %v301
      %vm303 = vcmask 64512
      %v305 = vsel %vm303, %v302, 0
      %vm307 = vcmask 1043456
      %v309 = vsel %vm307, %v281, 0
      %311 = vmatprep.subr.bf16.mxu0 0
      %312 = vmatpush1.bf16.msra.mxu0 %v309
      %313 = vmatprep.subr.bf16.mxu0 0
      %314 = vmatpush1.bf16.msra.mxu0 0
      %315 = vmatprep.subr.bf16.mxu0 0
      %316 = vmatpush1.bf16.msra.mxu0 0
      %317 = vmatprep.subr.bf16.mxu0 0
      %318 = vmatpush1.bf16.msra.mxu0 0
      %319 = vmatprep.subr.bf16.mxu0 0
      %320 = vmatpush1.bf16.msra.mxu0 0
      %321 = vmatprep.subr.bf16.mxu0 0
      %322 = vmatpush1.bf16.msra.mxu0 0
      %323 = vmatprep.subr.bf16.mxu0 0
      %324 = vmatpush1.bf16.msra.mxu0 0
      %325 = vmatprep.subr.bf16.mxu0 0
      %326 = vmatpush1.bf16.msra.mxu0 0
      %327 = vmatprep.subr.bf16.mxu0 0
      %328 = vmatpush1.bf16.msra.mxu0 0
      %329 = vmatprep.subr.bf16.mxu0 0
      %330 = vmatpush1.bf16.msra.mxu0 0
      %331 = vmatprep.subr.bf16.mxu0 0
      %332 = vmatpush1.bf16.msra.mxu0 0
      %333 = vmatprep.subr.bf16.mxu0 0
      %334 = vmatpush1.bf16.msra.mxu0 0
      %335 = vmatprep.subr.bf16.mxu0 0
      %336 = vmatpush1.bf16.msra.mxu0 0
      %337 = vmatprep.subr.bf16.mxu0 0
      %338 = vmatpush1.bf16.msra.mxu0 0
      %339 = vmatprep.subr.bf16.mxu0 0
      %340 = vmatpush1.bf16.msra.mxu0 0
      %341 = vmatprep.subr.bf16.mxu0 0
      %342 = vmatpush1.bf16.msra.mxu0 0
      %343 = vmatprep.mubr.bf16.mxu0 0
      %344 = vmatmul.mubr.bf16.gmra.mrb[0].mxu0 %v305
      %v345 = vpop.f32.mrb[0].mxu0
      %v346 = vadd.f32 0.0, %v345
      %v347 = vpop.f32.mrb[0].mxu0
      %v348 = vpop.f32.mrb[0].mxu0
      %v349 = vadd.f32 0.0, %v348
      %v350 = vpop.f32.mrb[0].mxu0
      %351 = vdwg.mxu0
      %v352 = vsel %vm303, %v288, 0
      %v355 = vsel %vm307, %v278, 0
      %357 = vmatprep.subr.bf16.mxu0 0
      %358 = vmatpush1.bf16.msra.mxu0 %v355
      %359 = vmatprep.subr.bf16.mxu0 0
      %360 = vmatpush1.bf16.msra.mxu0 0
      %361 = vmatprep.subr.bf16.mxu0 0
      %362 = vmatpush1.bf16.msra.mxu0 0
      %363 = vmatprep.subr.bf16.mxu0 0
      %364 = vmatpush1.bf16.msra.mxu0 0
      %365 = vmatprep.subr.bf16.mxu0 0
      %366 = vmatpush1.bf16.msra.mxu0 0
      %367 = vmatprep.subr.bf16.mxu0 0
      %368 = vmatpush1.bf16.msra.mxu0 0
      %369 = vmatprep.subr.bf16.mxu0 0
      %370 = vmatpush1.bf16.msra.mxu0 0
      %371 = vmatprep.subr.bf16.mxu0 0
      %372 = vmatpush1.bf16.msra.mxu0 0
      %373 = vmatprep.subr.bf16.mxu0 0
      %374 = vmatpush1.bf16.msra.mxu0 0
      %375 = vmatprep.subr.bf16.mxu0 0
      %376 = vmatpush1.bf16.msra.mxu0 0
      %377 = vmatprep.subr.bf16.mxu0 0
      %378 = vmatpush1.bf16.msra.mxu0 0
      %379 = vmatprep.subr.bf16.mxu0 0
      %380 = vmatpush1.bf16.msra.mxu0 0
      %381 = vmatprep.subr.bf16.mxu0 0
      %382 = vmatpush1.bf16.msra.mxu0 0
      %383 = vmatprep.subr.bf16.mxu0 0
      %384 = vmatpush1.bf16.msra.mxu0 0
      %385 = vmatprep.subr.bf16.mxu0 0
      %386 = vmatpush1.bf16.msra.mxu0 0
      %387 = vmatprep.subr.bf16.mxu0 0
      %388 = vmatpush1.bf16.msra.mxu0 0
      %389 = vmatprep.mubr.bf16.mxu0 0
      %390 = vmatmul.mubr.bf16.gmra.mrb[0].mxu0 %v352
      %v391 = vpop.f32.mrb[0].mxu0
      %v392 = vadd.f32 %v346, %v391
      %v393 = vpop.f32.mrb[0].mxu0
      %v394 = vpop.f32.mrb[0].mxu0
      %v395 = vadd.f32 %v349, %v394
      %v396 = vpop.f32.mrb[0].mxu0
      %397 = vdwg.mxu0
      %s398 = scalar_lea.vmem %s254, 12
      %v399 = vld [vmem:[%s398] sm:$0xf]
      %v400 = vld [vmem:[%s398 + $0x4] sm:$0xf]
      %s401 = scalar_lea.vmem %s2, 8
      %v402 = vld [vmem:[%s401] sm:$0xf]
      %v405 = vunpack.c.l.b16 %v399
      %v406 = vunpack.c.l.b16 %v400
      %v407 = vpack.c.b16 %v406, %v405
      %v409 = vsel %vm303, %v407, 0
      %v412 = vsel %vm307, %v402, 0
      %414 = vmatprep.subr.bf16.mxu0 0
      %415 = vmatpush1.bf16.msra.mxu0 %v412
      %416 = vmatprep.subr.bf16.mxu0 0
      %417 = vmatpush1.bf16.msra.mxu0 0
      %418 = vmatprep.subr.bf16.mxu0 0
      %419 = vmatpush1.bf16.msra.mxu0 0
      %420 = vmatprep.subr.bf16.mxu0 0
      %421 = vmatpush1.bf16.msra.mxu0 0
      %422 = vmatprep.subr.bf16.mxu0 0
      %423 = vmatpush1.bf16.msra.mxu0 0
      %424 = vmatprep.subr.bf16.mxu0 0
      %425 = vmatpush1.bf16.msra.mxu0 0
      %426 = vmatprep.subr.bf16.mxu0 0
      %427 = vmatpush1.bf16.msra.mxu0 0
      %428 = vmatprep.subr.bf16.mxu0 0
      %429 = vmatpush1.bf16.msra.mxu0 0
      %430 = vmatprep.subr.bf16.mxu0 0
      %431 = vmatpush1.bf16.msra.mxu0 0
      %432 = vmatprep.subr.bf16.mxu0 0
      %433 = vmatpush1.bf16.msra.mxu0 0
      %434 = vmatprep.subr.bf16.mxu0 0
      %435 = vmatpush1.bf16.msra.mxu0 0
      %436 = vmatprep.subr.bf16.mxu0 0
      %437 = vmatpush1.bf16.msra.mxu0 0
      %438 = vmatprep.subr.bf16.mxu0 0
      %439 = vmatpush1.bf16.msra.mxu0 0
      %440 = vmatprep.subr.bf16.mxu0 0
      %441 = vmatpush1.bf16.msra.mxu0 0
      %442 = vmatprep.subr.bf16.mxu0 0
      %443 = vmatpush1.bf16.msra.mxu0 0
      %444 = vmatprep.subr.bf16.mxu0 0
      %445 = vmatpush1.bf16.msra.mxu0 0
      %446 = vmatprep.mubr.bf16.mxu0 0
      %447 = vmatmul.mubr.bf16.gmra.mrb[0].mxu0 %v409
      %v448 = vpop.f32.mrb[0].mxu0
      %v449 = vadd.f32 0.0, %v448
      %v450 = vpop.f32.mrb[0].mxu0
      %v451 = vpop.f32.mrb[0].mxu0
      %v452 = vadd.f32 0.0, %v451
      %v453 = vpop.f32.mrb[0].mxu0
      %454 = vdwg.mxu0
      %v455 = vadd.f32 %v392, %v449
      %v456 = vadd.f32 %v395, %v452
      %v457 = vld [vmem:[%s398] sm:$0xf]
      %v458 = vld [vmem:[%s398 + $0x4] sm:$0xf]
      %v459 = vld [vmem:[%s398 + $0x8] sm:$0x1]
      %s460 = scalar_lea.vmem %s2, 12
      %v461 = vld [vmem:[%s460] sm:$0xf]
      %v465 = vunpack.c.l.b16 %v457
      %v466 = vunpack.c.l.b16 %v458
      %v467 = vunpack.c.l.b16 %v459
      %v468 = vpack.c.b16 %v466, %v465
      %v469 = vpack.c.b16 %v467, %v467
      %v471 = vshrl.u32 %v468, 16
      %v473 = vshll.u32 %v468, 16
      %v475 = vrot.slane %v473, 1
      %v476 = vor.u32 %v471, %v475
      %v478 = vshll.u32 %v469, 16
      %v480 = vrot.slane %v478, 1
      %v481 = vsel %vm290, %v476, %v480
      %v483 = vsel %vm303, %v481, 0
      %v486 = vsel %vm307, %v461, 0
      %488 = vmatprep.subr.bf16.mxu0 0
      %489 = vmatpush1.bf16.msra.mxu0 %v486
      %490 = vmatprep.subr.bf16.mxu0 0
      %491 = vmatpush1.bf16.msra.mxu0 0
      %492 = vmatprep.subr.bf16.mxu0 0
      %493 = vmatpush1.bf16.msra.mxu0 0
      %494 = vmatprep.subr.bf16.mxu0 0
      %495 = vmatpush1.bf16.msra.mxu0 0
      %496 = vmatprep.subr.bf16.mxu0 0
      %497 = vmatpush1.bf16.msra.mxu0 0
      %498 = vmatprep.subr.bf16.mxu0 0
      %499 = vmatpush1.bf16.msra.mxu0 0
      %500 = vmatprep.subr.bf16.mxu0 0
      %501 = vmatpush1.bf16.msra.mxu0 0
      %502 = vmatprep.subr.bf16.mxu0 0
      %503 = vmatpush1.bf16.msra.mxu0 0
      %504 = vmatprep.subr.bf16.mxu0 0
      %505 = vmatpush1.bf16.msra.mxu0 0
      %506 = vmatprep.subr.bf16.mxu0 0
      %507 = vmatpush1.bf16.msra.mxu0 0
      %508 = vmatprep.subr.bf16.mxu0 0
      %509 = vmatpush1.bf16.msra.mxu0 0
      %510 = vmatprep.subr.bf16.mxu0 0
      %511 = vmatpush1.bf16.msra.mxu0 0
      %512 = vmatprep.subr.bf16.mxu0 0
      %513 = vmatpush1.bf16.msra.mxu0 0
      %514 = vmatprep.subr.bf16.mxu0 0
      %515 = vmatpush1.bf16.msra.mxu0 0
      %516 = vmatprep.subr.bf16.mxu0 0
      %517 = vmatpush1.bf16.msra.mxu0 0
      %518 = vmatprep.subr.bf16.mxu0 0
      %519 = vmatpush1.bf16.msra.mxu0 0
      %520 = vmatprep.mubr.bf16.mxu0 0
      %521 = vmatmul.mubr.bf16.gmra.mrb[0].mxu0 %v483
      %v522 = vpop.f32.mrb[0].mxu0
      %v523 = vadd.f32 0.0, %v522
      %v524 = vpop.f32.mrb[0].mxu0
      %v525 = vpop.f32.mrb[0].mxu0
      %v526 = vadd.f32 0.0, %v525
      %v527 = vpop.f32.mrb[0].mxu0
      %528 = vdwg.mxu0
      %v529 = vadd.f32 %v455, %v523
      %v530 = vadd.f32 %v456, %v526
      %v531 = vld [vmem:[%s264] sm:$0xf]
      %v532 = vld [vmem:[%s264 + $0x4] sm:$0xf]
      %s533 = scalar_lea.vmem %s2, 16
      %v534 = vld [vmem:[%s533] sm:$0xf]
      %v537 = vunpack.c.l.b16 %v531
      %v538 = vunpack.c.l.b16 %v532
      %v539 = vpack.c.b16 %v538, %v537
      %v541 = vsel %vm303, %v539, 0
      %v544 = vsel %vm307, %v534, 0
      %546 = vmatprep.subr.bf16.mxu0 0
      %547 = vmatpush1.bf16.msra.mxu0 %v544
      %548 = vmatprep.subr.bf16.mxu0 0
      %549 = vmatpush1.bf16.msra.mxu0 0
      %550 = vmatprep.subr.bf16.mxu0 0
      %551 = vmatpush1.bf16.msra.mxu0 0
      %552 = vmatprep.subr.bf16.mxu0 0
      %553 = vmatpush1.bf16.msra.mxu0 0
      %554 = vmatprep.subr.bf16.mxu0 0
      %555 = vmatpush1.bf16.msra.mxu0 0
      %556 = vmatprep.subr.bf16.mxu0 0
      %557 = vmatpush1.bf16.msra.mxu0 0
      %558 = vmatprep.subr.bf16.mxu0 0
      %559 = vmatpush1.bf16.msra.mxu0 0
      %560 = vmatprep.subr.bf16.mxu0 0
      %561 = vmatpush1.bf16.msra.mxu0 0
      %562 = vmatprep.subr.bf16.mxu0 0
      %563 = vmatpush1.bf16.msra.mxu0 0
      %564 = vmatprep.subr.bf16.mxu0 0
      %565 = vmatpush1.bf16.msra.mxu0 0
      %566 = vmatprep.subr.bf16.mxu0 0
      %567 = vmatpush1.bf16.msra.mxu0 0
      %568 = vmatprep.subr.bf16.mxu0 0
      %569 = vmatpush1.bf16.msra.mxu0 0
      %570 = vmatprep.subr.bf16.mxu0 0
      %571 = vmatpush1.bf16.msra.mxu0 0
      %572 = vmatprep.subr.bf16.mxu0 0
      %573 = vmatpush1.bf16.msra.mxu0 0
      %574 = vmatprep.subr.bf16.mxu0 0
      %575 = vmatpush1.bf16.msra.mxu0 0
      %576 = vmatprep.subr.bf16.mxu0 0
      %577 = vmatpush1.bf16.msra.mxu0 0
      %578 = vmatprep.mubr.bf16.mxu0 0
      %579 = vmatmul.mubr.bf16.gmra.mrb[0].mxu0 %v541
      %v580 = vpop.f32.mrb[0].mxu0
      %v581 = vadd.f32 0.0, %v580
      %v582 = vpop.f32.mrb[0].mxu0
      %v583 = vpop.f32.mrb[0].mxu0
      %v584 = vadd.f32 0.0, %v583
      %v585 = vpop.f32.mrb[0].mxu0
      %586 = vdwg.mxu0
      %v587 = vadd.f32 %v529, %v581
      %v588 = vadd.f32 %v530, %v584
      %v589 = vld [vmem:[%s264] sm:$0xf]
      %v590 = vld [vmem:[%s264 + $0x4] sm:$0xf]
      %v591 = vld [vmem:[%s264 + $0x8] sm:$0x1]
      %s592 = scalar_lea.vmem %s2, 20
      %v593 = vld [vmem:[%s592] sm:$0xf]
      %v597 = vunpack.c.l.b16 %v589
      %v598 = vunpack.c.l.b16 %v590
      %v599 = vunpack.c.l.b16 %v591
      %v600 = vpack.c.b16 %v598, %v597
      %v601 = vpack.c.b16 %v599, %v599
      %v603 = vshrl.u32 %v600, 16
      %v605 = vshll.u32 %v600, 16
      %v607 = vrot.slane %v605, 1
      %v608 = vor.u32 %v603, %v607
      %v610 = vshll.u32 %v601, 16
      %v612 = vrot.slane %v610, 1
      %v613 = vsel %vm290, %v608, %v612
      %v615 = vsel %vm303, %v613, 0
      %v618 = vsel %vm307, %v593, 0
      %620 = vmatprep.subr.bf16.mxu0 0
      %621 = vmatpush1.bf16.msra.mxu0 %v618
      %622 = vmatprep.subr.bf16.mxu0 0
      %623 = vmatpush1.bf16.msra.mxu0 0
      %624 = vmatprep.subr.bf16.mxu0 0
      %625 = vmatpush1.bf16.msra.mxu0 0
      %626 = vmatprep.subr.bf16.mxu0 0
      %627 = vmatpush1.bf16.msra.mxu0 0
      %628 = vmatprep.subr.bf16.mxu0 0
      %629 = vmatpush1.bf16.msra.mxu0 0
      %630 = vmatprep.subr.bf16.mxu0 0
      %631 = vmatpush1.bf16.msra.mxu0 0
      %632 = vmatprep.subr.bf16.mxu0 0
      %633 = vmatpush1.bf16.msra.mxu0 0
      %634 = vmatprep.subr.bf16.mxu0 0
      %635 = vmatpush1.bf16.msra.mxu0 0
      %636 = vmatprep.subr.bf16.mxu0 0
      %637 = vmatpush1.bf16.msra.mxu0 0
      %638 = vmatprep.subr.bf16.mxu0 0
      %639 = vmatpush1.bf16.msra.mxu0 0
      %640 = vmatprep.subr.bf16.mxu0 0
      %641 = vmatpush1.bf16.msra.mxu0 0
      %642 = vmatprep.subr.bf16.mxu0 0
      %643 = vmatpush1.bf16.msra.mxu0 0
      %644 = vmatprep.subr.bf16.mxu0 0
      %645 = vmatpush1.bf16.msra.mxu0 0
      %646 = vmatprep.subr.bf16.mxu0 0
      %647 = vmatpush1.bf16.msra.mxu0 0
      %648 = vmatprep.subr.bf16.mxu0 0
      %649 = vmatpush1.bf16.msra.mxu0 0
      %650 = vmatprep.subr.bf16.mxu0 0
      %651 = vmatpush1.bf16.msra.mxu0 0
      %652 = vmatprep.mubr.bf16.mxu0 0
      %653 = vmatmul.mubr.bf16.gmra.mrb[0].mxu0 %v615
      %v654 = vpop.f32.mrb[0].mxu0
      %v655 = vadd.f32 0.0, %v654
      %v656 = vpop.f32.mrb[0].mxu0
      %v657 = vpop.f32.mrb[0].mxu0
      %v658 = vadd.f32 0.0, %v657
      %v659 = vpop.f32.mrb[0].mxu0
      %660 = vdwg.mxu0
      %v661 = vadd.f32 %v587, %v655
      %v662 = vadd.f32 %v588, %v658
      %s663 = scalar_lea.vmem %s264, 12
      %v664 = vld [vmem:[%s663] sm:$0xf]
      %v665 = vld [vmem:[%s663 + $0x4] sm:$0xf]
      %s666 = scalar_lea.vmem %s2, 24
      %v667 = vld [vmem:[%s666] sm:$0xf]
      %v670 = vunpack.c.l.b16 %v664
      %v671 = vunpack.c.l.b16 %v665
      %v672 = vpack.c.b16 %v671, %v670
      %v674 = vsel %vm303, %v672, 0
      %v677 = vsel %vm307, %v667, 0
      %679 = vmatprep.subr.bf16.mxu0 0
      %680 = vmatpush1.bf16.msra.mxu0 %v677
      %681 = vmatprep.subr.bf16.mxu0 0
      %682 = vmatpush1.bf16.msra.mxu0 0
      %683 = vmatprep.subr.bf16.mxu0 0
      %684 = vmatpush1.bf16.msra.mxu0 0
      %685 = vmatprep.subr.bf16.mxu0 0
      %686 = vmatpush1.bf16.msra.mxu0 0
      %687 = vmatprep.subr.bf16.mxu0 0
      %688 = vmatpush1.bf16.msra.mxu0 0
      %689 = vmatprep.subr.bf16.mxu0 0
      %690 = vmatpush1.bf16.msra.mxu0 0
      %691 = vmatprep.subr.bf16.mxu0 0
      %692 = vmatpush1.bf16.msra.mxu0 0
      %693 = vmatprep.subr.bf16.mxu0 0
      %694 = vmatpush1.bf16.msra.mxu0 0
      %695 = vmatprep.subr.bf16.mxu0 0
      %696 = vmatpush1.bf16.msra.mxu0 0
      %697 = vmatprep.subr.bf16.mxu0 0
      %698 = vmatpush1.bf16.msra.mxu0 0
      %699 = vmatprep.subr.bf16.mxu0 0
      %700 = vmatpush1.bf16.msra.mxu0 0
      %701 = vmatprep.subr.bf16.mxu0 0
      %702 = vmatpush1.bf16.msra.mxu0 0
      %703 = vmatprep.subr.bf16.mxu0 0
      %704 = vmatpush1.bf16.msra.mxu0 0
      %705 = vmatprep.subr.bf16.mxu0 0
      %706 = vmatpush1.bf16.msra.mxu0 0
      %707 = vmatprep.subr.bf16.mxu0 0
      %708 = vmatpush1.bf16.msra.mxu0 0
      %709 = vmatprep.subr.bf16.mxu0 0
      %710 = vmatpush1.bf16.msra.mxu0 0
      %711 = vmatprep.mubr.bf16.mxu0 0
      %712 = vmatmul.mubr.bf16.gmra.mrb[0].mxu0 %v674
      %v713 = vpop.f32.mrb[0].mxu0
      %v714 = vadd.f32 0.0, %v713
      %v715 = vpop.f32.mrb[0].mxu0
      %v716 = vpop.f32.mrb[0].mxu0
      %v717 = vadd.f32 0.0, %v716
      %v718 = vpop.f32.mrb[0].mxu0
      %719 = vdwg.mxu0
      %v720 = vadd.f32 %v661, %v714
      %v721 = vadd.f32 %v662, %v717
      %v722 = vld [vmem:[%s663] sm:$0xf]
      %v723 = vld [vmem:[%s663 + $0x4] sm:$0xf]
      %v724 = vld [vmem:[%s663 + $0x8] sm:$0x1]
      %s725 = scalar_lea.vmem %s2, 28
      %v726 = vld [vmem:[%s725] sm:$0xf]
      %v730 = vunpack.c.l.b16 %v722
      %v731 = vunpack.c.l.b16 %v723
      %v732 = vunpack.c.l.b16 %v724
      %v733 = vpack.c.b16 %v731, %v730
      %v734 = vpack.c.b16 %v732, %v732
      %v736 = vshrl.u32 %v733, 16
      %v738 = vshll.u32 %v733, 16
      %v740 = vrot.slane %v738, 1
      %v741 = vor.u32 %v736, %v740
      %v743 = vshll.u32 %v734, 16
      %v745 = vrot.slane %v743, 1
      %v746 = vsel %vm290, %v741, %v745
      %v748 = vsel %vm303, %v746, 0
      %v751 = vsel %vm307, %v726, 0
      %753 = vmatprep.subr.bf16.mxu0 0
      %754 = vmatpush1.bf16.msra.mxu0 %v751
      %755 = vmatprep.subr.bf16.mxu0 0
      %756 = vmatpush1.bf16.msra.mxu0 0
      %757 = vmatprep.subr.bf16.mxu0 0
      %758 = vmatpush1.bf16.msra.mxu0 0
      %759 = vmatprep.subr.bf16.mxu0 0
      %760 = vmatpush1.bf16.msra.mxu0 0
      %761 = vmatprep.subr.bf16.mxu0 0
      %762 = vmatpush1.bf16.msra.mxu0 0
      %763 = vmatprep.subr.bf16.mxu0 0
      %764 = vmatpush1.bf16.msra.mxu0 0
      %765 = vmatprep.subr.bf16.mxu0 0
      %766 = vmatpush1.bf16.msra.mxu0 0
      %767 = vmatprep.subr.bf16.mxu0 0
      %768 = vmatpush1.bf16.msra.mxu0 0
      %769 = vmatprep.subr.bf16.mxu0 0
      %770 = vmatpush1.bf16.msra.mxu0 0
      %771 = vmatprep.subr.bf16.mxu0 0
      %772 = vmatpush1.bf16.msra.mxu0 0
      %773 = vmatprep.subr.bf16.mxu0 0
      %774 = vmatpush1.bf16.msra.mxu0 0
      %775 = vmatprep.subr.bf16.mxu0 0
      %776 = vmatpush1.bf16.msra.mxu0 0
      %777 = vmatprep.subr.bf16.mxu0 0
      %778 = vmatpush1.bf16.msra.mxu0 0
      %779 = vmatprep.subr.bf16.mxu0 0
      %780 = vmatpush1.bf16.msra.mxu0 0
      %781 = vmatprep.subr.bf16.mxu0 0
      %782 = vmatpush1.bf16.msra.mxu0 0
      %783 = vmatprep.subr.bf16.mxu0 0
      %784 = vmatpush1.bf16.msra.mxu0 0
      %785 = vmatprep.mubr.bf16.mxu0 0
      %786 = vmatmul.mubr.bf16.gmra.mrb[0].mxu0 %v748
      %v787 = vpop.f32.mrb[0].mxu0
      %v788 = vadd.f32 0.0, %v787
      %v789 = vpop.f32.mrb[0].mxu0
      %v790 = vpop.f32.mrb[0].mxu0
      %v791 = vadd.f32 0.0, %v790
      %v792 = vpop.f32.mrb[0].mxu0
      %793 = vdwg.mxu0
      %v794 = vadd.f32 %v720, %v788
      %v795 = vadd.f32 %v721, %v791
      %v796 = vld [vmem:[%s3] sm:$0x1]
      %v798 = vlaneseq
      %v799 = vshrl.u32 %v798, 7
      %v800 = vsub.s32 0, %v799
      %v801 = vrot.slane %v796, %v800
      %v803 = vadd.f32 %v794, %v801
      %v804 = vadd.f32 %v795, %v801
      %vm805 = vcmp.gt.f32.partialorder %v803, 0.0
      %vm806 = vcmp.gt.f32.partialorder %v804, 0.0
      %v807 = vmul.f32 %v803, 0.2
      %v808 = vmul.f32 %v804, 0.2
      %v809 = vsel %vm805, %v803, %v807
      %v810 = vsel %vm806, %v804, %v808
      %v811 = vpack.c.bf16 %v810, %v809
      %v813 = vunpack.c.l.b16 %v811
      %v814 = vunpack.c.h.b16 %v811
      %v815 = vpack.c.b16 %v813, %v813
      %v816 = vpack.c.b16 %v814, %v814
      %819 = vst [vmem:[%s274] sm:$0xf] %v815
      %820 = vst [vmem:[%s274 + $0x4] sm:$0xf] %v816
      %p821 = scmp.lt.s32.totalorder %s19, 1
      %s822 = scalar_select %p821, %s19, 1
      %p823 = scmp.lt.s32.totalorder %s20, 15
      %s824 = scalar_select %p823, %s20, 15
      %s825 = smul.addr %s824, 2
      %s826 = smul.addr %s822, 32
      %s827 = sadd.s32 %s825, %s826
      %s828 = smul.addr %s827, 4
      %s829 = scalar_lea.vmem %s4, %s828
      // Predicated region
      $region37: #{fc_discriminator_forward.5} parent=35 // pred_check
        %p830 = pneg %p147
      $region38: #{fc_discriminator_forward.5} parent=35 // pred_check_branch
        %832 = sbr.rel (%p830) target = $region40
      $region39: #{fc_discriminator_forward.5} parent=35 // pred_region
        _
      $region40: #{fc_discriminator_forward.5} parent=35 // pred_fallthru
        _
    $region36: #{fc_discriminator_forward.5} parent=5 // pred_fallthru
      _
    %p833 = scmp.le.s32.totalorder 2, %s10
    // Predicated region
    $region41: #{fc_discriminator_forward.5} parent=5 // pred_check
      %p834 = pneg %p833
    $region42: #{fc_discriminator_forward.5} parent=5 // pred_check_branch
      %836 = sbr.rel (%p834) target = $region44
    $region43: #{fc_discriminator_forward.5} parent=5 // pred_region
      %s837 = ssub.s32 %s10, 2
      // Predicated region
      $region45: #{fc_discriminator_forward.5} parent=43 // pred_check
        %p838 = pneg %p153
      $region46: #{fc_discriminator_forward.5} parent=43 // pred_check_branch
        %840 = sbr.rel (%p838) target = $region48
      $region47: #{fc_discriminator_forward.5} parent=43 // pred_region
        %p841 = scmp.lt.s32.totalorder %s21, 1
        %s842 = scalar_select %p841, %s21, 1
        %p843 = scmp.lt.s32.totalorder %s22, 15
        %s844 = scalar_select %p843, %s22, 15
        %s845 = smul.addr %s844, 2
        %s846 = smul.addr %s842, 32
        %s847 = sadd.s32 %s845, %s846
        %s848 = smul.addr %s847, 4
        %s849 = scalar_lea.vmem %s4, %s848
      $region48: #{fc_discriminator_forward.5} parent=43 // pred_fallthru
        _
    $region44: #{fc_discriminator_forward.5} parent=5 // pred_fallthru
      _
  $region6: #{fc_discriminator_forward.5} parent=0 // loop_footer
    %s14 = sadd.s32 1, %s10
  $region7: #{fc_discriminator_forward.5} parent=0 // loop_footer_branch
    %9 = sbr.rel target = $region3
  $region8: #{fc_discriminator_forward.5} parent=0 // loop_exit
    _

// kernel: fc_discriminator_forward.6
$region0: #{fc_discriminator_forward.6}
  #allocation0 [shape = 'u32[]', space=smem, size = 0x4, offset = 0x4, fixed_abs, tag = 'smem constant byte address 0x4 - core index']
  #allocation1 [shape = 'u32[144,128]{1,0:T(1,128)}', space=vmem, size = 0x12000, scoped, tag = 'internal scratch']
  %s0 = inlined_call_operand.vmem [shape: bf16[2,9,2,9,256], index: 0, kind: input, shape index: {}, may-alias: {0,1}]
  %s1 = inlined_call_operand.vmem [shape: bf16[2,9,2,9,256], index: 1, kind: input, shape index: {}, may-alias: {0,1}]
  %s2 = inlined_call_operand.vmem [shape: bf16[8,256,128], index: 2, kind: input, shape index: {}]
  %s3 = inlined_call_operand.vmem [shape: f32[1,128], index: 3, kind: input, shape index: {}]
  %s4 = inlined_call_operand.vmem [shape: bf16[2,8,8,128], index: 4, kind: output, shape index: {}]
  %s5 = sld [smem:[#allocation0]]
  $region49: #{fc_discriminator_forward.6} parent=0
    _
  %s7 = ssub.s32 1, %s5
  %s8 = scalar_select 0, %s7, %s5
  loop: start=0, step=1, limit=18
  $region2: #{fc_discriminator_forward.6} parent=0 // loop_pre_header
    _
  $region3: #{fc_discriminator_forward.6} parent=0 // loop_header
    %s10 = sphi 0, %s14
    %p11 = scmp.ge.s32.totalorder %s10, 18
    %s17 = sphi 0, %s29
    %s18 = sphi 0, %s25
    %s19 = sphi 0, %s17
    %s20 = sphi 0, %s18
    %s21 = sphi 0, %s19
    %s22 = sphi 0, %s20
    %s34 = sphi 0, %s36
    %s37 = sphi 0, %s34
    %s38 = sphi 0, %s37
    %s54 = sphi 0, %s38
    %s64 = sphi 0, %s66
    %s67 = sphi 0, %s64
    %s68 = sphi 0, %s67
    %s84 = sphi 0, %s68
    %s88 = sphi 0, %s88
    %s90 = sphi 0, %s88
    %s91 = sphi 0, %s90
    %s105 = sphi 0, %s91
    %s109 = sphi 0, %s109
    %s111 = sphi 0, %s109
    %s112 = sphi 0, %s111
    %s126 = sphi 0, %s112
    %s134 = sphi 0, %s136
    %s137 = sphi 0, %s134
    %s138 = sphi 0, %s137
    %s154 = sphi 0, %s138
  $region4: #{fc_discriminator_forward.6} parent=0 // loop_header_branch
    %13 = sbr.rel (%p11) target = $region8
  $region5: #{fc_discriminator_forward.6} parent=0 // loop_body
    %s15 = ssub.s32 %s10, 1
    %s16 = ssub.s32 %s10, 2
    %s23 = sadd.s32 1, %s18
    %p24 = scmp.ge.s32.totalorder %s23, 8
    %s25 = scalar_select %p24, 0, %s23
    %s26 = sadd.s32 1, %s17
    %s27 = scalar_select %p24, %s26, %s17
    %p28 = scmp.ge.s32.totalorder %s27, 2
    %s29 = scalar_select %p28, 0, %s27
    %s30 = ssub.s32 %s17, %s29
    %s31 = ssub.s32 %s18, %s25
    %s32 = sor.u32 %s30, %s31
    %p33 = scmp.eq.s32.totalorder %s32, 0
    %s35 = sadd.s32 %s34, 1
    %s36 = scalar_select %p33, %s34, %s35
    %p39 = pneg %p33
    %p40 = scmp.eq.s32.totalorder %s10, 15
    %p41 = por %p39, %p40
    %p42 = scmp.ne.s32.totalorder %s34, %s37
    %p43 = scmp.eq.s32.totalorder %s10, 0
    %p44 = por %p42, %p43
    %p45 = scmp.ne.s32.totalorder %s34, %s37
    %p46 = scmp.eq.s32.totalorder %s15, 15
    %p47 = por %p45, %p46
    %p48 = scmp.ne.s32.totalorder %s37, %s38
    %p49 = scmp.eq.s32.totalorder %s15, 0
    %p50 = por %p48, %p49
    %p51 = scmp.ne.s32.totalorder %s37, %s38
    %p52 = scmp.eq.s32.totalorder %s16, 15
    %p53 = por %p51, %p52
    %p55 = scmp.ne.s32.totalorder %s38, %s54
    %p56 = scmp.eq.s32.totalorder %s16, 0
    %p57 = por %p55, %p56
    %s58 = sadd.s32 %s18, 1
    %s59 = sadd.s32 %s25, 1
    %s60 = ssub.s32 %s17, %s29
    %s61 = ssub.s32 %s58, %s59
    %s62 = sor.u32 %s60, %s61
    %p63 = scmp.eq.s32.totalorder %s62, 0
    %s65 = sadd.s32 %s64, 1
    %s66 = scalar_select %p63, %s64, %s65
    %p69 = pneg %p63
    %p70 = scmp.eq.s32.totalorder %s10, 15
    %p71 = por %p69, %p70
    %p72 = scmp.ne.s32.totalorder %s64, %s67
    %p73 = scmp.eq.s32.totalorder %s10, 0
    %p74 = por %p72, %p73
    %p75 = scmp.ne.s32.totalorder %s64, %s67
    %p76 = scmp.eq.s32.totalorder %s15, 15
    %p77 = por %p75, %p76
    %p78 = scmp.ne.s32.totalorder %s67, %s68
    %p79 = scmp.eq.s32.totalorder %s15, 0
    %p80 = por %p78, %p79
    %p81 = scmp.ne.s32.totalorder %s67, %s68
    %p82 = scmp.eq.s32.totalorder %s16, 15
    %p83 = por %p81, %p82
    %p85 = scmp.ne.s32.totalorder %s68, %s84
    %p86 = scmp.eq.s32.totalorder %s16, 0
    %p87 = por %p85, %p86
    %s89 = sadd.s32 %s88, 1
    %p92 = scmp.eq.s32.totalorder %s10, 15
    %p93 = scmp.ne.s32.totalorder %s88, %s90
    %p94 = scmp.eq.s32.totalorder %s10, 0
    %p95 = por %p93, %p94
    %p96 = scmp.ne.s32.totalorder %s88, %s90
    %p97 = scmp.eq.s32.totalorder %s15, 15
    %p98 = por %p96, %p97
    %p99 = scmp.ne.s32.totalorder %s90, %s91
    %p100 = scmp.eq.s32.totalorder %s15, 0
    %p101 = por %p99, %p100
    %p102 = scmp.ne.s32.totalorder %s90, %s91
    %p103 = scmp.eq.s32.totalorder %s16, 15
    %p104 = por %p102, %p103
    %p106 = scmp.ne.s32.totalorder %s91, %s105
    %p107 = scmp.eq.s32.totalorder %s16, 0
    %p108 = por %p106, %p107
    %s110 = sadd.s32 %s109, 1
    %p113 = scmp.eq.s32.totalorder %s10, 15
    %p114 = scmp.ne.s32.totalorder %s109, %s111
    %p115 = scmp.eq.s32.totalorder %s10, 0
    %p116 = por %p114, %p115
    %p117 = scmp.ne.s32.totalorder %s109, %s111
    %p118 = scmp.eq.s32.totalorder %s15, 15
    %p119 = por %p117, %p118
    %p120 = scmp.ne.s32.totalorder %s111, %s112
    %p121 = scmp.eq.s32.totalorder %s15, 0
    %p122 = por %p120, %p121
    %p123 = scmp.ne.s32.totalorder %s111, %s112
    %p124 = scmp.eq.s32.totalorder %s16, 15
    %p125 = por %p123, %p124
    %p127 = scmp.ne.s32.totalorder %s112, %s126
    %p128 = scmp.eq.s32.totalorder %s16, 0
    %p129 = por %p127, %p128
    %s130 = ssub.s32 %s17, %s29
    %s131 = ssub.s32 %s18, %s25
    %s132 = sor.u32 %s130, %s131
    %p133 = scmp.eq.s32.totalorder %s132, 0
    %s135 = sadd.s32 %s134, 1
    %s136 = scalar_select %p133, %s134, %s135
    %p139 = pneg %p133
    %p140 = scmp.eq.s32.totalorder %s10, 15
    %p141 = por %p139, %p140
    %p142 = scmp.ne.s32.totalorder %s134, %s137
    %p143 = scmp.eq.s32.totalorder %s10, 0
    %p144 = por %p142, %p143
    %p145 = scmp.ne.s32.totalorder %s134, %s137
    %p146 = scmp.eq.s32.totalorder %s15, 15
    %p147 = por %p145, %p146
    %p148 = scmp.ne.s32.totalorder %s137, %s138
    %p149 = scmp.eq.s32.totalorder %s15, 0
    %p150 = por %p148, %p149
    %p151 = scmp.ne.s32.totalorder %s137, %s138
    %p152 = scmp.eq.s32.totalorder %s16, 15
    %p153 = por %p151, %p152
    %p155 = scmp.ne.s32.totalorder %s138, %s154
    %p156 = scmp.eq.s32.totalorder %s16, 0
    %p157 = por %p155, %p156
    %p158 = scmp.le.s32.totalorder 1, %s10
    %p159 = scmp.lt.s32.totalorder %s10, 17
    %p160 = pnand %p158, %p159
    %p161 = pneg %p160
    // Predicated region
    $region9: #{fc_discriminator_forward.6} parent=5 // pred_check
      _
    $region10: #{fc_discriminator_forward.6} parent=5 // pred_check_branch
      %163 = sbr.rel (%p160) target = $region12
    $region11: #{fc_discriminator_forward.6} parent=5 // pred_region
      %s164 = ssub.s32 %s10, 1
      // Predicated region
      $region13: #{fc_discriminator_forward.6} parent=11 // pred_check
        %p165 = pneg %p101
      $region14: #{fc_discriminator_forward.6} parent=11 // pred_check_branch
        %167 = sbr.rel (%p165) target = $region16
      $region15: #{fc_discriminator_forward.6} parent=11 // pred_region
        _
      $region16: #{fc_discriminator_forward.6} parent=11 // pred_fallthru
        _
      // Predicated region
      $region17: #{fc_discriminator_forward.6} parent=11 // pred_check
        %p168 = pneg %p122
      $region18: #{fc_discriminator_forward.6} parent=11 // pred_check_branch
        %170 = sbr.rel (%p168) target = $region20
      $region19: #{fc_discriminator_forward.6} parent=11 // pred_region
        _
      $region20: #{fc_discriminator_forward.6} parent=11 // pred_fallthru
        _
    $region12: #{fc_discriminator_forward.6} parent=5 // pred_fallthru
      _
    %p171 = scmp.lt.s32.totalorder %s10, 16
    // Predicated region
    $region21: #{fc_discriminator_forward.6} parent=5 // pred_check
      %p172 = pneg %p171
    $region22: #{fc_discriminator_forward.6} parent=5 // pred_check_branch
      %174 = sbr.rel (%p172) target = $region24
    $region23: #{fc_discriminator_forward.6} parent=5 // pred_region
      // Predicated region
      $region25: #{fc_discriminator_forward.6} parent=23 // pred_check
        %p175 = pneg %p44
      $region26: #{fc_discriminator_forward.6} parent=23 // pred_check_branch
        %177 = sbr.rel (%p175) target = $region28
      $region27: #{fc_discriminator_forward.6} parent=23 // pred_region
        %p178 = scmp.lt.s32.totalorder %s17, 1
        %s179 = scalar_select %p178, %s17, 1
        %p180 = scmp.lt.s32.totalorder %s18, 8
        %s181 = scalar_select %p180, %s18, 8
        %s182 = smul.addr %s181, 8
        %s183 = smul.addr %s179, 72
        %s184 = sadd.s32 %s182, %s183
        %s185 = smul.addr %s184, 4
        %s186 = scalar_lea.vmem %s0, %s185
      $region28: #{fc_discriminator_forward.6} parent=23 // pred_fallthru
        _
      // Predicated region
      $region29: #{fc_discriminator_forward.6} parent=23 // pred_check
        %p187 = pneg %p74
      $region30: #{fc_discriminator_forward.6} parent=23 // pred_check_branch
        %189 = sbr.rel (%p187) target = $region32
      $region31: #{fc_discriminator_forward.6} parent=23 // pred_region
        %s190 = sadd.s32 %s18, 1
        %p191 = scmp.lt.s32.totalorder %s17, 1
        %s192 = scalar_select %p191, %s17, 1
        %p193 = scmp.lt.s32.totalorder %s190, 8
        %s194 = scalar_select %p193, %s190, 8
        %s195 = smul.addr %s194, 8
        %s196 = smul.addr %s192, 72
        %s197 = sadd.s32 %s195, %s196
        %s198 = smul.addr %s197, 4
        %s199 = scalar_lea.vmem %s1, %s198
        %s200 = sadd.s32 %s18, 1
      $region32: #{fc_discriminator_forward.6} parent=23 // pred_fallthru
        _
    $region24: #{fc_discriminator_forward.6} parent=5 // pred_fallthru
      _
    %p201 = scmp.le.s32.totalorder 1, %s10
    %p202 = scmp.lt.s32.totalorder %s10, 17
    %p203 = pnand %p201, %p202
    %p204 = pneg %p203
    // Predicated region
    $region33: #{fc_discriminator_forward.6} parent=5 // pred_check
      _
    $region34: #{fc_discriminator_forward.6} parent=5 // pred_check_branch
      %206 = sbr.rel (%p203) target = $region36
    $region35: #{fc_discriminator_forward.6} parent=5 // pred_region
      %s207 = ssub.s32 %s10, 1
      %p208 = scmp.lt.s32.totalorder %s19, 1
      %s209 = scalar_select %p208, %s19, 1
      %p210 = scmp.lt.s32.totalorder %s20, 8
      %s211 = scalar_select %p210, %s20, 8
      %s212 = smul.addr %s211, 8
      %s213 = smul.addr %s209, 72
      %s214 = sadd.s32 %s212, %s213
      %s215 = smul.addr %s214, 4
      %s216 = scalar_lea.vmem %s0, %s215
      %p217 = pneg %p50
      %p218 = pneg %p47
      %s219 = sadd.s32 %s20, 1
      %p220 = scmp.lt.s32.totalorder %s19, 1
      %s221 = scalar_select %p220, %s19, 1
      %p222 = scmp.lt.s32.totalorder %s219, 8
      %s223 = scalar_select %p222, %s219, 8
      %s224 = smul.addr %s223, 8
      %s225 = smul.addr %s221, 72
      %s226 = sadd.s32 %s224, %s225
      %s227 = smul.addr %s226, 4
      %s228 = scalar_lea.vmem %s1, %s227
      %p229 = pneg %p80
      %p230 = pneg %p77
      %p231 = pneg %p101
      %p232 = pneg %p98
      %p233 = pneg %p122
      %p234 = pneg %p119
      %p235 = pneg %p150
      %p236 = pneg %p147
      %p237 = scmp.lt.s32.totalorder %s19, 1
      %s238 = scalar_select %p237, %s19, 1
      %p239 = scmp.lt.s32.totalorder %s20, 7
      %s240 = scalar_select %p239, %s20, 7
      %s241 = smul.addr %s238, 8
      %s242 = sadd.s32 %s240, %s241
      %s243 = smul.addr %s242, 4
      %s244 = scalar_lea.vmem %s4, %s243
      %p245 = scmp.lt.s32.totalorder %s19, 1
      %s246 = scalar_select %p245, %s19, 1
      %p247 = scmp.lt.s32.totalorder %s20, 8
      %s248 = scalar_select %p247, %s20, 8
      %s249 = smul.addr %s248, 8
      %s250 = smul.addr %s246, 72
      %s251 = sadd.s32 %s249, %s250
      %s252 = smul.addr %s251, 4
      %s253 = scalar_lea.vmem %s0, %s252
      %s254 = sadd.s32 %s20, 1
      %p255 = scmp.lt.s32.totalorder %s19, 1
      %s256 = scalar_select %p255, %s19, 1
      %p257 = scmp.lt.s32.totalorder %s254, 8
      %s258 = scalar_select %p257, %s254, 8
      %s259 = smul.addr %s258, 8
      %s260 = smul.addr %s256, 72
      %s261 = sadd.s32 %s259, %s260
      %s262 = smul.addr %s261, 4
      %s263 = scalar_lea.vmem %s1, %s262
      %s264 = sadd.s32 %s20, 1
      %p265 = scmp.lt.s32.totalorder %s19, 1
      %s266 = scalar_select %p265, %s19, 1
      %p267 = scmp.lt.s32.totalorder %s20, 7
      %s268 = scalar_select %p267, %s20, 7
      %s269 = smul.addr %s266, 8
      %s270 = sadd.s32 %s268, %s269
      %s271 = smul.addr %s270, 4
      %s272 = scalar_lea.vmem %s4, %s271
      %v274 = vld [vmem:[%s253] sm:$0xff]
      %v275 = vld [vmem:[%s2] sm:$0xf]
      %v276 = vld [vmem:[%s2 + $0x4] sm:$0xf]
      %v277 = vld [vmem:[%s2 + $0x8] sm:$0xf]
      %v278 = vld [vmem:[%s2 + $0xc] sm:$0xf]
      %v279 = vld [vmem:[%s2 + $0x10] sm:$0xf]
      %v280 = vld [vmem:[%s2 + $0x14] sm:$0xf]
      %v281 = vld [vmem:[%s2 + $0x18] sm:$0xf]
      %v282 = vld [vmem:[%s2 + $0x1c] sm:$0xf]
      %v283 = vld [vmem:[%s2 + $0x20] sm:$0xf]
      %v284 = vld [vmem:[%s2 + $0x24] sm:$0xf]
      %v285 = vld [vmem:[%s2 + $0x28] sm:$0xf]
      %v286 = vld [vmem:[%s2 + $0x2c] sm:$0xf]
      %v287 = vld [vmem:[%s2 + $0x30] sm:$0xf]
      %v288 = vld [vmem:[%s2 + $0x34] sm:$0xf]
      %v289 = vld [vmem:[%s2 + $0x38] sm:$0xf]
      %v290 = vld [vmem:[%s2 + $0x3c] sm:$0xf]
      %v291 = vld [vmem:[%s2 + $0x40] sm:$0xf]
      %v292 = vld [vmem:[%s2 + $0x44] sm:$0xf]
      %v293 = vld [vmem:[%s2 + $0x48] sm:$0xf]
      %v294 = vld [vmem:[%s2 + $0x4c] sm:$0xf]
      %v295 = vld [vmem:[%s2 + $0x50] sm:$0xf]
      %v296 = vld [vmem:[%s2 + $0x54] sm:$0xf]
      %v297 = vld [vmem:[%s2 + $0x58] sm:$0xf]
      %v298 = vld [vmem:[%s2 + $0x5c] sm:$0xf]
      %v299 = vld [vmem:[%s2 + $0x60] sm:$0xf]
      %v300 = vld [vmem:[%s2 + $0x64] sm:$0xf]
      %v301 = vld [vmem:[%s2 + $0x68] sm:$0xf]
      %v302 = vld [vmem:[%s2 + $0x6c] sm:$0xf]
      %v303 = vld [vmem:[%s2 + $0x70] sm:$0xf]
      %v304 = vld [vmem:[%s2 + $0x74] sm:$0xf]
      %v305 = vld [vmem:[%s2 + $0x78] sm:$0xf]
      %v306 = vld [vmem:[%s2 + $0x7c] sm:$0xf]
      %v307 = vld [vmem:[%s253 + $0x8] sm:$0x11]
      %s308 = scalar_lea.vmem %s2, 128
      %v309 = vld [vmem:[%s308] sm:$0xf]
      %v310 = vld [vmem:[%s308 + $0x4] sm:$0xf]
      %v311 = vld [vmem:[%s308 + $0x8] sm:$0xf]
      %v312 = vld [vmem:[%s308 + $0xc] sm:$0xf]
      %v313 = vld [vmem:[%s308 + $0x10] sm:$0xf]
      %v314 = vld [vmem:[%s308 + $0x14] sm:$0xf]
      %v315 = vld [vmem:[%s308 + $0x18] sm:$0xf]
      %v316 = vld [vmem:[%s308 + $0x1c] sm:$0xf]
      %v317 = vld [vmem:[%s308 + $0x20] sm:$0xf]
      %v318 = vld [vmem:[%s308 + $0x24] sm:$0xf]
      %v319 = vld [vmem:[%s308 + $0x28] sm:$0xf]
      %v320 = vld [vmem:[%s308 + $0x2c] sm:$0xf]
      %v321 = vld [vmem:[%s308 + $0x30] sm:$0xf]
      %v322 = vld [vmem:[%s308 + $0x34] sm:$0xf]
      %v323 = vld [vmem:[%s308 + $0x38] sm:$0xf]
      %v324 = vld [vmem:[%s308 + $0x3c] sm:$0xf]
      %v325 = vld [vmem:[%s308 + $0x40] sm:$0xf]
      %v326 = vld [vmem:[%s308 + $0x44] sm:$0xf]
      %v327 = vld [vmem:[%s308 + $0x48] sm:$0xf]
      %v328 = vld [vmem:[%s308 + $0x4c] sm:$0xf]
      %v329 = vld [vmem:[%s308 + $0x50] sm:$0xf]
      %v330 = vld [vmem:[%s308 + $0x54] sm:$0xf]
      %v331 = vld [vmem:[%s308 + $0x58] sm:$0xf]
      %v332 = vld [vmem:[%s308 + $0x5c] sm:$0xf]
      %v333 = vld [vmem:[%s308 + $0x60] sm:$0xf]
      %v334 = vld [vmem:[%s308 + $0x64] sm:$0xf]
      %v335 = vld [vmem:[%s308 + $0x68] sm:$0xf]
      %v336 = vld [vmem:[%s308 + $0x6c] sm:$0xf]
      %v337 = vld [vmem:[%s308 + $0x70] sm:$0xf]
      %v338 = vld [vmem:[%s308 + $0x74] sm:$0xf]
      %v339 = vld [vmem:[%s308 + $0x78] sm:$0xf]
      %v340 = vld [vmem:[%s308 + $0x7c] sm:$0xf]
      %v343 = vunpack.c.l.b16 %v274
      %v344 = vunpack.c.h.b16 %v274
      %v345 = vunpack.c.l.b16 %v307
      %v346 = vunpack.c.h.b16 %v307
      %v347 = vpack.c.b16 %v345, %v343
      %v348 = vpack.c.b16 %v346, %v344
      %v350 = vshrl.u32 %v347, 16
      %v352 = vshll.u32 %v347, 16
      %v354 = vrot.slane %v352, 1
      %v355 = vor.u32 %v350, %v354
      %v357 = vshrl.u32 %v348, 16
      %v359 = vshll.u32 %v348, 16
      %v361 = vrot.slane %v359, 1
      %v362 = vor.u32 %v357, %v361
      %v397 = vunpack.c.l.b16 %v309
      %v398 = vunpack.c.l.b16 %v310
      %v399 = vunpack.c.l.b16 %v311
      %v400 = vunpack.c.l.b16 %v312
      %v401 = vunpack.c.l.b16 %v313
      %v402 = vunpack.c.l.b16 %v314
      %v403 = vunpack.c.l.b16 %v315
      %v404 = vunpack.c.l.b16 %v316
      %v405 = vunpack.c.l.b16 %v317
      %v406 = vunpack.c.l.b16 %v318
      %v407 = vunpack.c.l.b16 %v319
      %v408 = vunpack.c.l.b16 %v320
      %v409 = vunpack.c.l.b16 %v321
      %v410 = vunpack.c.l.b16 %v322
      %v411 = vunpack.c.l.b16 %v323
      %v412 = vunpack.c.l.b16 %v324
      %v413 = vunpack.c.l.b16 %v325
      %v414 = vunpack.c.l.b16 %v326
      %v415 = vunpack.c.l.b16 %v327
      %v416 = vunpack.c.l.b16 %v328
      %v417 = vunpack.c.l.b16 %v329
      %v418 = vunpack.c.l.b16 %v330
      %v419 = vunpack.c.l.b16 %v331
      %v420 = vunpack.c.l.b16 %v332
      %v421 = vunpack.c.l.b16 %v333
      %v422 = vunpack.c.l.b16 %v334
      %v423 = vunpack.c.l.b16 %v335
      %v424 = vunpack.c.l.b16 %v336
      %v425 = vunpack.c.l.b16 %v337
      %v426 = vunpack.c.l.b16 %v338
      %v427 = vunpack.c.l.b16 %v339
      %v428 = vunpack.c.l.b16 %v340
      %v429 = vpack.c.b16 %v398, %v397
      %v430 = vpack.c.b16 %v400, %v399
      %v431 = vpack.c.b16 %v402, %v401
      %v432 = vpack.c.b16 %v404, %v403
      %v433 = vpack.c.b16 %v406, %v405
      %v434 = vpack.c.b16 %v408, %v407
      %v435 = vpack.c.b16 %v410, %v409
      %v436 = vpack.c.b16 %v412, %v411
      %v437 = vpack.c.b16 %v414, %v413
      %v438 = vpack.c.b16 %v416, %v415
      %v439 = vpack.c.b16 %v418, %v417
      %v440 = vpack.c.b16 %v420, %v419
      %v441 = vpack.c.b16 %v422, %v421
      %v442 = vpack.c.b16 %v424, %v423
      %v443 = vpack.c.b16 %v426, %v425
      %v444 = vpack.c.b16 %v428, %v427
      %461 = vmatprep.subr.bf16.mxu0 0
      %462 = vmatpush1.bf16.msra.mxu0 %v429
      %463 = vmatprep.subr.bf16.mxu0 0
      %464 = vmatpush1.bf16.msra.mxu0 %v430
      %465 = vmatprep.subr.bf16.mxu0 0
      %466 = vmatpush1.bf16.msra.mxu0 %v431
      %467 = vmatprep.subr.bf16.mxu0 0
      %468 = vmatpush1.bf16.msra.mxu0 %v432
      %469 = vmatprep.subr.bf16.mxu0 0
      %470 = vmatpush1.bf16.msra.mxu0 %v433
      %471 = vmatprep.subr.bf16.mxu0 0
      %472 = vmatpush1.bf16.msra.mxu0 %v434
      %473 = vmatprep.subr.bf16.mxu0 0
      %474 = vmatpush1.bf16.msra.mxu0 %v435
      %475 = vmatprep.subr.bf16.mxu0 0
      %476 = vmatpush1.bf16.msra.mxu0 %v436
      %477 = vmatprep.subr.bf16.mxu0 0
      %478 = vmatpush1.bf16.msra.mxu0 %v437
      %479 = vmatprep.subr.bf16.mxu0 0
      %480 = vmatpush1.bf16.msra.mxu0 %v438
      %481 = vmatprep.subr.bf16.mxu0 0
      %482 = vmatpush1.bf16.msra.mxu0 %v439
      %483 = vmatprep.subr.bf16.mxu0 0
      %484 = vmatpush1.bf16.msra.mxu0 %v440
      %485 = vmatprep.subr.bf16.mxu0 0
      %486 = vmatpush1.bf16.msra.mxu0 %v441
      %487 = vmatprep.subr.bf16.mxu0 0
      %488 = vmatpush1.bf16.msra.mxu0 %v442
      %489 = vmatprep.subr.bf16.mxu0 0
      %490 = vmatpush1.bf16.msra.mxu0 %v443
      %491 = vmatprep.subr.bf16.mxu0 0
      %492 = vmatpush1.bf16.msra.mxu0 %v444
      %493 = vmatprep.mubr.bf16.mxu0 %v362
      %494 = vmatmul.mubr.bf16.gmra.mrb[0].mxu0 %v355
      %v495 = vpop.f32.mrb[0].mxu0
      %v496 = vadd.f32 0.0, %v495
      %v497 = vpop.f32.mrb[0].mxu0
      %v498 = vpop.f32.mrb[0].mxu0
      %v499 = vpop.f32.mrb[0].mxu0
      %500 = vdwg.mxu0
      %v501 = vpack.c.b16 %v343, %v343
      %v502 = vpack.c.b16 %v344, %v344
      %v537 = vunpack.c.l.b16 %v275
      %v538 = vunpack.c.l.b16 %v276
      %v539 = vunpack.c.l.b16 %v277
      %v540 = vunpack.c.l.b16 %v278
      %v541 = vunpack.c.l.b16 %v279
      %v542 = vunpack.c.l.b16 %v280
      %v543 = vunpack.c.l.b16 %v281
      %v544 = vunpack.c.l.b16 %v282
      %v545 = vunpack.c.l.b16 %v283
      %v546 = vunpack.c.l.b16 %v284
      %v547 = vunpack.c.l.b16 %v285
      %v548 = vunpack.c.l.b16 %v286
      %v549 = vunpack.c.l.b16 %v287
      %v550 = vunpack.c.l.b16 %v288
      %v551 = vunpack.c.l.b16 %v289
      %v552 = vunpack.c.l.b16 %v290
      %v553 = vunpack.c.l.b16 %v291
      %v554 = vunpack.c.l.b16 %v292
      %v555 = vunpack.c.l.b16 %v293
      %v556 = vunpack.c.l.b16 %v294
      %v557 = vunpack.c.l.b16 %v295
      %v558 = vunpack.c.l.b16 %v296
      %v559 = vunpack.c.l.b16 %v297
      %v560 = vunpack.c.l.b16 %v298
      %v561 = vunpack.c.l.b16 %v299
      %v562 = vunpack.c.l.b16 %v300
      %v563 = vunpack.c.l.b16 %v301
      %v564 = vunpack.c.l.b16 %v302
      %v565 = vunpack.c.l.b16 %v303
      %v566 = vunpack.c.l.b16 %v304
      %v567 = vunpack.c.l.b16 %v305
      %v568 = vunpack.c.l.b16 %v306
      %v569 = vpack.c.b16 %v538, %v537
      %v570 = vpack.c.b16 %v540, %v539
      %v571 = vpack.c.b16 %v542, %v541
      %v572 = vpack.c.b16 %v544, %v543
      %v573 = vpack.c.b16 %v546, %v545
      %v574 = vpack.c.b16 %v548, %v547
      %v575 = vpack.c.b16 %v550, %v549
      %v576 = vpack.c.b16 %v552, %v551
      %v577 = vpack.c.b16 %v554, %v553
      %v578 = vpack.c.b16 %v556, %v555
      %v579 = vpack.c.b16 %v558, %v557
      %v580 = vpack.c.b16 %v560, %v559
      %v581 = vpack.c.b16 %v562, %v561
      %v582 = vpack.c.b16 %v564, %v563
      %v583 = vpack.c.b16 %v566, %v565
      %v584 = vpack.c.b16 %v568, %v567
      %601 = vmatprep.subr.bf16.mxu0 0
      %602 = vmatpush1.bf16.msra.mxu0 %v569
      %603 = vmatprep.subr.bf16.mxu0 0
      %604 = vmatpush1.bf16.msra.mxu0 %v570
      %605 = vmatprep.subr.bf16.mxu0 0
      %606 = vmatpush1.bf16.msra.mxu0 %v571
      %607 = vmatprep.subr.bf16.mxu0 0
      %608 = vmatpush1.bf16.msra.mxu0 %v572
      %609 = vmatprep.subr.bf16.mxu0 0
      %610 = vmatpush1.bf16.msra.mxu0 %v573
      %611 = vmatprep.subr.bf16.mxu0 0
      %612 = vmatpush1.bf16.msra.mxu0 %v574
      %613 = vmatprep.subr.bf16.mxu0 0
      %614 = vmatpush1.bf16.msra.mxu0 %v575
      %615 = vmatprep.subr.bf16.mxu0 0
      %616 = vmatpush1.bf16.msra.mxu0 %v576
      %617 = vmatprep.subr.bf16.mxu0 0
      %618 = vmatpush1.bf16.msra.mxu0 %v577
      %619 = vmatprep.subr.bf16.mxu0 0
      %620 = vmatpush1.bf16.msra.mxu0 %v578
      %621 = vmatprep.subr.bf16.mxu0 0
      %622 = vmatpush1.bf16.msra.mxu0 %v579
      %623 = vmatprep.subr.bf16.mxu0 0
      %624 = vmatpush1.bf16.msra.mxu0 %v580
      %625 = vmatprep.subr.bf16.mxu0 0
      %626 = vmatpush1.bf16.msra.mxu0 %v581
      %627 = vmatprep.subr.bf16.mxu0 0
      %628 = vmatpush1.bf16.msra.mxu0 %v582
      %629 = vmatprep.subr.bf16.mxu0 0
      %630 = vmatpush1.bf16.msra.mxu0 %v583
      %631 = vmatprep.subr.bf16.mxu0 0
      %632 = vmatpush1.bf16.msra.mxu0 %v584
      %633 = vmatprep.mubr.bf16.mxu0 %v502
      %634 = vmatmul.mubr.bf16.gmra.mrb[0].mxu0 %v501
      %v635 = vpop.f32.mrb[0].mxu0
      %v636 = vadd.f32 %v496, %v635
      %v637 = vpop.f32.mrb[0].mxu0
      %v638 = vpop.f32.mrb[0].mxu0
      %v639 = vpop.f32.mrb[0].mxu0
      %640 = vdwg.mxu0
      %s641 = scalar_lea.vmem %s253, 16
      %v642 = vld [vmem:[%s641] sm:$0xff]
      %s643 = scalar_lea.vmem %s2, 256
      %v644 = vld [vmem:[%s643] sm:$0xf]
      %v645 = vld [vmem:[%s643 + $0x4] sm:$0xf]
      %v646 = vld [vmem:[%s643 + $0x8] sm:$0xf]
      %v647 = vld [vmem:[%s643 + $0xc] sm:$0xf]
      %v648 = vld [vmem:[%s643 + $0x10] sm:$0xf]
      %v649 = vld [vmem:[%s643 + $0x14] sm:$0xf]
      %v650 = vld [vmem:[%s643 + $0x18] sm:$0xf]
      %v651 = vld [vmem:[%s643 + $0x1c] sm:$0xf]
      %v652 = vld [vmem:[%s643 + $0x20] sm:$0xf]
      %v653 = vld [vmem:[%s643 + $0x24] sm:$0xf]
      %v654 = vld [vmem:[%s643 + $0x28] sm:$0xf]
      %v655 = vld [vmem:[%s643 + $0x2c] sm:$0xf]
      %v656 = vld [vmem:[%s643 + $0x30] sm:$0xf]
      %v657 = vld [vmem:[%s643 + $0x34] sm:$0xf]
      %v658 = vld [vmem:[%s643 + $0x38] sm:$0xf]
      %v659 = vld [vmem:[%s643 + $0x3c] sm:$0xf]
      %v660 = vld [vmem:[%s643 + $0x40] sm:$0xf]
      %v661 = vld [vmem:[%s643 + $0x44] sm:$0xf]
      %v662 = vld [vmem:[%s643 + $0x48] sm:$0xf]
      %v663 = vld [vmem:[%s643 + $0x4c] sm:$0xf]
      %v664 = vld [vmem:[%s643 + $0x50] sm:$0xf]
      %v665 = vld [vmem:[%s643 + $0x54] sm:$0xf]
      %v666 = vld [vmem:[%s643 + $0x58] sm:$0xf]
      %v667 = vld [vmem:[%s643 + $0x5c] sm:$0xf]
      %v668 = vld [vmem:[%s643 + $0x60] sm:$0xf]
      %v669 = vld [vmem:[%s643 + $0x64] sm:$0xf]
      %v670 = vld [vmem:[%s643 + $0x68] sm:$0xf]
      %v671 = vld [vmem:[%s643 + $0x6c] sm:$0xf]
      %v672 = vld [vmem:[%s643 + $0x70] sm:$0xf]
      %v673 = vld [vmem:[%s643 + $0x74] sm:$0xf]
      %v674 = vld [vmem:[%s643 + $0x78] sm:$0xf]
      %v675 = vld [vmem:[%s643 + $0x7c] sm:$0xf]
      %v677 = vunpack.c.l.b16 %v642
      %v678 = vunpack.c.h.b16 %v642
      %v679 = vpack.c.b16 %v677, %v677
      %v680 = vpack.c.b16 %v678, %v678
      %v715 = vunpack.c.l.b16 %v644
      %v716 = vunpack.c.l.b16 %v645
      %v717 = vunpack.c.l.b16 %v646
      %v718 = vunpack.c.l.b16 %v647
      %v719 = vunpack.c.l.b16 %v648
      %v720 = vunpack.c.l.b16 %v649
      %v721 = vunpack.c.l.b16 %v650
      %v722 = vunpack.c.l.b16 %v651
      %v723 = vunpack.c.l.b16 %v652
      %v724 = vunpack.c.l.b16 %v653
      %v725 = vunpack.c.l.b16 %v654
      %v726 = vunpack.c.l.b16 %v655
      %v727 = vunpack.c.l.b16 %v656
      %v728 = vunpack.c.l.b16 %v657
      %v729 = vunpack.c.l.b16 %v658
      %v730 = vunpack.c.l.b16 %v659
      %v731 = vunpack.c.l.b16 %v660
      %v732 = vunpack.c.l.b16 %v661
      %v733 = vunpack.c.l.b16 %v662
      %v734 = vunpack.c.l.b16 %v663
      %v735 = vunpack.c.l.b16 %v664
      %v736 = vunpack.c.l.b16 %v665
      %v737 = vunpack.c.l.b16 %v666
      %v738 = vunpack.c.l.b16 %v667
      %v739 = vunpack.c.l.b16 %v668
      %v740 = vunpack.c.l.b16 %v669
      %v741 = vunpack.c.l.b16 %v670
      %v742 = vunpack.c.l.b16 %v671
      %v743 = vunpack.c.l.b16 %v672
      %v744 = vunpack.c.l.b16 %v673
      %v745 = vunpack.c.l.b16 %v674
      %v746 = vunpack.c.l.b16 %v675
      %v747 = vpack.c.b16 %v716, %v715
      %v748 = vpack.c.b16 %v718, %v717
      %v749 = vpack.c.b16 %v720, %v719
      %v750 = vpack.c.b16 %v722, %v721
      %v751 = vpack.c.b16 %v724, %v723
      %v752 = vpack.c.b16 %v726, %v725
      %v753 = vpack.c.b16 %v728, %v727
      %v754 = vpack.c.b16 %v730, %v729
      %v755 = vpack.c.b16 %v732, %v731
      %v756 = vpack.c.b16 %v734, %v733
      %v757 = vpack.c.b16 %v736, %v735
      %v758 = vpack.c.b16 %v738, %v737
      %v759 = vpack.c.b16 %v740, %v739
      %v760 = vpack.c.b16 %v742, %v741
      %v761 = vpack.c.b16 %v744, %v743
      %v762 = vpack.c.b16 %v746, %v745
      %779 = vmatprep.subr.bf16.mxu0 0
      %780 = vmatpush1.bf16.msra.mxu0 %v747
      %781 = vmatprep.subr.bf16.mxu0 0
      %782 = vmatpush1.bf16.msra.mxu0 %v748
      %783 = vmatprep.subr.bf16.mxu0 0
      %784 = vmatpush1.bf16.msra.mxu0 %v749
      %785 = vmatprep.subr.bf16.mxu0 0
      %786 = vmatpush1.bf16.msra.mxu0 %v750
      %787 = vmatprep.subr.bf16.mxu0 0
      %788 = vmatpush1.bf16.msra.mxu0 %v751
      %789 = vmatprep.subr.bf16.mxu0 0
      %790 = vmatpush1.bf16.msra.mxu0 %v752
      %791 = vmatprep.subr.bf16.mxu0 0
      %792 = vmatpush1.bf16.msra.mxu0 %v753
      %793 = vmatprep.subr.bf16.mxu0 0
      %794 = vmatpush1.bf16.msra.mxu0 %v754
      %795 = vmatprep.subr.bf16.mxu0 0
      %796 = vmatpush1.bf16.msra.mxu0 %v755
      %797 = vmatprep.subr.bf16.mxu0 0
      %798 = vmatpush1.bf16.msra.mxu0 %v756
      %799 = vmatprep.subr.bf16.mxu0 0
      %800 = vmatpush1.bf16.msra.mxu0 %v757
      %801 = vmatprep.subr.bf16.mxu0 0
      %802 = vmatpush1.bf16.msra.mxu0 %v758
      %803 = vmatprep.subr.bf16.mxu0 0
      %804 = vmatpush1.bf16.msra.mxu0 %v759
      %805 = vmatprep.subr.bf16.mxu0 0
      %806 = vmatpush1.bf16.msra.mxu0 %v760
      %807 = vmatprep.subr.bf16.mxu0 0
      %808 = vmatpush1.bf16.msra.mxu0 %v761
      %809 = vmatprep.subr.bf16.mxu0 0
      %810 = vmatpush1.bf16.msra.mxu0 %v762
      %811 = vmatprep.mubr.bf16.mxu0 %v680
      %812 = vmatmul.mubr.bf16.gmra.mrb[0].mxu0 %v679
      %v813 = vpop.f32.mrb[0].mxu0
      %v814 = vadd.f32 0.0, %v813
      %v815 = vpop.f32.mrb[0].mxu0
      %v816 = vpop.f32.mrb[0].mxu0
      %v817 = vpop.f32.mrb[0].mxu0
      %818 = vdwg.mxu0
      %v819 = vadd.f32 %v636, %v814
      %v820 = vld [vmem:[%s641] sm:$0xff]
      %v821 = vld [vmem:[%s641 + $0x8] sm:$0x11]
      %s822 = scalar_lea.vmem %s2, 384
      %v823 = vld [vmem:[%s822] sm:$0xf]
      %v824 = vld [vmem:[%s822 + $0x4] sm:$0xf]
      %v825 = vld [vmem:[%s822 + $0x8] sm:$0xf]
      %v826 = vld [vmem:[%s822 + $0xc] sm:$0xf]
      %v827 = vld [vmem:[%s822 + $0x10] sm:$0xf]
      %v828 = vld [vmem:[%s822 + $0x14] sm:$0xf]
      %v829 = vld [vmem:[%s822 + $0x18] sm:$0xf]
      %v830 = vld [vmem:[%s822 + $0x1c] sm:$0xf]
      %v831 = vld [vmem:[%s822 + $0x20] sm:$0xf]
      %v832 = vld [vmem:[%s822 + $0x24] sm:$0xf]
      %v833 = vld [vmem:[%s822 + $0x28] sm:$0xf]
      %v834 = vld [vmem:[%s822 + $0x2c] sm:$0xf]
      %v835 = vld [vmem:[%s822 + $0x30] sm:$0xf]
      %v836 = vld [vmem:[%s822 + $0x34] sm:$0xf]
      %v837 = vld [vmem:[%s822 + $0x38] sm:$0xf]
      %v838 = vld [vmem:[%s822 + $0x3c] sm:$0xf]
      %v839 = vld [vmem:[%s822 + $0x40] sm:$0xf]
      %v840 = vld [vmem:[%s822 + $0x44] sm:$0xf]
      %v841 = vld [vmem:[%s822 + $0x48] sm:$0xf]
      %v842 = vld [vmem:[%s822 + $0x4c] sm:$0xf]
      %v843 = vld [vmem:[%s822 + $0x50] sm:$0xf]
      %v844 = vld [vmem:[%s822 + $0x54] sm:$0xf]
      %v845 = vld [vmem:[%s822 + $0x58] sm:$0xf]
      %v846 = vld [vmem:[%s822 + $0x5c] sm:$0xf]
      %v847 = vld [vmem:[%s822 + $0x60] sm:$0xf]
      %v848 = vld [vmem:[%s822 + $0x64] sm:$0xf]
      %v849 = vld [vmem:[%s822 + $0x68] sm:$0xf]
      %v850 = vld [vmem:[%s822 + $0x6c] sm:$0xf]
      %v851 = vld [vmem:[%s822 + $0x70] sm:$0xf]
      %v852 = vld [vmem:[%s822 + $0x74] sm:$0xf]
      %v853 = vld [vmem:[%s822 + $0x78] sm:$0xf]
      %v854 = vld [vmem:[%s822 + $0x7c] sm:$0xf]
      %v857 = vunpack.c.l.b16 %v820
      %v858 = vunpack.c.h.b16 %v820
      %v859 = vunpack.c.l.b16 %v821
      %v860 = vunpack.c.h.b16 %v821
      %v861 = vpack.c.b16 %v859, %v857
      %v862 = vpack.c.b16 %v860, %v858
      %v864 = vshrl.u32 %v861, 16
      %v866 = vshll.u32 %v861, 16
      %v868 = vrot.slane %v866, 1
      %v869 = vor.u32 %v864, %v868
      %v871 = vshrl.u32 %v862, 16
      %v873 = vshll.u32 %v862, 16
      %v875 = vrot.slane %v873, 1
      %v876 = vor.u32 %v871, %v875
      %v911 = vunpack.c.l.b16 %v823
      %v912 = vunpack.c.l.b16 %v824
      %v913 = vunpack.c.l.b16 %v825
      %v914 = vunpack.c.l.b16 %v826
      %v915 = vunpack.c.l.b16 %v827
      %v916 = vunpack.c.l.b16 %v828
      %v917 = vunpack.c.l.b16 %v829
      %v918 = vunpack.c.l.b16 %v830
      %v919 = vunpack.c.l.b16 %v831
      %v920 = vunpack.c.l.b16 %v832
      %v921 = vunpack.c.l.b16 %v833
      %v922 = vunpack.c.l.b16 %v834
      %v923 = vunpack.c.l.b16 %v835
      %v924 = vunpack.c.l.b16 %v836
      %v925 = vunpack.c.l.b16 %v837
      %v926 = vunpack.c.l.b16 %v838
      %v927 = vunpack.c.l.b16 %v839
      %v928 = vunpack.c.l.b16 %v840
      %v929 = vunpack.c.l.b16 %v841
      %v930 = vunpack.c.l.b16 %v842
      %v931 = vunpack.c.l.b16 %v843
      %v932 = vunpack.c.l.b16 %v844
      %v933 = vunpack.c.l.b16 %v845
      %v934 = vunpack.c.l.b16 %v846
      %v935 = vunpack.c.l.b16 %v847
      %v936 = vunpack.c.l.b16 %v848
      %v937 = vunpack.c.l.b16 %v849
      %v938 = vunpack.c.l.b16 %v850
      %v939 = vunpack.c.l.b16 %v851
      %v940 = vunpack.c.l.b16 %v852
      %v941 = vunpack.c.l.b16 %v853
      %v942 = vunpack.c.l.b16 %v854
      %v943 = vpack.c.b16 %v912, %v911
      %v944 = vpack.c.b16 %v914, %v913
      %v945 = vpack.c.b16 %v916, %v915
      %v946 = vpack.c.b16 %v918, %v917
      %v947 = vpack.c.b16 %v920, %v919
      %v948 = vpack.c.b16 %v922, %v921
      %v949 = vpack.c.b16 %v924, %v923
      %v950 = vpack.c.b16 %v926, %v925
      %v951 = vpack.c.b16 %v928, %v927
      %v952 = vpack.c.b16 %v930, %v929
      %v953 = vpack.c.b16 %v932, %v931
      %v954 = vpack.c.b16 %v934, %v933
      %v955 = vpack.c.b16 %v936, %v935
      %v956 = vpack.c.b16 %v938, %v937
      %v957 = vpack.c.b16 %v940, %v939
      %v958 = vpack.c.b16 %v942, %v941
      %975 = vmatprep.subr.bf16.mxu0 0
      %976 = vmatpush1.bf16.msra.mxu0 %v943
      %977 = vmatprep.subr.bf16.mxu0 0
      %978 = vmatpush1.bf16.msra.mxu0 %v944
      %979 = vmatprep.subr.bf16.mxu0 0
      %980 = vmatpush1.bf16.msra.mxu0 %v945
      %981 = vmatprep.subr.bf16.mxu0 0
      %982 = vmatpush1.bf16.msra.mxu0 %v946
      %983 = vmatprep.subr.bf16.mxu0 0
      %984 = vmatpush1.bf16.msra.mxu0 %v947
      %985 = vmatprep.subr.bf16.mxu0 0
      %986 = vmatpush1.bf16.msra.mxu0 %v948
      %987 = vmatprep.subr.bf16.mxu0 0
      %988 = vmatpush1.bf16.msra.mxu0 %v949
      %989 = vmatprep.subr.bf16.mxu0 0
      %990 = vmatpush1.bf16.msra.mxu0 %v950
      %991 = vmatprep.subr.bf16.mxu0 0
      %992 = vmatpush1.bf16.msra.mxu0 %v951
      %993 = vmatprep.subr.bf16.mxu0 0
      %994 = vmatpush1.bf16.msra.mxu0 %v952
      %995 = vmatprep.subr.bf16.mxu0 0
      %996 = vmatpush1.bf16.msra.mxu0 %v953
      %997 = vmatprep.subr.bf16.mxu0 0
      %998 = vmatpush1.bf16.msra.mxu0 %v954
      %999 = vmatprep.subr.bf16.mxu0 0
      %1000 = vmatpush1.bf16.msra.mxu0 %v955
      %1001 = vmatprep.subr.bf16.mxu0 0
      %1002 = vmatpush1.bf16.msra.mxu0 %v956
      %1003 = vmatprep.subr.bf16.mxu0 0
      %1004 = vmatpush1.bf16.msra.mxu0 %v957
      %1005 = vmatprep.subr.bf16.mxu0 0
      %1006 = vmatpush1.bf16.msra.mxu0 %v958
      %1007 = vmatprep.mubr.bf16.mxu0 %v876
      %1008 = vmatmul.mubr.bf16.gmra.mrb[0].mxu0 %v869
      %v1009 = vpop.f32.mrb[0].mxu0
      %v1010 = vadd.f32 0.0, %v1009
      %v1011 = vpop.f32.mrb[0].mxu0
      %v1012 = vpop.f32.mrb[0].mxu0
      %v1013 = vpop.f32.mrb[0].mxu0
      %1014 = vdwg.mxu0
      %v1015 = vadd.f32 %v819, %v1010
      %v1016 = vld [vmem:[%s263] sm:$0xff]
      %s1017 = scalar_lea.vmem %s2, 512
      %v1018 = vld [vmem:[%s1017] sm:$0xf]
      %v1019 = vld [vmem:[%s1017 + $0x4] sm:$0xf]
      %v1020 = vld [vmem:[%s1017 + $0x8] sm:$0xf]
      %v1021 = vld [vmem:[%s1017 + $0xc] sm:$0xf]
      %v1022 = vld [vmem:[%s1017 + $0x10] sm:$0xf]
      %v1023 = vld [vmem:[%s1017 + $0x14] sm:$0xf]
      %v1024 = vld [vmem:[%s1017 + $0x18] sm:$0xf]
      %v1025 = vld [vmem:[%s1017 + $0x1c] sm:$0xf]
      %v1026 = vld [vmem:[%s1017 + $0x20] sm:$0xf]
      %v1027 = vld [vmem:[%s1017 + $0x24] sm:$0xf]
      %v1028 = vld [vmem:[%s1017 + $0x28] sm:$0xf]
      %v1029 = vld [vmem:[%s1017 + $0x2c] sm:$0xf]
      %v1030 = vld [vmem:[%s1017 + $0x30] sm:$0xf]
      %v1031 = vld [vmem:[%s1017 + $0x34] sm:$0xf]
      %v1032 = vld [vmem:[%s1017 + $0x38] sm:$0xf]
      %v1033 = vld [vmem:[%s1017 + $0x3c] sm:$0xf]
      %v1034 = vld [vmem:[%s1017 + $0x40] sm:$0xf]
      %v1035 = vld [vmem:[%s1017 + $0x44] sm:$0xf]
      %v1036 = vld [vmem:[%s1017 + $0x48] sm:$0xf]
      %v1037 = vld [vmem:[%s1017 + $0x4c] sm:$0xf]
      %v1038 = vld [vmem:[%s1017 + $0x50] sm:$0xf]
      %v1039 = vld [vmem:[%s1017 + $0x54] sm:$0xf]
      %v1040 = vld [vmem:[%s1017 + $0x58] sm:$0xf]
      %v1041 = vld [vmem:[%s1017 + $0x5c] sm:$0xf]
      %v1042 = vld [vmem:[%s1017 + $0x60] sm:$0xf]
      %v1043 = vld [vmem:[%s1017 + $0x64] sm:$0xf]
      %v1044 = vld [vmem:[%s1017 + $0x68] sm:$0xf]
      %v1045 = vld [vmem:[%s1017 + $0x6c] sm:$0xf]
      %v1046 = vld [vmem:[%s1017 + $0x70] sm:$0xf]
      %v1047 = vld [vmem:[%s1017 + $0x74] sm:$0xf]
      %v1048 = vld [vmem:[%s1017 + $0x78] sm:$0xf]
      %v1049 = vld [vmem:[%s1017 + $0x7c] sm:$0xf]
      %v1051 = vunpack.c.l.b16 %v1016
      %v1052 = vunpack.c.h.b16 %v1016
      %v1053 = vpack.c.b16 %v1051, %v1051
      %v1054 = vpack.c.b16 %v1052, %v1052
      %v1089 = vunpack.c.l.b16 %v1018
      %v1090 = vunpack.c.l.b16 %v1019
      %v1091 = vunpack.c.l.b16 %v1020
      %v1092 = vunpack.c.l.b16 %v1021
      %v1093 = vunpack.c.l.b16 %v1022
      %v1094 = vunpack.c.l.b16 %v1023
      %v1095 = vunpack.c.l.b16 %v1024
      %v1096 = vunpack.c.l.b16 %v1025
      %v1097 = vunpack.c.l.b16 %v1026
      %v1098 = vunpack.c.l.b16 %v1027
      %v1099 = vunpack.c.l.b16 %v1028
      %v1100 = vunpack.c.l.b16 %v1029
      %v1101 = vunpack.c.l.b16 %v1030
      %v1102 = vunpack.c.l.b16 %v1031
      %v1103 = vunpack.c.l.b16 %v1032
      %v1104 = vunpack.c.l.b16 %v1033
      %v1105 = vunpack.c.l.b16 %v1034
      %v1106 = vunpack.c.l.b16 %v1035
      %v1107 = vunpack.c.l.b16 %v1036
      %v1108 = vunpack.c.l.b16 %v1037
      %v1109 = vunpack.c.l.b16 %v1038
      %v1110 = vunpack.c.l.b16 %v1039
      %v1111 = vunpack.c.l.b16 %v1040
      %v1112 = vunpack.c.l.b16 %v1041
      %v1113 = vunpack.c.l.b16 %v1042
      %v1114 = vunpack.c.l.b16 %v1043
      %v1115 = vunpack.c.l.b16 %v1044
      %v1116 = vunpack.c.l.b16 %v1045
      %v1117 = vunpack.c.l.b16 %v1046
      %v1118 = vunpack.c.l.b16 %v1047
      %v1119 = vunpack.c.l.b16 %v1048
      %v1120 = vunpack.c.l.b16 %v1049
      %v1121 = vpack.c.b16 %v1090, %v1089
      %v1122 = vpack.c.b16 %v1092, %v1091
      %v1123 = vpack.c.b16 %v1094, %v1093
      %v1124 = vpack.c.b16 %v1096, %v1095
      %v1125 = vpack.c.b16 %v1098, %v1097
      %v1126 = vpack.c.b16 %v1100, %v1099
      %v1127 = vpack.c.b16 %v1102, %v1101
      %v1128 = vpack.c.b16 %v1104, %v1103
      %v1129 = vpack.c.b16 %v1106, %v1105
      %v1130 = vpack.c.b16 %v1108, %v1107
      %v1131 = vpack.c.b16 %v1110, %v1109
      %v1132 = vpack.c.b16 %v1112, %v1111
      %v1133 = vpack.c.b16 %v1114, %v1113
      %v1134 = vpack.c.b16 %v1116, %v1115
      %v1135 = vpack.c.b16 %v1118, %v1117
      %v1136 = vpack.c.b16 %v1120, %v1119
      %1153 = vmatprep.subr.bf16.mxu0 0
      %1154 = vmatpush1.bf16.msra.mxu0 %v1121
      %1155 = vmatprep.subr.bf16.mxu0 0
      %1156 = vmatpush1.bf16.msra.mxu0 %v1122
      %1157 = vmatprep.subr.bf16.mxu0 0
      %1158 = vmatpush1.bf16.msra.mxu0 %v1123
      %1159 = vmatprep.subr.bf16.mxu0 0
      %1160 = vmatpush1.bf16.msra.mxu0 %v1124
      %1161 = vmatprep.subr.bf16.mxu0 0
      %1162 = vmatpush1.bf16.msra.mxu0 %v1125
      %1163 = vmatprep.subr.bf16.mxu0 0
      %1164 = vmatpush1.bf16.msra.mxu0 %v1126
      %1165 = vmatprep.subr.bf16.mxu0 0
      %1166 = vmatpush1.bf16.msra.mxu0 %v1127
      %1167 = vmatprep.subr.bf16.mxu0 0
      %1168 = vmatpush1.bf16.msra.mxu0 %v1128
      %1169 = vmatprep.subr.bf16.mxu0 0
      %1170 = vmatpush1.bf16.msra.mxu0 %v1129
      %1171 = vmatprep.subr.bf16.mxu0 0
      %1172 = vmatpush1.bf16.msra.mxu0 %v1130
      %1173 = vmatprep.subr.bf16.mxu0 0
      %1174 = vmatpush1.bf16.msra.mxu0 %v1131
      %1175 = vmatprep.subr.bf16.mxu0 0
      %1176 = vmatpush1.bf16.msra.mxu0 %v1132
      %1177 = vmatprep.subr.bf16.mxu0 0
      %1178 = vmatpush1.bf16.msra.mxu0 %v1133
      %1179 = vmatprep.subr.bf16.mxu0 0
      %1180 = vmatpush1.bf16.msra.mxu0 %v1134
      %1181 = vmatprep.subr.bf16.mxu0 0
      %1182 = vmatpush1.bf16.msra.mxu0 %v1135
      %1183 = vmatprep.subr.bf16.mxu0 0
      %1184 = vmatpush1.bf16.msra.mxu0 %v1136
      %1185 = vmatprep.mubr.bf16.mxu0 %v1054
      %1186 = vmatmul.mubr.bf16.gmra.mrb[0].mxu0 %v1053
      %v1187 = vpop.f32.mrb[0].mxu0
      %v1188 = vadd.f32 0.0, %v1187
      %v1189 = vpop.f32.mrb[0].mxu0
      %v1190 = vpop.f32.mrb[0].mxu0
      %v1191 = vpop.f32.mrb[0].mxu0
      %1192 = vdwg.mxu0
      %v1193 = vadd.f32 %v1015, %v1188
      %v1194 = vld [vmem:[%s263] sm:$0xff]
      %v1195 = vld [vmem:[%s263 + $0x8] sm:$0x11]
      %s1196 = scalar_lea.vmem %s2, 640
      %v1197 = vld [vmem:[%s1196] sm:$0xf]
      %v1198 = vld [vmem:[%s1196 + $0x4] sm:$0xf]
      %v1199 = vld [vmem:[%s1196 + $0x8] sm:$0xf]
      %v1200 = vld [vmem:[%s1196 + $0xc] sm:$0xf]
      %v1201 = vld [vmem:[%s1196 + $0x10] sm:$0xf]
      %v1202 = vld [vmem:[%s1196 + $0x14] sm:$0xf]
      %v1203 = vld [vmem:[%s1196 + $0x18] sm:$0xf]
      %v1204 = vld [vmem:[%s1196 + $0x1c] sm:$0xf]
      %v1205 = vld [vmem:[%s1196 + $0x20] sm:$0xf]
      %v1206 = vld [vmem:[%s1196 + $0x24] sm:$0xf]
      %v1207 = vld [vmem:[%s1196 + $0x28] sm:$0xf]
      %v1208 = vld [vmem:[%s1196 + $0x2c] sm:$0xf]
      %v1209 = vld [vmem:[%s1196 + $0x30] sm:$0xf]
      %v1210 = vld [vmem:[%s1196 + $0x34] sm:$0xf]
      %v1211 = vld [vmem:[%s1196 + $0x38] sm:$0xf]
      %v1212 = vld [vmem:[%s1196 + $0x3c] sm:$0xf]
      %v1213 = vld [vmem:[%s1196 + $0x40] sm:$0xf]
      %v1214 = vld [vmem:[%s1196 + $0x44] sm:$0xf]
      %v1215 = vld [vmem:[%s1196 + $0x48] sm:$0xf]
      %v1216 = vld [vmem:[%s1196 + $0x4c] sm:$0xf]
      %v1217 = vld [vmem:[%s1196 + $0x50] sm:$0xf]
      %v1218 = vld [vmem:[%s1196 + $0x54] sm:$0xf]
      %v1219 = vld [vmem:[%s1196 + $0x58] sm:$0xf]
      %v1220 = vld [vmem:[%s1196 + $0x5c] sm:$0xf]
      %v1221 = vld [vmem:[%s1196 + $0x60] sm:$0xf]
      %v1222 = vld [vmem:[%s1196 + $0x64] sm:$0xf]
      %v1223 = vld [vmem:[%s1196 + $0x68] sm:$0xf]
      %v1224 = vld [vmem:[%s1196 + $0x6c] sm:$0xf]
      %v1225 = vld [vmem:[%s1196 + $0x70] sm:$0xf]
      %v1226 = vld [vmem:[%s1196 + $0x74] sm:$0xf]
      %v1227 = vld [vmem:[%s1196 + $0x78] sm:$0xf]
      %v1228 = vld [vmem:[%s1196 + $0x7c] sm:$0xf]
      %v1231 = vunpack.c.l.b16 %v1194
      %v1232 = vunpack.c.h.b16 %v1194
      %v1233 = vunpack.c.l.b16 %v1195
      %v1234 = vunpack.c.h.b16 %v1195
      %v1235 = vpack.c.b16 %v1233, %v1231
      %v1236 = vpack.c.b16 %v1234, %v1232
      %v1238 = vshrl.u32 %v1235, 16
      %v1240 = vshll.u32 %v1235, 16
      %v1242 = vrot.slane %v1240, 1
      %v1243 = vor.u32 %v1238, %v1242
      %v1245 = vshrl.u32 %v1236, 16
      %v1247 = vshll.u32 %v1236, 16
      %v1249 = vrot.slane %v1247, 1
      %v1250 = vor.u32 %v1245, %v1249
      %v1285 = vunpack.c.l.b16 %v1197
      %v1286 = vunpack.c.l.b16 %v1198
      %v1287 = vunpack.c.l.b16 %v1199
      %v1288 = vunpack.c.l.b16 %v1200
      %v1289 = vunpack.c.l.b16 %v1201
      %v1290 = vunpack.c.l.b16 %v1202
      %v1291 = vunpack.c.l.b16 %v1203
      %v1292 = vunpack.c.l.b16 %v1204
      %v1293 = vunpack.c.l.b16 %v1205
      %v1294 = vunpack.c.l.b16 %v1206
      %v1295 = vunpack.c.l.b16 %v1207
      %v1296 = vunpack.c.l.b16 %v1208
      %v1297 = vunpack.c.l.b16 %v1209
      %v1298 = vunpack.c.l.b16 %v1210
      %v1299 = vunpack.c.l.b16 %v1211
      %v1300 = vunpack.c.l.b16 %v1212
      %v1301 = vunpack.c.l.b16 %v1213
      %v1302 = vunpack.c.l.b16 %v1214
      %v1303 = vunpack.c.l.b16 %v1215
      %v1304 = vunpack.c.l.b16 %v1216
      %v1305 = vunpack.c.l.b16 %v1217
      %v1306 = vunpack.c.l.b16 %v1218
      %v1307 = vunpack.c.l.b16 %v1219
      %v1308 = vunpack.c.l.b16 %v1220
      %v1309 = vunpack.c.l.b16 %v1221
      %v1310 = vunpack.c.l.b16 %v1222
      %v1311 = vunpack.c.l.b16 %v1223
      %v1312 = vunpack.c.l.b16 %v1224
      %v1313 = vunpack.c.l.b16 %v1225
      %v1314 = vunpack.c.l.b16 %v1226
      %v1315 = vunpack.c.l.b16 %v1227
      %v1316 = vunpack.c.l.b16 %v1228
      %v1317 = vpack.c.b16 %v1286, %v1285
      %v1318 = vpack.c.b16 %v1288, %v1287
      %v1319 = vpack.c.b16 %v1290, %v1289
      %v1320 = vpack.c.b16 %v1292, %v1291
      %v1321 = vpack.c.b16 %v1294, %v1293
      %v1322 = vpack.c.b16 %v1296, %v1295
      %v1323 = vpack.c.b16 %v1298, %v1297
      %v1324 = vpack.c.b16 %v1300, %v1299
      %v1325 = vpack.c.b16 %v1302, %v1301
      %v1326 = vpack.c.b16 %v1304, %v1303
      %v1327 = vpack.c.b16 %v1306, %v1305
      %v1328 = vpack.c.b16 %v1308, %v1307
      %v1329 = vpack.c.b16 %v1310, %v1309
      %v1330 = vpack.c.b16 %v1312, %v1311
      %v1331 = vpack.c.b16 %v1314, %v1313
      %v1332 = vpack.c.b16 %v1316, %v1315
      %1349 = vmatprep.subr.bf16.mxu0 0
      %1350 = vmatpush1.bf16.msra.mxu0 %v1317
      %1351 = vmatprep.subr.bf16.mxu0 0
      %1352 = vmatpush1.bf16.msra.mxu0 %v1318
      %1353 = vmatprep.subr.bf16.mxu0 0
      %1354 = vmatpush1.bf16.msra.mxu0 %v1319
      %1355 = vmatprep.subr.bf16.mxu0 0
      %1356 = vmatpush1.bf16.msra.mxu0 %v1320
      %1357 = vmatprep.subr.bf16.mxu0 0
      %1358 = vmatpush1.bf16.msra.mxu0 %v1321
      %1359 = vmatprep.subr.bf16.mxu0 0
      %1360 = vmatpush1.bf16.msra.mxu0 %v1322
      %1361 = vmatprep.subr.bf16.mxu0 0
      %1362 = vmatpush1.bf16.msra.mxu0 %v1323
      %1363 = vmatprep.subr.bf16.mxu0 0
      %1364 = vmatpush1.bf16.msra.mxu0 %v1324
      %1365 = vmatprep.subr.bf16.mxu0 0
      %1366 = vmatpush1.bf16.msra.mxu0 %v1325
      %1367 = vmatprep.subr.bf16.mxu0 0
      %1368 = vmatpush1.bf16.msra.mxu0 %v1326
      %1369 = vmatprep.subr.bf16.mxu0 0
      %1370 = vmatpush1.bf16.msra.mxu0 %v1327
      %1371 = vmatprep.subr.bf16.mxu0 0
      %1372 = vmatpush1.bf16.msra.mxu0 %v1328
      %1373 = vmatprep.subr.bf16.mxu0 0
      %1374 = vmatpush1.bf16.msra.mxu0 %v1329
      %1375 = vmatprep.subr.bf16.mxu0 0
      %1376 = vmatpush1.bf16.msra.mxu0 %v1330
      %1377 = vmatprep.subr.bf16.mxu0 0
      %1378 = vmatpush1.bf16.msra.mxu0 %v1331
      %1379 = vmatprep.subr.bf16.mxu0 0
      %1380 = vmatpush1.bf16.msra.mxu0 %v1332
      %1381 = vmatprep.mubr.bf16.mxu0 %v1250
      %1382 = vmatmul.mubr.bf16.gmra.mrb[0].mxu0 %v1243
      %v1383 = vpop.f32.mrb[0].mxu0
      %v1384 = vadd.f32 0.0, %v1383
      %v1385 = vpop.f32.mrb[0].mxu0
      %v1386 = vpop.f32.mrb[0].mxu0
      %v1387 = vpop.f32.mrb[0].mxu0
      %1388 = vdwg.mxu0
      %v1389 = vadd.f32 %v1193, %v1384
      %s1390 = scalar_lea.vmem %s263, 16
      %v1391 = vld [vmem:[%s1390] sm:$0xff]
      %s1392 = scalar_lea.vmem %s2, 768
      %v1393 = vld [vmem:[%s1392] sm:$0xf]
      %v1394 = vld [vmem:[%s1392 + $0x4] sm:$0xf]
      %v1395 = vld [vmem:[%s1392 + $0x8] sm:$0xf]
      %v1396 = vld [vmem:[%s1392 + $0xc] sm:$0xf]
      %v1397 = vld [vmem:[%s1392 + $0x10] sm:$0xf]
      %v1398 = vld [vmem:[%s1392 + $0x14] sm:$0xf]
      %v1399 = vld [vmem:[%s1392 + $0x18] sm:$0xf]
      %v1400 = vld [vmem:[%s1392 + $0x1c] sm:$0xf]
      %v1401 = vld [vmem:[%s1392 + $0x20] sm:$0xf]
      %v1402 = vld [vmem:[%s1392 + $0x24] sm:$0xf]
      %v1403 = vld [vmem:[%s1392 + $0x28] sm:$0xf]
      %v1404 = vld [vmem:[%s1392 + $0x2c] sm:$0xf]
      %v1405 = vld [vmem:[%s1392 + $0x30] sm:$0xf]
      %v1406 = vld [vmem:[%s1392 + $0x34] sm:$0xf]
      %v1407 = vld [vmem:[%s1392 + $0x38] sm:$0xf]
      %v1408 = vld [vmem:[%s1392 + $0x3c] sm:$0xf]
      %v1409 = vld [vmem:[%s1392 + $0x40] sm:$0xf]
      %v1410 = vld [vmem:[%s1392 + $0x44] sm:$0xf]
      %v1411 = vld [vmem:[%s1392 + $0x48] sm:$0xf]
      %v1412 = vld [vmem:[%s1392 + $0x4c] sm:$0xf]
      %v1413 = vld [vmem:[%s1392 + $0x50] sm:$0xf]
      %v1414 = vld [vmem:[%s1392 + $0x54] sm:$0xf]
      %v1415 = vld [vmem:[%s1392 + $0x58] sm:$0xf]
      %v1416 = vld [vmem:[%s1392 + $0x5c] sm:$0xf]
      %v1417 = vld [vmem:[%s1392 + $0x60] sm:$0xf]
      %v1418 = vld [vmem:[%s1392 + $0x64] sm:$0xf]
      %v1419 = vld [vmem:[%s1392 + $0x68] sm:$0xf]
      %v1420 = vld [vmem:[%s1392 + $0x6c] sm:$0xf]
      %v1421 = vld [vmem:[%s1392 + $0x70] sm:$0xf]
      %v1422 = vld [vmem:[%s1392 + $0x74] sm:$0xf]
      %v1423 = vld [vmem:[%s1392 + $0x78] sm:$0xf]
      %v1424 = vld [vmem:[%s1392 + $0x7c] sm:$0xf]
      %v1426 = vunpack.c.l.b16 %v1391
      %v1427 = vunpack.c.h.b16 %v1391
      %v1428 = vpack.c.b16 %v1426, %v1426
      %v1429 = vpack.c.b16 %v1427, %v1427
      %v1464 = vunpack.c.l.b16 %v1393
      %v1465 = vunpack.c.l.b16 %v1394
      %v1466 = vunpack.c.l.b16 %v1395
      %v1467 = vunpack.c.l.b16 %v1396
      %v1468 = vunpack.c.l.b16 %v1397
      %v1469 = vunpack.c.l.b16 %v1398
      %v1470 = vunpack.c.l.b16 %v1399
      %v1471 = vunpack.c.l.b16 %v1400
      %v1472 = vunpack.c.l.b16 %v1401
      %v1473 = vunpack.c.l.b16 %v1402
      %v1474 = vunpack.c.l.b16 %v1403
      %v1475 = vunpack.c.l.b16 %v1404
      %v1476 = vunpack.c.l.b16 %v1405
      %v1477 = vunpack.c.l.b16 %v1406
      %v1478 = vunpack.c.l.b16 %v1407
      %v1479 = vunpack.c.l.b16 %v1408
      %v1480 = vunpack.c.l.b16 %v1409
      %v1481 = vunpack.c.l.b16 %v1410
      %v1482 = vunpack.c.l.b16 %v1411
      %v1483 = vunpack.c.l.b16 %v1412
      %v1484 = vunpack.c.l.b16 %v1413
      %v1485 = vunpack.c.l.b16 %v1414
      %v1486 = vunpack.c.l.b16 %v1415
      %v1487 = vunpack.c.l.b16 %v1416
      %v1488 = vunpack.c.l.b16 %v1417
      %v1489 = vunpack.c.l.b16 %v1418
      %v1490 = vunpack.c.l.b16 %v1419
      %v1491 = vunpack.c.l.b16 %v1420
      %v1492 = vunpack.c.l.b16 %v1421
      %v1493 = vunpack.c.l.b16 %v1422
      %v1494 = vunpack.c.l.b16 %v1423
      %v1495 = vunpack.c.l.b16 %v1424
      %v1496 = vpack.c.b16 %v1465, %v1464
      %v1497 = vpack.c.b16 %v1467, %v1466
      %v1498 = vpack.c.b16 %v1469, %v1468
      %v1499 = vpack.c.b16 %v1471, %v1470
      %v1500 = vpack.c.b16 %v1473, %v1472
      %v1501 = vpack.c.b16 %v1475, %v1474
      %v1502 = vpack.c.b16 %v1477, %v1476
      %v1503 = vpack.c.b16 %v1479, %v1478
      %v1504 = vpack.c.b16 %v1481, %v1480
      %v1505 = vpack.c.b16 %v1483, %v1482
      %v1506 = vpack.c.b16 %v1485, %v1484
      %v1507 = vpack.c.b16 %v1487, %v1486
      %v1508 = vpack.c.b16 %v1489, %v1488
      %v1509 = vpack.c.b16 %v1491, %v1490
      %v1510 = vpack.c.b16 %v1493, %v1492
      %v1511 = vpack.c.b16 %v1495, %v1494
      %1528 = vmatprep.subr.bf16.mxu0 0
      %1529 = vmatpush1.bf16.msra.mxu0 %v1496
      %1530 = vmatprep.subr.bf16.mxu0 0
      %1531 = vmatpush1.bf16.msra.mxu0 %v1497
      %1532 = vmatprep.subr.bf16.mxu0 0
      %1533 = vmatpush1.bf16.msra.mxu0 %v1498
      %1534 = vmatprep.subr.bf16.mxu0 0
      %1535 = vmatpush1.bf16.msra.mxu0 %v1499
      %1536 = vmatprep.subr.bf16.mxu0 0
      %1537 = vmatpush1.bf16.msra.mxu0 %v1500
      %1538 = vmatprep.subr.bf16.mxu0 0
      %1539 = vmatpush1.bf16.msra.mxu0 %v1501
      %1540 = vmatprep.subr.bf16.mxu0 0
      %1541 = vmatpush1.bf16.msra.mxu0 %v1502
      %1542 = vmatprep.subr.bf16.mxu0 0
      %1543 = vmatpush1.bf16.msra.mxu0 %v1503
      %1544 = vmatprep.subr.bf16.mxu0 0
      %1545 = vmatpush1.bf16.msra.mxu0 %v1504
      %1546 = vmatprep.subr.bf16.mxu0 0
      %1547 = vmatpush1.bf16.msra.mxu0 %v1505
      %1548 = vmatprep.subr.bf16.mxu0 0
      %1549 = vmatpush1.bf16.msra.mxu0 %v1506
      %1550 = vmatprep.subr.bf16.mxu0 0
      %1551 = vmatpush1.bf16.msra.mxu0 %v1507
      %1552 = vmatprep.subr.bf16.mxu0 0
      %1553 = vmatpush1.bf16.msra.mxu0 %v1508
      %1554 = vmatprep.subr.bf16.mxu0 0
      %1555 = vmatpush1.bf16.msra.mxu0 %v1509
      %1556 = vmatprep.subr.bf16.mxu0 0
      %1557 = vmatpush1.bf16.msra.mxu0 %v1510
      %1558 = vmatprep.subr.bf16.mxu0 0
      %1559 = vmatpush1.bf16.msra.mxu0 %v1511
      %1560 = vmatprep.mubr.bf16.mxu0 %v1429
      %1561 = vmatmul.mubr.bf16.gmra.mrb[0].mxu0 %v1428
      %v1562 = vpop.f32.mrb[0].mxu0
      %v1563 = vadd.f32 0.0, %v1562
      %v1564 = vpop.f32.mrb[0].mxu0
      %v1565 = vpop.f32.mrb[0].mxu0
      %v1566 = vpop.f32.mrb[0].mxu0
      %1567 = vdwg.mxu0
      %v1568 = vadd.f32 %v1389, %v1563
      %v1569 = vld [vmem:[%s1390] sm:$0xff]
      %v1570 = vld [vmem:[%s1390 + $0x8] sm:$0x11]
      %s1571 = scalar_lea.vmem %s2, 896
      %v1572 = vld [vmem:[%s1571] sm:$0xf]
      %v1573 = vld [vmem:[%s1571 + $0x4] sm:$0xf]
      %v1574 = vld [vmem:[%s1571 + $0x8] sm:$0xf]
      %v1575 = vld [vmem:[%s1571 + $0xc] sm:$0xf]
      %v1576 = vld [vmem:[%s1571 + $0x10] sm:$0xf]
      %v1577 = vld [vmem:[%s1571 + $0x14] sm:$0xf]
      %v1578 = vld [vmem:[%s1571 + $0x18] sm:$0xf]
      %v1579 = vld [vmem:[%s1571 + $0x1c] sm:$0xf]
      %v1580 = vld [vmem:[%s1571 + $0x20] sm:$0xf]
      %v1581 = vld [vmem:[%s1571 + $0x24] sm:$0xf]
      %v1582 = vld [vmem:[%s1571 + $0x28] sm:$0xf]
      %v1583 = vld [vmem:[%s1571 + $0x2c] sm:$0xf]
      %v1584 = vld [vmem:[%s1571 + $0x30] sm:$0xf]
      %v1585 = vld [vmem:[%s1571 + $0x34] sm:$0xf]
      %v1586 = vld [vmem:[%s1571 + $0x38] sm:$0xf]
      %v1587 = vld [vmem:[%s1571 + $0x3c] sm:$0xf]
      %v1588 = vld [vmem:[%s1571 + $0x40] sm:$0xf]
      %v1589 = vld [vmem:[%s1571 + $0x44] sm:$0xf]
      %v1590 = vld [vmem:[%s1571 + $0x48] sm:$0xf]
      %v1591 = vld [vmem:[%s1571 + $0x4c] sm:$0xf]
      %v1592 = vld [vmem:[%s1571 + $0x50] sm:$0xf]
      %v1593 = vld [vmem:[%s1571 + $0x54] sm:$0xf]
      %v1594 = vld [vmem:[%s1571 + $0x58] sm:$0xf]
      %v1595 = vld [vmem:[%s1571 + $0x5c] sm:$0xf]
      %v1596 = vld [vmem:[%s1571 + $0x60] sm:$0xf]
      %v1597 = vld [vmem:[%s1571 + $0x64] sm:$0xf]
      %v1598 = vld [vmem:[%s1571 + $0x68] sm:$0xf]
      %v1599 = vld [vmem:[%s1571 + $0x6c] sm:$0xf]
      %v1600 = vld [vmem:[%s1571 + $0x70] sm:$0xf]
      %v1601 = vld [vmem:[%s1571 + $0x74] sm:$0xf]
      %v1602 = vld [vmem:[%s1571 + $0x78] sm:$0xf]
      %v1603 = vld [vmem:[%s1571 + $0x7c] sm:$0xf]
      %v1606 = vunpack.c.l.b16 %v1569
      %v1607 = vunpack.c.h.b16 %v1569
      %v1608 = vunpack.c.l.b16 %v1570
      %v1609 = vunpack.c.h.b16 %v1570
      %v1610 = vpack.c.b16 %v1608, %v1606
      %v1611 = vpack.c.b16 %v1609, %v1607
      %v1613 = vshrl.u32 %v1610, 16
      %v1615 = vshll.u32 %v1610, 16
      %v1617 = vrot.slane %v1615, 1
      %v1618 = vor.u32 %v1613, %v1617
      %v1620 = vshrl.u32 %v1611, 16
      %v1622 = vshll.u32 %v1611, 16
      %v1624 = vrot.slane %v1622, 1
      %v1625 = vor.u32 %v1620, %v1624
      %v1660 = vunpack.c.l.b16 %v1572
      %v1661 = vunpack.c.l.b16 %v1573
      %v1662 = vunpack.c.l.b16 %v1574
      %v1663 = vunpack.c.l.b16 %v1575
      %v1664 = vunpack.c.l.b16 %v1576
      %v1665 = vunpack.c.l.b16 %v1577
      %v1666 = vunpack.c.l.b16 %v1578
      %v1667 = vunpack.c.l.b16 %v1579
      %v1668 = vunpack.c.l.b16 %v1580
      %v1669 = vunpack.c.l.b16 %v1581
      %v1670 = vunpack.c.l.b16 %v1582
      %v1671 = vunpack.c.l.b16 %v1583
      %v1672 = vunpack.c.l.b16 %v1584
      %v1673 = vunpack.c.l.b16 %v1585
      %v1674 = vunpack.c.l.b16 %v1586
      %v1675 = vunpack.c.l.b16 %v1587
      %v1676 = vunpack.c.l.b16 %v1588
      %v1677 = vunpack.c.l.b16 %v1589
      %v1678 = vunpack.c.l.b16 %v1590
      %v1679 = vunpack.c.l.b16 %v1591
      %v1680 = vunpack.c.l.b16 %v1592
      %v1681 = vunpack.c.l.b16 %v1593
      %v1682 = vunpack.c.l.b16 %v1594
      %v1683 = vunpack.c.l.b16 %v1595
      %v1684 = vunpack.c.l.b16 %v1596
      %v1685 = vunpack.c.l.b16 %v1597
      %v1686 = vunpack.c.l.b16 %v1598
      %v1687 = vunpack.c.l.b16 %v1599
      %v1688 = vunpack.c.l.b16 %v1600
      %v1689 = vunpack.c.l.b16 %v1601
      %v1690 = vunpack.c.l.b16 %v1602
      %v1691 = vunpack.c.l.b16 %v1603
      %v1692 = vpack.c.b16 %v1661, %v1660
      %v1693 = vpack.c.b16 %v1663, %v1662
      %v1694 = vpack.c.b16 %v1665, %v1664
      %v1695 = vpack.c.b16 %v1667, %v1666
      %v1696 = vpack.c.b16 %v1669, %v1668
      %v1697 = vpack.c.b16 %v1671, %v1670
      %v1698 = vpack.c.b16 %v1673, %v1672
      %v1699 = vpack.c.b16 %v1675, %v1674
      %v1700 = vpack.c.b16 %v1677, %v1676
      %v1701 = vpack.c.b16 %v1679, %v1678
      %v1702 = vpack.c.b16 %v1681, %v1680
      %v1703 = vpack.c.b16 %v1683, %v1682
      %v1704 = vpack.c.b16 %v1685, %v1684
      %v1705 = vpack.c.b16 %v1687, %v1686
      %v1706 = vpack.c.b16 %v1689, %v1688
      %v1707 = vpack.c.b16 %v1691, %v1690
      %1724 = vmatprep.subr.bf16.mxu0 0
      %1725 = vmatpush1.bf16.msra.mxu0 %v1692
      %1726 = vmatprep.subr.bf16.mxu0 0
      %1727 = vmatpush1.bf16.msra.mxu0 %v1693
      %1728 = vmatprep.subr.bf16.mxu0 0
      %1729 = vmatpush1.bf16.msra.mxu0 %v1694
      %1730 = vmatprep.subr.bf16.mxu0 0
      %1731 = vmatpush1.bf16.msra.mxu0 %v1695
      %1732 = vmatprep.subr.bf16.mxu0 0
      %1733 = vmatpush1.bf16.msra.mxu0 %v1696
      %1734 = vmatprep.subr.bf16.mxu0 0
      %1735 = vmatpush1.bf16.msra.mxu0 %v1697
      %1736 = vmatprep.subr.bf16.mxu0 0
      %1737 = vmatpush1.bf16.msra.mxu0 %v1698
      %1738 = vmatprep.subr.bf16.mxu0 0
      %1739 = vmatpush1.bf16.msra.mxu0 %v1699
      %1740 = vmatprep.subr.bf16.mxu0 0
      %1741 = vmatpush1.bf16.msra.mxu0 %v1700
      %1742 = vmatprep.subr.bf16.mxu0 0
      %1743 = vmatpush1.bf16.msra.mxu0 %v1701
      %1744 = vmatprep.subr.bf16.mxu0 0
      %1745 = vmatpush1.bf16.msra.mxu0 %v1702
      %1746 = vmatprep.subr.bf16.mxu0 0
      %1747 = vmatpush1.bf16.msra.mxu0 %v1703
      %1748 = vmatprep.subr.bf16.mxu0 0
      %1749 = vmatpush1.bf16.msra.mxu0 %v1704
      %1750 = vmatprep.subr.bf16.mxu0 0
      %1751 = vmatpush1.bf16.msra.mxu0 %v1705
      %1752 = vmatprep.subr.bf16.mxu0 0
      %1753 = vmatpush1.bf16.msra.mxu0 %v1706
      %1754 = vmatprep.subr.bf16.mxu0 0
      %1755 = vmatpush1.bf16.msra.mxu0 %v1707
      %1756 = vmatprep.mubr.bf16.mxu0 %v1625
      %1757 = vmatmul.mubr.bf16.gmra.mrb[0].mxu0 %v1618
      %v1758 = vpop.f32.mrb[0].mxu0
      %v1759 = vadd.f32 0.0, %v1758
      %v1760 = vpop.f32.mrb[0].mxu0
      %v1761 = vpop.f32.mrb[0].mxu0
      %v1762 = vpop.f32.mrb[0].mxu0
      %1763 = vdwg.mxu0
      %v1764 = vadd.f32 %v1568, %v1759
      %v1765 = vld [vmem:[%s3] sm:$0x1]
      %v1767 = vlaneseq
      %v1768 = vshrl.u32 %v1767, 7
      %v1769 = vsub.s32 0, %v1768
      %v1770 = vrot.slane %v1765, %v1769
      %v1772 = vadd.f32 %v1764, %v1770
      %vm1773 = vcmp.gt.f32.partialorder %v1772, 0.0
      %v1774 = vmul.f32 %v1772, 0.2
      %v1775 = vsel %vm1773, %v1772, %v1774
      %v1776 = vpack.c.bf16 %v1775, %v1775
      %1777 = vst [vmem:[%s272] sm:$0xf] %v1776
      %p1778 = scmp.lt.s32.totalorder %s19, 1
      %s1779 = scalar_select %p1778, %s19, 1
      %p1780 = scmp.lt.s32.totalorder %s20, 7
      %s1781 = scalar_select %p1780, %s20, 7
      %s1782 = smul.addr %s1779, 8
      %s1783 = sadd.s32 %s1781, %s1782
      %s1784 = smul.addr %s1783, 4
      %s1785 = scalar_lea.vmem %s4, %s1784
      // Predicated region
      $region37: #{fc_discriminator_forward.6} parent=35 // pred_check
        %p1786 = pneg %p147
      $region38: #{fc_discriminator_forward.6} parent=35 // pred_check_branch
        %1788 = sbr.rel (%p1786) target = $region40
      $region39: #{fc_discriminator_forward.6} parent=35 // pred_region
        _
      $region40: #{fc_discriminator_forward.6} parent=35 // pred_fallthru
        _
    $region36: #{fc_discriminator_forward.6} parent=5 // pred_fallthru
      _
    %p1789 = scmp.le.s32.totalorder 2, %s10
    // Predicated region
    $region41: #{fc_discriminator_forward.6} parent=5 // pred_check
      %p1790 = pneg %p1789
    $region42: #{fc_discriminator_forward.6} parent=5 // pred_check_branch
      %1792 = sbr.rel (%p1790) target = $region44
    $region43: #{fc_discriminator_forward.6} parent=5 // pred_region
      %s1793 = ssub.s32 %s10, 2
      // Predicated region
      $region45: #{fc_discriminator_forward.6} parent=43 // pred_check
        %p1794 = pneg %p153
      $region46: #{fc_discriminator_forward.6} parent=43 // pred_check_branch
        %1796 = sbr.rel (%p1794) target = $region48
      $region47: #{fc_discriminator_forward.6} parent=43 // pred_region
        %p1797 = scmp.lt.s32.totalorder %s21, 1
        %s1798 = scalar_select %p1797, %s21, 1
        %p1799 = scmp.lt.s32.totalorder %s22, 7
        %s1800 = scalar_select %p1799, %s22, 7
        %s1801 = smul.addr %s1798, 8
        %s1802 = sadd.s32 %s1800, %s1801
        %s1803 = smul.addr %s1802, 4
        %s1804 = scalar_lea.vmem %s4, %s1803
      $region48: #{fc_discriminator_forward.6} parent=43 // pred_fallthru
        _
    $region44: #{fc_discriminator_forward.6} parent=5 // pred_fallthru
      _
  $region6: #{fc_discriminator_forward.6} parent=0 // loop_footer
    %s14 = sadd.s32 1, %s10
  $region7: #{fc_discriminator_forward.6} parent=0 // loop_footer_branch
    %9 = sbr.rel target = $region3
  $region8: #{fc_discriminator_forward.6} parent=0 // loop_exit
    _

// kernel: fc_discriminator_forward.7
$region0: #{fc_discriminator_forward.7}
  #allocation0 [shape = 'u32[]', space=smem, size = 0x4, offset = 0x4, fixed_abs, tag = 'smem constant byte address 0x4 - core index']
  #allocation1 [shape = 'u32[144,128]{1,0:T(1,128)}', space=vmem, size = 0x12000, scoped, tag = 'internal scratch']
  %s0 = inlined_call_operand.vmem [shape: bf16[2,5,2,5,256], index: 0, kind: input, shape index: {}, may-alias: {0,1}]
  %s1 = inlined_call_operand.vmem [shape: bf16[2,5,2,5,256], index: 1, kind: input, shape index: {}, may-alias: {0,1}]
  %s2 = inlined_call_operand.vmem [shape: bf16[8,256,128], index: 2, kind: input, shape index: {}]
  %s3 = inlined_call_operand.vmem [shape: f32[1,128], index: 3, kind: input, shape index: {}]
  %s4 = inlined_call_operand.vmem [shape: bf16[2,4,4,128], index: 4, kind: output, shape index: {}]
  %s5 = sld [smem:[#allocation0]]
  $region49: #{fc_discriminator_forward.7} parent=0
    _
  %s7 = ssub.s32 1, %s5
  %s8 = scalar_select 0, %s7, %s5
  loop: start=0, step=1, limit=10
  $region2: #{fc_discriminator_forward.7} parent=0 // loop_pre_header
    _
  $region3: #{fc_discriminator_forward.7} parent=0 // loop_header
    %s10 = sphi 0, %s14
    %p11 = scmp.ge.s32.totalorder %s10, 10
    %s17 = sphi 0, %s29
    %s18 = sphi 0, %s25
    %s19 = sphi 0, %s17
    %s20 = sphi 0, %s18
    %s21 = sphi 0, %s19
    %s22 = sphi 0, %s20
    %s34 = sphi 0, %s36
    %s37 = sphi 0, %s34
    %s38 = sphi 0, %s37
    %s54 = sphi 0, %s38
    %s64 = sphi 0, %s66
    %s67 = sphi 0, %s64
    %s68 = sphi 0, %s67
    %s84 = sphi 0, %s68
    %s88 = sphi 0, %s88
    %s90 = sphi 0, %s88
    %s91 = sphi 0, %s90
    %s105 = sphi 0, %s91
    %s109 = sphi 0, %s109
    %s111 = sphi 0, %s109
    %s112 = sphi 0, %s111
    %s126 = sphi 0, %s112
    %s134 = sphi 0, %s136
    %s137 = sphi 0, %s134
    %s138 = sphi 0, %s137
    %s154 = sphi 0, %s138
  $region4: #{fc_discriminator_forward.7} parent=0 // loop_header_branch
    %13 = sbr.rel (%p11) target = $region8
  $region5: #{fc_discriminator_forward.7} parent=0 // loop_body
    %s15 = ssub.s32 %s10, 1
    %s16 = ssub.s32 %s10, 2
    %s23 = sadd.s32 1, %s18
    %p24 = scmp.ge.s32.totalorder %s23, 4
    %s25 = scalar_select %p24, 0, %s23
    %s26 = sadd.s32 1, %s17
    %s27 = scalar_select %p24, %s26, %s17
    %p28 = scmp.ge.s32.totalorder %s27, 2
    %s29 = scalar_select %p28, 0, %s27
    %s30 = ssub.s32 %s17, %s29
    %s31 = ssub.s32 %s18, %s25
    %s32 = sor.u32 %s30, %s31
    %p33 = scmp.eq.s32.totalorder %s32, 0
    %s35 = sadd.s32 %s34, 1
    %s36 = scalar_select %p33, %s34, %s35
    %p39 = pneg %p33
    %p40 = scmp.eq.s32.totalorder %s10, 7
    %p41 = por %p39, %p40
    %p42 = scmp.ne.s32.totalorder %s34, %s37
    %p43 = scmp.eq.s32.totalorder %s10, 0
    %p44 = por %p42, %p43
    %p45 = scmp.ne.s32.totalorder %s34, %s37
    %p46 = scmp.eq.s32.totalorder %s15, 7
    %p47 = por %p45, %p46
    %p48 = scmp.ne.s32.totalorder %s37, %s38
    %p49 = scmp.eq.s32.totalorder %s15, 0
    %p50 = por %p48, %p49
    %p51 = scmp.ne.s32.totalorder %s37, %s38
    %p52 = scmp.eq.s32.totalorder %s16, 7
    %p53 = por %p51, %p52
    %p55 = scmp.ne.s32.totalorder %s38, %s54
    %p56 = scmp.eq.s32.totalorder %s16, 0
    %p57 = por %p55, %p56
    %s58 = sadd.s32 %s18, 1
    %s59 = sadd.s32 %s25, 1
    %s60 = ssub.s32 %s17, %s29
    %s61 = ssub.s32 %s58, %s59
    %s62 = sor.u32 %s60, %s61
    %p63 = scmp.eq.s32.totalorder %s62, 0
    %s65 = sadd.s32 %s64, 1
    %s66 = scalar_select %p63, %s64, %s65
    %p69 = pneg %p63
    %p70 = scmp.eq.s32.totalorder %s10, 7
    %p71 = por %p69, %p70
    %p72 = scmp.ne.s32.totalorder %s64, %s67
    %p73 = scmp.eq.s32.totalorder %s10, 0
    %p74 = por %p72, %p73
    %p75 = scmp.ne.s32.totalorder %s64, %s67
    %p76 = scmp.eq.s32.totalorder %s15, 7
    %p77 = por %p75, %p76
    %p78 = scmp.ne.s32.totalorder %s67, %s68
    %p79 = scmp.eq.s32.totalorder %s15, 0
    %p80 = por %p78, %p79
    %p81 = scmp.ne.s32.totalorder %s67, %s68
    %p82 = scmp.eq.s32.totalorder %s16, 7
    %p83 = por %p81, %p82
    %p85 = scmp.ne.s32.totalorder %s68, %s84
    %p86 = scmp.eq.s32.totalorder %s16, 0
    %p87 = por %p85, %p86
    %s89 = sadd.s32 %s88, 1
    %p92 = scmp.eq.s32.totalorder %s10, 7
    %p93 = scmp.ne.s32.totalorder %s88, %s90
    %p94 = scmp.eq.s32.totalorder %s10, 0
    %p95 = por %p93, %p94
    %p96 = scmp.ne.s32.totalorder %s88, %s90
    %p97 = scmp.eq.s32.totalorder %s15, 7
    %p98 = por %p96, %p97
    %p99 = scmp.ne.s32.totalorder %s90, %s91
    %p100 = scmp.eq.s32.totalorder %s15, 0
    %p101 = por %p99, %p100
    %p102 = scmp.ne.s32.totalorder %s90, %s91
    %p103 = scmp.eq.s32.totalorder %s16, 7
    %p104 = por %p102, %p103
    %p106 = scmp.ne.s32.totalorder %s91, %s105
    %p107 = scmp.eq.s32.totalorder %s16, 0
    %p108 = por %p106, %p107
    %s110 = sadd.s32 %s109, 1
    %p113 = scmp.eq.s32.totalorder %s10, 7
    %p114 = scmp.ne.s32.totalorder %s109, %s111
    %p115 = scmp.eq.s32.totalorder %s10, 0
    %p116 = por %p114, %p115
    %p117 = scmp.ne.s32.totalorder %s109, %s111
    %p118 = scmp.eq.s32.totalorder %s15, 7
    %p119 = por %p117, %p118
    %p120 = scmp.ne.s32.totalorder %s111, %s112
    %p121 = scmp.eq.s32.totalorder %s15, 0
    %p122 = por %p120, %p121
    %p123 = scmp.ne.s32.totalorder %s111, %s112
    %p124 = scmp.eq.s32.totalorder %s16, 7
    %p125 = por %p123, %p124
    %p127 = scmp.ne.s32.totalorder %s112, %s126
    %p128 = scmp.eq.s32.totalorder %s16, 0
    %p129 = por %p127, %p128
    %s130 = ssub.s32 %s17, %s29
    %s131 = ssub.s32 %s18, %s25
    %s132 = sor.u32 %s130, %s131
    %p133 = scmp.eq.s32.totalorder %s132, 0
    %s135 = sadd.s32 %s134, 1
    %s136 = scalar_select %p133, %s134, %s135
    %p139 = pneg %p133
    %p140 = scmp.eq.s32.totalorder %s10, 7
    %p141 = por %p139, %p140
    %p142 = scmp.ne.s32.totalorder %s134, %s137
    %p143 = scmp.eq.s32.totalorder %s10, 0
    %p144 = por %p142, %p143
    %p145 = scmp.ne.s32.totalorder %s134, %s137
    %p146 = scmp.eq.s32.totalorder %s15, 7
    %p147 = por %p145, %p146
    %p148 = scmp.ne.s32.totalorder %s137, %s138
    %p149 = scmp.eq.s32.totalorder %s15, 0
    %p150 = por %p148, %p149
    %p151 = scmp.ne.s32.totalorder %s137, %s138
    %p152 = scmp.eq.s32.totalorder %s16, 7
    %p153 = por %p151, %p152
    %p155 = scmp.ne.s32.totalorder %s138, %s154
    %p156 = scmp.eq.s32.totalorder %s16, 0
    %p157 = por %p155, %p156
    %p158 = scmp.le.s32.totalorder 1, %s10
    %p159 = scmp.lt.s32.totalorder %s10, 9
    %p160 = pnand %p158, %p159
    %p161 = pneg %p160
    // Predicated region
    $region9: #{fc_discriminator_forward.7} parent=5 // pred_check
      _
    $region10: #{fc_discriminator_forward.7} parent=5 // pred_check_branch
      %163 = sbr.rel (%p160) target = $region12
    $region11: #{fc_discriminator_forward.7} parent=5 // pred_region
      %s164 = ssub.s32 %s10, 1
      // Predicated region
      $region13: #{fc_discriminator_forward.7} parent=11 // pred_check
        %p165 = pneg %p101
      $region14: #{fc_discriminator_forward.7} parent=11 // pred_check_branch
        %167 = sbr.rel (%p165) target = $region16
      $region15: #{fc_discriminator_forward.7} parent=11 // pred_region
        _
      $region16: #{fc_discriminator_forward.7} parent=11 // pred_fallthru
        _
      // Predicated region
      $region17: #{fc_discriminator_forward.7} parent=11 // pred_check
        %p168 = pneg %p122
      $region18: #{fc_discriminator_forward.7} parent=11 // pred_check_branch
        %170 = sbr.rel (%p168) target = $region20
      $region19: #{fc_discriminator_forward.7} parent=11 // pred_region
        _
      $region20: #{fc_discriminator_forward.7} parent=11 // pred_fallthru
        _
    $region12: #{fc_discriminator_forward.7} parent=5 // pred_fallthru
      _
    %p171 = scmp.lt.s32.totalorder %s10, 8
    // Predicated region
    $region21: #{fc_discriminator_forward.7} parent=5 // pred_check
      %p172 = pneg %p171
    $region22: #{fc_discriminator_forward.7} parent=5 // pred_check_branch
      %174 = sbr.rel (%p172) target = $region24
    $region23: #{fc_discriminator_forward.7} parent=5 // pred_region
      // Predicated region
      $region25: #{fc_discriminator_forward.7} parent=23 // pred_check
        %p175 = pneg %p44
      $region26: #{fc_discriminator_forward.7} parent=23 // pred_check_branch
        %177 = sbr.rel (%p175) target = $region28
      $region27: #{fc_discriminator_forward.7} parent=23 // pred_region
        %p178 = scmp.lt.s32.totalorder %s17, 1
        %s179 = scalar_select %p178, %s17, 1
        %p180 = scmp.lt.s32.totalorder %s18, 4
        %s181 = scalar_select %p180, %s18, 4
        %s182 = smul.addr %s181, 4
        %s183 = smul.addr %s179, 20
        %s184 = sadd.s32 %s182, %s183
        %s185 = smul.addr %s184, 4
        %s186 = scalar_lea.vmem %s0, %s185
      $region28: #{fc_discriminator_forward.7} parent=23 // pred_fallthru
        _
      // Predicated region
      $region29: #{fc_discriminator_forward.7} parent=23 // pred_check
        %p187 = pneg %p74
      $region30: #{fc_discriminator_forward.7} parent=23 // pred_check_branch
        %189 = sbr.rel (%p187) target = $region32
      $region31: #{fc_discriminator_forward.7} parent=23 // pred_region
        %s190 = sadd.s32 %s18, 1
        %p191 = scmp.lt.s32.totalorder %s17, 1
        %s192 = scalar_select %p191, %s17, 1
        %p193 = scmp.lt.s32.totalorder %s190, 4
        %s194 = scalar_select %p193, %s190, 4
        %s195 = smul.addr %s194, 4
        %s196 = smul.addr %s192, 20
        %s197 = sadd.s32 %s195, %s196
        %s198 = smul.addr %s197, 4
        %s199 = scalar_lea.vmem %s1, %s198
        %s200 = sadd.s32 %s18, 1
      $region32: #{fc_discriminator_forward.7} parent=23 // pred_fallthru
        _
    $region24: #{fc_discriminator_forward.7} parent=5 // pred_fallthru
      _
    %p201 = scmp.le.s32.totalorder 1, %s10
    %p202 = scmp.lt.s32.totalorder %s10, 9
    %p203 = pnand %p201, %p202
    %p204 = pneg %p203
    // Predicated region
    $region33: #{fc_discriminator_forward.7} parent=5 // pred_check
      _
    $region34: #{fc_discriminator_forward.7} parent=5 // pred_check_branch
      %206 = sbr.rel (%p203) target = $region36
    $region35: #{fc_discriminator_forward.7} parent=5 // pred_region
      %s207 = ssub.s32 %s10, 1
      %p208 = scmp.lt.s32.totalorder %s19, 1
      %s209 = scalar_select %p208, %s19, 1
      %p210 = scmp.lt.s32.totalorder %s20, 4
      %s211 = scalar_select %p210, %s20, 4
      %s212 = smul.addr %s211, 4
      %s213 = smul.addr %s209, 20
      %s214 = sadd.s32 %s212, %s213
      %s215 = smul.addr %s214, 4
      %s216 = scalar_lea.vmem %s0, %s215
      %p217 = pneg %p50
      %p218 = pneg %p47
      %s219 = sadd.s32 %s20, 1
      %p220 = scmp.lt.s32.totalorder %s19, 1
      %s221 = scalar_select %p220, %s19, 1
      %p222 = scmp.lt.s32.totalorder %s219, 4
      %s223 = scalar_select %p222, %s219, 4
      %s224 = smul.addr %s223, 4
      %s225 = smul.addr %s221, 20
      %s226 = sadd.s32 %s224, %s225
      %s227 = smul.addr %s226, 4
      %s228 = scalar_lea.vmem %s1, %s227
      %p229 = pneg %p80
      %p230 = pneg %p77
      %p231 = pneg %p101
      %p232 = pneg %p98
      %p233 = pneg %p122
      %p234 = pneg %p119
      %p235 = pneg %p150
      %p236 = pneg %p147
      %p237 = scmp.lt.s32.totalorder %s19, 1
      %s238 = scalar_select %p237, %s19, 1
      %p239 = scmp.lt.s32.totalorder %s20, 3
      %s240 = scalar_select %p239, %s20, 3
      %s241 = smul.addr %s238, 4
      %s242 = sadd.s32 %s240, %s241
      %s243 = smul.addr %s242, 2
      %s244 = scalar_lea.vmem %s4, %s243
      %p245 = scmp.lt.s32.totalorder %s19, 1
      %s246 = scalar_select %p245, %s19, 1
      %p247 = scmp.lt.s32.totalorder %s20, 4
      %s248 = scalar_select %p247, %s20, 4
      %s249 = smul.addr %s248, 4
      %s250 = smul.addr %s246, 20
      %s251 = sadd.s32 %s249, %s250
      %s252 = smul.addr %s251, 4
      %s253 = scalar_lea.vmem %s0, %s252
      %s254 = sadd.s32 %s20, 1
      %p255 = scmp.lt.s32.totalorder %s19, 1
      %s256 = scalar_select %p255, %s19, 1
      %p257 = scmp.lt.s32.totalorder %s254, 4
      %s258 = scalar_select %p257, %s254, 4
      %s259 = smul.addr %s258, 4
      %s260 = smul.addr %s256, 20
      %s261 = sadd.s32 %s259, %s260
      %s262 = smul.addr %s261, 4
      %s263 = scalar_lea.vmem %s1, %s262
      %s264 = sadd.s32 %s20, 1
      %p265 = scmp.lt.s32.totalorder %s19, 1
      %s266 = scalar_select %p265, %s19, 1
      %p267 = scmp.lt.s32.totalorder %s20, 3
      %s268 = scalar_select %p267, %s20, 3
      %s269 = smul.addr %s266, 4
      %s270 = sadd.s32 %s268, %s269
      %s271 = smul.addr %s270, 2
      %s272 = scalar_lea.vmem %s4, %s271
      %v274 = vld [vmem:[%s253] sm:$0x33]
      %v275 = vld [vmem:[%s2] sm:$0xf]
      %v276 = vld [vmem:[%s2 + $0x4] sm:$0xf]
      %v277 = vld [vmem:[%s2 + $0x8] sm:$0xf]
      %v278 = vld [vmem:[%s2 + $0xc] sm:$0xf]
      %v279 = vld [vmem:[%s2 + $0x10] sm:$0xf]
      %v280 = vld [vmem:[%s2 + $0x14] sm:$0xf]
      %v281 = vld [vmem:[%s2 + $0x18] sm:$0xf]
      %v282 = vld [vmem:[%s2 + $0x1c] sm:$0xf]
      %v283 = vld [vmem:[%s2 + $0x20] sm:$0xf]
      %v284 = vld [vmem:[%s2 + $0x24] sm:$0xf]
      %v285 = vld [vmem:[%s2 + $0x28] sm:$0xf]
      %v286 = vld [vmem:[%s2 + $0x2c] sm:$0xf]
      %v287 = vld [vmem:[%s2 + $0x30] sm:$0xf]
      %v288 = vld [vmem:[%s2 + $0x34] sm:$0xf]
      %v289 = vld [vmem:[%s2 + $0x38] sm:$0xf]
      %v290 = vld [vmem:[%s2 + $0x3c] sm:$0xf]
      %v291 = vld [vmem:[%s2 + $0x40] sm:$0xf]
      %v292 = vld [vmem:[%s2 + $0x44] sm:$0xf]
      %v293 = vld [vmem:[%s2 + $0x48] sm:$0xf]
      %v294 = vld [vmem:[%s2 + $0x4c] sm:$0xf]
      %v295 = vld [vmem:[%s2 + $0x50] sm:$0xf]
      %v296 = vld [vmem:[%s2 + $0x54] sm:$0xf]
      %v297 = vld [vmem:[%s2 + $0x58] sm:$0xf]
      %v298 = vld [vmem:[%s2 + $0x5c] sm:$0xf]
      %v299 = vld [vmem:[%s2 + $0x60] sm:$0xf]
      %v300 = vld [vmem:[%s2 + $0x64] sm:$0xf]
      %v301 = vld [vmem:[%s2 + $0x68] sm:$0xf]
      %v302 = vld [vmem:[%s2 + $0x6c] sm:$0xf]
      %v303 = vld [vmem:[%s2 + $0x70] sm:$0xf]
      %v304 = vld [vmem:[%s2 + $0x74] sm:$0xf]
      %v305 = vld [vmem:[%s2 + $0x78] sm:$0xf]
      %v306 = vld [vmem:[%s2 + $0x7c] sm:$0xf]
      %v307 = vld [vmem:[%s253] sm:$0x77]
      %s308 = scalar_lea.vmem %s2, 128
      %v309 = vld [vmem:[%s308] sm:$0xf]
      %v310 = vld [vmem:[%s308 + $0x4] sm:$0xf]
      %v311 = vld [vmem:[%s308 + $0x8] sm:$0xf]
      %v312 = vld [vmem:[%s308 + $0xc] sm:$0xf]
      %v313 = vld [vmem:[%s308 + $0x10] sm:$0xf]
      %v314 = vld [vmem:[%s308 + $0x14] sm:$0xf]
      %v315 = vld [vmem:[%s308 + $0x18] sm:$0xf]
      %v316 = vld [vmem:[%s308 + $0x1c] sm:$0xf]
      %v317 = vld [vmem:[%s308 + $0x20] sm:$0xf]
      %v318 = vld [vmem:[%s308 + $0x24] sm:$0xf]
      %v319 = vld [vmem:[%s308 + $0x28] sm:$0xf]
      %v320 = vld [vmem:[%s308 + $0x2c] sm:$0xf]
      %v321 = vld [vmem:[%s308 + $0x30] sm:$0xf]
      %v322 = vld [vmem:[%s308 + $0x34] sm:$0xf]
      %v323 = vld [vmem:[%s308 + $0x38] sm:$0xf]
      %v324 = vld [vmem:[%s308 + $0x3c] sm:$0xf]
      %v325 = vld [vmem:[%s308 + $0x40] sm:$0xf]
      %v326 = vld [vmem:[%s308 + $0x44] sm:$0xf]
      %v327 = vld [vmem:[%s308 + $0x48] sm:$0xf]
      %v328 = vld [vmem:[%s308 + $0x4c] sm:$0xf]
      %v329 = vld [vmem:[%s308 + $0x50] sm:$0xf]
      %v330 = vld [vmem:[%s308 + $0x54] sm:$0xf]
      %v331 = vld [vmem:[%s308 + $0x58] sm:$0xf]
      %v332 = vld [vmem:[%s308 + $0x5c] sm:$0xf]
      %v333 = vld [vmem:[%s308 + $0x60] sm:$0xf]
      %v334 = vld [vmem:[%s308 + $0x64] sm:$0xf]
      %v335 = vld [vmem:[%s308 + $0x68] sm:$0xf]
      %v336 = vld [vmem:[%s308 + $0x6c] sm:$0xf]
      %v337 = vld [vmem:[%s308 + $0x70] sm:$0xf]
      %v338 = vld [vmem:[%s308 + $0x74] sm:$0xf]
      %v339 = vld [vmem:[%s308 + $0x78] sm:$0xf]
      %v340 = vld [vmem:[%s308 + $0x7c] sm:$0xf]
      %v342 = vunpack.c.l.b16 %v307
      %v343 = vunpack.c.h.b16 %v307
      %v344 = vpack.c.b16 %v342, %v342
      %v345 = vpack.c.b16 %v343, %v343
      %v347 = vshrl.u32 %v344, 16
      %v349 = vshll.u32 %v344, 16
      %v351 = vrot.slane %v349, 1
      %v352 = vor.u32 %v347, %v351
      %v354 = vshrl.u32 %v345, 16
      %v356 = vshll.u32 %v345, 16
      %v358 = vrot.slane %v356, 1
      %v359 = vor.u32 %v354, %v358
      %v394 = vunpack.c.l.b16 %v309
      %v395 = vunpack.c.l.b16 %v310
      %v396 = vunpack.c.l.b16 %v311
      %v397 = vunpack.c.l.b16 %v312
      %v398 = vunpack.c.l.b16 %v313
      %v399 = vunpack.c.l.b16 %v314
      %v400 = vunpack.c.l.b16 %v315
      %v401 = vunpack.c.l.b16 %v316
      %v402 = vunpack.c.l.b16 %v317
      %v403 = vunpack.c.l.b16 %v318
      %v404 = vunpack.c.l.b16 %v319
      %v405 = vunpack.c.l.b16 %v320
      %v406 = vunpack.c.l.b16 %v321
      %v407 = vunpack.c.l.b16 %v322
      %v408 = vunpack.c.l.b16 %v323
      %v409 = vunpack.c.l.b16 %v324
      %v410 = vunpack.c.l.b16 %v325
      %v411 = vunpack.c.l.b16 %v326
      %v412 = vunpack.c.l.b16 %v327
      %v413 = vunpack.c.l.b16 %v328
      %v414 = vunpack.c.l.b16 %v329
      %v415 = vunpack.c.l.b16 %v330
      %v416 = vunpack.c.l.b16 %v331
      %v417 = vunpack.c.l.b16 %v332
      %v418 = vunpack.c.l.b16 %v333
      %v419 = vunpack.c.l.b16 %v334
      %v420 = vunpack.c.l.b16 %v335
      %v421 = vunpack.c.l.b16 %v336
      %v422 = vunpack.c.l.b16 %v337
      %v423 = vunpack.c.l.b16 %v338
      %v424 = vunpack.c.l.b16 %v339
      %v425 = vunpack.c.l.b16 %v340
      %v426 = vpack.c.b16 %v395, %v394
      %v427 = vpack.c.b16 %v397, %v396
      %v428 = vpack.c.b16 %v399, %v398
      %v429 = vpack.c.b16 %v401, %v400
      %v430 = vpack.c.b16 %v403, %v402
      %v431 = vpack.c.b16 %v405, %v404
      %v432 = vpack.c.b16 %v407, %v406
      %v433 = vpack.c.b16 %v409, %v408
      %v434 = vpack.c.b16 %v411, %v410
      %v435 = vpack.c.b16 %v413, %v412
      %v436 = vpack.c.b16 %v415, %v414
      %v437 = vpack.c.b16 %v417, %v416
      %v438 = vpack.c.b16 %v419, %v418
      %v439 = vpack.c.b16 %v421, %v420
      %v440 = vpack.c.b16 %v423, %v422
      %v441 = vpack.c.b16 %v425, %v424
      %458 = vmatprep.subr.bf16.mxu0 0
      %459 = vmatpush1.bf16.msra.mxu0 %v426
      %460 = vmatprep.subr.bf16.mxu0 0
      %461 = vmatpush1.bf16.msra.mxu0 %v427
      %462 = vmatprep.subr.bf16.mxu0 0
      %463 = vmatpush1.bf16.msra.mxu0 %v428
      %464 = vmatprep.subr.bf16.mxu0 0
      %465 = vmatpush1.bf16.msra.mxu0 %v429
      %466 = vmatprep.subr.bf16.mxu0 0
      %467 = vmatpush1.bf16.msra.mxu0 %v430
      %468 = vmatprep.subr.bf16.mxu0 0
      %469 = vmatpush1.bf16.msra.mxu0 %v431
      %470 = vmatprep.subr.bf16.mxu0 0
      %471 = vmatpush1.bf16.msra.mxu0 %v432
      %472 = vmatprep.subr.bf16.mxu0 0
      %473 = vmatpush1.bf16.msra.mxu0 %v433
      %474 = vmatprep.subr.bf16.mxu0 0
      %475 = vmatpush1.bf16.msra.mxu0 %v434
      %476 = vmatprep.subr.bf16.mxu0 0
      %477 = vmatpush1.bf16.msra.mxu0 %v435
      %478 = vmatprep.subr.bf16.mxu0 0
      %479 = vmatpush1.bf16.msra.mxu0 %v436
      %480 = vmatprep.subr.bf16.mxu0 0
      %481 = vmatpush1.bf16.msra.mxu0 %v437
      %482 = vmatprep.subr.bf16.mxu0 0
      %483 = vmatpush1.bf16.msra.mxu0 %v438
      %484 = vmatprep.subr.bf16.mxu0 0
      %485 = vmatpush1.bf16.msra.mxu0 %v439
      %486 = vmatprep.subr.bf16.mxu0 0
      %487 = vmatpush1.bf16.msra.mxu0 %v440
      %488 = vmatprep.subr.bf16.mxu0 0
      %489 = vmatpush1.bf16.msra.mxu0 %v441
      %490 = vmatprep.mubr.bf16.mxu0 %v359
      %491 = vmatmul.mubr.bf16.gmra.mrb[0].mxu0 %v352
      %v492 = vpop.f32.mrb[0].mxu0
      %v493 = vadd.f32 0.0, %v492
      %v494 = vpop.f32.mrb[0].mxu0
      %v495 = vpop.f32.mrb[0].mxu0
      %v496 = vpop.f32.mrb[0].mxu0
      %497 = vdwg.mxu0
      %v499 = vunpack.c.l.b16 %v274
      %v500 = vunpack.c.h.b16 %v274
      %v501 = vpack.c.b16 %v499, %v499
      %v502 = vpack.c.b16 %v500, %v500
      %v537 = vunpack.c.l.b16 %v275
      %v538 = vunpack.c.l.b16 %v276
      %v539 = vunpack.c.l.b16 %v277
      %v540 = vunpack.c.l.b16 %v278
      %v541 = vunpack.c.l.b16 %v279
      %v542 = vunpack.c.l.b16 %v280
      %v543 = vunpack.c.l.b16 %v281
      %v544 = vunpack.c.l.b16 %v282
      %v545 = vunpack.c.l.b16 %v283
      %v546 = vunpack.c.l.b16 %v284
      %v547 = vunpack.c.l.b16 %v285
      %v548 = vunpack.c.l.b16 %v286
      %v549 = vunpack.c.l.b16 %v287
      %v550 = vunpack.c.l.b16 %v288
      %v551 = vunpack.c.l.b16 %v289
      %v552 = vunpack.c.l.b16 %v290
      %v553 = vunpack.c.l.b16 %v291
      %v554 = vunpack.c.l.b16 %v292
      %v555 = vunpack.c.l.b16 %v293
      %v556 = vunpack.c.l.b16 %v294
      %v557 = vunpack.c.l.b16 %v295
      %v558 = vunpack.c.l.b16 %v296
      %v559 = vunpack.c.l.b16 %v297
      %v560 = vunpack.c.l.b16 %v298
      %v561 = vunpack.c.l.b16 %v299
      %v562 = vunpack.c.l.b16 %v300
      %v563 = vunpack.c.l.b16 %v301
      %v564 = vunpack.c.l.b16 %v302
      %v565 = vunpack.c.l.b16 %v303
      %v566 = vunpack.c.l.b16 %v304
      %v567 = vunpack.c.l.b16 %v305
      %v568 = vunpack.c.l.b16 %v306
      %v569 = vpack.c.b16 %v538, %v537
      %v570 = vpack.c.b16 %v540, %v539
      %v571 = vpack.c.b16 %v542, %v541
      %v572 = vpack.c.b16 %v544, %v543
      %v573 = vpack.c.b16 %v546, %v545
      %v574 = vpack.c.b16 %v548, %v547
      %v575 = vpack.c.b16 %v550, %v549
      %v576 = vpack.c.b16 %v552, %v551
      %v577 = vpack.c.b16 %v554, %v553
      %v578 = vpack.c.b16 %v556, %v555
      %v579 = vpack.c.b16 %v558, %v557
      %v580 = vpack.c.b16 %v560, %v559
      %v581 = vpack.c.b16 %v562, %v561
      %v582 = vpack.c.b16 %v564, %v563
      %v583 = vpack.c.b16 %v566, %v565
      %v584 = vpack.c.b16 %v568, %v567
      %601 = vmatprep.subr.bf16.mxu0 0
      %602 = vmatpush1.bf16.msra.mxu0 %v569
      %603 = vmatprep.subr.bf16.mxu0 0
      %604 = vmatpush1.bf16.msra.mxu0 %v570
      %605 = vmatprep.subr.bf16.mxu0 0
      %606 = vmatpush1.bf16.msra.mxu0 %v571
      %607 = vmatprep.subr.bf16.mxu0 0
      %608 = vmatpush1.bf16.msra.mxu0 %v572
      %609 = vmatprep.subr.bf16.mxu0 0
      %610 = vmatpush1.bf16.msra.mxu0 %v573
      %611 = vmatprep.subr.bf16.mxu0 0
      %612 = vmatpush1.bf16.msra.mxu0 %v574
      %613 = vmatprep.subr.bf16.mxu0 0
      %614 = vmatpush1.bf16.msra.mxu0 %v575
      %615 = vmatprep.subr.bf16.mxu0 0
      %616 = vmatpush1.bf16.msra.mxu0 %v576
      %617 = vmatprep.subr.bf16.mxu0 0
      %618 = vmatpush1.bf16.msra.mxu0 %v577
      %619 = vmatprep.subr.bf16.mxu0 0
      %620 = vmatpush1.bf16.msra.mxu0 %v578
      %621 = vmatprep.subr.bf16.mxu0 0
      %622 = vmatpush1.bf16.msra.mxu0 %v579
      %623 = vmatprep.subr.bf16.mxu0 0
      %624 = vmatpush1.bf16.msra.mxu0 %v580
      %625 = vmatprep.subr.bf16.mxu0 0
      %626 = vmatpush1.bf16.msra.mxu0 %v581
      %627 = vmatprep.subr.bf16.mxu0 0
      %628 = vmatpush1.bf16.msra.mxu0 %v582
      %629 = vmatprep.subr.bf16.mxu0 0
      %630 = vmatpush1.bf16.msra.mxu0 %v583
      %631 = vmatprep.subr.bf16.mxu0 0
      %632 = vmatpush1.bf16.msra.mxu0 %v584
      %633 = vmatprep.mubr.bf16.mxu0 %v502
      %634 = vmatmul.mubr.bf16.gmra.mrb[0].mxu0 %v501
      %v635 = vpop.f32.mrb[0].mxu0
      %v636 = vadd.f32 %v493, %v635
      %v637 = vpop.f32.mrb[0].mxu0
      %v638 = vpop.f32.mrb[0].mxu0
      %v639 = vpop.f32.mrb[0].mxu0
      %640 = vdwg.mxu0
      %s641 = scalar_lea.vmem %s253, 8
      %v642 = vld [vmem:[%s641] sm:$0x33]
      %s643 = scalar_lea.vmem %s2, 256
      %v644 = vld [vmem:[%s643] sm:$0xf]
      %v645 = vld [vmem:[%s643 + $0x4] sm:$0xf]
      %v646 = vld [vmem:[%s643 + $0x8] sm:$0xf]
      %v647 = vld [vmem:[%s643 + $0xc] sm:$0xf]
      %v648 = vld [vmem:[%s643 + $0x10] sm:$0xf]
      %v649 = vld [vmem:[%s643 + $0x14] sm:$0xf]
      %v650 = vld [vmem:[%s643 + $0x18] sm:$0xf]
      %v651 = vld [vmem:[%s643 + $0x1c] sm:$0xf]
      %v652 = vld [vmem:[%s643 + $0x20] sm:$0xf]
      %v653 = vld [vmem:[%s643 + $0x24] sm:$0xf]
      %v654 = vld [vmem:[%s643 + $0x28] sm:$0xf]
      %v655 = vld [vmem:[%s643 + $0x2c] sm:$0xf]
      %v656 = vld [vmem:[%s643 + $0x30] sm:$0xf]
      %v657 = vld [vmem:[%s643 + $0x34] sm:$0xf]
      %v658 = vld [vmem:[%s643 + $0x38] sm:$0xf]
      %v659 = vld [vmem:[%s643 + $0x3c] sm:$0xf]
      %v660 = vld [vmem:[%s643 + $0x40] sm:$0xf]
      %v661 = vld [vmem:[%s643 + $0x44] sm:$0xf]
      %v662 = vld [vmem:[%s643 + $0x48] sm:$0xf]
      %v663 = vld [vmem:[%s643 + $0x4c] sm:$0xf]
      %v664 = vld [vmem:[%s643 + $0x50] sm:$0xf]
      %v665 = vld [vmem:[%s643 + $0x54] sm:$0xf]
      %v666 = vld [vmem:[%s643 + $0x58] sm:$0xf]
      %v667 = vld [vmem:[%s643 + $0x5c] sm:$0xf]
      %v668 = vld [vmem:[%s643 + $0x60] sm:$0xf]
      %v669 = vld [vmem:[%s643 + $0x64] sm:$0xf]
      %v670 = vld [vmem:[%s643 + $0x68] sm:$0xf]
      %v671 = vld [vmem:[%s643 + $0x6c] sm:$0xf]
      %v672 = vld [vmem:[%s643 + $0x70] sm:$0xf]
      %v673 = vld [vmem:[%s643 + $0x74] sm:$0xf]
      %v674 = vld [vmem:[%s643 + $0x78] sm:$0xf]
      %v675 = vld [vmem:[%s643 + $0x7c] sm:$0xf]
      %v677 = vunpack.c.l.b16 %v642
      %v678 = vunpack.c.h.b16 %v642
      %v679 = vpack.c.b16 %v677, %v677
      %v680 = vpack.c.b16 %v678, %v678
      %v715 = vunpack.c.l.b16 %v644
      %v716 = vunpack.c.l.b16 %v645
      %v717 = vunpack.c.l.b16 %v646
      %v718 = vunpack.c.l.b16 %v647
      %v719 = vunpack.c.l.b16 %v648
      %v720 = vunpack.c.l.b16 %v649
      %v721 = vunpack.c.l.b16 %v650
      %v722 = vunpack.c.l.b16 %v651
      %v723 = vunpack.c.l.b16 %v652
      %v724 = vunpack.c.l.b16 %v653
      %v725 = vunpack.c.l.b16 %v654
      %v726 = vunpack.c.l.b16 %v655
      %v727 = vunpack.c.l.b16 %v656
      %v728 = vunpack.c.l.b16 %v657
      %v729 = vunpack.c.l.b16 %v658
      %v730 = vunpack.c.l.b16 %v659
      %v731 = vunpack.c.l.b16 %v660
      %v732 = vunpack.c.l.b16 %v661
      %v733 = vunpack.c.l.b16 %v662
      %v734 = vunpack.c.l.b16 %v663
      %v735 = vunpack.c.l.b16 %v664
      %v736 = vunpack.c.l.b16 %v665
      %v737 = vunpack.c.l.b16 %v666
      %v738 = vunpack.c.l.b16 %v667
      %v739 = vunpack.c.l.b16 %v668
      %v740 = vunpack.c.l.b16 %v669
      %v741 = vunpack.c.l.b16 %v670
      %v742 = vunpack.c.l.b16 %v671
      %v743 = vunpack.c.l.b16 %v672
      %v744 = vunpack.c.l.b16 %v673
      %v745 = vunpack.c.l.b16 %v674
      %v746 = vunpack.c.l.b16 %v675
      %v747 = vpack.c.b16 %v716, %v715
      %v748 = vpack.c.b16 %v718, %v717
      %v749 = vpack.c.b16 %v720, %v719
      %v750 = vpack.c.b16 %v722, %v721
      %v751 = vpack.c.b16 %v724, %v723
      %v752 = vpack.c.b16 %v726, %v725
      %v753 = vpack.c.b16 %v728, %v727
      %v754 = vpack.c.b16 %v730, %v729
      %v755 = vpack.c.b16 %v732, %v731
      %v756 = vpack.c.b16 %v734, %v733
      %v757 = vpack.c.b16 %v736, %v735
      %v758 = vpack.c.b16 %v738, %v737
      %v759 = vpack.c.b16 %v740, %v739
      %v760 = vpack.c.b16 %v742, %v741
      %v761 = vpack.c.b16 %v744, %v743
      %v762 = vpack.c.b16 %v746, %v745
      %779 = vmatprep.subr.bf16.mxu0 0
      %780 = vmatpush1.bf16.msra.mxu0 %v747
      %781 = vmatprep.subr.bf16.mxu0 0
      %782 = vmatpush1.bf16.msra.mxu0 %v748
      %783 = vmatprep.subr.bf16.mxu0 0
      %784 = vmatpush1.bf16.msra.mxu0 %v749
      %785 = vmatprep.subr.bf16.mxu0 0
      %786 = vmatpush1.bf16.msra.mxu0 %v750
      %787 = vmatprep.subr.bf16.mxu0 0
      %788 = vmatpush1.bf16.msra.mxu0 %v751
      %789 = vmatprep.subr.bf16.mxu0 0
      %790 = vmatpush1.bf16.msra.mxu0 %v752
      %791 = vmatprep.subr.bf16.mxu0 0
      %792 = vmatpush1.bf16.msra.mxu0 %v753
      %793 = vmatprep.subr.bf16.mxu0 0
      %794 = vmatpush1.bf16.msra.mxu0 %v754
      %795 = vmatprep.subr.bf16.mxu0 0
      %796 = vmatpush1.bf16.msra.mxu0 %v755
      %797 = vmatprep.subr.bf16.mxu0 0
      %798 = vmatpush1.bf16.msra.mxu0 %v756
      %799 = vmatprep.subr.bf16.mxu0 0
      %800 = vmatpush1.bf16.msra.mxu0 %v757
      %801 = vmatprep.subr.bf16.mxu0 0
      %802 = vmatpush1.bf16.msra.mxu0 %v758
      %803 = vmatprep.subr.bf16.mxu0 0
      %804 = vmatpush1.bf16.msra.mxu0 %v759
      %805 = vmatprep.subr.bf16.mxu0 0
      %806 = vmatpush1.bf16.msra.mxu0 %v760
      %807 = vmatprep.subr.bf16.mxu0 0
      %808 = vmatpush1.bf16.msra.mxu0 %v761
      %809 = vmatprep.subr.bf16.mxu0 0
      %810 = vmatpush1.bf16.msra.mxu0 %v762
      %811 = vmatprep.mubr.bf16.mxu0 %v680
      %812 = vmatmul.mubr.bf16.gmra.mrb[0].mxu0 %v679
      %v813 = vpop.f32.mrb[0].mxu0
      %v814 = vadd.f32 0.0, %v813
      %v815 = vpop.f32.mrb[0].mxu0
      %v816 = vpop.f32.mrb[0].mxu0
      %v817 = vpop.f32.mrb[0].mxu0
      %818 = vdwg.mxu0
      %v819 = vadd.f32 %v636, %v814
      %v820 = vld [vmem:[%s641] sm:$0x77]
      %s821 = scalar_lea.vmem %s2, 384
      %v822 = vld [vmem:[%s821] sm:$0xf]
      %v823 = vld [vmem:[%s821 + $0x4] sm:$0xf]
      %v824 = vld [vmem:[%s821 + $0x8] sm:$0xf]
      %v825 = vld [vmem:[%s821 + $0xc] sm:$0xf]
      %v826 = vld [vmem:[%s821 + $0x10] sm:$0xf]
      %v827 = vld [vmem:[%s821 + $0x14] sm:$0xf]
      %v828 = vld [vmem:[%s821 + $0x18] sm:$0xf]
      %v829 = vld [vmem:[%s821 + $0x1c] sm:$0xf]
      %v830 = vld [vmem:[%s821 + $0x20] sm:$0xf]
      %v831 = vld [vmem:[%s821 + $0x24] sm:$0xf]
      %v832 = vld [vmem:[%s821 + $0x28] sm:$0xf]
      %v833 = vld [vmem:[%s821 + $0x2c] sm:$0xf]
      %v834 = vld [vmem:[%s821 + $0x30] sm:$0xf]
      %v835 = vld [vmem:[%s821 + $0x34] sm:$0xf]
      %v836 = vld [vmem:[%s821 + $0x38] sm:$0xf]
      %v837 = vld [vmem:[%s821 + $0x3c] sm:$0xf]
      %v838 = vld [vmem:[%s821 + $0x40] sm:$0xf]
      %v839 = vld [vmem:[%s821 + $0x44] sm:$0xf]
      %v840 = vld [vmem:[%s821 + $0x48] sm:$0xf]
      %v841 = vld [vmem:[%s821 + $0x4c] sm:$0xf]
      %v842 = vld [vmem:[%s821 + $0x50] sm:$0xf]
      %v843 = vld [vmem:[%s821 + $0x54] sm:$0xf]
      %v844 = vld [vmem:[%s821 + $0x58] sm:$0xf]
      %v845 = vld [vmem:[%s821 + $0x5c] sm:$0xf]
      %v846 = vld [vmem:[%s821 + $0x60] sm:$0xf]
      %v847 = vld [vmem:[%s821 + $0x64] sm:$0xf]
      %v848 = vld [vmem:[%s821 + $0x68] sm:$0xf]
      %v849 = vld [vmem:[%s821 + $0x6c] sm:$0xf]
      %v850 = vld [vmem:[%s821 + $0x70] sm:$0xf]
      %v851 = vld [vmem:[%s821 + $0x74] sm:$0xf]
      %v852 = vld [vmem:[%s821 + $0x78] sm:$0xf]
      %v853 = vld [vmem:[%s821 + $0x7c] sm:$0xf]
      %v855 = vunpack.c.l.b16 %v820
      %v856 = vunpack.c.h.b16 %v820
      %v857 = vpack.c.b16 %v855, %v855
      %v858 = vpack.c.b16 %v856, %v856
      %v860 = vshrl.u32 %v857, 16
      %v862 = vshll.u32 %v857, 16
      %v864 = vrot.slane %v862, 1
      %v865 = vor.u32 %v860, %v864
      %v867 = vshrl.u32 %v858, 16
      %v869 = vshll.u32 %v858, 16
      %v871 = vrot.slane %v869, 1
      %v872 = vor.u32 %v867, %v871
      %v907 = vunpack.c.l.b16 %v822
      %v908 = vunpack.c.l.b16 %v823
      %v909 = vunpack.c.l.b16 %v824
      %v910 = vunpack.c.l.b16 %v825
      %v911 = vunpack.c.l.b16 %v826
      %v912 = vunpack.c.l.b16 %v827
      %v913 = vunpack.c.l.b16 %v828
      %v914 = vunpack.c.l.b16 %v829
      %v915 = vunpack.c.l.b16 %v830
      %v916 = vunpack.c.l.b16 %v831
      %v917 = vunpack.c.l.b16 %v832
      %v918 = vunpack.c.l.b16 %v833
      %v919 = vunpack.c.l.b16 %v834
      %v920 = vunpack.c.l.b16 %v835
      %v921 = vunpack.c.l.b16 %v836
      %v922 = vunpack.c.l.b16 %v837
      %v923 = vunpack.c.l.b16 %v838
      %v924 = vunpack.c.l.b16 %v839
      %v925 = vunpack.c.l.b16 %v840
      %v926 = vunpack.c.l.b16 %v841
      %v927 = vunpack.c.l.b16 %v842
      %v928 = vunpack.c.l.b16 %v843
      %v929 = vunpack.c.l.b16 %v844
      %v930 = vunpack.c.l.b16 %v845
      %v931 = vunpack.c.l.b16 %v846
      %v932 = vunpack.c.l.b16 %v847
      %v933 = vunpack.c.l.b16 %v848
      %v934 = vunpack.c.l.b16 %v849
      %v935 = vunpack.c.l.b16 %v850
      %v936 = vunpack.c.l.b16 %v851
      %v937 = vunpack.c.l.b16 %v852
      %v938 = vunpack.c.l.b16 %v853
      %v939 = vpack.c.b16 %v908, %v907
      %v940 = vpack.c.b16 %v910, %v909
      %v941 = vpack.c.b16 %v912, %v911
      %v942 = vpack.c.b16 %v914, %v913
      %v943 = vpack.c.b16 %v916, %v915
      %v944 = vpack.c.b16 %v918, %v917
      %v945 = vpack.c.b16 %v920, %v919
      %v946 = vpack.c.b16 %v922, %v921
      %v947 = vpack.c.b16 %v924, %v923
      %v948 = vpack.c.b16 %v926, %v925
      %v949 = vpack.c.b16 %v928, %v927
      %v950 = vpack.c.b16 %v930, %v929
      %v951 = vpack.c.b16 %v932, %v931
      %v952 = vpack.c.b16 %v934, %v933
      %v953 = vpack.c.b16 %v936, %v935
      %v954 = vpack.c.b16 %v938, %v937
      %971 = vmatprep.subr.bf16.mxu0 0
      %972 = vmatpush1.bf16.msra.mxu0 %v939
      %973 = vmatprep.subr.bf16.mxu0 0
      %974 = vmatpush1.bf16.msra.mxu0 %v940
      %975 = vmatprep.subr.bf16.mxu0 0
      %976 = vmatpush1.bf16.msra.mxu0 %v941
      %977 = vmatprep.subr.bf16.mxu0 0
      %978 = vmatpush1.bf16.msra.mxu0 %v942
      %979 = vmatprep.subr.bf16.mxu0 0
      %980 = vmatpush1.bf16.msra.mxu0 %v943
      %981 = vmatprep.subr.bf16.mxu0 0
      %982 = vmatpush1.bf16.msra.mxu0 %v944
      %983 = vmatprep.subr.bf16.mxu0 0
      %984 = vmatpush1.bf16.msra.mxu0 %v945
      %985 = vmatprep.subr.bf16.mxu0 0
      %986 = vmatpush1.bf16.msra.mxu0 %v946
      %987 = vmatprep.subr.bf16.mxu0 0
      %988 = vmatpush1.bf16.msra.mxu0 %v947
      %989 = vmatprep.subr.bf16.mxu0 0
      %990 = vmatpush1.bf16.msra.mxu0 %v948
      %991 = vmatprep.subr.bf16.mxu0 0
      %992 = vmatpush1.bf16.msra.mxu0 %v949
      %993 = vmatprep.subr.bf16.mxu0 0
      %994 = vmatpush1.bf16.msra.mxu0 %v950
      %995 = vmatprep.subr.bf16.mxu0 0
      %996 = vmatpush1.bf16.msra.mxu0 %v951
      %997 = vmatprep.subr.bf16.mxu0 0
      %998 = vmatpush1.bf16.msra.mxu0 %v952
      %999 = vmatprep.subr.bf16.mxu0 0
      %1000 = vmatpush1.bf16.msra.mxu0 %v953
      %1001 = vmatprep.subr.bf16.mxu0 0
      %1002 = vmatpush1.bf16.msra.mxu0 %v954
      %1003 = vmatprep.mubr.bf16.mxu0 %v872
      %1004 = vmatmul.mubr.bf16.gmra.mrb[0].mxu0 %v865
      %v1005 = vpop.f32.mrb[0].mxu0
      %v1006 = vadd.f32 0.0, %v1005
      %v1007 = vpop.f32.mrb[0].mxu0
      %v1008 = vpop.f32.mrb[0].mxu0
      %v1009 = vpop.f32.mrb[0].mxu0
      %1010 = vdwg.mxu0
      %v1011 = vadd.f32 %v819, %v1006
      %v1012 = vld [vmem:[%s263] sm:$0x33]
      %s1013 = scalar_lea.vmem %s2, 512
      %v1014 = vld [vmem:[%s1013] sm:$0xf]
      %v1015 = vld [vmem:[%s1013 + $0x4] sm:$0xf]
      %v1016 = vld [vmem:[%s1013 + $0x8] sm:$0xf]
      %v1017 = vld [vmem:[%s1013 + $0xc] sm:$0xf]
      %v1018 = vld [vmem:[%s1013 + $0x10] sm:$0xf]
      %v1019 = vld [vmem:[%s1013 + $0x14] sm:$0xf]
      %v1020 = vld [vmem:[%s1013 + $0x18] sm:$0xf]
      %v1021 = vld [vmem:[%s1013 + $0x1c] sm:$0xf]
      %v1022 = vld [vmem:[%s1013 + $0x20] sm:$0xf]
      %v1023 = vld [vmem:[%s1013 + $0x24] sm:$0xf]
      %v1024 = vld [vmem:[%s1013 + $0x28] sm:$0xf]
      %v1025 = vld [vmem:[%s1013 + $0x2c] sm:$0xf]
      %v1026 = vld [vmem:[%s1013 + $0x30] sm:$0xf]
      %v1027 = vld [vmem:[%s1013 + $0x34] sm:$0xf]
      %v1028 = vld [vmem:[%s1013 + $0x38] sm:$0xf]
      %v1029 = vld [vmem:[%s1013 + $0x3c] sm:$0xf]
      %v1030 = vld [vmem:[%s1013 + $0x40] sm:$0xf]
      %v1031 = vld [vmem:[%s1013 + $0x44] sm:$0xf]
      %v1032 = vld [vmem:[%s1013 + $0x48] sm:$0xf]
      %v1033 = vld [vmem:[%s1013 + $0x4c] sm:$0xf]
      %v1034 = vld [vmem:[%s1013 + $0x50] sm:$0xf]
      %v1035 = vld [vmem:[%s1013 + $0x54] sm:$0xf]
      %v1036 = vld [vmem:[%s1013 + $0x58] sm:$0xf]
      %v1037 = vld [vmem:[%s1013 + $0x5c] sm:$0xf]
      %v1038 = vld [vmem:[%s1013 + $0x60] sm:$0xf]
      %v1039 = vld [vmem:[%s1013 + $0x64] sm:$0xf]
      %v1040 = vld [vmem:[%s1013 + $0x68] sm:$0xf]
      %v1041 = vld [vmem:[%s1013 + $0x6c] sm:$0xf]
      %v1042 = vld [vmem:[%s1013 + $0x70] sm:$0xf]
      %v1043 = vld [vmem:[%s1013 + $0x74] sm:$0xf]
      %v1044 = vld [vmem:[%s1013 + $0x78] sm:$0xf]
      %v1045 = vld [vmem:[%s1013 + $0x7c] sm:$0xf]
      %v1047 = vunpack.c.l.b16 %v1012
      %v1048 = vunpack.c.h.b16 %v1012
      %v1049 = vpack.c.b16 %v1047, %v1047
      %v1050 = vpack.c.b16 %v1048, %v1048
      %v1085 = vunpack.c.l.b16 %v1014
      %v1086 = vunpack.c.l.b16 %v1015
      %v1087 = vunpack.c.l.b16 %v1016
      %v1088 = vunpack.c.l.b16 %v1017
      %v1089 = vunpack.c.l.b16 %v1018
      %v1090 = vunpack.c.l.b16 %v1019
      %v1091 = vunpack.c.l.b16 %v1020
      %v1092 = vunpack.c.l.b16 %v1021
      %v1093 = vunpack.c.l.b16 %v1022
      %v1094 = vunpack.c.l.b16 %v1023
      %v1095 = vunpack.c.l.b16 %v1024
      %v1096 = vunpack.c.l.b16 %v1025
      %v1097 = vunpack.c.l.b16 %v1026
      %v1098 = vunpack.c.l.b16 %v1027
      %v1099 = vunpack.c.l.b16 %v1028
      %v1100 = vunpack.c.l.b16 %v1029
      %v1101 = vunpack.c.l.b16 %v1030
      %v1102 = vunpack.c.l.b16 %v1031
      %v1103 = vunpack.c.l.b16 %v1032
      %v1104 = vunpack.c.l.b16 %v1033
      %v1105 = vunpack.c.l.b16 %v1034
      %v1106 = vunpack.c.l.b16 %v1035
      %v1107 = vunpack.c.l.b16 %v1036
      %v1108 = vunpack.c.l.b16 %v1037
      %v1109 = vunpack.c.l.b16 %v1038
      %v1110 = vunpack.c.l.b16 %v1039
      %v1111 = vunpack.c.l.b16 %v1040
      %v1112 = vunpack.c.l.b16 %v1041
      %v1113 = vunpack.c.l.b16 %v1042
      %v1114 = vunpack.c.l.b16 %v1043
      %v1115 = vunpack.c.l.b16 %v1044
      %v1116 = vunpack.c.l.b16 %v1045
      %v1117 = vpack.c.b16 %v1086, %v1085
      %v1118 = vpack.c.b16 %v1088, %v1087
      %v1119 = vpack.c.b16 %v1090, %v1089
      %v1120 = vpack.c.b16 %v1092, %v1091
      %v1121 = vpack.c.b16 %v1094, %v1093
      %v1122 = vpack.c.b16 %v1096, %v1095
      %v1123 = vpack.c.b16 %v1098, %v1097
      %v1124 = vpack.c.b16 %v1100, %v1099
      %v1125 = vpack.c.b16 %v1102, %v1101
      %v1126 = vpack.c.b16 %v1104, %v1103
      %v1127 = vpack.c.b16 %v1106, %v1105
      %v1128 = vpack.c.b16 %v1108, %v1107
      %v1129 = vpack.c.b16 %v1110, %v1109
      %v1130 = vpack.c.b16 %v1112, %v1111
      %v1131 = vpack.c.b16 %v1114, %v1113
      %v1132 = vpack.c.b16 %v1116, %v1115
      %1149 = vmatprep.subr.bf16.mxu0 0
      %1150 = vmatpush1.bf16.msra.mxu0 %v1117
      %1151 = vmatprep.subr.bf16.mxu0 0
      %1152 = vmatpush1.bf16.msra.mxu0 %v1118
      %1153 = vmatprep.subr.bf16.mxu0 0
      %1154 = vmatpush1.bf16.msra.mxu0 %v1119
      %1155 = vmatprep.subr.bf16.mxu0 0
      %1156 = vmatpush1.bf16.msra.mxu0 %v1120
      %1157 = vmatprep.subr.bf16.mxu0 0
      %1158 = vmatpush1.bf16.msra.mxu0 %v1121
      %1159 = vmatprep.subr.bf16.mxu0 0
      %1160 = vmatpush1.bf16.msra.mxu0 %v1122
      %1161 = vmatprep.subr.bf16.mxu0 0
      %1162 = vmatpush1.bf16.msra.mxu0 %v1123
      %1163 = vmatprep.subr.bf16.mxu0 0
      %1164 = vmatpush1.bf16.msra.mxu0 %v1124
      %1165 = vmatprep.subr.bf16.mxu0 0
      %1166 = vmatpush1.bf16.msra.mxu0 %v1125
      %1167 = vmatprep.subr.bf16.mxu0 0
      %1168 = vmatpush1.bf16.msra.mxu0 %v1126
      %1169 = vmatprep.subr.bf16.mxu0 0
      %1170 = vmatpush1.bf16.msra.mxu0 %v1127
      %1171 = vmatprep.subr.bf16.mxu0 0
      %1172 = vmatpush1.bf16.msra.mxu0 %v1128
      %1173 = vmatprep.subr.bf16.mxu0 0
      %1174 = vmatpush1.bf16.msra.mxu0 %v1129
      %1175 = vmatprep.subr.bf16.mxu0 0
      %1176 = vmatpush1.bf16.msra.mxu0 %v1130
      %1177 = vmatprep.subr.bf16.mxu0 0
      %1178 = vmatpush1.bf16.msra.mxu0 %v1131
      %1179 = vmatprep.subr.bf16.mxu0 0
      %1180 = vmatpush1.bf16.msra.mxu0 %v1132
      %1181 = vmatprep.mubr.bf16.mxu0 %v1050
      %1182 = vmatmul.mubr.bf16.gmra.mrb[0].mxu0 %v1049
      %v1183 = vpop.f32.mrb[0].mxu0
      %v1184 = vadd.f32 0.0, %v1183
      %v1185 = vpop.f32.mrb[0].mxu0
      %v1186 = vpop.f32.mrb[0].mxu0
      %v1187 = vpop.f32.mrb[0].mxu0
      %1188 = vdwg.mxu0
      %v1189 = vadd.f32 %v1011, %v1184
      %v1190 = vld [vmem:[%s263] sm:$0x77]
      %s1191 = scalar_lea.vmem %s2, 640
      %v1192 = vld [vmem:[%s1191] sm:$0xf]
      %v1193 = vld [vmem:[%s1191 + $0x4] sm:$0xf]
      %v1194 = vld [vmem:[%s1191 + $0x8] sm:$0xf]
      %v1195 = vld [vmem:[%s1191 + $0xc] sm:$0xf]
      %v1196 = vld [vmem:[%s1191 + $0x10] sm:$0xf]
      %v1197 = vld [vmem:[%s1191 + $0x14] sm:$0xf]
      %v1198 = vld [vmem:[%s1191 + $0x18] sm:$0xf]
      %v1199 = vld [vmem:[%s1191 + $0x1c] sm:$0xf]
      %v1200 = vld [vmem:[%s1191 + $0x20] sm:$0xf]
      %v1201 = vld [vmem:[%s1191 + $0x24] sm:$0xf]
      %v1202 = vld [vmem:[%s1191 + $0x28] sm:$0xf]
      %v1203 = vld [vmem:[%s1191 + $0x2c] sm:$0xf]
      %v1204 = vld [vmem:[%s1191 + $0x30] sm:$0xf]
      %v1205 = vld [vmem:[%s1191 + $0x34] sm:$0xf]
      %v1206 = vld [vmem:[%s1191 + $0x38] sm:$0xf]
      %v1207 = vld [vmem:[%s1191 + $0x3c] sm:$0xf]
      %v1208 = vld [vmem:[%s1191 + $0x40] sm:$0xf]
      %v1209 = vld [vmem:[%s1191 + $0x44] sm:$0xf]
      %v1210 = vld [vmem:[%s1191 + $0x48] sm:$0xf]
      %v1211 = vld [vmem:[%s1191 + $0x4c] sm:$0xf]
      %v1212 = vld [vmem:[%s1191 + $0x50] sm:$0xf]
      %v1213 = vld [vmem:[%s1191 + $0x54] sm:$0xf]
      %v1214 = vld [vmem:[%s1191 + $0x58] sm:$0xf]
      %v1215 = vld [vmem:[%s1191 + $0x5c] sm:$0xf]
      %v1216 = vld [vmem:[%s1191 + $0x60] sm:$0xf]
      %v1217 = vld [vmem:[%s1191 + $0x64] sm:$0xf]
      %v1218 = vld [vmem:[%s1191 + $0x68] sm:$0xf]
      %v1219 = vld [vmem:[%s1191 + $0x6c] sm:$0xf]
      %v1220 = vld [vmem:[%s1191 + $0x70] sm:$0xf]
      %v1221 = vld [vmem:[%s1191 + $0x74] sm:$0xf]
      %v1222 = vld [vmem:[%s1191 + $0x78] sm:$0xf]
      %v1223 = vld [vmem:[%s1191 + $0x7c] sm:$0xf]
      %v1225 = vunpack.c.l.b16 %v1190
      %v1226 = vunpack.c.h.b16 %v1190
      %v1227 = vpack.c.b16 %v1225, %v1225
      %v1228 = vpack.c.b16 %v1226, %v1226
      %v1230 = vshrl.u32 %v1227, 16
      %v1232 = vshll.u32 %v1227, 16
      %v1234 = vrot.slane %v1232, 1
      %v1235 = vor.u32 %v1230, %v1234
      %v1237 = vshrl.u32 %v1228, 16
      %v1239 = vshll.u32 %v1228, 16
      %v1241 = vrot.slane %v1239, 1
      %v1242 = vor.u32 %v1237, %v1241
      %v1277 = vunpack.c.l.b16 %v1192
      %v1278 = vunpack.c.l.b16 %v1193
      %v1279 = vunpack.c.l.b16 %v1194
      %v1280 = vunpack.c.l.b16 %v1195
      %v1281 = vunpack.c.l.b16 %v1196
      %v1282 = vunpack.c.l.b16 %v1197
      %v1283 = vunpack.c.l.b16 %v1198
      %v1284 = vunpack.c.l.b16 %v1199
      %v1285 = vunpack.c.l.b16 %v1200
      %v1286 = vunpack.c.l.b16 %v1201
      %v1287 = vunpack.c.l.b16 %v1202
      %v1288 = vunpack.c.l.b16 %v1203
      %v1289 = vunpack.c.l.b16 %v1204
      %v1290 = vunpack.c.l.b16 %v1205
      %v1291 = vunpack.c.l.b16 %v1206
      %v1292 = vunpack.c.l.b16 %v1207
      %v1293 = vunpack.c.l.b16 %v1208
      %v1294 = vunpack.c.l.b16 %v1209
      %v1295 = vunpack.c.l.b16 %v1210
      %v1296 = vunpack.c.l.b16 %v1211
      %v1297 = vunpack.c.l.b16 %v1212
      %v1298 = vunpack.c.l.b16 %v1213
      %v1299 = vunpack.c.l.b16 %v1214
      %v1300 = vunpack.c.l.b16 %v1215
      %v1301 = vunpack.c.l.b16 %v1216
      %v1302 = vunpack.c.l.b16 %v1217
      %v1303 = vunpack.c.l.b16 %v1218
      %v1304 = vunpack.c.l.b16 %v1219
      %v1305 = vunpack.c.l.b16 %v1220
      %v1306 = vunpack.c.l.b16 %v1221
      %v1307 = vunpack.c.l.b16 %v1222
      %v1308 = vunpack.c.l.b16 %v1223
      %v1309 = vpack.c.b16 %v1278, %v1277
      %v1310 = vpack.c.b16 %v1280, %v1279
      %v1311 = vpack.c.b16 %v1282, %v1281
      %v1312 = vpack.c.b16 %v1284, %v1283
      %v1313 = vpack.c.b16 %v1286, %v1285
      %v1314 = vpack.c.b16 %v1288, %v1287
      %v1315 = vpack.c.b16 %v1290, %v1289
      %v1316 = vpack.c.b16 %v1292, %v1291
      %v1317 = vpack.c.b16 %v1294, %v1293
      %v1318 = vpack.c.b16 %v1296, %v1295
      %v1319 = vpack.c.b16 %v1298, %v1297
      %v1320 = vpack.c.b16 %v1300, %v1299
      %v1321 = vpack.c.b16 %v1302, %v1301
      %v1322 = vpack.c.b16 %v1304, %v1303
      %v1323 = vpack.c.b16 %v1306, %v1305
      %v1324 = vpack.c.b16 %v1308, %v1307
      %1341 = vmatprep.subr.bf16.mxu0 0
      %1342 = vmatpush1.bf16.msra.mxu0 %v1309
      %1343 = vmatprep.subr.bf16.mxu0 0
      %1344 = vmatpush1.bf16.msra.mxu0 %v1310
      %1345 = vmatprep.subr.bf16.mxu0 0
      %1346 = vmatpush1.bf16.msra.mxu0 %v1311
      %1347 = vmatprep.subr.bf16.mxu0 0
      %1348 = vmatpush1.bf16.msra.mxu0 %v1312
      %1349 = vmatprep.subr.bf16.mxu0 0
      %1350 = vmatpush1.bf16.msra.mxu0 %v1313
      %1351 = vmatprep.subr.bf16.mxu0 0
      %1352 = vmatpush1.bf16.msra.mxu0 %v1314
      %1353 = vmatprep.subr.bf16.mxu0 0
      %1354 = vmatpush1.bf16.msra.mxu0 %v1315
      %1355 = vmatprep.subr.bf16.mxu0 0
      %1356 = vmatpush1.bf16.msra.mxu0 %v1316
      %1357 = vmatprep.subr.bf16.mxu0 0
      %1358 = vmatpush1.bf16.msra.mxu0 %v1317
      %1359 = vmatprep.subr.bf16.mxu0 0
      %1360 = vmatpush1.bf16.msra.mxu0 %v1318
      %1361 = vmatprep.subr.bf16.mxu0 0
      %1362 = vmatpush1.bf16.msra.mxu0 %v1319
      %1363 = vmatprep.subr.bf16.mxu0 0
      %1364 = vmatpush1.bf16.msra.mxu0 %v1320
      %1365 = vmatprep.subr.bf16.mxu0 0
      %1366 = vmatpush1.bf16.msra.mxu0 %v1321
      %1367 = vmatprep.subr.bf16.mxu0 0
      %1368 = vmatpush1.bf16.msra.mxu0 %v1322
      %1369 = vmatprep.subr.bf16.mxu0 0
      %1370 = vmatpush1.bf16.msra.mxu0 %v1323
      %1371 = vmatprep.subr.bf16.mxu0 0
      %1372 = vmatpush1.bf16.msra.mxu0 %v1324
      %1373 = vmatprep.mubr.bf16.mxu0 %v1242
      %1374 = vmatmul.mubr.bf16.gmra.mrb[0].mxu0 %v1235
      %v1375 = vpop.f32.mrb[0].mxu0
      %v1376 = vadd.f32 0.0, %v1375
      %v1377 = vpop.f32.mrb[0].mxu0
      %v1378 = vpop.f32.mrb[0].mxu0
      %v1379 = vpop.f32.mrb[0].mxu0
      %1380 = vdwg.mxu0
      %v1381 = vadd.f32 %v1189, %v1376
      %s1382 = scalar_lea.vmem %s263, 8
      %v1383 = vld [vmem:[%s1382] sm:$0x33]
      %s1384 = scalar_lea.vmem %s2, 768
      %v1385 = vld [vmem:[%s1384] sm:$0xf]
      %v1386 = vld [vmem:[%s1384 + $0x4] sm:$0xf]
      %v1387 = vld [vmem:[%s1384 + $0x8] sm:$0xf]
      %v1388 = vld [vmem:[%s1384 + $0xc] sm:$0xf]
      %v1389 = vld [vmem:[%s1384 + $0x10] sm:$0xf]
      %v1390 = vld [vmem:[%s1384 + $0x14] sm:$0xf]
      %v1391 = vld [vmem:[%s1384 + $0x18] sm:$0xf]
      %v1392 = vld [vmem:[%s1384 + $0x1c] sm:$0xf]
      %v1393 = vld [vmem:[%s1384 + $0x20] sm:$0xf]
      %v1394 = vld [vmem:[%s1384 + $0x24] sm:$0xf]
      %v1395 = vld [vmem:[%s1384 + $0x28] sm:$0xf]
      %v1396 = vld [vmem:[%s1384 + $0x2c] sm:$0xf]
      %v1397 = vld [vmem:[%s1384 + $0x30] sm:$0xf]
      %v1398 = vld [vmem:[%s1384 + $0x34] sm:$0xf]
      %v1399 = vld [vmem:[%s1384 + $0x38] sm:$0xf]
      %v1400 = vld [vmem:[%s1384 + $0x3c] sm:$0xf]
      %v1401 = vld [vmem:[%s1384 + $0x40] sm:$0xf]
      %v1402 = vld [vmem:[%s1384 + $0x44] sm:$0xf]
      %v1403 = vld [vmem:[%s1384 + $0x48] sm:$0xf]
      %v1404 = vld [vmem:[%s1384 + $0x4c] sm:$0xf]
      %v1405 = vld [vmem:[%s1384 + $0x50] sm:$0xf]
      %v1406 = vld [vmem:[%s1384 + $0x54] sm:$0xf]
      %v1407 = vld [vmem:[%s1384 + $0x58] sm:$0xf]
      %v1408 = vld [vmem:[%s1384 + $0x5c] sm:$0xf]
      %v1409 = vld [vmem:[%s1384 + $0x60] sm:$0xf]
      %v1410 = vld [vmem:[%s1384 + $0x64] sm:$0xf]
      %v1411 = vld [vmem:[%s1384 + $0x68] sm:$0xf]
      %v1412 = vld [vmem:[%s1384 + $0x6c] sm:$0xf]
      %v1413 = vld [vmem:[%s1384 + $0x70] sm:$0xf]
      %v1414 = vld [vmem:[%s1384 + $0x74] sm:$0xf]
      %v1415 = vld [vmem:[%s1384 + $0x78] sm:$0xf]
      %v1416 = vld [vmem:[%s1384 + $0x7c] sm:$0xf]
      %v1418 = vunpack.c.l.b16 %v1383
      %v1419 = vunpack.c.h.b16 %v1383
      %v1420 = vpack.c.b16 %v1418, %v1418
      %v1421 = vpack.c.b16 %v1419, %v1419
      %v1456 = vunpack.c.l.b16 %v1385
      %v1457 = vunpack.c.l.b16 %v1386
      %v1458 = vunpack.c.l.b16 %v1387
      %v1459 = vunpack.c.l.b16 %v1388
      %v1460 = vunpack.c.l.b16 %v1389
      %v1461 = vunpack.c.l.b16 %v1390
      %v1462 = vunpack.c.l.b16 %v1391
      %v1463 = vunpack.c.l.b16 %v1392
      %v1464 = vunpack.c.l.b16 %v1393
      %v1465 = vunpack.c.l.b16 %v1394
      %v1466 = vunpack.c.l.b16 %v1395
      %v1467 = vunpack.c.l.b16 %v1396
      %v1468 = vunpack.c.l.b16 %v1397
      %v1469 = vunpack.c.l.b16 %v1398
      %v1470 = vunpack.c.l.b16 %v1399
      %v1471 = vunpack.c.l.b16 %v1400
      %v1472 = vunpack.c.l.b16 %v1401
      %v1473 = vunpack.c.l.b16 %v1402
      %v1474 = vunpack.c.l.b16 %v1403
      %v1475 = vunpack.c.l.b16 %v1404
      %v1476 = vunpack.c.l.b16 %v1405
      %v1477 = vunpack.c.l.b16 %v1406
      %v1478 = vunpack.c.l.b16 %v1407
      %v1479 = vunpack.c.l.b16 %v1408
      %v1480 = vunpack.c.l.b16 %v1409
      %v1481 = vunpack.c.l.b16 %v1410
      %v1482 = vunpack.c.l.b16 %v1411
      %v1483 = vunpack.c.l.b16 %v1412
      %v1484 = vunpack.c.l.b16 %v1413
      %v1485 = vunpack.c.l.b16 %v1414
      %v1486 = vunpack.c.l.b16 %v1415
      %v1487 = vunpack.c.l.b16 %v1416
      %v1488 = vpack.c.b16 %v1457, %v1456
      %v1489 = vpack.c.b16 %v1459, %v1458
      %v1490 = vpack.c.b16 %v1461, %v1460
      %v1491 = vpack.c.b16 %v1463, %v1462
      %v1492 = vpack.c.b16 %v1465, %v1464
      %v1493 = vpack.c.b16 %v1467, %v1466
      %v1494 = vpack.c.b16 %v1469, %v1468
      %v1495 = vpack.c.b16 %v1471, %v1470
      %v1496 = vpack.c.b16 %v1473, %v1472
      %v1497 = vpack.c.b16 %v1475, %v1474
      %v1498 = vpack.c.b16 %v1477, %v1476
      %v1499 = vpack.c.b16 %v1479, %v1478
      %v1500 = vpack.c.b16 %v1481, %v1480
      %v1501 = vpack.c.b16 %v1483, %v1482
      %v1502 = vpack.c.b16 %v1485, %v1484
      %v1503 = vpack.c.b16 %v1487, %v1486
      %1520 = vmatprep.subr.bf16.mxu0 0
      %1521 = vmatpush1.bf16.msra.mxu0 %v1488
      %1522 = vmatprep.subr.bf16.mxu0 0
      %1523 = vmatpush1.bf16.msra.mxu0 %v1489
      %1524 = vmatprep.subr.bf16.mxu0 0
      %1525 = vmatpush1.bf16.msra.mxu0 %v1490
      %1526 = vmatprep.subr.bf16.mxu0 0
      %1527 = vmatpush1.bf16.msra.mxu0 %v1491
      %1528 = vmatprep.subr.bf16.mxu0 0
      %1529 = vmatpush1.bf16.msra.mxu0 %v1492
      %1530 = vmatprep.subr.bf16.mxu0 0
      %1531 = vmatpush1.bf16.msra.mxu0 %v1493
      %1532 = vmatprep.subr.bf16.mxu0 0
      %1533 = vmatpush1.bf16.msra.mxu0 %v1494
      %1534 = vmatprep.subr.bf16.mxu0 0
      %1535 = vmatpush1.bf16.msra.mxu0 %v1495
      %1536 = vmatprep.subr.bf16.mxu0 0
      %1537 = vmatpush1.bf16.msra.mxu0 %v1496
      %1538 = vmatprep.subr.bf16.mxu0 0
      %1539 = vmatpush1.bf16.msra.mxu0 %v1497
      %1540 = vmatprep.subr.bf16.mxu0 0
      %1541 = vmatpush1.bf16.msra.mxu0 %v1498
      %1542 = vmatprep.subr.bf16.mxu0 0
      %1543 = vmatpush1.bf16.msra.mxu0 %v1499
      %1544 = vmatprep.subr.bf16.mxu0 0
      %1545 = vmatpush1.bf16.msra.mxu0 %v1500
      %1546 = vmatprep.subr.bf16.mxu0 0
      %1547 = vmatpush1.bf16.msra.mxu0 %v1501
      %1548 = vmatprep.subr.bf16.mxu0 0
      %1549 = vmatpush1.bf16.msra.mxu0 %v1502
      %1550 = vmatprep.subr.bf16.mxu0 0
      %1551 = vmatpush1.bf16.msra.mxu0 %v1503
      %1552 = vmatprep.mubr.bf16.mxu0 %v1421
      %1553 = vmatmul.mubr.bf16.gmra.mrb[0].mxu0 %v1420
      %v1554 = vpop.f32.mrb[0].mxu0
      %v1555 = vadd.f32 0.0, %v1554
      %v1556 = vpop.f32.mrb[0].mxu0
      %v1557 = vpop.f32.mrb[0].mxu0
      %v1558 = vpop.f32.mrb[0].mxu0
      %1559 = vdwg.mxu0
      %v1560 = vadd.f32 %v1381, %v1555
      %v1561 = vld [vmem:[%s1382] sm:$0x77]
      %s1562 = scalar_lea.vmem %s2, 896
      %v1563 = vld [vmem:[%s1562] sm:$0xf]
      %v1564 = vld [vmem:[%s1562 + $0x4] sm:$0xf]
      %v1565 = vld [vmem:[%s1562 + $0x8] sm:$0xf]
      %v1566 = vld [vmem:[%s1562 + $0xc] sm:$0xf]
      %v1567 = vld [vmem:[%s1562 + $0x10] sm:$0xf]
      %v1568 = vld [vmem:[%s1562 + $0x14] sm:$0xf]
      %v1569 = vld [vmem:[%s1562 + $0x18] sm:$0xf]
      %v1570 = vld [vmem:[%s1562 + $0x1c] sm:$0xf]
      %v1571 = vld [vmem:[%s1562 + $0x20] sm:$0xf]
      %v1572 = vld [vmem:[%s1562 + $0x24] sm:$0xf]
      %v1573 = vld [vmem:[%s1562 + $0x28] sm:$0xf]
      %v1574 = vld [vmem:[%s1562 + $0x2c] sm:$0xf]
      %v1575 = vld [vmem:[%s1562 + $0x30] sm:$0xf]
      %v1576 = vld [vmem:[%s1562 + $0x34] sm:$0xf]
      %v1577 = vld [vmem:[%s1562 + $0x38] sm:$0xf]
      %v1578 = vld [vmem:[%s1562 + $0x3c] sm:$0xf]
      %v1579 = vld [vmem:[%s1562 + $0x40] sm:$0xf]
      %v1580 = vld [vmem:[%s1562 + $0x44] sm:$0xf]
      %v1581 = vld [vmem:[%s1562 + $0x48] sm:$0xf]
      %v1582 = vld [vmem:[%s1562 + $0x4c] sm:$0xf]
      %v1583 = vld [vmem:[%s1562 + $0x50] sm:$0xf]
      %v1584 = vld [vmem:[%s1562 + $0x54] sm:$0xf]
      %v1585 = vld [vmem:[%s1562 + $0x58] sm:$0xf]
      %v1586 = vld [vmem:[%s1562 + $0x5c] sm:$0xf]
      %v1587 = vld [vmem:[%s1562 + $0x60] sm:$0xf]
      %v1588 = vld [vmem:[%s1562 + $0x64] sm:$0xf]
      %v1589 = vld [vmem:[%s1562 + $0x68] sm:$0xf]
      %v1590 = vld [vmem:[%s1562 + $0x6c] sm:$0xf]
      %v1591 = vld [vmem:[%s1562 + $0x70] sm:$0xf]
      %v1592 = vld [vmem:[%s1562 + $0x74] sm:$0xf]
      %v1593 = vld [vmem:[%s1562 + $0x78] sm:$0xf]
      %v1594 = vld [vmem:[%s1562 + $0x7c] sm:$0xf]
      %v1596 = vunpack.c.l.b16 %v1561
      %v1597 = vunpack.c.h.b16 %v1561
      %v1598 = vpack.c.b16 %v1596, %v1596
      %v1599 = vpack.c.b16 %v1597, %v1597
      %v1601 = vshrl.u32 %v1598, 16
      %v1603 = vshll.u32 %v1598, 16
      %v1605 = vrot.slane %v1603, 1
      %v1606 = vor.u32 %v1601, %v1605
      %v1608 = vshrl.u32 %v1599, 16
      %v1610 = vshll.u32 %v1599, 16
      %v1612 = vrot.slane %v1610, 1
      %v1613 = vor.u32 %v1608, %v1612
      %v1648 = vunpack.c.l.b16 %v1563
      %v1649 = vunpack.c.l.b16 %v1564
      %v1650 = vunpack.c.l.b16 %v1565
      %v1651 = vunpack.c.l.b16 %v1566
      %v1652 = vunpack.c.l.b16 %v1567
      %v1653 = vunpack.c.l.b16 %v1568
      %v1654 = vunpack.c.l.b16 %v1569
      %v1655 = vunpack.c.l.b16 %v1570
      %v1656 = vunpack.c.l.b16 %v1571
      %v1657 = vunpack.c.l.b16 %v1572
      %v1658 = vunpack.c.l.b16 %v1573
      %v1659 = vunpack.c.l.b16 %v1574
      %v1660 = vunpack.c.l.b16 %v1575
      %v1661 = vunpack.c.l.b16 %v1576
      %v1662 = vunpack.c.l.b16 %v1577
      %v1663 = vunpack.c.l.b16 %v1578
      %v1664 = vunpack.c.l.b16 %v1579
      %v1665 = vunpack.c.l.b16 %v1580
      %v1666 = vunpack.c.l.b16 %v1581
      %v1667 = vunpack.c.l.b16 %v1582
      %v1668 = vunpack.c.l.b16 %v1583
      %v1669 = vunpack.c.l.b16 %v1584
      %v1670 = vunpack.c.l.b16 %v1585
      %v1671 = vunpack.c.l.b16 %v1586
      %v1672 = vunpack.c.l.b16 %v1587
      %v1673 = vunpack.c.l.b16 %v1588
      %v1674 = vunpack.c.l.b16 %v1589
      %v1675 = vunpack.c.l.b16 %v1590
      %v1676 = vunpack.c.l.b16 %v1591
      %v1677 = vunpack.c.l.b16 %v1592
      %v1678 = vunpack.c.l.b16 %v1593
      %v1679 = vunpack.c.l.b16 %v1594
      %v1680 = vpack.c.b16 %v1649, %v1648
      %v1681 = vpack.c.b16 %v1651, %v1650
      %v1682 = vpack.c.b16 %v1653, %v1652
      %v1683 = vpack.c.b16 %v1655, %v1654
      %v1684 = vpack.c.b16 %v1657, %v1656
      %v1685 = vpack.c.b16 %v1659, %v1658
      %v1686 = vpack.c.b16 %v1661, %v1660
      %v1687 = vpack.c.b16 %v1663, %v1662
      %v1688 = vpack.c.b16 %v1665, %v1664
      %v1689 = vpack.c.b16 %v1667, %v1666
      %v1690 = vpack.c.b16 %v1669, %v1668
      %v1691 = vpack.c.b16 %v1671, %v1670
      %v1692 = vpack.c.b16 %v1673, %v1672
      %v1693 = vpack.c.b16 %v1675, %v1674
      %v1694 = vpack.c.b16 %v1677, %v1676
      %v1695 = vpack.c.b16 %v1679, %v1678
      %1712 = vmatprep.subr.bf16.mxu0 0
      %1713 = vmatpush1.bf16.msra.mxu0 %v1680
      %1714 = vmatprep.subr.bf16.mxu0 0
      %1715 = vmatpush1.bf16.msra.mxu0 %v1681
      %1716 = vmatprep.subr.bf16.mxu0 0
      %1717 = vmatpush1.bf16.msra.mxu0 %v1682
      %1718 = vmatprep.subr.bf16.mxu0 0
      %1719 = vmatpush1.bf16.msra.mxu0 %v1683
      %1720 = vmatprep.subr.bf16.mxu0 0
      %1721 = vmatpush1.bf16.msra.mxu0 %v1684
      %1722 = vmatprep.subr.bf16.mxu0 0
      %1723 = vmatpush1.bf16.msra.mxu0 %v1685
      %1724 = vmatprep.subr.bf16.mxu0 0
      %1725 = vmatpush1.bf16.msra.mxu0 %v1686
      %1726 = vmatprep.subr.bf16.mxu0 0
      %1727 = vmatpush1.bf16.msra.mxu0 %v1687
      %1728 = vmatprep.subr.bf16.mxu0 0
      %1729 = vmatpush1.bf16.msra.mxu0 %v1688
      %1730 = vmatprep.subr.bf16.mxu0 0
      %1731 = vmatpush1.bf16.msra.mxu0 %v1689
      %1732 = vmatprep.subr.bf16.mxu0 0
      %1733 = vmatpush1.bf16.msra.mxu0 %v1690
      %1734 = vmatprep.subr.bf16.mxu0 0
      %1735 = vmatpush1.bf16.msra.mxu0 %v1691
      %1736 = vmatprep.subr.bf16.mxu0 0
      %1737 = vmatpush1.bf16.msra.mxu0 %v1692
      %1738 = vmatprep.subr.bf16.mxu0 0
      %1739 = vmatpush1.bf16.msra.mxu0 %v1693
      %1740 = vmatprep.subr.bf16.mxu0 0
      %1741 = vmatpush1.bf16.msra.mxu0 %v1694
      %1742 = vmatprep.subr.bf16.mxu0 0
      %1743 = vmatpush1.bf16.msra.mxu0 %v1695
      %1744 = vmatprep.mubr.bf16.mxu0 %v1613
      %1745 = vmatmul.mubr.bf16.gmra.mrb[0].mxu0 %v1606
      %v1746 = vpop.f32.mrb[0].mxu0
      %v1747 = vadd.f32 0.0, %v1746
      %v1748 = vpop.f32.mrb[0].mxu0
      %v1749 = vpop.f32.mrb[0].mxu0
      %v1750 = vpop.f32.mrb[0].mxu0
      %1751 = vdwg.mxu0
      %v1752 = vadd.f32 %v1560, %v1747
      %v1753 = vld [vmem:[%s3] sm:$0x1]
      %v1755 = vlaneseq
      %v1756 = vshrl.u32 %v1755, 7
      %v1757 = vsub.s32 0, %v1756
      %v1758 = vrot.slane %v1753, %v1757
      %v1760 = vadd.f32 %v1752, %v1758
      %vm1761 = vcmp.gt.f32.partialorder %v1760, 0.0
      %v1762 = vmul.f32 %v1760, 0.2
      %v1763 = vsel %vm1761, %v1760, %v1762
      %v1764 = vpack.c.bf16 %v1763, %v1763
      %1765 = vst [vmem:[%s272] sm:$0x3] %v1764
      %p1766 = scmp.lt.s32.totalorder %s19, 1
      %s1767 = scalar_select %p1766, %s19, 1
      %p1768 = scmp.lt.s32.totalorder %s20, 3
      %s1769 = scalar_select %p1768, %s20, 3
      %s1770 = smul.addr %s1767, 4
      %s1771 = sadd.s32 %s1769, %s1770
      %s1772 = smul.addr %s1771, 2
      %s1773 = scalar_lea.vmem %s4, %s1772
      // Predicated region
      $region37: #{fc_discriminator_forward.7} parent=35 // pred_check
        %p1774 = pneg %p147
      $region38: #{fc_discriminator_forward.7} parent=35 // pred_check_branch
        %1776 = sbr.rel (%p1774) target = $region40
      $region39: #{fc_discriminator_forward.7} parent=35 // pred_region
        _
      $region40: #{fc_discriminator_forward.7} parent=35 // pred_fallthru
        _
    $region36: #{fc_discriminator_forward.7} parent=5 // pred_fallthru
      _
    %p1777 = scmp.le.s32.totalorder 2, %s10
    // Predicated region
    $region41: #{fc_discriminator_forward.7} parent=5 // pred_check
      %p1778 = pneg %p1777
    $region42: #{fc_discriminator_forward.7} parent=5 // pred_check_branch
      %1780 = sbr.rel (%p1778) target = $region44
    $region43: #{fc_discriminator_forward.7} parent=5 // pred_region
      %s1781 = ssub.s32 %s10, 2
      // Predicated region
      $region45: #{fc_discriminator_forward.7} parent=43 // pred_check
        %p1782 = pneg %p153
      $region46: #{fc_discriminator_forward.7} parent=43 // pred_check_branch
        %1784 = sbr.rel (%p1782) target = $region48
      $region47: #{fc_discriminator_forward.7} parent=43 // pred_region
        %p1785 = scmp.lt.s32.totalorder %s21, 1
        %s1786 = scalar_select %p1785, %s21, 1
        %p1787 = scmp.lt.s32.totalorder %s22, 3
        %s1788 = scalar_select %p1787, %s22, 3
        %s1789 = smul.addr %s1786, 4
        %s1790 = sadd.s32 %s1788, %s1789
        %s1791 = smul.addr %s1790, 2
        %s1792 = scalar_lea.vmem %s4, %s1791
      $region48: #{fc_discriminator_forward.7} parent=43 // pred_fallthru
        _
    $region44: #{fc_discriminator_forward.7} parent=5 // pred_fallthru
      _
  $region6: #{fc_discriminator_forward.7} parent=0 // loop_footer
    %s14 = sadd.s32 1, %s10
  $region7: #{fc_discriminator_forward.7} parent=0 // loop_footer_branch
    %9 = sbr.rel target = $region3
  $region8: #{fc_discriminator_forward.7} parent=0 // loop_exit
    _

// kernel: fc_discriminator_forward.8
$region0: #{fc_discriminator_forward.8}
  #allocation0 [shape = 'u32[]', space=smem, size = 0x4, offset = 0x4, fixed_abs, tag = 'smem constant byte address 0x4 - core index']
  #allocation1 [shape = 'u32[144,128]{1,0:T(1,128)}', space=vmem, size = 0x12000, scoped, tag = 'internal scratch']
  %s0 = inlined_call_operand.vmem [shape: bf16[2,3,2,3,256], index: 0, kind: input, shape index: {}, may-alias: {0,1}]
  %s1 = inlined_call_operand.vmem [shape: bf16[2,3,2,3,256], index: 1, kind: input, shape index: {}, may-alias: {0,1}]
  %s2 = inlined_call_operand.vmem [shape: bf16[8,256,128], index: 2, kind: input, shape index: {}]
  %s3 = inlined_call_operand.vmem [shape: f32[1,128], index: 3, kind: input, shape index: {}]
  %s4 = inlined_call_operand.vmem [shape: bf16[2,2,2,128], index: 4, kind: output, shape index: {}]
  %s5 = sld [smem:[#allocation0]]
  $region49: #{fc_discriminator_forward.8} parent=0
    _
  %s7 = ssub.s32 1, %s5
  %s8 = scalar_select 0, %s7, %s5
  loop: start=0, step=1, limit=6
  $region2: #{fc_discriminator_forward.8} parent=0 // loop_pre_header
    _
  $region3: #{fc_discriminator_forward.8} parent=0 // loop_header
    %s10 = sphi 0, %s14
    %p11 = scmp.ge.s32.totalorder %s10, 6
    %s17 = sphi 0, %s29
    %s18 = sphi 0, %s25
    %s19 = sphi 0, %s17
    %s20 = sphi 0, %s18
    %s21 = sphi 0, %s19
    %s22 = sphi 0, %s20
    %s34 = sphi 0, %s36
    %s37 = sphi 0, %s34
    %s38 = sphi 0, %s37
    %s54 = sphi 0, %s38
    %s64 = sphi 0, %s66
    %s67 = sphi 0, %s64
    %s68 = sphi 0, %s67
    %s84 = sphi 0, %s68
    %s88 = sphi 0, %s88
    %s90 = sphi 0, %s88
    %s91 = sphi 0, %s90
    %s105 = sphi 0, %s91
    %s109 = sphi 0, %s109
    %s111 = sphi 0, %s109
    %s112 = sphi 0, %s111
    %s126 = sphi 0, %s112
    %s134 = sphi 0, %s136
    %s137 = sphi 0, %s134
    %s138 = sphi 0, %s137
    %s154 = sphi 0, %s138
  $region4: #{fc_discriminator_forward.8} parent=0 // loop_header_branch
    %13 = sbr.rel (%p11) target = $region8
  $region5: #{fc_discriminator_forward.8} parent=0 // loop_body
    %s15 = ssub.s32 %s10, 1
    %s16 = ssub.s32 %s10, 2
    %s23 = sadd.s32 1, %s18
    %p24 = scmp.ge.s32.totalorder %s23, 2
    %s25 = scalar_select %p24, 0, %s23
    %s26 = sadd.s32 1, %s17
    %s27 = scalar_select %p24, %s26, %s17
    %p28 = scmp.ge.s32.totalorder %s27, 2
    %s29 = scalar_select %p28, 0, %s27
    %s30 = ssub.s32 %s17, %s29
    %s31 = ssub.s32 %s18, %s25
    %s32 = sor.u32 %s30, %s31
    %p33 = scmp.eq.s32.totalorder %s32, 0
    %s35 = sadd.s32 %s34, 1
    %s36 = scalar_select %p33, %s34, %s35
    %p39 = pneg %p33
    %p40 = scmp.eq.s32.totalorder %s10, 3
    %p41 = por %p39, %p40
    %p42 = scmp.ne.s32.totalorder %s34, %s37
    %p43 = scmp.eq.s32.totalorder %s10, 0
    %p44 = por %p42, %p43
    %p45 = scmp.ne.s32.totalorder %s34, %s37
    %p46 = scmp.eq.s32.totalorder %s15, 3
    %p47 = por %p45, %p46
    %p48 = scmp.ne.s32.totalorder %s37, %s38
    %p49 = scmp.eq.s32.totalorder %s15, 0
    %p50 = por %p48, %p49
    %p51 = scmp.ne.s32.totalorder %s37, %s38
    %p52 = scmp.eq.s32.totalorder %s16, 3
    %p53 = por %p51, %p52
    %p55 = scmp.ne.s32.totalorder %s38, %s54
    %p56 = scmp.eq.s32.totalorder %s16, 0
    %p57 = por %p55, %p56
    %s58 = sadd.s32 %s18, 1
    %s59 = sadd.s32 %s25, 1
    %s60 = ssub.s32 %s17, %s29
    %s61 = ssub.s32 %s58, %s59
    %s62 = sor.u32 %s60, %s61
    %p63 = scmp.eq.s32.totalorder %s62, 0
    %s65 = sadd.s32 %s64, 1
    %s66 = scalar_select %p63, %s64, %s65
    %p69 = pneg %p63
    %p70 = scmp.eq.s32.totalorder %s10, 3
    %p71 = por %p69, %p70
    %p72 = scmp.ne.s32.totalorder %s64, %s67
    %p73 = scmp.eq.s32.totalorder %s10, 0
    %p74 = por %p72, %p73
    %p75 = scmp.ne.s32.totalorder %s64, %s67
    %p76 = scmp.eq.s32.totalorder %s15, 3
    %p77 = por %p75, %p76
    %p78 = scmp.ne.s32.totalorder %s67, %s68
    %p79 = scmp.eq.s32.totalorder %s15, 0
    %p80 = por %p78, %p79
    %p81 = scmp.ne.s32.totalorder %s67, %s68
    %p82 = scmp.eq.s32.totalorder %s16, 3
    %p83 = por %p81, %p82
    %p85 = scmp.ne.s32.totalorder %s68, %s84
    %p86 = scmp.eq.s32.totalorder %s16, 0
    %p87 = por %p85, %p86
    %s89 = sadd.s32 %s88, 1
    %p92 = scmp.eq.s32.totalorder %s10, 3
    %p93 = scmp.ne.s32.totalorder %s88, %s90
    %p94 = scmp.eq.s32.totalorder %s10, 0
    %p95 = por %p93, %p94
    %p96 = scmp.ne.s32.totalorder %s88, %s90
    %p97 = scmp.eq.s32.totalorder %s15, 3
    %p98 = por %p96, %p97
    %p99 = scmp.ne.s32.totalorder %s90, %s91
    %p100 = scmp.eq.s32.totalorder %s15, 0
    %p101 = por %p99, %p100
    %p102 = scmp.ne.s32.totalorder %s90, %s91
    %p103 = scmp.eq.s32.totalorder %s16, 3
    %p104 = por %p102, %p103
    %p106 = scmp.ne.s32.totalorder %s91, %s105
    %p107 = scmp.eq.s32.totalorder %s16, 0
    %p108 = por %p106, %p107
    %s110 = sadd.s32 %s109, 1
    %p113 = scmp.eq.s32.totalorder %s10, 3
    %p114 = scmp.ne.s32.totalorder %s109, %s111
    %p115 = scmp.eq.s32.totalorder %s10, 0
    %p116 = por %p114, %p115
    %p117 = scmp.ne.s32.totalorder %s109, %s111
    %p118 = scmp.eq.s32.totalorder %s15, 3
    %p119 = por %p117, %p118
    %p120 = scmp.ne.s32.totalorder %s111, %s112
    %p121 = scmp.eq.s32.totalorder %s15, 0
    %p122 = por %p120, %p121
    %p123 = scmp.ne.s32.totalorder %s111, %s112
    %p124 = scmp.eq.s32.totalorder %s16, 3
    %p125 = por %p123, %p124
    %p127 = scmp.ne.s32.totalorder %s112, %s126
    %p128 = scmp.eq.s32.totalorder %s16, 0
    %p129 = por %p127, %p128
    %s130 = ssub.s32 %s17, %s29
    %s131 = ssub.s32 %s18, %s25
    %s132 = sor.u32 %s130, %s131
    %p133 = scmp.eq.s32.totalorder %s132, 0
    %s135 = sadd.s32 %s134, 1
    %s136 = scalar_select %p133, %s134, %s135
    %p139 = pneg %p133
    %p140 = scmp.eq.s32.totalorder %s10, 3
    %p141 = por %p139, %p140
    %p142 = scmp.ne.s32.totalorder %s134, %s137
    %p143 = scmp.eq.s32.totalorder %s10, 0
    %p144 = por %p142, %p143
    %p145 = scmp.ne.s32.totalorder %s134, %s137
    %p146 = scmp.eq.s32.totalorder %s15, 3
    %p147 = por %p145, %p146
    %p148 = scmp.ne.s32.totalorder %s137, %s138
    %p149 = scmp.eq.s32.totalorder %s15, 0
    %p150 = por %p148, %p149
    %p151 = scmp.ne.s32.totalorder %s137, %s138
    %p152 = scmp.eq.s32.totalorder %s16, 3
    %p153 = por %p151, %p152
    %p155 = scmp.ne.s32.totalorder %s138, %s154
    %p156 = scmp.eq.s32.totalorder %s16, 0
    %p157 = por %p155, %p156
    %p158 = scmp.le.s32.totalorder 1, %s10
    %p159 = scmp.lt.s32.totalorder %s10, 5
    %p160 = pnand %p158, %p159
    %p161 = pneg %p160
    // Predicated region
    $region9: #{fc_discriminator_forward.8} parent=5 // pred_check
      _
    $region10: #{fc_discriminator_forward.8} parent=5 // pred_check_branch
      %163 = sbr.rel (%p160) target = $region12
    $region11: #{fc_discriminator_forward.8} parent=5 // pred_region
      %s164 = ssub.s32 %s10, 1
      // Predicated region
      $region13: #{fc_discriminator_forward.8} parent=11 // pred_check
        %p165 = pneg %p101
      $region14: #{fc_discriminator_forward.8} parent=11 // pred_check_branch
        %167 = sbr.rel (%p165) target = $region16
      $region15: #{fc_discriminator_forward.8} parent=11 // pred_region
        _
      $region16: #{fc_discriminator_forward.8} parent=11 // pred_fallthru
        _
      // Predicated region
      $region17: #{fc_discriminator_forward.8} parent=11 // pred_check
        %p168 = pneg %p122
      $region18: #{fc_discriminator_forward.8} parent=11 // pred_check_branch
        %170 = sbr.rel (%p168) target = $region20
      $region19: #{fc_discriminator_forward.8} parent=11 // pred_region
        _
      $region20: #{fc_discriminator_forward.8} parent=11 // pred_fallthru
        _
    $region12: #{fc_discriminator_forward.8} parent=5 // pred_fallthru
      _
    %p171 = scmp.lt.s32.totalorder %s10, 4
    // Predicated region
    $region21: #{fc_discriminator_forward.8} parent=5 // pred_check
      %p172 = pneg %p171
    $region22: #{fc_discriminator_forward.8} parent=5 // pred_check_branch
      %174 = sbr.rel (%p172) target = $region24
    $region23: #{fc_discriminator_forward.8} parent=5 // pred_region
      // Predicated region
      $region25: #{fc_discriminator_forward.8} parent=23 // pred_check
        %p175 = pneg %p44
      $region26: #{fc_discriminator_forward.8} parent=23 // pred_check_branch
        %177 = sbr.rel (%p175) target = $region28
      $region27: #{fc_discriminator_forward.8} parent=23 // pred_region
        %p178 = scmp.lt.s32.totalorder %s17, 1
        %s179 = scalar_select %p178, %s17, 1
        %p180 = scmp.lt.s32.totalorder %s18, 2
        %s181 = scalar_select %p180, %s18, 2
        %s182 = smul.addr %s181, 4
        %s183 = smul.addr %s179, 12
        %s184 = sadd.s32 %s182, %s183
        %s185 = smul.addr %s184, 2
        %s186 = scalar_lea.vmem %s0, %s185
      $region28: #{fc_discriminator_forward.8} parent=23 // pred_fallthru
        _
      // Predicated region
      $region29: #{fc_discriminator_forward.8} parent=23 // pred_check
        %p187 = pneg %p74
      $region30: #{fc_discriminator_forward.8} parent=23 // pred_check_branch
        %189 = sbr.rel (%p187) target = $region32
      $region31: #{fc_discriminator_forward.8} parent=23 // pred_region
        %s190 = sadd.s32 %s18, 1
        %p191 = scmp.lt.s32.totalorder %s17, 1
        %s192 = scalar_select %p191, %s17, 1
        %p193 = scmp.lt.s32.totalorder %s190, 2
        %s194 = scalar_select %p193, %s190, 2
        %s195 = smul.addr %s194, 4
        %s196 = smul.addr %s192, 12
        %s197 = sadd.s32 %s195, %s196
        %s198 = smul.addr %s197, 2
        %s199 = scalar_lea.vmem %s1, %s198
        %s200 = sadd.s32 %s18, 1
      $region32: #{fc_discriminator_forward.8} parent=23 // pred_fallthru
        _
    $region24: #{fc_discriminator_forward.8} parent=5 // pred_fallthru
      _
    %p201 = scmp.le.s32.totalorder 1, %s10
    %p202 = scmp.lt.s32.totalorder %s10, 5
    %p203 = pnand %p201, %p202
    %p204 = pneg %p203
    // Predicated region
    $region33: #{fc_discriminator_forward.8} parent=5 // pred_check
      _
    $region34: #{fc_discriminator_forward.8} parent=5 // pred_check_branch
      %206 = sbr.rel (%p203) target = $region36
    $region35: #{fc_discriminator_forward.8} parent=5 // pred_region
      %s207 = ssub.s32 %s10, 1
      %p208 = scmp.lt.s32.totalorder %s19, 1
      %s209 = scalar_select %p208, %s19, 1
      %p210 = scmp.lt.s32.totalorder %s20, 2
      %s211 = scalar_select %p210, %s20, 2
      %s212 = smul.addr %s211, 4
      %s213 = smul.addr %s209, 12
      %s214 = sadd.s32 %s212, %s213
      %s215 = smul.addr %s214, 2
      %s216 = scalar_lea.vmem %s0, %s215
      %p217 = pneg %p50
      %p218 = pneg %p47
      %s219 = sadd.s32 %s20, 1
      %p220 = scmp.lt.s32.totalorder %s19, 1
      %s221 = scalar_select %p220, %s19, 1
      %p222 = scmp.lt.s32.totalorder %s219, 2
      %s223 = scalar_select %p222, %s219, 2
      %s224 = smul.addr %s223, 4
      %s225 = smul.addr %s221, 12
      %s226 = sadd.s32 %s224, %s225
      %s227 = smul.addr %s226, 2
      %s228 = scalar_lea.vmem %s1, %s227
      %p229 = pneg %p80
      %p230 = pneg %p77
      %p231 = pneg %p101
      %p232 = pneg %p98
      %p233 = pneg %p122
      %p234 = pneg %p119
      %p235 = pneg %p150
      %p236 = pneg %p147
      %p237 = scmp.lt.s32.totalorder %s19, 1
      %s238 = scalar_select %p237, %s19, 1
      %p239 = scmp.lt.s32.totalorder %s20, 1
      %s240 = scalar_select %p239, %s20, 1
      %s241 = smul.addr %s238, 2
      %s242 = sadd.s32 %s240, %s241
      %s243 = scalar_lea.vmem %s4, %s242
      %p244 = scmp.lt.s32.totalorder %s19, 1
      %s245 = scalar_select %p244, %s19, 1
      %p246 = scmp.lt.s32.totalorder %s20, 2
      %s247 = scalar_select %p246, %s20, 2
      %s248 = smul.addr %s247, 4
      %s249 = smul.addr %s245, 12
      %s250 = sadd.s32 %s248, %s249
      %s251 = smul.addr %s250, 2
      %s252 = scalar_lea.vmem %s0, %s251
      %s253 = sadd.s32 %s20, 1
      %p254 = scmp.lt.s32.totalorder %s19, 1
      %s255 = scalar_select %p254, %s19, 1
      %p256 = scmp.lt.s32.totalorder %s253, 2
      %s257 = scalar_select %p256, %s253, 2
      %s258 = smul.addr %s257, 4
      %s259 = smul.addr %s255, 12
      %s260 = sadd.s32 %s258, %s259
      %s261 = smul.addr %s260, 2
      %s262 = scalar_lea.vmem %s1, %s261
      %s263 = sadd.s32 %s20, 1
      %p264 = scmp.lt.s32.totalorder %s19, 1
      %s265 = scalar_select %p264, %s19, 1
      %p266 = scmp.lt.s32.totalorder %s20, 1
      %s267 = scalar_select %p266, %s20, 1
      %s268 = smul.addr %s265, 2
      %s269 = sadd.s32 %s267, %s268
      %s270 = scalar_lea.vmem %s4, %s269
      %v272 = vld [vmem:[%s252] sm:$0x5]
      %v273 = vld [vmem:[%s2] sm:$0xf]
      %v274 = vld [vmem:[%s2 + $0x4] sm:$0xf]
      %v275 = vld [vmem:[%s2 + $0x8] sm:$0xf]
      %v276 = vld [vmem:[%s2 + $0xc] sm:$0xf]
      %v277 = vld [vmem:[%s2 + $0x10] sm:$0xf]
      %v278 = vld [vmem:[%s2 + $0x14] sm:$0xf]
      %v279 = vld [vmem:[%s2 + $0x18] sm:$0xf]
      %v280 = vld [vmem:[%s2 + $0x1c] sm:$0xf]
      %v281 = vld [vmem:[%s2 + $0x20] sm:$0xf]
      %v282 = vld [vmem:[%s2 + $0x24] sm:$0xf]
      %v283 = vld [vmem:[%s2 + $0x28] sm:$0xf]
      %v284 = vld [vmem:[%s2 + $0x2c] sm:$0xf]
      %v285 = vld [vmem:[%s2 + $0x30] sm:$0xf]
      %v286 = vld [vmem:[%s2 + $0x34] sm:$0xf]
      %v287 = vld [vmem:[%s2 + $0x38] sm:$0xf]
      %v288 = vld [vmem:[%s2 + $0x3c] sm:$0xf]
      %v289 = vld [vmem:[%s2 + $0x40] sm:$0xf]
      %v290 = vld [vmem:[%s2 + $0x44] sm:$0xf]
      %v291 = vld [vmem:[%s2 + $0x48] sm:$0xf]
      %v292 = vld [vmem:[%s2 + $0x4c] sm:$0xf]
      %v293 = vld [vmem:[%s2 + $0x50] sm:$0xf]
      %v294 = vld [vmem:[%s2 + $0x54] sm:$0xf]
      %v295 = vld [vmem:[%s2 + $0x58] sm:$0xf]
      %v296 = vld [vmem:[%s2 + $0x5c] sm:$0xf]
      %v297 = vld [vmem:[%s2 + $0x60] sm:$0xf]
      %v298 = vld [vmem:[%s2 + $0x64] sm:$0xf]
      %v299 = vld [vmem:[%s2 + $0x68] sm:$0xf]
      %v300 = vld [vmem:[%s2 + $0x6c] sm:$0xf]
      %v301 = vld [vmem:[%s2 + $0x70] sm:$0xf]
      %v302 = vld [vmem:[%s2 + $0x74] sm:$0xf]
      %v303 = vld [vmem:[%s2 + $0x78] sm:$0xf]
      %v304 = vld [vmem:[%s2 + $0x7c] sm:$0xf]
      %v305 = vld [vmem:[%s252] sm:$0xf]
      %s306 = scalar_lea.vmem %s2, 128
      %v307 = vld [vmem:[%s306] sm:$0xf]
      %v308 = vld [vmem:[%s306 + $0x4] sm:$0xf]
      %v309 = vld [vmem:[%s306 + $0x8] sm:$0xf]
      %v310 = vld [vmem:[%s306 + $0xc] sm:$0xf]
      %v311 = vld [vmem:[%s306 + $0x10] sm:$0xf]
      %v312 = vld [vmem:[%s306 + $0x14] sm:$0xf]
      %v313 = vld [vmem:[%s306 + $0x18] sm:$0xf]
      %v314 = vld [vmem:[%s306 + $0x1c] sm:$0xf]
      %v315 = vld [vmem:[%s306 + $0x20] sm:$0xf]
      %v316 = vld [vmem:[%s306 + $0x24] sm:$0xf]
      %v317 = vld [vmem:[%s306 + $0x28] sm:$0xf]
      %v318 = vld [vmem:[%s306 + $0x2c] sm:$0xf]
      %v319 = vld [vmem:[%s306 + $0x30] sm:$0xf]
      %v320 = vld [vmem:[%s306 + $0x34] sm:$0xf]
      %v321 = vld [vmem:[%s306 + $0x38] sm:$0xf]
      %v322 = vld [vmem:[%s306 + $0x3c] sm:$0xf]
      %v323 = vld [vmem:[%s306 + $0x40] sm:$0xf]
      %v324 = vld [vmem:[%s306 + $0x44] sm:$0xf]
      %v325 = vld [vmem:[%s306 + $0x48] sm:$0xf]
      %v326 = vld [vmem:[%s306 + $0x4c] sm:$0xf]
      %v327 = vld [vmem:[%s306 + $0x50] sm:$0xf]
      %v328 = vld [vmem:[%s306 + $0x54] sm:$0xf]
      %v329 = vld [vmem:[%s306 + $0x58] sm:$0xf]
      %v330 = vld [vmem:[%s306 + $0x5c] sm:$0xf]
      %v331 = vld [vmem:[%s306 + $0x60] sm:$0xf]
      %v332 = vld [vmem:[%s306 + $0x64] sm:$0xf]
      %v333 = vld [vmem:[%s306 + $0x68] sm:$0xf]
      %v334 = vld [vmem:[%s306 + $0x6c] sm:$0xf]
      %v335 = vld [vmem:[%s306 + $0x70] sm:$0xf]
      %v336 = vld [vmem:[%s306 + $0x74] sm:$0xf]
      %v337 = vld [vmem:[%s306 + $0x78] sm:$0xf]
      %v338 = vld [vmem:[%s306 + $0x7c] sm:$0xf]
      %v341 = vunpack.c.l.s4 1983009808
      %v342 = vunpack.c.0.s8 %v341
      %v343 = vlaneseq
      %v344 = vshrl.u32 %v343, 7
      %v345 = vsub.s32 %v342, %v344
      %v346 = vrot.slane %v305, %v345
      %v347 = vcombine.high %v346, %v346
      %v349 = vshrl.u32 %v346, 16
      %v351 = vshll.u32 %v346, 16
      %v353 = vrot.slane %v351, 1
      %v354 = vor.u32 %v349, %v353
      %v356 = vshrl.u32 %v347, 16
      %v358 = vshll.u32 %v347, 16
      %v360 = vrot.slane %v358, 1
      %v361 = vor.u32 %v356, %v360
      %v396 = vunpack.c.l.b16 %v307
      %v397 = vunpack.c.l.b16 %v308
      %v398 = vunpack.c.l.b16 %v309
      %v399 = vunpack.c.l.b16 %v310
      %v400 = vunpack.c.l.b16 %v311
      %v401 = vunpack.c.l.b16 %v312
      %v402 = vunpack.c.l.b16 %v313
      %v403 = vunpack.c.l.b16 %v314
      %v404 = vunpack.c.l.b16 %v315
      %v405 = vunpack.c.l.b16 %v316
      %v406 = vunpack.c.l.b16 %v317
      %v407 = vunpack.c.l.b16 %v318
      %v408 = vunpack.c.l.b16 %v319
      %v409 = vunpack.c.l.b16 %v320
      %v410 = vunpack.c.l.b16 %v321
      %v411 = vunpack.c.l.b16 %v322
      %v412 = vunpack.c.l.b16 %v323
      %v413 = vunpack.c.l.b16 %v324
      %v414 = vunpack.c.l.b16 %v325
      %v415 = vunpack.c.l.b16 %v326
      %v416 = vunpack.c.l.b16 %v327
      %v417 = vunpack.c.l.b16 %v328
      %v418 = vunpack.c.l.b16 %v329
      %v419 = vunpack.c.l.b16 %v330
      %v420 = vunpack.c.l.b16 %v331
      %v421 = vunpack.c.l.b16 %v332
      %v422 = vunpack.c.l.b16 %v333
      %v423 = vunpack.c.l.b16 %v334
      %v424 = vunpack.c.l.b16 %v335
      %v425 = vunpack.c.l.b16 %v336
      %v426 = vunpack.c.l.b16 %v337
      %v427 = vunpack.c.l.b16 %v338
      %v428 = vpack.c.b16 %v397, %v396
      %v429 = vpack.c.b16 %v399, %v398
      %v430 = vpack.c.b16 %v401, %v400
      %v431 = vpack.c.b16 %v403, %v402
      %v432 = vpack.c.b16 %v405, %v404
      %v433 = vpack.c.b16 %v407, %v406
      %v434 = vpack.c.b16 %v409, %v408
      %v435 = vpack.c.b16 %v411, %v410
      %v436 = vpack.c.b16 %v413, %v412
      %v437 = vpack.c.b16 %v415, %v414
      %v438 = vpack.c.b16 %v417, %v416
      %v439 = vpack.c.b16 %v419, %v418
      %v440 = vpack.c.b16 %v421, %v420
      %v441 = vpack.c.b16 %v423, %v422
      %v442 = vpack.c.b16 %v425, %v424
      %v443 = vpack.c.b16 %v427, %v426
      %460 = vmatprep.subr.bf16.mxu0 0
      %461 = vmatpush1.bf16.msra.mxu0 %v428
      %462 = vmatprep.subr.bf16.mxu0 0
      %463 = vmatpush1.bf16.msra.mxu0 %v429
      %464 = vmatprep.subr.bf16.mxu0 0
      %465 = vmatpush1.bf16.msra.mxu0 %v430
      %466 = vmatprep.subr.bf16.mxu0 0
      %467 = vmatpush1.bf16.msra.mxu0 %v431
      %468 = vmatprep.subr.bf16.mxu0 0
      %469 = vmatpush1.bf16.msra.mxu0 %v432
      %470 = vmatprep.subr.bf16.mxu0 0
      %471 = vmatpush1.bf16.msra.mxu0 %v433
      %472 = vmatprep.subr.bf16.mxu0 0
      %473 = vmatpush1.bf16.msra.mxu0 %v434
      %474 = vmatprep.subr.bf16.mxu0 0
      %475 = vmatpush1.bf16.msra.mxu0 %v435
      %476 = vmatprep.subr.bf16.mxu0 0
      %477 = vmatpush1.bf16.msra.mxu0 %v436
      %478 = vmatprep.subr.bf16.mxu0 0
      %479 = vmatpush1.bf16.msra.mxu0 %v437
      %480 = vmatprep.subr.bf16.mxu0 0
      %481 = vmatpush1.bf16.msra.mxu0 %v438
      %482 = vmatprep.subr.bf16.mxu0 0
      %483 = vmatpush1.bf16.msra.mxu0 %v439
      %484 = vmatprep.subr.bf16.mxu0 0
      %485 = vmatpush1.bf16.msra.mxu0 %v440
      %486 = vmatprep.subr.bf16.mxu0 0
      %487 = vmatpush1.bf16.msra.mxu0 %v441
      %488 = vmatprep.subr.bf16.mxu0 0
      %489 = vmatpush1.bf16.msra.mxu0 %v442
      %490 = vmatprep.subr.bf16.mxu0 0
      %491 = vmatpush1.bf16.msra.mxu0 %v443
      %492 = vmatprep.mubr.bf16.mxu0 %v361
      %493 = vmatmul.mubr.bf16.gmra.mrb[0].mxu0 %v354
      %v494 = vpop.f32.mrb[0].mxu0
      %v495 = vadd.f32 0.0, %v494
      %v496 = vpop.f32.mrb[0].mxu0
      %v497 = vpop.f32.mrb[0].mxu0
      %v498 = vpop.f32.mrb[0].mxu0
      %499 = vdwg.mxu0
      %v502 = vunpack.c.l.s4 1983009808
      %v503 = vunpack.c.0.s8 %v502
      %v504 = vlaneseq
      %v505 = vshrl.u32 %v504, 7
      %v506 = vsub.s32 %v503, %v505
      %v507 = vrot.slane %v272, %v506
      %v508 = vcombine.high %v507, %v507
      %v543 = vunpack.c.l.b16 %v273
      %v544 = vunpack.c.l.b16 %v274
      %v545 = vunpack.c.l.b16 %v275
      %v546 = vunpack.c.l.b16 %v276
      %v547 = vunpack.c.l.b16 %v277
      %v548 = vunpack.c.l.b16 %v278
      %v549 = vunpack.c.l.b16 %v279
      %v550 = vunpack.c.l.b16 %v280
      %v551 = vunpack.c.l.b16 %v281
      %v552 = vunpack.c.l.b16 %v282
      %v553 = vunpack.c.l.b16 %v283
      %v554 = vunpack.c.l.b16 %v284
      %v555 = vunpack.c.l.b16 %v285
      %v556 = vunpack.c.l.b16 %v286
      %v557 = vunpack.c.l.b16 %v287
      %v558 = vunpack.c.l.b16 %v288
      %v559 = vunpack.c.l.b16 %v289
      %v560 = vunpack.c.l.b16 %v290
      %v561 = vunpack.c.l.b16 %v291
      %v562 = vunpack.c.l.b16 %v292
      %v563 = vunpack.c.l.b16 %v293
      %v564 = vunpack.c.l.b16 %v294
      %v565 = vunpack.c.l.b16 %v295
      %v566 = vunpack.c.l.b16 %v296
      %v567 = vunpack.c.l.b16 %v297
      %v568 = vunpack.c.l.b16 %v298
      %v569 = vunpack.c.l.b16 %v299
      %v570 = vunpack.c.l.b16 %v300
      %v571 = vunpack.c.l.b16 %v301
      %v572 = vunpack.c.l.b16 %v302
      %v573 = vunpack.c.l.b16 %v303
      %v574 = vunpack.c.l.b16 %v304
      %v575 = vpack.c.b16 %v544, %v543
      %v576 = vpack.c.b16 %v546, %v545
      %v577 = vpack.c.b16 %v548, %v547
      %v578 = vpack.c.b16 %v550, %v549
      %v579 = vpack.c.b16 %v552, %v551
      %v580 = vpack.c.b16 %v554, %v553
      %v581 = vpack.c.b16 %v556, %v555
      %v582 = vpack.c.b16 %v558, %v557
      %v583 = vpack.c.b16 %v560, %v559
      %v584 = vpack.c.b16 %v562, %v561
      %v585 = vpack.c.b16 %v564, %v563
      %v586 = vpack.c.b16 %v566, %v565
      %v587 = vpack.c.b16 %v568, %v567
      %v588 = vpack.c.b16 %v570, %v569
      %v589 = vpack.c.b16 %v572, %v571
      %v590 = vpack.c.b16 %v574, %v573
      %607 = vmatprep.subr.bf16.mxu0 0
      %608 = vmatpush1.bf16.msra.mxu0 %v575
      %609 = vmatprep.subr.bf16.mxu0 0
      %610 = vmatpush1.bf16.msra.mxu0 %v576
      %611 = vmatprep.subr.bf16.mxu0 0
      %612 = vmatpush1.bf16.msra.mxu0 %v577
      %613 = vmatprep.subr.bf16.mxu0 0
      %614 = vmatpush1.bf16.msra.mxu0 %v578
      %615 = vmatprep.subr.bf16.mxu0 0
      %616 = vmatpush1.bf16.msra.mxu0 %v579
      %617 = vmatprep.subr.bf16.mxu0 0
      %618 = vmatpush1.bf16.msra.mxu0 %v580
      %619 = vmatprep.subr.bf16.mxu0 0
      %620 = vmatpush1.bf16.msra.mxu0 %v581
      %621 = vmatprep.subr.bf16.mxu0 0
      %622 = vmatpush1.bf16.msra.mxu0 %v582
      %623 = vmatprep.subr.bf16.mxu0 0
      %624 = vmatpush1.bf16.msra.mxu0 %v583
      %625 = vmatprep.subr.bf16.mxu0 0
      %626 = vmatpush1.bf16.msra.mxu0 %v584
      %627 = vmatprep.subr.bf16.mxu0 0
      %628 = vmatpush1.bf16.msra.mxu0 %v585
      %629 = vmatprep.subr.bf16.mxu0 0
      %630 = vmatpush1.bf16.msra.mxu0 %v586
      %631 = vmatprep.subr.bf16.mxu0 0
      %632 = vmatpush1.bf16.msra.mxu0 %v587
      %633 = vmatprep.subr.bf16.mxu0 0
      %634 = vmatpush1.bf16.msra.mxu0 %v588
      %635 = vmatprep.subr.bf16.mxu0 0
      %636 = vmatpush1.bf16.msra.mxu0 %v589
      %637 = vmatprep.subr.bf16.mxu0 0
      %638 = vmatpush1.bf16.msra.mxu0 %v590
      %639 = vmatprep.mubr.bf16.mxu0 %v508
      %640 = vmatmul.mubr.bf16.gmra.mrb[0].mxu0 %v507
      %v641 = vpop.f32.mrb[0].mxu0
      %v642 = vadd.f32 %v495, %v641
      %v643 = vpop.f32.mrb[0].mxu0
      %v644 = vpop.f32.mrb[0].mxu0
      %v645 = vpop.f32.mrb[0].mxu0
      %646 = vdwg.mxu0
      %s647 = scalar_lea.vmem %s252, 4
      %v648 = vld [vmem:[%s647] sm:$0x5]
      %s649 = scalar_lea.vmem %s2, 256
      %v650 = vld [vmem:[%s649] sm:$0xf]
      %v651 = vld [vmem:[%s649 + $0x4] sm:$0xf]
      %v652 = vld [vmem:[%s649 + $0x8] sm:$0xf]
      %v653 = vld [vmem:[%s649 + $0xc] sm:$0xf]
      %v654 = vld [vmem:[%s649 + $0x10] sm:$0xf]
      %v655 = vld [vmem:[%s649 + $0x14] sm:$0xf]
      %v656 = vld [vmem:[%s649 + $0x18] sm:$0xf]
      %v657 = vld [vmem:[%s649 + $0x1c] sm:$0xf]
      %v658 = vld [vmem:[%s649 + $0x20] sm:$0xf]
      %v659 = vld [vmem:[%s649 + $0x24] sm:$0xf]
      %v660 = vld [vmem:[%s649 + $0x28] sm:$0xf]
      %v661 = vld [vmem:[%s649 + $0x2c] sm:$0xf]
      %v662 = vld [vmem:[%s649 + $0x30] sm:$0xf]
      %v663 = vld [vmem:[%s649 + $0x34] sm:$0xf]
      %v664 = vld [vmem:[%s649 + $0x38] sm:$0xf]
      %v665 = vld [vmem:[%s649 + $0x3c] sm:$0xf]
      %v666 = vld [vmem:[%s649 + $0x40] sm:$0xf]
      %v667 = vld [vmem:[%s649 + $0x44] sm:$0xf]
      %v668 = vld [vmem:[%s649 + $0x48] sm:$0xf]
      %v669 = vld [vmem:[%s649 + $0x4c] sm:$0xf]
      %v670 = vld [vmem:[%s649 + $0x50] sm:$0xf]
      %v671 = vld [vmem:[%s649 + $0x54] sm:$0xf]
      %v672 = vld [vmem:[%s649 + $0x58] sm:$0xf]
      %v673 = vld [vmem:[%s649 + $0x5c] sm:$0xf]
      %v674 = vld [vmem:[%s649 + $0x60] sm:$0xf]
      %v675 = vld [vmem:[%s649 + $0x64] sm:$0xf]
      %v676 = vld [vmem:[%s649 + $0x68] sm:$0xf]
      %v677 = vld [vmem:[%s649 + $0x6c] sm:$0xf]
      %v678 = vld [vmem:[%s649 + $0x70] sm:$0xf]
      %v679 = vld [vmem:[%s649 + $0x74] sm:$0xf]
      %v680 = vld [vmem:[%s649 + $0x78] sm:$0xf]
      %v681 = vld [vmem:[%s649 + $0x7c] sm:$0xf]
      %v684 = vunpack.c.l.s4 1983009808
      %v685 = vunpack.c.0.s8 %v684
      %v686 = vlaneseq
      %v687 = vshrl.u32 %v686, 7
      %v688 = vsub.s32 %v685, %v687
      %v689 = vrot.slane %v648, %v688
      %v690 = vcombine.high %v689, %v689
      %v725 = vunpack.c.l.b16 %v650
      %v726 = vunpack.c.l.b16 %v651
      %v727 = vunpack.c.l.b16 %v652
      %v728 = vunpack.c.l.b16 %v653
      %v729 = vunpack.c.l.b16 %v654
      %v730 = vunpack.c.l.b16 %v655
      %v731 = vunpack.c.l.b16 %v656
      %v732 = vunpack.c.l.b16 %v657
      %v733 = vunpack.c.l.b16 %v658
      %v734 = vunpack.c.l.b16 %v659
      %v735 = vunpack.c.l.b16 %v660
      %v736 = vunpack.c.l.b16 %v661
      %v737 = vunpack.c.l.b16 %v662
      %v738 = vunpack.c.l.b16 %v663
      %v739 = vunpack.c.l.b16 %v664
      %v740 = vunpack.c.l.b16 %v665
      %v741 = vunpack.c.l.b16 %v666
      %v742 = vunpack.c.l.b16 %v667
      %v743 = vunpack.c.l.b16 %v668
      %v744 = vunpack.c.l.b16 %v669
      %v745 = vunpack.c.l.b16 %v670
      %v746 = vunpack.c.l.b16 %v671
      %v747 = vunpack.c.l.b16 %v672
      %v748 = vunpack.c.l.b16 %v673
      %v749 = vunpack.c.l.b16 %v674
      %v750 = vunpack.c.l.b16 %v675
      %v751 = vunpack.c.l.b16 %v676
      %v752 = vunpack.c.l.b16 %v677
      %v753 = vunpack.c.l.b16 %v678
      %v754 = vunpack.c.l.b16 %v679
      %v755 = vunpack.c.l.b16 %v680
      %v756 = vunpack.c.l.b16 %v681
      %v757 = vpack.c.b16 %v726, %v725
      %v758 = vpack.c.b16 %v728, %v727
      %v759 = vpack.c.b16 %v730, %v729
      %v760 = vpack.c.b16 %v732, %v731
      %v761 = vpack.c.b16 %v734, %v733
      %v762 = vpack.c.b16 %v736, %v735
      %v763 = vpack.c.b16 %v738, %v737
      %v764 = vpack.c.b16 %v740, %v739
      %v765 = vpack.c.b16 %v742, %v741
      %v766 = vpack.c.b16 %v744, %v743
      %v767 = vpack.c.b16 %v746, %v745
      %v768 = vpack.c.b16 %v748, %v747
      %v769 = vpack.c.b16 %v750, %v749
      %v770 = vpack.c.b16 %v752, %v751
      %v771 = vpack.c.b16 %v754, %v753
      %v772 = vpack.c.b16 %v756, %v755
      %789 = vmatprep.subr.bf16.mxu0 0
      %790 = vmatpush1.bf16.msra.mxu0 %v757
      %791 = vmatprep.subr.bf16.mxu0 0
      %792 = vmatpush1.bf16.msra.mxu0 %v758
      %793 = vmatprep.subr.bf16.mxu0 0
      %794 = vmatpush1.bf16.msra.mxu0 %v759
      %795 = vmatprep.subr.bf16.mxu0 0
      %796 = vmatpush1.bf16.msra.mxu0 %v760
      %797 = vmatprep.subr.bf16.mxu0 0
      %798 = vmatpush1.bf16.msra.mxu0 %v761
      %799 = vmatprep.subr.bf16.mxu0 0
      %800 = vmatpush1.bf16.msra.mxu0 %v762
      %801 = vmatprep.subr.bf16.mxu0 0
      %802 = vmatpush1.bf16.msra.mxu0 %v763
      %803 = vmatprep.subr.bf16.mxu0 0
      %804 = vmatpush1.bf16.msra.mxu0 %v764
      %805 = vmatprep.subr.bf16.mxu0 0
      %806 = vmatpush1.bf16.msra.mxu0 %v765
      %807 = vmatprep.subr.bf16.mxu0 0
      %808 = vmatpush1.bf16.msra.mxu0 %v766
      %809 = vmatprep.subr.bf16.mxu0 0
      %810 = vmatpush1.bf16.msra.mxu0 %v767
      %811 = vmatprep.subr.bf16.mxu0 0
      %812 = vmatpush1.bf16.msra.mxu0 %v768
      %813 = vmatprep.subr.bf16.mxu0 0
      %814 = vmatpush1.bf16.msra.mxu0 %v769
      %815 = vmatprep.subr.bf16.mxu0 0
      %816 = vmatpush1.bf16.msra.mxu0 %v770
      %817 = vmatprep.subr.bf16.mxu0 0
      %818 = vmatpush1.bf16.msra.mxu0 %v771
      %819 = vmatprep.subr.bf16.mxu0 0
      %820 = vmatpush1.bf16.msra.mxu0 %v772
      %821 = vmatprep.mubr.bf16.mxu0 %v690
      %822 = vmatmul.mubr.bf16.gmra.mrb[0].mxu0 %v689
      %v823 = vpop.f32.mrb[0].mxu0
      %v824 = vadd.f32 0.0, %v823
      %v825 = vpop.f32.mrb[0].mxu0
      %v826 = vpop.f32.mrb[0].mxu0
      %v827 = vpop.f32.mrb[0].mxu0
      %828 = vdwg.mxu0
      %v829 = vadd.f32 %v642, %v824
      %v830 = vld [vmem:[%s647] sm:$0xf]
      %s831 = scalar_lea.vmem %s2, 384
      %v832 = vld [vmem:[%s831] sm:$0xf]
      %v833 = vld [vmem:[%s831 + $0x4] sm:$0xf]
      %v834 = vld [vmem:[%s831 + $0x8] sm:$0xf]
      %v835 = vld [vmem:[%s831 + $0xc] sm:$0xf]
      %v836 = vld [vmem:[%s831 + $0x10] sm:$0xf]
      %v837 = vld [vmem:[%s831 + $0x14] sm:$0xf]
      %v838 = vld [vmem:[%s831 + $0x18] sm:$0xf]
      %v839 = vld [vmem:[%s831 + $0x1c] sm:$0xf]
      %v840 = vld [vmem:[%s831 + $0x20] sm:$0xf]
      %v841 = vld [vmem:[%s831 + $0x24] sm:$0xf]
      %v842 = vld [vmem:[%s831 + $0x28] sm:$0xf]
      %v843 = vld [vmem:[%s831 + $0x2c] sm:$0xf]
      %v844 = vld [vmem:[%s831 + $0x30] sm:$0xf]
      %v845 = vld [vmem:[%s831 + $0x34] sm:$0xf]
      %v846 = vld [vmem:[%s831 + $0x38] sm:$0xf]
      %v847 = vld [vmem:[%s831 + $0x3c] sm:$0xf]
      %v848 = vld [vmem:[%s831 + $0x40] sm:$0xf]
      %v849 = vld [vmem:[%s831 + $0x44] sm:$0xf]
      %v850 = vld [vmem:[%s831 + $0x48] sm:$0xf]
      %v851 = vld [vmem:[%s831 + $0x4c] sm:$0xf]
      %v852 = vld [vmem:[%s831 + $0x50] sm:$0xf]
      %v853 = vld [vmem:[%s831 + $0x54] sm:$0xf]
      %v854 = vld [vmem:[%s831 + $0x58] sm:$0xf]
      %v855 = vld [vmem:[%s831 + $0x5c] sm:$0xf]
      %v856 = vld [vmem:[%s831 + $0x60] sm:$0xf]
      %v857 = vld [vmem:[%s831 + $0x64] sm:$0xf]
      %v858 = vld [vmem:[%s831 + $0x68] sm:$0xf]
      %v859 = vld [vmem:[%s831 + $0x6c] sm:$0xf]
      %v860 = vld [vmem:[%s831 + $0x70] sm:$0xf]
      %v861 = vld [vmem:[%s831 + $0x74] sm:$0xf]
      %v862 = vld [vmem:[%s831 + $0x78] sm:$0xf]
      %v863 = vld [vmem:[%s831 + $0x7c] sm:$0xf]
      %v866 = vunpack.c.l.s4 1983009808
      %v867 = vunpack.c.0.s8 %v866
      %v868 = vlaneseq
      %v869 = vshrl.u32 %v868, 7
      %v870 = vsub.s32 %v867, %v869
      %v871 = vrot.slane %v830, %v870
      %v872 = vcombine.high %v871, %v871
      %v874 = vshrl.u32 %v871, 16
      %v876 = vshll.u32 %v871, 16
      %v878 = vrot.slane %v876, 1
      %v879 = vor.u32 %v874, %v878
      %v881 = vshrl.u32 %v872, 16
      %v883 = vshll.u32 %v872, 16
      %v885 = vrot.slane %v883, 1
      %v886 = vor.u32 %v881, %v885
      %v921 = vunpack.c.l.b16 %v832
      %v922 = vunpack.c.l.b16 %v833
      %v923 = vunpack.c.l.b16 %v834
      %v924 = vunpack.c.l.b16 %v835
      %v925 = vunpack.c.l.b16 %v836
      %v926 = vunpack.c.l.b16 %v837
      %v927 = vunpack.c.l.b16 %v838
      %v928 = vunpack.c.l.b16 %v839
      %v929 = vunpack.c.l.b16 %v840
      %v930 = vunpack.c.l.b16 %v841
      %v931 = vunpack.c.l.b16 %v842
      %v932 = vunpack.c.l.b16 %v843
      %v933 = vunpack.c.l.b16 %v844
      %v934 = vunpack.c.l.b16 %v845
      %v935 = vunpack.c.l.b16 %v846
      %v936 = vunpack.c.l.b16 %v847
      %v937 = vunpack.c.l.b16 %v848
      %v938 = vunpack.c.l.b16 %v849
      %v939 = vunpack.c.l.b16 %v850
      %v940 = vunpack.c.l.b16 %v851
      %v941 = vunpack.c.l.b16 %v852
      %v942 = vunpack.c.l.b16 %v853
      %v943 = vunpack.c.l.b16 %v854
      %v944 = vunpack.c.l.b16 %v855
      %v945 = vunpack.c.l.b16 %v856
      %v946 = vunpack.c.l.b16 %v857
      %v947 = vunpack.c.l.b16 %v858
      %v948 = vunpack.c.l.b16 %v859
      %v949 = vunpack.c.l.b16 %v860
      %v950 = vunpack.c.l.b16 %v861
      %v951 = vunpack.c.l.b16 %v862
      %v952 = vunpack.c.l.b16 %v863
      %v953 = vpack.c.b16 %v922, %v921
      %v954 = vpack.c.b16 %v924, %v923
      %v955 = vpack.c.b16 %v926, %v925
      %v956 = vpack.c.b16 %v928, %v927
      %v957 = vpack.c.b16 %v930, %v929
      %v958 = vpack.c.b16 %v932, %v931
      %v959 = vpack.c.b16 %v934, %v933
      %v960 = vpack.c.b16 %v936, %v935
      %v961 = vpack.c.b16 %v938, %v937
      %v962 = vpack.c.b16 %v940, %v939
      %v963 = vpack.c.b16 %v942, %v941
      %v964 = vpack.c.b16 %v944, %v943
      %v965 = vpack.c.b16 %v946, %v945
      %v966 = vpack.c.b16 %v948, %v947
      %v967 = vpack.c.b16 %v950, %v949
      %v968 = vpack.c.b16 %v952, %v951
      %985 = vmatprep.subr.bf16.mxu0 0
      %986 = vmatpush1.bf16.msra.mxu0 %v953
      %987 = vmatprep.subr.bf16.mxu0 0
      %988 = vmatpush1.bf16.msra.mxu0 %v954
      %989 = vmatprep.subr.bf16.mxu0 0
      %990 = vmatpush1.bf16.msra.mxu0 %v955
      %991 = vmatprep.subr.bf16.mxu0 0
      %992 = vmatpush1.bf16.msra.mxu0 %v956
      %993 = vmatprep.subr.bf16.mxu0 0
      %994 = vmatpush1.bf16.msra.mxu0 %v957
      %995 = vmatprep.subr.bf16.mxu0 0
      %996 = vmatpush1.bf16.msra.mxu0 %v958
      %997 = vmatprep.subr.bf16.mxu0 0
      %998 = vmatpush1.bf16.msra.mxu0 %v959
      %999 = vmatprep.subr.bf16.mxu0 0
      %1000 = vmatpush1.bf16.msra.mxu0 %v960
      %1001 = vmatprep.subr.bf16.mxu0 0
      %1002 = vmatpush1.bf16.msra.mxu0 %v961
      %1003 = vmatprep.subr.bf16.mxu0 0
      %1004 = vmatpush1.bf16.msra.mxu0 %v962
      %1005 = vmatprep.subr.bf16.mxu0 0
      %1006 = vmatpush1.bf16.msra.mxu0 %v963
      %1007 = vmatprep.subr.bf16.mxu0 0
      %1008 = vmatpush1.bf16.msra.mxu0 %v964
      %1009 = vmatprep.subr.bf16.mxu0 0
      %1010 = vmatpush1.bf16.msra.mxu0 %v965
      %1011 = vmatprep.subr.bf16.mxu0 0
      %1012 = vmatpush1.bf16.msra.mxu0 %v966
      %1013 = vmatprep.subr.bf16.mxu0 0
      %1014 = vmatpush1.bf16.msra.mxu0 %v967
      %1015 = vmatprep.subr.bf16.mxu0 0
      %1016 = vmatpush1.bf16.msra.mxu0 %v968
      %1017 = vmatprep.mubr.bf16.mxu0 %v886
      %1018 = vmatmul.mubr.bf16.gmra.mrb[0].mxu0 %v879
      %v1019 = vpop.f32.mrb[0].mxu0
      %v1020 = vadd.f32 0.0, %v1019
      %v1021 = vpop.f32.mrb[0].mxu0
      %v1022 = vpop.f32.mrb[0].mxu0
      %v1023 = vpop.f32.mrb[0].mxu0
      %1024 = vdwg.mxu0
      %v1025 = vadd.f32 %v829, %v1020
      %v1026 = vld [vmem:[%s262] sm:$0x5]
      %s1027 = scalar_lea.vmem %s2, 512
      %v1028 = vld [vmem:[%s1027] sm:$0xf]
      %v1029 = vld [vmem:[%s1027 + $0x4] sm:$0xf]
      %v1030 = vld [vmem:[%s1027 + $0x8] sm:$0xf]
      %v1031 = vld [vmem:[%s1027 + $0xc] sm:$0xf]
      %v1032 = vld [vmem:[%s1027 + $0x10] sm:$0xf]
      %v1033 = vld [vmem:[%s1027 + $0x14] sm:$0xf]
      %v1034 = vld [vmem:[%s1027 + $0x18] sm:$0xf]
      %v1035 = vld [vmem:[%s1027 + $0x1c] sm:$0xf]
      %v1036 = vld [vmem:[%s1027 + $0x20] sm:$0xf]
      %v1037 = vld [vmem:[%s1027 + $0x24] sm:$0xf]
      %v1038 = vld [vmem:[%s1027 + $0x28] sm:$0xf]
      %v1039 = vld [vmem:[%s1027 + $0x2c] sm:$0xf]
      %v1040 = vld [vmem:[%s1027 + $0x30] sm:$0xf]
      %v1041 = vld [vmem:[%s1027 + $0x34] sm:$0xf]
      %v1042 = vld [vmem:[%s1027 + $0x38] sm:$0xf]
      %v1043 = vld [vmem:[%s1027 + $0x3c] sm:$0xf]
      %v1044 = vld [vmem:[%s1027 + $0x40] sm:$0xf]
      %v1045 = vld [vmem:[%s1027 + $0x44] sm:$0xf]
      %v1046 = vld [vmem:[%s1027 + $0x48] sm:$0xf]
      %v1047 = vld [vmem:[%s1027 + $0x4c] sm:$0xf]
      %v1048 = vld [vmem:[%s1027 + $0x50] sm:$0xf]
      %v1049 = vld [vmem:[%s1027 + $0x54] sm:$0xf]
      %v1050 = vld [vmem:[%s1027 + $0x58] sm:$0xf]
      %v1051 = vld [vmem:[%s1027 + $0x5c] sm:$0xf]
      %v1052 = vld [vmem:[%s1027 + $0x60] sm:$0xf]
      %v1053 = vld [vmem:[%s1027 + $0x64] sm:$0xf]
      %v1054 = vld [vmem:[%s1027 + $0x68] sm:$0xf]
      %v1055 = vld [vmem:[%s1027 + $0x6c] sm:$0xf]
      %v1056 = vld [vmem:[%s1027 + $0x70] sm:$0xf]
      %v1057 = vld [vmem:[%s1027 + $0x74] sm:$0xf]
      %v1058 = vld [vmem:[%s1027 + $0x78] sm:$0xf]
      %v1059 = vld [vmem:[%s1027 + $0x7c] sm:$0xf]
      %v1062 = vunpack.c.l.s4 1983009808
      %v1063 = vunpack.c.0.s8 %v1062
      %v1064 = vlaneseq
      %v1065 = vshrl.u32 %v1064, 7
      %v1066 = vsub.s32 %v1063, %v1065
      %v1067 = vrot.slane %v1026, %v1066
      %v1068 = vcombine.high %v1067, %v1067
      %v1103 = vunpack.c.l.b16 %v1028
      %v1104 = vunpack.c.l.b16 %v1029
      %v1105 = vunpack.c.l.b16 %v1030
      %v1106 = vunpack.c.l.b16 %v1031
      %v1107 = vunpack.c.l.b16 %v1032
      %v1108 = vunpack.c.l.b16 %v1033
      %v1109 = vunpack.c.l.b16 %v1034
      %v1110 = vunpack.c.l.b16 %v1035
      %v1111 = vunpack.c.l.b16 %v1036
      %v1112 = vunpack.c.l.b16 %v1037
      %v1113 = vunpack.c.l.b16 %v1038
      %v1114 = vunpack.c.l.b16 %v1039
      %v1115 = vunpack.c.l.b16 %v1040
      %v1116 = vunpack.c.l.b16 %v1041
      %v1117 = vunpack.c.l.b16 %v1042
      %v1118 = vunpack.c.l.b16 %v1043
      %v1119 = vunpack.c.l.b16 %v1044
      %v1120 = vunpack.c.l.b16 %v1045
      %v1121 = vunpack.c.l.b16 %v1046
      %v1122 = vunpack.c.l.b16 %v1047
      %v1123 = vunpack.c.l.b16 %v1048
      %v1124 = vunpack.c.l.b16 %v1049
      %v1125 = vunpack.c.l.b16 %v1050
      %v1126 = vunpack.c.l.b16 %v1051
      %v1127 = vunpack.c.l.b16 %v1052
      %v1128 = vunpack.c.l.b16 %v1053
      %v1129 = vunpack.c.l.b16 %v1054
      %v1130 = vunpack.c.l.b16 %v1055
      %v1131 = vunpack.c.l.b16 %v1056
      %v1132 = vunpack.c.l.b16 %v1057
      %v1133 = vunpack.c.l.b16 %v1058
      %v1134 = vunpack.c.l.b16 %v1059
      %v1135 = vpack.c.b16 %v1104, %v1103
      %v1136 = vpack.c.b16 %v1106, %v1105
      %v1137 = vpack.c.b16 %v1108, %v1107
      %v1138 = vpack.c.b16 %v1110, %v1109
      %v1139 = vpack.c.b16 %v1112, %v1111
      %v1140 = vpack.c.b16 %v1114, %v1113
      %v1141 = vpack.c.b16 %v1116, %v1115
      %v1142 = vpack.c.b16 %v1118, %v1117
      %v1143 = vpack.c.b16 %v1120, %v1119
      %v1144 = vpack.c.b16 %v1122, %v1121
      %v1145 = vpack.c.b16 %v1124, %v1123
      %v1146 = vpack.c.b16 %v1126, %v1125
      %v1147 = vpack.c.b16 %v1128, %v1127
      %v1148 = vpack.c.b16 %v1130, %v1129
      %v1149 = vpack.c.b16 %v1132, %v1131
      %v1150 = vpack.c.b16 %v1134, %v1133
      %1167 = vmatprep.subr.bf16.mxu0 0
      %1168 = vmatpush1.bf16.msra.mxu0 %v1135
      %1169 = vmatprep.subr.bf16.mxu0 0
      %1170 = vmatpush1.bf16.msra.mxu0 %v1136
      %1171 = vmatprep.subr.bf16.mxu0 0
      %1172 = vmatpush1.bf16.msra.mxu0 %v1137
      %1173 = vmatprep.subr.bf16.mxu0 0
      %1174 = vmatpush1.bf16.msra.mxu0 %v1138
      %1175 = vmatprep.subr.bf16.mxu0 0
      %1176 = vmatpush1.bf16.msra.mxu0 %v1139
      %1177 = vmatprep.subr.bf16.mxu0 0
      %1178 = vmatpush1.bf16.msra.mxu0 %v1140
      %1179 = vmatprep.subr.bf16.mxu0 0
      %1180 = vmatpush1.bf16.msra.mxu0 %v1141
      %1181 = vmatprep.subr.bf16.mxu0 0
      %1182 = vmatpush1.bf16.msra.mxu0 %v1142
      %1183 = vmatprep.subr.bf16.mxu0 0
      %1184 = vmatpush1.bf16.msra.mxu0 %v1143
      %1185 = vmatprep.subr.bf16.mxu0 0
      %1186 = vmatpush1.bf16.msra.mxu0 %v1144
      %1187 = vmatprep.subr.bf16.mxu0 0
      %1188 = vmatpush1.bf16.msra.mxu0 %v1145
      %1189 = vmatprep.subr.bf16.mxu0 0
      %1190 = vmatpush1.bf16.msra.mxu0 %v1146
      %1191 = vmatprep.subr.bf16.mxu0 0
      %1192 = vmatpush1.bf16.msra.mxu0 %v1147
      %1193 = vmatprep.subr.bf16.mxu0 0
      %1194 = vmatpush1.bf16.msra.mxu0 %v1148
      %1195 = vmatprep.subr.bf16.mxu0 0
      %1196 = vmatpush1.bf16.msra.mxu0 %v1149
      %1197 = vmatprep.subr.bf16.mxu0 0
      %1198 = vmatpush1.bf16.msra.mxu0 %v1150
      %1199 = vmatprep.mubr.bf16.mxu0 %v1068
      %1200 = vmatmul.mubr.bf16.gmra.mrb[0].mxu0 %v1067
      %v1201 = vpop.f32.mrb[0].mxu0
      %v1202 = vadd.f32 0.0, %v1201
      %v1203 = vpop.f32.mrb[0].mxu0
      %v1204 = vpop.f32.mrb[0].mxu0
      %v1205 = vpop.f32.mrb[0].mxu0
      %1206 = vdwg.mxu0
      %v1207 = vadd.f32 %v1025, %v1202
      %v1208 = vld [vmem:[%s262] sm:$0xf]
      %s1209 = scalar_lea.vmem %s2, 640
      %v1210 = vld [vmem:[%s1209] sm:$0xf]
      %v1211 = vld [vmem:[%s1209 + $0x4] sm:$0xf]
      %v1212 = vld [vmem:[%s1209 + $0x8] sm:$0xf]
      %v1213 = vld [vmem:[%s1209 + $0xc] sm:$0xf]
      %v1214 = vld [vmem:[%s1209 + $0x10] sm:$0xf]
      %v1215 = vld [vmem:[%s1209 + $0x14] sm:$0xf]
      %v1216 = vld [vmem:[%s1209 + $0x18] sm:$0xf]
      %v1217 = vld [vmem:[%s1209 + $0x1c] sm:$0xf]
      %v1218 = vld [vmem:[%s1209 + $0x20] sm:$0xf]
      %v1219 = vld [vmem:[%s1209 + $0x24] sm:$0xf]
      %v1220 = vld [vmem:[%s1209 + $0x28] sm:$0xf]
      %v1221 = vld [vmem:[%s1209 + $0x2c] sm:$0xf]
      %v1222 = vld [vmem:[%s1209 + $0x30] sm:$0xf]
      %v1223 = vld [vmem:[%s1209 + $0x34] sm:$0xf]
      %v1224 = vld [vmem:[%s1209 + $0x38] sm:$0xf]
      %v1225 = vld [vmem:[%s1209 + $0x3c] sm:$0xf]
      %v1226 = vld [vmem:[%s1209 + $0x40] sm:$0xf]
      %v1227 = vld [vmem:[%s1209 + $0x44] sm:$0xf]
      %v1228 = vld [vmem:[%s1209 + $0x48] sm:$0xf]
      %v1229 = vld [vmem:[%s1209 + $0x4c] sm:$0xf]
      %v1230 = vld [vmem:[%s1209 + $0x50] sm:$0xf]
      %v1231 = vld [vmem:[%s1209 + $0x54] sm:$0xf]
      %v1232 = vld [vmem:[%s1209 + $0x58] sm:$0xf]
      %v1233 = vld [vmem:[%s1209 + $0x5c] sm:$0xf]
      %v1234 = vld [vmem:[%s1209 + $0x60] sm:$0xf]
      %v1235 = vld [vmem:[%s1209 + $0x64] sm:$0xf]
      %v1236 = vld [vmem:[%s1209 + $0x68] sm:$0xf]
      %v1237 = vld [vmem:[%s1209 + $0x6c] sm:$0xf]
      %v1238 = vld [vmem:[%s1209 + $0x70] sm:$0xf]
      %v1239 = vld [vmem:[%s1209 + $0x74] sm:$0xf]
      %v1240 = vld [vmem:[%s1209 + $0x78] sm:$0xf]
      %v1241 = vld [vmem:[%s1209 + $0x7c] sm:$0xf]
      %v1244 = vunpack.c.l.s4 1983009808
      %v1245 = vunpack.c.0.s8 %v1244
      %v1246 = vlaneseq
      %v1247 = vshrl.u32 %v1246, 7
      %v1248 = vsub.s32 %v1245, %v1247
      %v1249 = vrot.slane %v1208, %v1248
      %v1250 = vcombine.high %v1249, %v1249
      %v1252 = vshrl.u32 %v1249, 16
      %v1254 = vshll.u32 %v1249, 16
      %v1256 = vrot.slane %v1254, 1
      %v1257 = vor.u32 %v1252, %v1256
      %v1259 = vshrl.u32 %v1250, 16
      %v1261 = vshll.u32 %v1250, 16
      %v1263 = vrot.slane %v1261, 1
      %v1264 = vor.u32 %v1259, %v1263
      %v1299 = vunpack.c.l.b16 %v1210
      %v1300 = vunpack.c.l.b16 %v1211
      %v1301 = vunpack.c.l.b16 %v1212
      %v1302 = vunpack.c.l.b16 %v1213
      %v1303 = vunpack.c.l.b16 %v1214
      %v1304 = vunpack.c.l.b16 %v1215
      %v1305 = vunpack.c.l.b16 %v1216
      %v1306 = vunpack.c.l.b16 %v1217
      %v1307 = vunpack.c.l.b16 %v1218
      %v1308 = vunpack.c.l.b16 %v1219
      %v1309 = vunpack.c.l.b16 %v1220
      %v1310 = vunpack.c.l.b16 %v1221
      %v1311 = vunpack.c.l.b16 %v1222
      %v1312 = vunpack.c.l.b16 %v1223
      %v1313 = vunpack.c.l.b16 %v1224
      %v1314 = vunpack.c.l.b16 %v1225
      %v1315 = vunpack.c.l.b16 %v1226
      %v1316 = vunpack.c.l.b16 %v1227
      %v1317 = vunpack.c.l.b16 %v1228
      %v1318 = vunpack.c.l.b16 %v1229
      %v1319 = vunpack.c.l.b16 %v1230
      %v1320 = vunpack.c.l.b16 %v1231
      %v1321 = vunpack.c.l.b16 %v1232
      %v1322 = vunpack.c.l.b16 %v1233
      %v1323 = vunpack.c.l.b16 %v1234
      %v1324 = vunpack.c.l.b16 %v1235
      %v1325 = vunpack.c.l.b16 %v1236
      %v1326 = vunpack.c.l.b16 %v1237
      %v1327 = vunpack.c.l.b16 %v1238
      %v1328 = vunpack.c.l.b16 %v1239
      %v1329 = vunpack.c.l.b16 %v1240
      %v1330 = vunpack.c.l.b16 %v1241
      %v1331 = vpack.c.b16 %v1300, %v1299
      %v1332 = vpack.c.b16 %v1302, %v1301
      %v1333 = vpack.c.b16 %v1304, %v1303
      %v1334 = vpack.c.b16 %v1306, %v1305
      %v1335 = vpack.c.b16 %v1308, %v1307
      %v1336 = vpack.c.b16 %v1310, %v1309
      %v1337 = vpack.c.b16 %v1312, %v1311
      %v1338 = vpack.c.b16 %v1314, %v1313
      %v1339 = vpack.c.b16 %v1316, %v1315
      %v1340 = vpack.c.b16 %v1318, %v1317
      %v1341 = vpack.c.b16 %v1320, %v1319
      %v1342 = vpack.c.b16 %v1322, %v1321
      %v1343 = vpack.c.b16 %v1324, %v1323
      %v1344 = vpack.c.b16 %v1326, %v1325
      %v1345 = vpack.c.b16 %v1328, %v1327
      %v1346 = vpack.c.b16 %v1330, %v1329
      %1363 = vmatprep.subr.bf16.mxu0 0
      %1364 = vmatpush1.bf16.msra.mxu0 %v1331
      %1365 = vmatprep.subr.bf16.mxu0 0
      %1366 = vmatpush1.bf16.msra.mxu0 %v1332
      %1367 = vmatprep.subr.bf16.mxu0 0
      %1368 = vmatpush1.bf16.msra.mxu0 %v1333
      %1369 = vmatprep.subr.bf16.mxu0 0
      %1370 = vmatpush1.bf16.msra.mxu0 %v1334
      %1371 = vmatprep.subr.bf16.mxu0 0
      %1372 = vmatpush1.bf16.msra.mxu0 %v1335
      %1373 = vmatprep.subr.bf16.mxu0 0
      %1374 = vmatpush1.bf16.msra.mxu0 %v1336
      %1375 = vmatprep.subr.bf16.mxu0 0
      %1376 = vmatpush1.bf16.msra.mxu0 %v1337
      %1377 = vmatprep.subr.bf16.mxu0 0
      %1378 = vmatpush1.bf16.msra.mxu0 %v1338
      %1379 = vmatprep.subr.bf16.mxu0 0
      %1380 = vmatpush1.bf16.msra.mxu0 %v1339
      %1381 = vmatprep.subr.bf16.mxu0 0
      %1382 = vmatpush1.bf16.msra.mxu0 %v1340
      %1383 = vmatprep.subr.bf16.mxu0 0
      %1384 = vmatpush1.bf16.msra.mxu0 %v1341
      %1385 = vmatprep.subr.bf16.mxu0 0
      %1386 = vmatpush1.bf16.msra.mxu0 %v1342
      %1387 = vmatprep.subr.bf16.mxu0 0
      %1388 = vmatpush1.bf16.msra.mxu0 %v1343
      %1389 = vmatprep.subr.bf16.mxu0 0
      %1390 = vmatpush1.bf16.msra.mxu0 %v1344
      %1391 = vmatprep.subr.bf16.mxu0 0
      %1392 = vmatpush1.bf16.msra.mxu0 %v1345
      %1393 = vmatprep.subr.bf16.mxu0 0
      %1394 = vmatpush1.bf16.msra.mxu0 %v1346
      %1395 = vmatprep.mubr.bf16.mxu0 %v1264
      %1396 = vmatmul.mubr.bf16.gmra.mrb[0].mxu0 %v1257
      %v1397 = vpop.f32.mrb[0].mxu0
      %v1398 = vadd.f32 0.0, %v1397
      %v1399 = vpop.f32.mrb[0].mxu0
      %v1400 = vpop.f32.mrb[0].mxu0
      %v1401 = vpop.f32.mrb[0].mxu0
      %1402 = vdwg.mxu0
      %v1403 = vadd.f32 %v1207, %v1398
      %s1404 = scalar_lea.vmem %s262, 4
      %v1405 = vld [vmem:[%s1404] sm:$0x5]
      %s1406 = scalar_lea.vmem %s2, 768
      %v1407 = vld [vmem:[%s1406] sm:$0xf]
      %v1408 = vld [vmem:[%s1406 + $0x4] sm:$0xf]
      %v1409 = vld [vmem:[%s1406 + $0x8] sm:$0xf]
      %v1410 = vld [vmem:[%s1406 + $0xc] sm:$0xf]
      %v1411 = vld [vmem:[%s1406 + $0x10] sm:$0xf]
      %v1412 = vld [vmem:[%s1406 + $0x14] sm:$0xf]
      %v1413 = vld [vmem:[%s1406 + $0x18] sm:$0xf]
      %v1414 = vld [vmem:[%s1406 + $0x1c] sm:$0xf]
      %v1415 = vld [vmem:[%s1406 + $0x20] sm:$0xf]
      %v1416 = vld [vmem:[%s1406 + $0x24] sm:$0xf]
      %v1417 = vld [vmem:[%s1406 + $0x28] sm:$0xf]
      %v1418 = vld [vmem:[%s1406 + $0x2c] sm:$0xf]
      %v1419 = vld [vmem:[%s1406 + $0x30] sm:$0xf]
      %v1420 = vld [vmem:[%s1406 + $0x34] sm:$0xf]
      %v1421 = vld [vmem:[%s1406 + $0x38] sm:$0xf]
      %v1422 = vld [vmem:[%s1406 + $0x3c] sm:$0xf]
      %v1423 = vld [vmem:[%s1406 + $0x40] sm:$0xf]
      %v1424 = vld [vmem:[%s1406 + $0x44] sm:$0xf]
      %v1425 = vld [vmem:[%s1406 + $0x48] sm:$0xf]
      %v1426 = vld [vmem:[%s1406 + $0x4c] sm:$0xf]
      %v1427 = vld [vmem:[%s1406 + $0x50] sm:$0xf]
      %v1428 = vld [vmem:[%s1406 + $0x54] sm:$0xf]
      %v1429 = vld [vmem:[%s1406 + $0x58] sm:$0xf]
      %v1430 = vld [vmem:[%s1406 + $0x5c] sm:$0xf]
      %v1431 = vld [vmem:[%s1406 + $0x60] sm:$0xf]
      %v1432 = vld [vmem:[%s1406 + $0x64] sm:$0xf]
      %v1433 = vld [vmem:[%s1406 + $0x68] sm:$0xf]
      %v1434 = vld [vmem:[%s1406 + $0x6c] sm:$0xf]
      %v1435 = vld [vmem:[%s1406 + $0x70] sm:$0xf]
      %v1436 = vld [vmem:[%s1406 + $0x74] sm:$0xf]
      %v1437 = vld [vmem:[%s1406 + $0x78] sm:$0xf]
      %v1438 = vld [vmem:[%s1406 + $0x7c] sm:$0xf]
      %v1441 = vunpack.c.l.s4 1983009808
      %v1442 = vunpack.c.0.s8 %v1441
      %v1443 = vlaneseq
      %v1444 = vshrl.u32 %v1443, 7
      %v1445 = vsub.s32 %v1442, %v1444
      %v1446 = vrot.slane %v1405, %v1445
      %v1447 = vcombine.high %v1446, %v1446
      %v1482 = vunpack.c.l.b16 %v1407
      %v1483 = vunpack.c.l.b16 %v1408
      %v1484 = vunpack.c.l.b16 %v1409
      %v1485 = vunpack.c.l.b16 %v1410
      %v1486 = vunpack.c.l.b16 %v1411
      %v1487 = vunpack.c.l.b16 %v1412
      %v1488 = vunpack.c.l.b16 %v1413
      %v1489 = vunpack.c.l.b16 %v1414
      %v1490 = vunpack.c.l.b16 %v1415
      %v1491 = vunpack.c.l.b16 %v1416
      %v1492 = vunpack.c.l.b16 %v1417
      %v1493 = vunpack.c.l.b16 %v1418
      %v1494 = vunpack.c.l.b16 %v1419
      %v1495 = vunpack.c.l.b16 %v1420
      %v1496 = vunpack.c.l.b16 %v1421
      %v1497 = vunpack.c.l.b16 %v1422
      %v1498 = vunpack.c.l.b16 %v1423
      %v1499 = vunpack.c.l.b16 %v1424
      %v1500 = vunpack.c.l.b16 %v1425
      %v1501 = vunpack.c.l.b16 %v1426
      %v1502 = vunpack.c.l.b16 %v1427
      %v1503 = vunpack.c.l.b16 %v1428
      %v1504 = vunpack.c.l.b16 %v1429
      %v1505 = vunpack.c.l.b16 %v1430
      %v1506 = vunpack.c.l.b16 %v1431
      %v1507 = vunpack.c.l.b16 %v1432
      %v1508 = vunpack.c.l.b16 %v1433
      %v1509 = vunpack.c.l.b16 %v1434
      %v1510 = vunpack.c.l.b16 %v1435
      %v1511 = vunpack.c.l.b16 %v1436
      %v1512 = vunpack.c.l.b16 %v1437
      %v1513 = vunpack.c.l.b16 %v1438
      %v1514 = vpack.c.b16 %v1483, %v1482
      %v1515 = vpack.c.b16 %v1485, %v1484
      %v1516 = vpack.c.b16 %v1487, %v1486
      %v1517 = vpack.c.b16 %v1489, %v1488
      %v1518 = vpack.c.b16 %v1491, %v1490
      %v1519 = vpack.c.b16 %v1493, %v1492
      %v1520 = vpack.c.b16 %v1495, %v1494
      %v1521 = vpack.c.b16 %v1497, %v1496
      %v1522 = vpack.c.b16 %v1499, %v1498
      %v1523 = vpack.c.b16 %v1501, %v1500
      %v1524 = vpack.c.b16 %v1503, %v1502
      %v1525 = vpack.c.b16 %v1505, %v1504
      %v1526 = vpack.c.b16 %v1507, %v1506
      %v1527 = vpack.c.b16 %v1509, %v1508
      %v1528 = vpack.c.b16 %v1511, %v1510
      %v1529 = vpack.c.b16 %v1513, %v1512
      %1546 = vmatprep.subr.bf16.mxu0 0
      %1547 = vmatpush1.bf16.msra.mxu0 %v1514
      %1548 = vmatprep.subr.bf16.mxu0 0
      %1549 = vmatpush1.bf16.msra.mxu0 %v1515
      %1550 = vmatprep.subr.bf16.mxu0 0
      %1551 = vmatpush1.bf16.msra.mxu0 %v1516
      %1552 = vmatprep.subr.bf16.mxu0 0
      %1553 = vmatpush1.bf16.msra.mxu0 %v1517
      %1554 = vmatprep.subr.bf16.mxu0 0
      %1555 = vmatpush1.bf16.msra.mxu0 %v1518
      %1556 = vmatprep.subr.bf16.mxu0 0
      %1557 = vmatpush1.bf16.msra.mxu0 %v1519
      %1558 = vmatprep.subr.bf16.mxu0 0
      %1559 = vmatpush1.bf16.msra.mxu0 %v1520
      %1560 = vmatprep.subr.bf16.mxu0 0
      %1561 = vmatpush1.bf16.msra.mxu0 %v1521
      %1562 = vmatprep.subr.bf16.mxu0 0
      %1563 = vmatpush1.bf16.msra.mxu0 %v1522
      %1564 = vmatprep.subr.bf16.mxu0 0
      %1565 = vmatpush1.bf16.msra.mxu0 %v1523
      %1566 = vmatprep.subr.bf16.mxu0 0
      %1567 = vmatpush1.bf16.msra.mxu0 %v1524
      %1568 = vmatprep.subr.bf16.mxu0 0
      %1569 = vmatpush1.bf16.msra.mxu0 %v1525
      %1570 = vmatprep.subr.bf16.mxu0 0
      %1571 = vmatpush1.bf16.msra.mxu0 %v1526
      %1572 = vmatprep.subr.bf16.mxu0 0
      %1573 = vmatpush1.bf16.msra.mxu0 %v1527
      %1574 = vmatprep.subr.bf16.mxu0 0
      %1575 = vmatpush1.bf16.msra.mxu0 %v1528
      %1576 = vmatprep.subr.bf16.mxu0 0
      %1577 = vmatpush1.bf16.msra.mxu0 %v1529
      %1578 = vmatprep.mubr.bf16.mxu0 %v1447
      %1579 = vmatmul.mubr.bf16.gmra.mrb[0].mxu0 %v1446
      %v1580 = vpop.f32.mrb[0].mxu0
      %v1581 = vadd.f32 0.0, %v1580
      %v1582 = vpop.f32.mrb[0].mxu0
      %v1583 = vpop.f32.mrb[0].mxu0
      %v1584 = vpop.f32.mrb[0].mxu0
      %1585 = vdwg.mxu0
      %v1586 = vadd.f32 %v1403, %v1581
      %v1587 = vld [vmem:[%s1404] sm:$0xf]
      %s1588 = scalar_lea.vmem %s2, 896
      %v1589 = vld [vmem:[%s1588] sm:$0xf]
      %v1590 = vld [vmem:[%s1588 + $0x4] sm:$0xf]
      %v1591 = vld [vmem:[%s1588 + $0x8] sm:$0xf]
      %v1592 = vld [vmem:[%s1588 + $0xc] sm:$0xf]
      %v1593 = vld [vmem:[%s1588 + $0x10] sm:$0xf]
      %v1594 = vld [vmem:[%s1588 + $0x14] sm:$0xf]
      %v1595 = vld [vmem:[%s1588 + $0x18] sm:$0xf]
      %v1596 = vld [vmem:[%s1588 + $0x1c] sm:$0xf]
      %v1597 = vld [vmem:[%s1588 + $0x20] sm:$0xf]
      %v1598 = vld [vmem:[%s1588 + $0x24] sm:$0xf]
      %v1599 = vld [vmem:[%s1588 + $0x28] sm:$0xf]
      %v1600 = vld [vmem:[%s1588 + $0x2c] sm:$0xf]
      %v1601 = vld [vmem:[%s1588 + $0x30] sm:$0xf]
      %v1602 = vld [vmem:[%s1588 + $0x34] sm:$0xf]
      %v1603 = vld [vmem:[%s1588 + $0x38] sm:$0xf]
      %v1604 = vld [vmem:[%s1588 + $0x3c] sm:$0xf]
      %v1605 = vld [vmem:[%s1588 + $0x40] sm:$0xf]
      %v1606 = vld [vmem:[%s1588 + $0x44] sm:$0xf]
      %v1607 = vld [vmem:[%s1588 + $0x48] sm:$0xf]
      %v1608 = vld [vmem:[%s1588 + $0x4c] sm:$0xf]
      %v1609 = vld [vmem:[%s1588 + $0x50] sm:$0xf]
      %v1610 = vld [vmem:[%s1588 + $0x54] sm:$0xf]
      %v1611 = vld [vmem:[%s1588 + $0x58] sm:$0xf]
      %v1612 = vld [vmem:[%s1588 + $0x5c] sm:$0xf]
      %v1613 = vld [vmem:[%s1588 + $0x60] sm:$0xf]
      %v1614 = vld [vmem:[%s1588 + $0x64] sm:$0xf]
      %v1615 = vld [vmem:[%s1588 + $0x68] sm:$0xf]
      %v1616 = vld [vmem:[%s1588 + $0x6c] sm:$0xf]
      %v1617 = vld [vmem:[%s1588 + $0x70] sm:$0xf]
      %v1618 = vld [vmem:[%s1588 + $0x74] sm:$0xf]
      %v1619 = vld [vmem:[%s1588 + $0x78] sm:$0xf]
      %v1620 = vld [vmem:[%s1588 + $0x7c] sm:$0xf]
      %v1623 = vunpack.c.l.s4 1983009808
      %v1624 = vunpack.c.0.s8 %v1623
      %v1625 = vlaneseq
      %v1626 = vshrl.u32 %v1625, 7
      %v1627 = vsub.s32 %v1624, %v1626
      %v1628 = vrot.slane %v1587, %v1627
      %v1629 = vcombine.high %v1628, %v1628
      %v1631 = vshrl.u32 %v1628, 16
      %v1633 = vshll.u32 %v1628, 16
      %v1635 = vrot.slane %v1633, 1
      %v1636 = vor.u32 %v1631, %v1635
      %v1638 = vshrl.u32 %v1629, 16
      %v1640 = vshll.u32 %v1629, 16
      %v1642 = vrot.slane %v1640, 1
      %v1643 = vor.u32 %v1638, %v1642
      %v1678 = vunpack.c.l.b16 %v1589
      %v1679 = vunpack.c.l.b16 %v1590
      %v1680 = vunpack.c.l.b16 %v1591
      %v1681 = vunpack.c.l.b16 %v1592
      %v1682 = vunpack.c.l.b16 %v1593
      %v1683 = vunpack.c.l.b16 %v1594
      %v1684 = vunpack.c.l.b16 %v1595
      %v1685 = vunpack.c.l.b16 %v1596
      %v1686 = vunpack.c.l.b16 %v1597
      %v1687 = vunpack.c.l.b16 %v1598
      %v1688 = vunpack.c.l.b16 %v1599
      %v1689 = vunpack.c.l.b16 %v1600
      %v1690 = vunpack.c.l.b16 %v1601
      %v1691 = vunpack.c.l.b16 %v1602
      %v1692 = vunpack.c.l.b16 %v1603
      %v1693 = vunpack.c.l.b16 %v1604
      %v1694 = vunpack.c.l.b16 %v1605
      %v1695 = vunpack.c.l.b16 %v1606
      %v1696 = vunpack.c.l.b16 %v1607
      %v1697 = vunpack.c.l.b16 %v1608
      %v1698 = vunpack.c.l.b16 %v1609
      %v1699 = vunpack.c.l.b16 %v1610
      %v1700 = vunpack.c.l.b16 %v1611
      %v1701 = vunpack.c.l.b16 %v1612
      %v1702 = vunpack.c.l.b16 %v1613
      %v1703 = vunpack.c.l.b16 %v1614
      %v1704 = vunpack.c.l.b16 %v1615
      %v1705 = vunpack.c.l.b16 %v1616
      %v1706 = vunpack.c.l.b16 %v1617
      %v1707 = vunpack.c.l.b16 %v1618
      %v1708 = vunpack.c.l.b16 %v1619
      %v1709 = vunpack.c.l.b16 %v1620
      %v1710 = vpack.c.b16 %v1679, %v1678
      %v1711 = vpack.c.b16 %v1681, %v1680
      %v1712 = vpack.c.b16 %v1683, %v1682
      %v1713 = vpack.c.b16 %v1685, %v1684
      %v1714 = vpack.c.b16 %v1687, %v1686
      %v1715 = vpack.c.b16 %v1689, %v1688
      %v1716 = vpack.c.b16 %v1691, %v1690
      %v1717 = vpack.c.b16 %v1693, %v1692
      %v1718 = vpack.c.b16 %v1695, %v1694
      %v1719 = vpack.c.b16 %v1697, %v1696
      %v1720 = vpack.c.b16 %v1699, %v1698
      %v1721 = vpack.c.b16 %v1701, %v1700
      %v1722 = vpack.c.b16 %v1703, %v1702
      %v1723 = vpack.c.b16 %v1705, %v1704
      %v1724 = vpack.c.b16 %v1707, %v1706
      %v1725 = vpack.c.b16 %v1709, %v1708
      %1742 = vmatprep.subr.bf16.mxu0 0
      %1743 = vmatpush1.bf16.msra.mxu0 %v1710
      %1744 = vmatprep.subr.bf16.mxu0 0
      %1745 = vmatpush1.bf16.msra.mxu0 %v1711
      %1746 = vmatprep.subr.bf16.mxu0 0
      %1747 = vmatpush1.bf16.msra.mxu0 %v1712
      %1748 = vmatprep.subr.bf16.mxu0 0
      %1749 = vmatpush1.bf16.msra.mxu0 %v1713
      %1750 = vmatprep.subr.bf16.mxu0 0
      %1751 = vmatpush1.bf16.msra.mxu0 %v1714
      %1752 = vmatprep.subr.bf16.mxu0 0
      %1753 = vmatpush1.bf16.msra.mxu0 %v1715
      %1754 = vmatprep.subr.bf16.mxu0 0
      %1755 = vmatpush1.bf16.msra.mxu0 %v1716
      %1756 = vmatprep.subr.bf16.mxu0 0
      %1757 = vmatpush1.bf16.msra.mxu0 %v1717
      %1758 = vmatprep.subr.bf16.mxu0 0
      %1759 = vmatpush1.bf16.msra.mxu0 %v1718
      %1760 = vmatprep.subr.bf16.mxu0 0
      %1761 = vmatpush1.bf16.msra.mxu0 %v1719
      %1762 = vmatprep.subr.bf16.mxu0 0
      %1763 = vmatpush1.bf16.msra.mxu0 %v1720
      %1764 = vmatprep.subr.bf16.mxu0 0
      %1765 = vmatpush1.bf16.msra.mxu0 %v1721
      %1766 = vmatprep.subr.bf16.mxu0 0
      %1767 = vmatpush1.bf16.msra.mxu0 %v1722
      %1768 = vmatprep.subr.bf16.mxu0 0
      %1769 = vmatpush1.bf16.msra.mxu0 %v1723
      %1770 = vmatprep.subr.bf16.mxu0 0
      %1771 = vmatpush1.bf16.msra.mxu0 %v1724
      %1772 = vmatprep.subr.bf16.mxu0 0
      %1773 = vmatpush1.bf16.msra.mxu0 %v1725
      %1774 = vmatprep.mubr.bf16.mxu0 %v1643
      %1775 = vmatmul.mubr.bf16.gmra.mrb[0].mxu0 %v1636
      %v1776 = vpop.f32.mrb[0].mxu0
      %v1777 = vadd.f32 0.0, %v1776
      %v1778 = vpop.f32.mrb[0].mxu0
      %v1779 = vpop.f32.mrb[0].mxu0
      %v1780 = vpop.f32.mrb[0].mxu0
      %1781 = vdwg.mxu0
      %v1782 = vadd.f32 %v1586, %v1777
      %v1783 = vld [vmem:[%s3] sm:$0x1]
      %v1785 = vlaneseq
      %v1786 = vshrl.u32 %v1785, 7
      %v1787 = vsub.s32 0, %v1786
      %v1788 = vrot.slane %v1783, %v1787
      %v1790 = vadd.f32 %v1782, %v1788
      %vm1791 = vcmp.gt.f32.partialorder %v1790, 0.0
      %v1792 = vmul.f32 %v1790, 0.2
      %v1793 = vsel %vm1791, %v1790, %v1792
      %v1794 = vpack.c.bf16 %v1793, %v1793
      %1795 = vst [vmem:[%s270] sm:$0x1] %v1794
      %p1796 = scmp.lt.s32.totalorder %s19, 1
      %s1797 = scalar_select %p1796, %s19, 1
      %p1798 = scmp.lt.s32.totalorder %s20, 1
      %s1799 = scalar_select %p1798, %s20, 1
      %s1800 = smul.addr %s1797, 2
      %s1801 = sadd.s32 %s1799, %s1800
      %s1802 = scalar_lea.vmem %s4, %s1801
      // Predicated region
      $region37: #{fc_discriminator_forward.8} parent=35 // pred_check
        %p1803 = pneg %p147
      $region38: #{fc_discriminator_forward.8} parent=35 // pred_check_branch
        %1805 = sbr.rel (%p1803) target = $region40
      $region39: #{fc_discriminator_forward.8} parent=35 // pred_region
        _
      $region40: #{fc_discriminator_forward.8} parent=35 // pred_fallthru
        _
    $region36: #{fc_discriminator_forward.8} parent=5 // pred_fallthru
      _
    %p1806 = scmp.le.s32.totalorder 2, %s10
    // Predicated region
    $region41: #{fc_discriminator_forward.8} parent=5 // pred_check
      %p1807 = pneg %p1806
    $region42: #{fc_discriminator_forward.8} parent=5 // pred_check_branch
      %1809 = sbr.rel (%p1807) target = $region44
    $region43: #{fc_discriminator_forward.8} parent=5 // pred_region
      %s1810 = ssub.s32 %s10, 2
      // Predicated region
      $region45: #{fc_discriminator_forward.8} parent=43 // pred_check
        %p1811 = pneg %p153
      $region46: #{fc_discriminator_forward.8} parent=43 // pred_check_branch
        %1813 = sbr.rel (%p1811) target = $region48
      $region47: #{fc_discriminator_forward.8} parent=43 // pred_region
        %p1814 = scmp.lt.s32.totalorder %s21, 1
        %s1815 = scalar_select %p1814, %s21, 1
        %p1816 = scmp.lt.s32.totalorder %s22, 1
        %s1817 = scalar_select %p1816, %s22, 1
        %s1818 = smul.addr %s1815, 2
        %s1819 = sadd.s32 %s1817, %s1818
        %s1820 = scalar_lea.vmem %s4, %s1819
      $region48: #{fc_discriminator_forward.8} parent=43 // pred_fallthru
        _
    $region44: #{fc_discriminator_forward.8} parent=5 // pred_fallthru
      _
  $region6: #{fc_discriminator_forward.8} parent=0 // loop_footer
    %s14 = sadd.s32 1, %s10
  $region7: #{fc_discriminator_forward.8} parent=0 // loop_footer_branch
    %9 = sbr.rel target = $region3
  $region8: #{fc_discriminator_forward.8} parent=0 // loop_exit
    _

// kernel: fc_discriminator_forward.9
$region0: #{fc_discriminator_forward.9}
  #allocation0 [shape = 'u32[]', space=smem, size = 0x4, offset = 0x4, fixed_abs, tag = 'smem constant byte address 0x4 - core index']
  #allocation1 [shape = 'u32[144,128]{1,0:T(1,128)}', space=vmem, size = 0x12000, scoped, tag = 'internal scratch']
  %s0 = inlined_call_operand.vmem [shape: bf16[2,2,2,2,256], index: 0, kind: input, shape index: {}, may-alias: {0,1}]
  %s1 = inlined_call_operand.vmem [shape: bf16[2,2,2,2,256], index: 1, kind: input, shape index: {}, may-alias: {0,1}]
  %s2 = inlined_call_operand.vmem [shape: bf16[8,256,128], index: 2, kind: input, shape index: {}]
  %s3 = inlined_call_operand.vmem [shape: f32[1,128], index: 3, kind: input, shape index: {}]
  %s4 = inlined_call_operand.vmem [shape: bf16[2,1,1,128], index: 4, kind: output, shape index: {}]
  %s5 = sld [smem:[#allocation0]]
  $region49: #{fc_discriminator_forward.9} parent=0
    _
  %s7 = ssub.s32 1, %s5
  %s8 = scalar_select 0, %s7, %s5
  loop: start=0, step=1, limit=4
  $region2: #{fc_discriminator_forward.9} parent=0 // loop_pre_header
    _
  $region3: #{fc_discriminator_forward.9} parent=0 // loop_header
    %s10 = sphi 0, %s14
    %p11 = scmp.ge.s32.totalorder %s10, 4
    %s17 = sphi 0, %s29
    %s18 = sphi 0, %s25
    %s19 = sphi 0, %s17
    %s20 = sphi 0, %s18
    %s21 = sphi 0, %s19
    %s22 = sphi 0, %s20
    %s34 = sphi 0, %s36
    %s37 = sphi 0, %s34
    %s38 = sphi 0, %s37
    %s54 = sphi 0, %s38
    %s64 = sphi 0, %s66
    %s67 = sphi 0, %s64
    %s68 = sphi 0, %s67
    %s84 = sphi 0, %s68
    %s88 = sphi 0, %s88
    %s90 = sphi 0, %s88
    %s91 = sphi 0, %s90
    %s105 = sphi 0, %s91
    %s109 = sphi 0, %s109
    %s111 = sphi 0, %s109
    %s112 = sphi 0, %s111
    %s126 = sphi 0, %s112
    %s134 = sphi 0, %s136
    %s137 = sphi 0, %s134
    %s138 = sphi 0, %s137
    %s154 = sphi 0, %s138
  $region4: #{fc_discriminator_forward.9} parent=0 // loop_header_branch
    %13 = sbr.rel (%p11) target = $region8
  $region5: #{fc_discriminator_forward.9} parent=0 // loop_body
    %s15 = ssub.s32 %s10, 1
    %s16 = ssub.s32 %s10, 2
    %s23 = sadd.s32 1, %s18
    %p24 = scmp.ge.s32.totalorder %s23, 1
    %s25 = scalar_select %p24, 0, %s23
    %s26 = sadd.s32 1, %s17
    %s27 = scalar_select %p24, %s26, %s17
    %p28 = scmp.ge.s32.totalorder %s27, 2
    %s29 = scalar_select %p28, 0, %s27
    %s30 = ssub.s32 %s17, %s29
    %s31 = ssub.s32 %s18, %s25
    %s32 = sor.u32 %s30, %s31
    %p33 = scmp.eq.s32.totalorder %s32, 0
    %s35 = sadd.s32 %s34, 1
    %s36 = scalar_select %p33, %s34, %s35
    %p39 = pneg %p33
    %p40 = scmp.eq.s32.totalorder %s10, 1
    %p41 = por %p39, %p40
    %p42 = scmp.ne.s32.totalorder %s34, %s37
    %p43 = scmp.eq.s32.totalorder %s10, 0
    %p44 = por %p42, %p43
    %p45 = scmp.ne.s32.totalorder %s34, %s37
    %p46 = scmp.eq.s32.totalorder %s15, 1
    %p47 = por %p45, %p46
    %p48 = scmp.ne.s32.totalorder %s37, %s38
    %p49 = scmp.eq.s32.totalorder %s15, 0
    %p50 = por %p48, %p49
    %p51 = scmp.ne.s32.totalorder %s37, %s38
    %p52 = scmp.eq.s32.totalorder %s16, 1
    %p53 = por %p51, %p52
    %p55 = scmp.ne.s32.totalorder %s38, %s54
    %p56 = scmp.eq.s32.totalorder %s16, 0
    %p57 = por %p55, %p56
    %s58 = sadd.s32 %s18, 1
    %s59 = sadd.s32 %s25, 1
    %s60 = ssub.s32 %s17, %s29
    %s61 = ssub.s32 %s58, %s59
    %s62 = sor.u32 %s60, %s61
    %p63 = scmp.eq.s32.totalorder %s62, 0
    %s65 = sadd.s32 %s64, 1
    %s66 = scalar_select %p63, %s64, %s65
    %p69 = pneg %p63
    %p70 = scmp.eq.s32.totalorder %s10, 1
    %p71 = por %p69, %p70
    %p72 = scmp.ne.s32.totalorder %s64, %s67
    %p73 = scmp.eq.s32.totalorder %s10, 0
    %p74 = por %p72, %p73
    %p75 = scmp.ne.s32.totalorder %s64, %s67
    %p76 = scmp.eq.s32.totalorder %s15, 1
    %p77 = por %p75, %p76
    %p78 = scmp.ne.s32.totalorder %s67, %s68
    %p79 = scmp.eq.s32.totalorder %s15, 0
    %p80 = por %p78, %p79
    %p81 = scmp.ne.s32.totalorder %s67, %s68
    %p82 = scmp.eq.s32.totalorder %s16, 1
    %p83 = por %p81, %p82
    %p85 = scmp.ne.s32.totalorder %s68, %s84
    %p86 = scmp.eq.s32.totalorder %s16, 0
    %p87 = por %p85, %p86
    %s89 = sadd.s32 %s88, 1
    %p92 = scmp.eq.s32.totalorder %s10, 1
    %p93 = scmp.ne.s32.totalorder %s88, %s90
    %p94 = scmp.eq.s32.totalorder %s10, 0
    %p95 = por %p93, %p94
    %p96 = scmp.ne.s32.totalorder %s88, %s90
    %p97 = scmp.eq.s32.totalorder %s15, 1
    %p98 = por %p96, %p97
    %p99 = scmp.ne.s32.totalorder %s90, %s91
    %p100 = scmp.eq.s32.totalorder %s15, 0
    %p101 = por %p99, %p100
    %p102 = scmp.ne.s32.totalorder %s90, %s91
    %p103 = scmp.eq.s32.totalorder %s16, 1
    %p104 = por %p102, %p103
    %p106 = scmp.ne.s32.totalorder %s91, %s105
    %p107 = scmp.eq.s32.totalorder %s16, 0
    %p108 = por %p106, %p107
    %s110 = sadd.s32 %s109, 1
    %p113 = scmp.eq.s32.totalorder %s10, 1
    %p114 = scmp.ne.s32.totalorder %s109, %s111
    %p115 = scmp.eq.s32.totalorder %s10, 0
    %p116 = por %p114, %p115
    %p117 = scmp.ne.s32.totalorder %s109, %s111
    %p118 = scmp.eq.s32.totalorder %s15, 1
    %p119 = por %p117, %p118
    %p120 = scmp.ne.s32.totalorder %s111, %s112
    %p121 = scmp.eq.s32.totalorder %s15, 0
    %p122 = por %p120, %p121
    %p123 = scmp.ne.s32.totalorder %s111, %s112
    %p124 = scmp.eq.s32.totalorder %s16, 1
    %p125 = por %p123, %p124
    %p127 = scmp.ne.s32.totalorder %s112, %s126
    %p128 = scmp.eq.s32.totalorder %s16, 0
    %p129 = por %p127, %p128
    %s130 = ssub.s32 %s17, %s29
    %s131 = ssub.s32 %s18, %s25
    %s132 = sor.u32 %s130, %s131
    %p133 = scmp.eq.s32.totalorder %s132, 0
    %s135 = sadd.s32 %s134, 1
    %s136 = scalar_select %p133, %s134, %s135
    %p139 = pneg %p133
    %p140 = scmp.eq.s32.totalorder %s10, 1
    %p141 = por %p139, %p140
    %p142 = scmp.ne.s32.totalorder %s134, %s137
    %p143 = scmp.eq.s32.totalorder %s10, 0
    %p144 = por %p142, %p143
    %p145 = scmp.ne.s32.totalorder %s134, %s137
    %p146 = scmp.eq.s32.totalorder %s15, 1
    %p147 = por %p145, %p146
    %p148 = scmp.ne.s32.totalorder %s137, %s138
    %p149 = scmp.eq.s32.totalorder %s15, 0
    %p150 = por %p148, %p149
    %p151 = scmp.ne.s32.totalorder %s137, %s138
    %p152 = scmp.eq.s32.totalorder %s16, 1
    %p153 = por %p151, %p152
    %p155 = scmp.ne.s32.totalorder %s138, %s154
    %p156 = scmp.eq.s32.totalorder %s16, 0
    %p157 = por %p155, %p156
    %p158 = scmp.le.s32.totalorder 1, %s10
    %p159 = scmp.lt.s32.totalorder %s10, 3
    %p160 = pnand %p158, %p159
    %p161 = pneg %p160
    // Predicated region
    $region9: #{fc_discriminator_forward.9} parent=5 // pred_check
      _
    $region10: #{fc_discriminator_forward.9} parent=5 // pred_check_branch
      %163 = sbr.rel (%p160) target = $region12
    $region11: #{fc_discriminator_forward.9} parent=5 // pred_region
      %s164 = ssub.s32 %s10, 1
      // Predicated region
      $region13: #{fc_discriminator_forward.9} parent=11 // pred_check
        %p165 = pneg %p101
      $region14: #{fc_discriminator_forward.9} parent=11 // pred_check_branch
        %167 = sbr.rel (%p165) target = $region16
      $region15: #{fc_discriminator_forward.9} parent=11 // pred_region
        _
      $region16: #{fc_discriminator_forward.9} parent=11 // pred_fallthru
        _
      // Predicated region
      $region17: #{fc_discriminator_forward.9} parent=11 // pred_check
        %p168 = pneg %p122
      $region18: #{fc_discriminator_forward.9} parent=11 // pred_check_branch
        %170 = sbr.rel (%p168) target = $region20
      $region19: #{fc_discriminator_forward.9} parent=11 // pred_region
        _
      $region20: #{fc_discriminator_forward.9} parent=11 // pred_fallthru
        _
    $region12: #{fc_discriminator_forward.9} parent=5 // pred_fallthru
      _
    %p171 = scmp.lt.s32.totalorder %s10, 2
    // Predicated region
    $region21: #{fc_discriminator_forward.9} parent=5 // pred_check
      %p172 = pneg %p171
    $region22: #{fc_discriminator_forward.9} parent=5 // pred_check_branch
      %174 = sbr.rel (%p172) target = $region24
    $region23: #{fc_discriminator_forward.9} parent=5 // pred_region
      // Predicated region
      $region25: #{fc_discriminator_forward.9} parent=23 // pred_check
        %p175 = pneg %p44
      $region26: #{fc_discriminator_forward.9} parent=23 // pred_check_branch
        %177 = sbr.rel (%p175) target = $region28
      $region27: #{fc_discriminator_forward.9} parent=23 // pred_region
        %p178 = scmp.lt.s32.totalorder %s17, 1
        %s179 = scalar_select %p178, %s17, 1
        %p180 = scmp.lt.s32.totalorder %s18, 1
        %s181 = scalar_select %p180, %s18, 1
        %s182 = smul.addr %s181, 4
        %s183 = smul.addr %s179, 8
        %s184 = sadd.s32 %s182, %s183
        %s185 = scalar_lea.vmem %s0, %s184
      $region28: #{fc_discriminator_forward.9} parent=23 // pred_fallthru
        _
      // Predicated region
      $region29: #{fc_discriminator_forward.9} parent=23 // pred_check
        %p186 = pneg %p74
      $region30: #{fc_discriminator_forward.9} parent=23 // pred_check_branch
        %188 = sbr.rel (%p186) target = $region32
      $region31: #{fc_discriminator_forward.9} parent=23 // pred_region
        %s189 = sadd.s32 %s18, 1
        %p190 = scmp.lt.s32.totalorder %s17, 1
        %s191 = scalar_select %p190, %s17, 1
        %p192 = scmp.lt.s32.totalorder %s189, 1
        %s193 = scalar_select %p192, %s189, 1
        %s194 = smul.addr %s193, 4
        %s195 = smul.addr %s191, 8
        %s196 = sadd.s32 %s194, %s195
        %s197 = scalar_lea.vmem %s1, %s196
        %s198 = sadd.s32 %s18, 1
      $region32: #{fc_discriminator_forward.9} parent=23 // pred_fallthru
        _
    $region24: #{fc_discriminator_forward.9} parent=5 // pred_fallthru
      _
    %p199 = scmp.le.s32.totalorder 1, %s10
    %p200 = scmp.lt.s32.totalorder %s10, 3
    %p201 = pnand %p199, %p200
    %p202 = pneg %p201
    // Predicated region
    $region33: #{fc_discriminator_forward.9} parent=5 // pred_check
      _
    $region34: #{fc_discriminator_forward.9} parent=5 // pred_check_branch
      %204 = sbr.rel (%p201) target = $region36
    $region35: #{fc_discriminator_forward.9} parent=5 // pred_region
      %s205 = ssub.s32 %s10, 1
      %p206 = scmp.lt.s32.totalorder %s19, 1
      %s207 = scalar_select %p206, %s19, 1
      %p208 = scmp.lt.s32.totalorder %s20, 1
      %s209 = scalar_select %p208, %s20, 1
      %s210 = smul.addr %s209, 4
      %s211 = smul.addr %s207, 8
      %s212 = sadd.s32 %s210, %s211
      %s213 = scalar_lea.vmem %s0, %s212
      %p214 = pneg %p50
      %p215 = pneg %p47
      %s216 = sadd.s32 %s20, 1
      %p217 = scmp.lt.s32.totalorder %s19, 1
      %s218 = scalar_select %p217, %s19, 1
      %p219 = scmp.lt.s32.totalorder %s216, 1
      %s220 = scalar_select %p219, %s216, 1
      %s221 = smul.addr %s220, 4
      %s222 = smul.addr %s218, 8
      %s223 = sadd.s32 %s221, %s222
      %s224 = scalar_lea.vmem %s1, %s223
      %p225 = pneg %p80
      %p226 = pneg %p77
      %p227 = pneg %p101
      %p228 = pneg %p98
      %p229 = pneg %p122
      %p230 = pneg %p119
      %p231 = pneg %p150
      %p232 = pneg %p147
      %p233 = scmp.lt.s32.totalorder %s19, 1
      %s234 = scalar_select %p233, %s19, 1
      %p235 = scmp.lt.s32.totalorder %s20, 0
      %s236 = scalar_select %p235, %s20, 0
      %s237 = sadd.s32 %s236, %s234
      %s238 = scalar_lea.vmem %s4, %s237
      %p239 = scmp.lt.s32.totalorder %s19, 1
      %s240 = scalar_select %p239, %s19, 1
      %p241 = scmp.lt.s32.totalorder %s20, 1
      %s242 = scalar_select %p241, %s20, 1
      %s243 = smul.addr %s242, 4
      %s244 = smul.addr %s240, 8
      %s245 = sadd.s32 %s243, %s244
      %s246 = scalar_lea.vmem %s0, %s245
      %s247 = sadd.s32 %s20, 1
      %p248 = scmp.lt.s32.totalorder %s19, 1
      %s249 = scalar_select %p248, %s19, 1
      %p250 = scmp.lt.s32.totalorder %s247, 1
      %s251 = scalar_select %p250, %s247, 1
      %s252 = smul.addr %s251, 4
      %s253 = smul.addr %s249, 8
      %s254 = sadd.s32 %s252, %s253
      %s255 = scalar_lea.vmem %s1, %s254
      %s256 = sadd.s32 %s20, 1
      %p257 = scmp.lt.s32.totalorder %s19, 1
      %s258 = scalar_select %p257, %s19, 1
      %p259 = scmp.lt.s32.totalorder %s20, 0
      %s260 = scalar_select %p259, %s20, 0
      %s261 = sadd.s32 %s260, %s258
      %s262 = scalar_lea.vmem %s4, %s261
      %v264 = vld [vmem:[%s246] sm:$0x3]
      %v265 = vld [vmem:[%s2] sm:$0xf]
      %v266 = vld [vmem:[%s2 + $0x4] sm:$0xf]
      %v267 = vld [vmem:[%s2 + $0x8] sm:$0xf]
      %v268 = vld [vmem:[%s2 + $0xc] sm:$0xf]
      %v269 = vld [vmem:[%s2 + $0x10] sm:$0xf]
      %v270 = vld [vmem:[%s2 + $0x14] sm:$0xf]
      %v271 = vld [vmem:[%s2 + $0x18] sm:$0xf]
      %v272 = vld [vmem:[%s2 + $0x1c] sm:$0xf]
      %v273 = vld [vmem:[%s2 + $0x20] sm:$0xf]
      %v274 = vld [vmem:[%s2 + $0x24] sm:$0xf]
      %v275 = vld [vmem:[%s2 + $0x28] sm:$0xf]
      %v276 = vld [vmem:[%s2 + $0x2c] sm:$0xf]
      %v277 = vld [vmem:[%s2 + $0x30] sm:$0xf]
      %v278 = vld [vmem:[%s2 + $0x34] sm:$0xf]
      %v279 = vld [vmem:[%s2 + $0x38] sm:$0xf]
      %v280 = vld [vmem:[%s2 + $0x3c] sm:$0xf]
      %v281 = vld [vmem:[%s2 + $0x40] sm:$0xf]
      %v282 = vld [vmem:[%s2 + $0x44] sm:$0xf]
      %v283 = vld [vmem:[%s2 + $0x48] sm:$0xf]
      %v284 = vld [vmem:[%s2 + $0x4c] sm:$0xf]
      %v285 = vld [vmem:[%s2 + $0x50] sm:$0xf]
      %v286 = vld [vmem:[%s2 + $0x54] sm:$0xf]
      %v287 = vld [vmem:[%s2 + $0x58] sm:$0xf]
      %v288 = vld [vmem:[%s2 + $0x5c] sm:$0xf]
      %v289 = vld [vmem:[%s2 + $0x60] sm:$0xf]
      %v290 = vld [vmem:[%s2 + $0x64] sm:$0xf]
      %v291 = vld [vmem:[%s2 + $0x68] sm:$0xf]
      %v292 = vld [vmem:[%s2 + $0x6c] sm:$0xf]
      %v293 = vld [vmem:[%s2 + $0x70] sm:$0xf]
      %v294 = vld [vmem:[%s2 + $0x74] sm:$0xf]
      %v295 = vld [vmem:[%s2 + $0x78] sm:$0xf]
      %v296 = vld [vmem:[%s2 + $0x7c] sm:$0xf]
      %s297 = scalar_lea.vmem %s2, 128
      %v298 = vld [vmem:[%s297] sm:$0xf]
      %v299 = vld [vmem:[%s297 + $0x4] sm:$0xf]
      %v300 = vld [vmem:[%s297 + $0x8] sm:$0xf]
      %v301 = vld [vmem:[%s297 + $0xc] sm:$0xf]
      %v302 = vld [vmem:[%s297 + $0x10] sm:$0xf]
      %v303 = vld [vmem:[%s297 + $0x14] sm:$0xf]
      %v304 = vld [vmem:[%s297 + $0x18] sm:$0xf]
      %v305 = vld [vmem:[%s297 + $0x1c] sm:$0xf]
      %v306 = vld [vmem:[%s297 + $0x20] sm:$0xf]
      %v307 = vld [vmem:[%s297 + $0x24] sm:$0xf]
      %v308 = vld [vmem:[%s297 + $0x28] sm:$0xf]
      %v309 = vld [vmem:[%s297 + $0x2c] sm:$0xf]
      %v310 = vld [vmem:[%s297 + $0x30] sm:$0xf]
      %v311 = vld [vmem:[%s297 + $0x34] sm:$0xf]
      %v312 = vld [vmem:[%s297 + $0x38] sm:$0xf]
      %v313 = vld [vmem:[%s297 + $0x3c] sm:$0xf]
      %v314 = vld [vmem:[%s297 + $0x40] sm:$0xf]
      %v315 = vld [vmem:[%s297 + $0x44] sm:$0xf]
      %v316 = vld [vmem:[%s297 + $0x48] sm:$0xf]
      %v317 = vld [vmem:[%s297 + $0x4c] sm:$0xf]
      %v318 = vld [vmem:[%s297 + $0x50] sm:$0xf]
      %v319 = vld [vmem:[%s297 + $0x54] sm:$0xf]
      %v320 = vld [vmem:[%s297 + $0x58] sm:$0xf]
      %v321 = vld [vmem:[%s297 + $0x5c] sm:$0xf]
      %v322 = vld [vmem:[%s297 + $0x60] sm:$0xf]
      %v323 = vld [vmem:[%s297 + $0x64] sm:$0xf]
      %v324 = vld [vmem:[%s297 + $0x68] sm:$0xf]
      %v325 = vld [vmem:[%s297 + $0x6c] sm:$0xf]
      %v326 = vld [vmem:[%s297 + $0x70] sm:$0xf]
      %v327 = vld [vmem:[%s297 + $0x74] sm:$0xf]
      %v328 = vld [vmem:[%s297 + $0x78] sm:$0xf]
      %v329 = vld [vmem:[%s297 + $0x7c] sm:$0xf]
      %v332 = vunpack.c.l.s4 1966171168
      %v333 = vunpack.c.0.s8 %v332
      %v334 = vlaneseq
      %v335 = vshrl.u32 %v334, 7
      %v336 = vsub.s32 %v333, %v335
      %v337 = vrot.slane %v264, %v336
      %v338 = vcombine.high %v337, %v337
      %v340 = vunpack.c.l.s4 1966171168
      %v341 = vunpack.c.0.s8 %v340
      %v342 = vlaneseq
      %v343 = vshrl.u32 %v342, 7
      %v344 = vsub.s32 %v341, %v343
      %v345 = vrot.slane %v337, %v344
      %v347 = vunpack.c.l.s4 1966171168
      %v348 = vunpack.c.0.s8 %v347
      %v349 = vlaneseq
      %v350 = vshrl.u32 %v349, 7
      %v351 = vsub.s32 %v348, %v350
      %v352 = vrot.slane %v338, %v351
      %v354 = vshrl.u32 %v345, 16
      %v357 = vshrl.u32 %v352, 16
      %v393 = vunpack.c.l.b16 %v298
      %v394 = vunpack.c.l.b16 %v299
      %v395 = vunpack.c.l.b16 %v300
      %v396 = vunpack.c.l.b16 %v301
      %v397 = vunpack.c.l.b16 %v302
      %v398 = vunpack.c.l.b16 %v303
      %v399 = vunpack.c.l.b16 %v304
      %v400 = vunpack.c.l.b16 %v305
      %v401 = vunpack.c.l.b16 %v306
      %v402 = vunpack.c.l.b16 %v307
      %v403 = vunpack.c.l.b16 %v308
      %v404 = vunpack.c.l.b16 %v309
      %v405 = vunpack.c.l.b16 %v310
      %v406 = vunpack.c.l.b16 %v311
      %v407 = vunpack.c.l.b16 %v312
      %v408 = vunpack.c.l.b16 %v313
      %v409 = vunpack.c.l.b16 %v314
      %v410 = vunpack.c.l.b16 %v315
      %v411 = vunpack.c.l.b16 %v316
      %v412 = vunpack.c.l.b16 %v317
      %v413 = vunpack.c.l.b16 %v318
      %v414 = vunpack.c.l.b16 %v319
      %v415 = vunpack.c.l.b16 %v320
      %v416 = vunpack.c.l.b16 %v321
      %v417 = vunpack.c.l.b16 %v322
      %v418 = vunpack.c.l.b16 %v323
      %v419 = vunpack.c.l.b16 %v324
      %v420 = vunpack.c.l.b16 %v325
      %v421 = vunpack.c.l.b16 %v326
      %v422 = vunpack.c.l.b16 %v327
      %v423 = vunpack.c.l.b16 %v328
      %v424 = vunpack.c.l.b16 %v329
      %v425 = vpack.c.b16 %v394, %v393
      %v426 = vpack.c.b16 %v396, %v395
      %v427 = vpack.c.b16 %v398, %v397
      %v428 = vpack.c.b16 %v400, %v399
      %v429 = vpack.c.b16 %v402, %v401
      %v430 = vpack.c.b16 %v404, %v403
      %v431 = vpack.c.b16 %v406, %v405
      %v432 = vpack.c.b16 %v408, %v407
      %v433 = vpack.c.b16 %v410, %v409
      %v434 = vpack.c.b16 %v412, %v411
      %v435 = vpack.c.b16 %v414, %v413
      %v436 = vpack.c.b16 %v416, %v415
      %v437 = vpack.c.b16 %v418, %v417
      %v438 = vpack.c.b16 %v420, %v419
      %v439 = vpack.c.b16 %v422, %v421
      %v440 = vpack.c.b16 %v424, %v423
      %457 = vmatprep.subr.bf16.mxu0 0
      %458 = vmatpush1.bf16.msra.mxu0 %v425
      %459 = vmatprep.subr.bf16.mxu0 0
      %460 = vmatpush1.bf16.msra.mxu0 %v426
      %461 = vmatprep.subr.bf16.mxu0 0
      %462 = vmatpush1.bf16.msra.mxu0 %v427
      %463 = vmatprep.subr.bf16.mxu0 0
      %464 = vmatpush1.bf16.msra.mxu0 %v428
      %465 = vmatprep.subr.bf16.mxu0 0
      %466 = vmatpush1.bf16.msra.mxu0 %v429
      %467 = vmatprep.subr.bf16.mxu0 0
      %468 = vmatpush1.bf16.msra.mxu0 %v430
      %469 = vmatprep.subr.bf16.mxu0 0
      %470 = vmatpush1.bf16.msra.mxu0 %v431
      %471 = vmatprep.subr.bf16.mxu0 0
      %472 = vmatpush1.bf16.msra.mxu0 %v432
      %473 = vmatprep.subr.bf16.mxu0 0
      %474 = vmatpush1.bf16.msra.mxu0 %v433
      %475 = vmatprep.subr.bf16.mxu0 0
      %476 = vmatpush1.bf16.msra.mxu0 %v434
      %477 = vmatprep.subr.bf16.mxu0 0
      %478 = vmatpush1.bf16.msra.mxu0 %v435
      %479 = vmatprep.subr.bf16.mxu0 0
      %480 = vmatpush1.bf16.msra.mxu0 %v436
      %481 = vmatprep.subr.bf16.mxu0 0
      %482 = vmatpush1.bf16.msra.mxu0 %v437
      %483 = vmatprep.subr.bf16.mxu0 0
      %484 = vmatpush1.bf16.msra.mxu0 %v438
      %485 = vmatprep.subr.bf16.mxu0 0
      %486 = vmatpush1.bf16.msra.mxu0 %v439
      %487 = vmatprep.subr.bf16.mxu0 0
      %488 = vmatpush1.bf16.msra.mxu0 %v440
      %489 = vmatprep.mubr.bf16.mxu0 %v357
      %490 = vmatmul.mubr.bf16.gmra.mrb[0].mxu0 %v354
      %v491 = vpop.f32.mrb[0].mxu0
      %v492 = vadd.f32 0.0, %v491
      %v493 = vpop.f32.mrb[0].mxu0
      %v494 = vpop.f32.mrb[0].mxu0
      %v495 = vpop.f32.mrb[0].mxu0
      %496 = vdwg.mxu0
      %v531 = vunpack.c.l.b16 %v265
      %v532 = vunpack.c.l.b16 %v266
      %v533 = vunpack.c.l.b16 %v267
      %v534 = vunpack.c.l.b16 %v268
      %v535 = vunpack.c.l.b16 %v269
      %v536 = vunpack.c.l.b16 %v270
      %v537 = vunpack.c.l.b16 %v271
      %v538 = vunpack.c.l.b16 %v272
      %v539 = vunpack.c.l.b16 %v273
      %v540 = vunpack.c.l.b16 %v274
      %v541 = vunpack.c.l.b16 %v275
      %v542 = vunpack.c.l.b16 %v276
      %v543 = vunpack.c.l.b16 %v277
      %v544 = vunpack.c.l.b16 %v278
      %v545 = vunpack.c.l.b16 %v279
      %v546 = vunpack.c.l.b16 %v280
      %v547 = vunpack.c.l.b16 %v281
      %v548 = vunpack.c.l.b16 %v282
      %v549 = vunpack.c.l.b16 %v283
      %v550 = vunpack.c.l.b16 %v284
      %v551 = vunpack.c.l.b16 %v285
      %v552 = vunpack.c.l.b16 %v286
      %v553 = vunpack.c.l.b16 %v287
      %v554 = vunpack.c.l.b16 %v288
      %v555 = vunpack.c.l.b16 %v289
      %v556 = vunpack.c.l.b16 %v290
      %v557 = vunpack.c.l.b16 %v291
      %v558 = vunpack.c.l.b16 %v292
      %v559 = vunpack.c.l.b16 %v293
      %v560 = vunpack.c.l.b16 %v294
      %v561 = vunpack.c.l.b16 %v295
      %v562 = vunpack.c.l.b16 %v296
      %v563 = vpack.c.b16 %v532, %v531
      %v564 = vpack.c.b16 %v534, %v533
      %v565 = vpack.c.b16 %v536, %v535
      %v566 = vpack.c.b16 %v538, %v537
      %v567 = vpack.c.b16 %v540, %v539
      %v568 = vpack.c.b16 %v542, %v541
      %v569 = vpack.c.b16 %v544, %v543
      %v570 = vpack.c.b16 %v546, %v545
      %v571 = vpack.c.b16 %v548, %v547
      %v572 = vpack.c.b16 %v550, %v549
      %v573 = vpack.c.b16 %v552, %v551
      %v574 = vpack.c.b16 %v554, %v553
      %v575 = vpack.c.b16 %v556, %v555
      %v576 = vpack.c.b16 %v558, %v557
      %v577 = vpack.c.b16 %v560, %v559
      %v578 = vpack.c.b16 %v562, %v561
      %595 = vmatprep.subr.bf16.mxu0 0
      %596 = vmatpush1.bf16.msra.mxu0 %v563
      %597 = vmatprep.subr.bf16.mxu0 0
      %598 = vmatpush1.bf16.msra.mxu0 %v564
      %599 = vmatprep.subr.bf16.mxu0 0
      %600 = vmatpush1.bf16.msra.mxu0 %v565
      %601 = vmatprep.subr.bf16.mxu0 0
      %602 = vmatpush1.bf16.msra.mxu0 %v566
      %603 = vmatprep.subr.bf16.mxu0 0
      %604 = vmatpush1.bf16.msra.mxu0 %v567
      %605 = vmatprep.subr.bf16.mxu0 0
      %606 = vmatpush1.bf16.msra.mxu0 %v568
      %607 = vmatprep.subr.bf16.mxu0 0
      %608 = vmatpush1.bf16.msra.mxu0 %v569
      %609 = vmatprep.subr.bf16.mxu0 0
      %610 = vmatpush1.bf16.msra.mxu0 %v570
      %611 = vmatprep.subr.bf16.mxu0 0
      %612 = vmatpush1.bf16.msra.mxu0 %v571
      %613 = vmatprep.subr.bf16.mxu0 0
      %614 = vmatpush1.bf16.msra.mxu0 %v572
      %615 = vmatprep.subr.bf16.mxu0 0
      %616 = vmatpush1.bf16.msra.mxu0 %v573
      %617 = vmatprep.subr.bf16.mxu0 0
      %618 = vmatpush1.bf16.msra.mxu0 %v574
      %619 = vmatprep.subr.bf16.mxu0 0
      %620 = vmatpush1.bf16.msra.mxu0 %v575
      %621 = vmatprep.subr.bf16.mxu0 0
      %622 = vmatpush1.bf16.msra.mxu0 %v576
      %623 = vmatprep.subr.bf16.mxu0 0
      %624 = vmatpush1.bf16.msra.mxu0 %v577
      %625 = vmatprep.subr.bf16.mxu0 0
      %626 = vmatpush1.bf16.msra.mxu0 %v578
      %627 = vmatprep.mubr.bf16.mxu0 %v352
      %628 = vmatmul.mubr.bf16.gmra.mrb[0].mxu0 %v345
      %v629 = vpop.f32.mrb[0].mxu0
      %v630 = vadd.f32 %v492, %v629
      %v631 = vpop.f32.mrb[0].mxu0
      %v632 = vpop.f32.mrb[0].mxu0
      %v633 = vpop.f32.mrb[0].mxu0
      %634 = vdwg.mxu0
      %s635 = scalar_lea.vmem %s246, 2
      %v636 = vld [vmem:[%s635] sm:$0x3]
      %s637 = scalar_lea.vmem %s2, 256
      %v638 = vld [vmem:[%s637] sm:$0xf]
      %v639 = vld [vmem:[%s637 + $0x4] sm:$0xf]
      %v640 = vld [vmem:[%s637 + $0x8] sm:$0xf]
      %v641 = vld [vmem:[%s637 + $0xc] sm:$0xf]
      %v642 = vld [vmem:[%s637 + $0x10] sm:$0xf]
      %v643 = vld [vmem:[%s637 + $0x14] sm:$0xf]
      %v644 = vld [vmem:[%s637 + $0x18] sm:$0xf]
      %v645 = vld [vmem:[%s637 + $0x1c] sm:$0xf]
      %v646 = vld [vmem:[%s637 + $0x20] sm:$0xf]
      %v647 = vld [vmem:[%s637 + $0x24] sm:$0xf]
      %v648 = vld [vmem:[%s637 + $0x28] sm:$0xf]
      %v649 = vld [vmem:[%s637 + $0x2c] sm:$0xf]
      %v650 = vld [vmem:[%s637 + $0x30] sm:$0xf]
      %v651 = vld [vmem:[%s637 + $0x34] sm:$0xf]
      %v652 = vld [vmem:[%s637 + $0x38] sm:$0xf]
      %v653 = vld [vmem:[%s637 + $0x3c] sm:$0xf]
      %v654 = vld [vmem:[%s637 + $0x40] sm:$0xf]
      %v655 = vld [vmem:[%s637 + $0x44] sm:$0xf]
      %v656 = vld [vmem:[%s637 + $0x48] sm:$0xf]
      %v657 = vld [vmem:[%s637 + $0x4c] sm:$0xf]
      %v658 = vld [vmem:[%s637 + $0x50] sm:$0xf]
      %v659 = vld [vmem:[%s637 + $0x54] sm:$0xf]
      %v660 = vld [vmem:[%s637 + $0x58] sm:$0xf]
      %v661 = vld [vmem:[%s637 + $0x5c] sm:$0xf]
      %v662 = vld [vmem:[%s637 + $0x60] sm:$0xf]
      %v663 = vld [vmem:[%s637 + $0x64] sm:$0xf]
      %v664 = vld [vmem:[%s637 + $0x68] sm:$0xf]
      %v665 = vld [vmem:[%s637 + $0x6c] sm:$0xf]
      %v666 = vld [vmem:[%s637 + $0x70] sm:$0xf]
      %v667 = vld [vmem:[%s637 + $0x74] sm:$0xf]
      %v668 = vld [vmem:[%s637 + $0x78] sm:$0xf]
      %v669 = vld [vmem:[%s637 + $0x7c] sm:$0xf]
      %v672 = vunpack.c.l.s4 1966171168
      %v673 = vunpack.c.0.s8 %v672
      %v674 = vlaneseq
      %v675 = vshrl.u32 %v674, 7
      %v676 = vsub.s32 %v673, %v675
      %v677 = vrot.slane %v636, %v676
      %v678 = vcombine.high %v677, %v677
      %v680 = vunpack.c.l.s4 1966171168
      %v681 = vunpack.c.0.s8 %v680
      %v682 = vlaneseq
      %v683 = vshrl.u32 %v682, 7
      %v684 = vsub.s32 %v681, %v683
      %v685 = vrot.slane %v677, %v684
      %v687 = vunpack.c.l.s4 1966171168
      %v688 = vunpack.c.0.s8 %v687
      %v689 = vlaneseq
      %v690 = vshrl.u32 %v689, 7
      %v691 = vsub.s32 %v688, %v690
      %v692 = vrot.slane %v678, %v691
      %v727 = vunpack.c.l.b16 %v638
      %v728 = vunpack.c.l.b16 %v639
      %v729 = vunpack.c.l.b16 %v640
      %v730 = vunpack.c.l.b16 %v641
      %v731 = vunpack.c.l.b16 %v642
      %v732 = vunpack.c.l.b16 %v643
      %v733 = vunpack.c.l.b16 %v644
      %v734 = vunpack.c.l.b16 %v645
      %v735 = vunpack.c.l.b16 %v646
      %v736 = vunpack.c.l.b16 %v647
      %v737 = vunpack.c.l.b16 %v648
      %v738 = vunpack.c.l.b16 %v649
      %v739 = vunpack.c.l.b16 %v650
      %v740 = vunpack.c.l.b16 %v651
      %v741 = vunpack.c.l.b16 %v652
      %v742 = vunpack.c.l.b16 %v653
      %v743 = vunpack.c.l.b16 %v654
      %v744 = vunpack.c.l.b16 %v655
      %v745 = vunpack.c.l.b16 %v656
      %v746 = vunpack.c.l.b16 %v657
      %v747 = vunpack.c.l.b16 %v658
      %v748 = vunpack.c.l.b16 %v659
      %v749 = vunpack.c.l.b16 %v660
      %v750 = vunpack.c.l.b16 %v661
      %v751 = vunpack.c.l.b16 %v662
      %v752 = vunpack.c.l.b16 %v663
      %v753 = vunpack.c.l.b16 %v664
      %v754 = vunpack.c.l.b16 %v665
      %v755 = vunpack.c.l.b16 %v666
      %v756 = vunpack.c.l.b16 %v667
      %v757 = vunpack.c.l.b16 %v668
      %v758 = vunpack.c.l.b16 %v669
      %v759 = vpack.c.b16 %v728, %v727
      %v760 = vpack.c.b16 %v730, %v729
      %v761 = vpack.c.b16 %v732, %v731
      %v762 = vpack.c.b16 %v734, %v733
      %v763 = vpack.c.b16 %v736, %v735
      %v764 = vpack.c.b16 %v738, %v737
      %v765 = vpack.c.b16 %v740, %v739
      %v766 = vpack.c.b16 %v742, %v741
      %v767 = vpack.c.b16 %v744, %v743
      %v768 = vpack.c.b16 %v746, %v745
      %v769 = vpack.c.b16 %v748, %v747
      %v770 = vpack.c.b16 %v750, %v749
      %v771 = vpack.c.b16 %v752, %v751
      %v772 = vpack.c.b16 %v754, %v753
      %v773 = vpack.c.b16 %v756, %v755
      %v774 = vpack.c.b16 %v758, %v757
      %791 = vmatprep.subr.bf16.mxu0 0
      %792 = vmatpush1.bf16.msra.mxu0 %v759
      %793 = vmatprep.subr.bf16.mxu0 0
      %794 = vmatpush1.bf16.msra.mxu0 %v760
      %795 = vmatprep.subr.bf16.mxu0 0
      %796 = vmatpush1.bf16.msra.mxu0 %v761
      %797 = vmatprep.subr.bf16.mxu0 0
      %798 = vmatpush1.bf16.msra.mxu0 %v762
      %799 = vmatprep.subr.bf16.mxu0 0
      %800 = vmatpush1.bf16.msra.mxu0 %v763
      %801 = vmatprep.subr.bf16.mxu0 0
      %802 = vmatpush1.bf16.msra.mxu0 %v764
      %803 = vmatprep.subr.bf16.mxu0 0
      %804 = vmatpush1.bf16.msra.mxu0 %v765
      %805 = vmatprep.subr.bf16.mxu0 0
      %806 = vmatpush1.bf16.msra.mxu0 %v766
      %807 = vmatprep.subr.bf16.mxu0 0
      %808 = vmatpush1.bf16.msra.mxu0 %v767
      %809 = vmatprep.subr.bf16.mxu0 0
      %810 = vmatpush1.bf16.msra.mxu0 %v768
      %811 = vmatprep.subr.bf16.mxu0 0
      %812 = vmatpush1.bf16.msra.mxu0 %v769
      %813 = vmatprep.subr.bf16.mxu0 0
      %814 = vmatpush1.bf16.msra.mxu0 %v770
      %815 = vmatprep.subr.bf16.mxu0 0
      %816 = vmatpush1.bf16.msra.mxu0 %v771
      %817 = vmatprep.subr.bf16.mxu0 0
      %818 = vmatpush1.bf16.msra.mxu0 %v772
      %819 = vmatprep.subr.bf16.mxu0 0
      %820 = vmatpush1.bf16.msra.mxu0 %v773
      %821 = vmatprep.subr.bf16.mxu0 0
      %822 = vmatpush1.bf16.msra.mxu0 %v774
      %823 = vmatprep.mubr.bf16.mxu0 %v692
      %824 = vmatmul.mubr.bf16.gmra.mrb[0].mxu0 %v685
      %v825 = vpop.f32.mrb[0].mxu0
      %v826 = vadd.f32 0.0, %v825
      %v827 = vpop.f32.mrb[0].mxu0
      %v828 = vpop.f32.mrb[0].mxu0
      %v829 = vpop.f32.mrb[0].mxu0
      %830 = vdwg.mxu0
      %v831 = vadd.f32 %v630, %v826
      %v832 = vld [vmem:[%s635] sm:$0x3]
      %s833 = scalar_lea.vmem %s2, 384
      %v834 = vld [vmem:[%s833] sm:$0xf]
      %v835 = vld [vmem:[%s833 + $0x4] sm:$0xf]
      %v836 = vld [vmem:[%s833 + $0x8] sm:$0xf]
      %v837 = vld [vmem:[%s833 + $0xc] sm:$0xf]
      %v838 = vld [vmem:[%s833 + $0x10] sm:$0xf]
      %v839 = vld [vmem:[%s833 + $0x14] sm:$0xf]
      %v840 = vld [vmem:[%s833 + $0x18] sm:$0xf]
      %v841 = vld [vmem:[%s833 + $0x1c] sm:$0xf]
      %v842 = vld [vmem:[%s833 + $0x20] sm:$0xf]
      %v843 = vld [vmem:[%s833 + $0x24] sm:$0xf]
      %v844 = vld [vmem:[%s833 + $0x28] sm:$0xf]
      %v845 = vld [vmem:[%s833 + $0x2c] sm:$0xf]
      %v846 = vld [vmem:[%s833 + $0x30] sm:$0xf]
      %v847 = vld [vmem:[%s833 + $0x34] sm:$0xf]
      %v848 = vld [vmem:[%s833 + $0x38] sm:$0xf]
      %v849 = vld [vmem:[%s833 + $0x3c] sm:$0xf]
      %v850 = vld [vmem:[%s833 + $0x40] sm:$0xf]
      %v851 = vld [vmem:[%s833 + $0x44] sm:$0xf]
      %v852 = vld [vmem:[%s833 + $0x48] sm:$0xf]
      %v853 = vld [vmem:[%s833 + $0x4c] sm:$0xf]
      %v854 = vld [vmem:[%s833 + $0x50] sm:$0xf]
      %v855 = vld [vmem:[%s833 + $0x54] sm:$0xf]
      %v856 = vld [vmem:[%s833 + $0x58] sm:$0xf]
      %v857 = vld [vmem:[%s833 + $0x5c] sm:$0xf]
      %v858 = vld [vmem:[%s833 + $0x60] sm:$0xf]
      %v859 = vld [vmem:[%s833 + $0x64] sm:$0xf]
      %v860 = vld [vmem:[%s833 + $0x68] sm:$0xf]
      %v861 = vld [vmem:[%s833 + $0x6c] sm:$0xf]
      %v862 = vld [vmem:[%s833 + $0x70] sm:$0xf]
      %v863 = vld [vmem:[%s833 + $0x74] sm:$0xf]
      %v864 = vld [vmem:[%s833 + $0x78] sm:$0xf]
      %v865 = vld [vmem:[%s833 + $0x7c] sm:$0xf]
      %v868 = vunpack.c.l.s4 1966171168
      %v869 = vunpack.c.0.s8 %v868
      %v870 = vlaneseq
      %v871 = vshrl.u32 %v870, 7
      %v872 = vsub.s32 %v869, %v871
      %v873 = vrot.slane %v832, %v872
      %v874 = vcombine.high %v873, %v873
      %v876 = vunpack.c.l.s4 1966171168
      %v877 = vunpack.c.0.s8 %v876
      %v878 = vlaneseq
      %v879 = vshrl.u32 %v878, 7
      %v880 = vsub.s32 %v877, %v879
      %v881 = vrot.slane %v873, %v880
      %v883 = vunpack.c.l.s4 1966171168
      %v884 = vunpack.c.0.s8 %v883
      %v885 = vlaneseq
      %v886 = vshrl.u32 %v885, 7
      %v887 = vsub.s32 %v884, %v886
      %v888 = vrot.slane %v874, %v887
      %v890 = vshrl.u32 %v881, 16
      %v893 = vshrl.u32 %v888, 16
      %v929 = vunpack.c.l.b16 %v834
      %v930 = vunpack.c.l.b16 %v835
      %v931 = vunpack.c.l.b16 %v836
      %v932 = vunpack.c.l.b16 %v837
      %v933 = vunpack.c.l.b16 %v838
      %v934 = vunpack.c.l.b16 %v839
      %v935 = vunpack.c.l.b16 %v840
      %v936 = vunpack.c.l.b16 %v841
      %v937 = vunpack.c.l.b16 %v842
      %v938 = vunpack.c.l.b16 %v843
      %v939 = vunpack.c.l.b16 %v844
      %v940 = vunpack.c.l.b16 %v845
      %v941 = vunpack.c.l.b16 %v846
      %v942 = vunpack.c.l.b16 %v847
      %v943 = vunpack.c.l.b16 %v848
      %v944 = vunpack.c.l.b16 %v849
      %v945 = vunpack.c.l.b16 %v850
      %v946 = vunpack.c.l.b16 %v851
      %v947 = vunpack.c.l.b16 %v852
      %v948 = vunpack.c.l.b16 %v853
      %v949 = vunpack.c.l.b16 %v854
      %v950 = vunpack.c.l.b16 %v855
      %v951 = vunpack.c.l.b16 %v856
      %v952 = vunpack.c.l.b16 %v857
      %v953 = vunpack.c.l.b16 %v858
      %v954 = vunpack.c.l.b16 %v859
      %v955 = vunpack.c.l.b16 %v860
      %v956 = vunpack.c.l.b16 %v861
      %v957 = vunpack.c.l.b16 %v862
      %v958 = vunpack.c.l.b16 %v863
      %v959 = vunpack.c.l.b16 %v864
      %v960 = vunpack.c.l.b16 %v865
      %v961 = vpack.c.b16 %v930, %v929
      %v962 = vpack.c.b16 %v932, %v931
      %v963 = vpack.c.b16 %v934, %v933
      %v964 = vpack.c.b16 %v936, %v935
      %v965 = vpack.c.b16 %v938, %v937
      %v966 = vpack.c.b16 %v940, %v939
      %v967 = vpack.c.b16 %v942, %v941
      %v968 = vpack.c.b16 %v944, %v943
      %v969 = vpack.c.b16 %v946, %v945
      %v970 = vpack.c.b16 %v948, %v947
      %v971 = vpack.c.b16 %v950, %v949
      %v972 = vpack.c.b16 %v952, %v951
      %v973 = vpack.c.b16 %v954, %v953
      %v974 = vpack.c.b16 %v956, %v955
      %v975 = vpack.c.b16 %v958, %v957
      %v976 = vpack.c.b16 %v960, %v959
      %993 = vmatprep.subr.bf16.mxu0 0
      %994 = vmatpush1.bf16.msra.mxu0 %v961
      %995 = vmatprep.subr.bf16.mxu0 0
      %996 = vmatpush1.bf16.msra.mxu0 %v962
      %997 = vmatprep.subr.bf16.mxu0 0
      %998 = vmatpush1.bf16.msra.mxu0 %v963
      %999 = vmatprep.subr.bf16.mxu0 0
      %1000 = vmatpush1.bf16.msra.mxu0 %v964
      %1001 = vmatprep.subr.bf16.mxu0 0
      %1002 = vmatpush1.bf16.msra.mxu0 %v965
      %1003 = vmatprep.subr.bf16.mxu0 0
      %1004 = vmatpush1.bf16.msra.mxu0 %v966
      %1005 = vmatprep.subr.bf16.mxu0 0
      %1006 = vmatpush1.bf16.msra.mxu0 %v967
      %1007 = vmatprep.subr.bf16.mxu0 0
      %1008 = vmatpush1.bf16.msra.mxu0 %v968
      %1009 = vmatprep.subr.bf16.mxu0 0
      %1010 = vmatpush1.bf16.msra.mxu0 %v969
      %1011 = vmatprep.subr.bf16.mxu0 0
      %1012 = vmatpush1.bf16.msra.mxu0 %v970
      %1013 = vmatprep.subr.bf16.mxu0 0
      %1014 = vmatpush1.bf16.msra.mxu0 %v971
      %1015 = vmatprep.subr.bf16.mxu0 0
      %1016 = vmatpush1.bf16.msra.mxu0 %v972
      %1017 = vmatprep.subr.bf16.mxu0 0
      %1018 = vmatpush1.bf16.msra.mxu0 %v973
      %1019 = vmatprep.subr.bf16.mxu0 0
      %1020 = vmatpush1.bf16.msra.mxu0 %v974
      %1021 = vmatprep.subr.bf16.mxu0 0
      %1022 = vmatpush1.bf16.msra.mxu0 %v975
      %1023 = vmatprep.subr.bf16.mxu0 0
      %1024 = vmatpush1.bf16.msra.mxu0 %v976
      %1025 = vmatprep.mubr.bf16.mxu0 %v893
      %1026 = vmatmul.mubr.bf16.gmra.mrb[0].mxu0 %v890
      %v1027 = vpop.f32.mrb[0].mxu0
      %v1028 = vadd.f32 0.0, %v1027
      %v1029 = vpop.f32.mrb[0].mxu0
      %v1030 = vpop.f32.mrb[0].mxu0
      %v1031 = vpop.f32.mrb[0].mxu0
      %1032 = vdwg.mxu0
      %v1033 = vadd.f32 %v831, %v1028
      %v1034 = vld [vmem:[%s255] sm:$0x3]
      %s1035 = scalar_lea.vmem %s2, 512
      %v1036 = vld [vmem:[%s1035] sm:$0xf]
      %v1037 = vld [vmem:[%s1035 + $0x4] sm:$0xf]
      %v1038 = vld [vmem:[%s1035 + $0x8] sm:$0xf]
      %v1039 = vld [vmem:[%s1035 + $0xc] sm:$0xf]
      %v1040 = vld [vmem:[%s1035 + $0x10] sm:$0xf]
      %v1041 = vld [vmem:[%s1035 + $0x14] sm:$0xf]
      %v1042 = vld [vmem:[%s1035 + $0x18] sm:$0xf]
      %v1043 = vld [vmem:[%s1035 + $0x1c] sm:$0xf]
      %v1044 = vld [vmem:[%s1035 + $0x20] sm:$0xf]
      %v1045 = vld [vmem:[%s1035 + $0x24] sm:$0xf]
      %v1046 = vld [vmem:[%s1035 + $0x28] sm:$0xf]
      %v1047 = vld [vmem:[%s1035 + $0x2c] sm:$0xf]
      %v1048 = vld [vmem:[%s1035 + $0x30] sm:$0xf]
      %v1049 = vld [vmem:[%s1035 + $0x34] sm:$0xf]
      %v1050 = vld [vmem:[%s1035 + $0x38] sm:$0xf]
      %v1051 = vld [vmem:[%s1035 + $0x3c] sm:$0xf]
      %v1052 = vld [vmem:[%s1035 + $0x40] sm:$0xf]
      %v1053 = vld [vmem:[%s1035 + $0x44] sm:$0xf]
      %v1054 = vld [vmem:[%s1035 + $0x48] sm:$0xf]
      %v1055 = vld [vmem:[%s1035 + $0x4c] sm:$0xf]
      %v1056 = vld [vmem:[%s1035 + $0x50] sm:$0xf]
      %v1057 = vld [vmem:[%s1035 + $0x54] sm:$0xf]
      %v1058 = vld [vmem:[%s1035 + $0x58] sm:$0xf]
      %v1059 = vld [vmem:[%s1035 + $0x5c] sm:$0xf]
      %v1060 = vld [vmem:[%s1035 + $0x60] sm:$0xf]
      %v1061 = vld [vmem:[%s1035 + $0x64] sm:$0xf]
      %v1062 = vld [vmem:[%s1035 + $0x68] sm:$0xf]
      %v1063 = vld [vmem:[%s1035 + $0x6c] sm:$0xf]
      %v1064 = vld [vmem:[%s1035 + $0x70] sm:$0xf]
      %v1065 = vld [vmem:[%s1035 + $0x74] sm:$0xf]
      %v1066 = vld [vmem:[%s1035 + $0x78] sm:$0xf]
      %v1067 = vld [vmem:[%s1035 + $0x7c] sm:$0xf]
      %v1070 = vunpack.c.l.s4 1966171168
      %v1071 = vunpack.c.0.s8 %v1070
      %v1072 = vlaneseq
      %v1073 = vshrl.u32 %v1072, 7
      %v1074 = vsub.s32 %v1071, %v1073
      %v1075 = vrot.slane %v1034, %v1074
      %v1076 = vcombine.high %v1075, %v1075
      %v1078 = vunpack.c.l.s4 1966171168
      %v1079 = vunpack.c.0.s8 %v1078
      %v1080 = vlaneseq
      %v1081 = vshrl.u32 %v1080, 7
      %v1082 = vsub.s32 %v1079, %v1081
      %v1083 = vrot.slane %v1075, %v1082
      %v1085 = vunpack.c.l.s4 1966171168
      %v1086 = vunpack.c.0.s8 %v1085
      %v1087 = vlaneseq
      %v1088 = vshrl.u32 %v1087, 7
      %v1089 = vsub.s32 %v1086, %v1088
      %v1090 = vrot.slane %v1076, %v1089
      %v1125 = vunpack.c.l.b16 %v1036
      %v1126 = vunpack.c.l.b16 %v1037
      %v1127 = vunpack.c.l.b16 %v1038
      %v1128 = vunpack.c.l.b16 %v1039
      %v1129 = vunpack.c.l.b16 %v1040
      %v1130 = vunpack.c.l.b16 %v1041
      %v1131 = vunpack.c.l.b16 %v1042
      %v1132 = vunpack.c.l.b16 %v1043
      %v1133 = vunpack.c.l.b16 %v1044
      %v1134 = vunpack.c.l.b16 %v1045
      %v1135 = vunpack.c.l.b16 %v1046
      %v1136 = vunpack.c.l.b16 %v1047
      %v1137 = vunpack.c.l.b16 %v1048
      %v1138 = vunpack.c.l.b16 %v1049
      %v1139 = vunpack.c.l.b16 %v1050
      %v1140 = vunpack.c.l.b16 %v1051
      %v1141 = vunpack.c.l.b16 %v1052
      %v1142 = vunpack.c.l.b16 %v1053
      %v1143 = vunpack.c.l.b16 %v1054
      %v1144 = vunpack.c.l.b16 %v1055
      %v1145 = vunpack.c.l.b16 %v1056
      %v1146 = vunpack.c.l.b16 %v1057
      %v1147 = vunpack.c.l.b16 %v1058
      %v1148 = vunpack.c.l.b16 %v1059
      %v1149 = vunpack.c.l.b16 %v1060
      %v1150 = vunpack.c.l.b16 %v1061
      %v1151 = vunpack.c.l.b16 %v1062
      %v1152 = vunpack.c.l.b16 %v1063
      %v1153 = vunpack.c.l.b16 %v1064
      %v1154 = vunpack.c.l.b16 %v1065
      %v1155 = vunpack.c.l.b16 %v1066
      %v1156 = vunpack.c.l.b16 %v1067
      %v1157 = vpack.c.b16 %v1126, %v1125
      %v1158 = vpack.c.b16 %v1128, %v1127
      %v1159 = vpack.c.b16 %v1130, %v1129
      %v1160 = vpack.c.b16 %v1132, %v1131
      %v1161 = vpack.c.b16 %v1134, %v1133
      %v1162 = vpack.c.b16 %v1136, %v1135
      %v1163 = vpack.c.b16 %v1138, %v1137
      %v1164 = vpack.c.b16 %v1140, %v1139
      %v1165 = vpack.c.b16 %v1142, %v1141
      %v1166 = vpack.c.b16 %v1144, %v1143
      %v1167 = vpack.c.b16 %v1146, %v1145
      %v1168 = vpack.c.b16 %v1148, %v1147
      %v1169 = vpack.c.b16 %v1150, %v1149
      %v1170 = vpack.c.b16 %v1152, %v1151
      %v1171 = vpack.c.b16 %v1154, %v1153
      %v1172 = vpack.c.b16 %v1156, %v1155
      %1189 = vmatprep.subr.bf16.mxu0 0
      %1190 = vmatpush1.bf16.msra.mxu0 %v1157
      %1191 = vmatprep.subr.bf16.mxu0 0
      %1192 = vmatpush1.bf16.msra.mxu0 %v1158
      %1193 = vmatprep.subr.bf16.mxu0 0
      %1194 = vmatpush1.bf16.msra.mxu0 %v1159
      %1195 = vmatprep.subr.bf16.mxu0 0
      %1196 = vmatpush1.bf16.msra.mxu0 %v1160
      %1197 = vmatprep.subr.bf16.mxu0 0
      %1198 = vmatpush1.bf16.msra.mxu0 %v1161
      %1199 = vmatprep.subr.bf16.mxu0 0
      %1200 = vmatpush1.bf16.msra.mxu0 %v1162
      %1201 = vmatprep.subr.bf16.mxu0 0
      %1202 = vmatpush1.bf16.msra.mxu0 %v1163
      %1203 = vmatprep.subr.bf16.mxu0 0
      %1204 = vmatpush1.bf16.msra.mxu0 %v1164
      %1205 = vmatprep.subr.bf16.mxu0 0
      %1206 = vmatpush1.bf16.msra.mxu0 %v1165
      %1207 = vmatprep.subr.bf16.mxu0 0
      %1208 = vmatpush1.bf16.msra.mxu0 %v1166
      %1209 = vmatprep.subr.bf16.mxu0 0
      %1210 = vmatpush1.bf16.msra.mxu0 %v1167
      %1211 = vmatprep.subr.bf16.mxu0 0
      %1212 = vmatpush1.bf16.msra.mxu0 %v1168
      %1213 = vmatprep.subr.bf16.mxu0 0
      %1214 = vmatpush1.bf16.msra.mxu0 %v1169
      %1215 = vmatprep.subr.bf16.mxu0 0
      %1216 = vmatpush1.bf16.msra.mxu0 %v1170
      %1217 = vmatprep.subr.bf16.mxu0 0
      %1218 = vmatpush1.bf16.msra.mxu0 %v1171
      %1219 = vmatprep.subr.bf16.mxu0 0
      %1220 = vmatpush1.bf16.msra.mxu0 %v1172
      %1221 = vmatprep.mubr.bf16.mxu0 %v1090
      %1222 = vmatmul.mubr.bf16.gmra.mrb[0].mxu0 %v1083
      %v1223 = vpop.f32.mrb[0].mxu0
      %v1224 = vadd.f32 0.0, %v1223
      %v1225 = vpop.f32.mrb[0].mxu0
      %v1226 = vpop.f32.mrb[0].mxu0
      %v1227 = vpop.f32.mrb[0].mxu0
      %1228 = vdwg.mxu0
      %v1229 = vadd.f32 %v1033, %v1224
      %v1230 = vld [vmem:[%s255] sm:$0x3]
      %s1231 = scalar_lea.vmem %s2, 640
      %v1232 = vld [vmem:[%s1231] sm:$0xf]
      %v1233 = vld [vmem:[%s1231 + $0x4] sm:$0xf]
      %v1234 = vld [vmem:[%s1231 + $0x8] sm:$0xf]
      %v1235 = vld [vmem:[%s1231 + $0xc] sm:$0xf]
      %v1236 = vld [vmem:[%s1231 + $0x10] sm:$0xf]
      %v1237 = vld [vmem:[%s1231 + $0x14] sm:$0xf]
      %v1238 = vld [vmem:[%s1231 + $0x18] sm:$0xf]
      %v1239 = vld [vmem:[%s1231 + $0x1c] sm:$0xf]
      %v1240 = vld [vmem:[%s1231 + $0x20] sm:$0xf]
      %v1241 = vld [vmem:[%s1231 + $0x24] sm:$0xf]
      %v1242 = vld [vmem:[%s1231 + $0x28] sm:$0xf]
      %v1243 = vld [vmem:[%s1231 + $0x2c] sm:$0xf]
      %v1244 = vld [vmem:[%s1231 + $0x30] sm:$0xf]
      %v1245 = vld [vmem:[%s1231 + $0x34] sm:$0xf]
      %v1246 = vld [vmem:[%s1231 + $0x38] sm:$0xf]
      %v1247 = vld [vmem:[%s1231 + $0x3c] sm:$0xf]
      %v1248 = vld [vmem:[%s1231 + $0x40] sm:$0xf]
      %v1249 = vld [vmem:[%s1231 + $0x44] sm:$0xf]
      %v1250 = vld [vmem:[%s1231 + $0x48] sm:$0xf]
      %v1251 = vld [vmem:[%s1231 + $0x4c] sm:$0xf]
      %v1252 = vld [vmem:[%s1231 + $0x50] sm:$0xf]
      %v1253 = vld [vmem:[%s1231 + $0x54] sm:$0xf]
      %v1254 = vld [vmem:[%s1231 + $0x58] sm:$0xf]
      %v1255 = vld [vmem:[%s1231 + $0x5c] sm:$0xf]
      %v1256 = vld [vmem:[%s1231 + $0x60] sm:$0xf]
      %v1257 = vld [vmem:[%s1231 + $0x64] sm:$0xf]
      %v1258 = vld [vmem:[%s1231 + $0x68] sm:$0xf]
      %v1259 = vld [vmem:[%s1231 + $0x6c] sm:$0xf]
      %v1260 = vld [vmem:[%s1231 + $0x70] sm:$0xf]
      %v1261 = vld [vmem:[%s1231 + $0x74] sm:$0xf]
      %v1262 = vld [vmem:[%s1231 + $0x78] sm:$0xf]
      %v1263 = vld [vmem:[%s1231 + $0x7c] sm:$0xf]
      %v1266 = vunpack.c.l.s4 1966171168
      %v1267 = vunpack.c.0.s8 %v1266
      %v1268 = vlaneseq
      %v1269 = vshrl.u32 %v1268, 7
      %v1270 = vsub.s32 %v1267, %v1269
      %v1271 = vrot.slane %v1230, %v1270
      %v1272 = vcombine.high %v1271, %v1271
      %v1274 = vunpack.c.l.s4 1966171168
      %v1275 = vunpack.c.0.s8 %v1274
      %v1276 = vlaneseq
      %v1277 = vshrl.u32 %v1276, 7
      %v1278 = vsub.s32 %v1275, %v1277
      %v1279 = vrot.slane %v1271, %v1278
      %v1281 = vunpack.c.l.s4 1966171168
      %v1282 = vunpack.c.0.s8 %v1281
      %v1283 = vlaneseq
      %v1284 = vshrl.u32 %v1283, 7
      %v1285 = vsub.s32 %v1282, %v1284
      %v1286 = vrot.slane %v1272, %v1285
      %v1288 = vshrl.u32 %v1279, 16
      %v1291 = vshrl.u32 %v1286, 16
      %v1327 = vunpack.c.l.b16 %v1232
      %v1328 = vunpack.c.l.b16 %v1233
      %v1329 = vunpack.c.l.b16 %v1234
      %v1330 = vunpack.c.l.b16 %v1235
      %v1331 = vunpack.c.l.b16 %v1236
      %v1332 = vunpack.c.l.b16 %v1237
      %v1333 = vunpack.c.l.b16 %v1238
      %v1334 = vunpack.c.l.b16 %v1239
      %v1335 = vunpack.c.l.b16 %v1240
      %v1336 = vunpack.c.l.b16 %v1241
      %v1337 = vunpack.c.l.b16 %v1242
      %v1338 = vunpack.c.l.b16 %v1243
      %v1339 = vunpack.c.l.b16 %v1244
      %v1340 = vunpack.c.l.b16 %v1245
      %v1341 = vunpack.c.l.b16 %v1246
      %v1342 = vunpack.c.l.b16 %v1247
      %v1343 = vunpack.c.l.b16 %v1248
      %v1344 = vunpack.c.l.b16 %v1249
      %v1345 = vunpack.c.l.b16 %v1250
      %v1346 = vunpack.c.l.b16 %v1251
      %v1347 = vunpack.c.l.b16 %v1252
      %v1348 = vunpack.c.l.b16 %v1253
      %v1349 = vunpack.c.l.b16 %v1254
      %v1350 = vunpack.c.l.b16 %v1255
      %v1351 = vunpack.c.l.b16 %v1256
      %v1352 = vunpack.c.l.b16 %v1257
      %v1353 = vunpack.c.l.b16 %v1258
      %v1354 = vunpack.c.l.b16 %v1259
      %v1355 = vunpack.c.l.b16 %v1260
      %v1356 = vunpack.c.l.b16 %v1261
      %v1357 = vunpack.c.l.b16 %v1262
      %v1358 = vunpack.c.l.b16 %v1263
      %v1359 = vpack.c.b16 %v1328, %v1327
      %v1360 = vpack.c.b16 %v1330, %v1329
      %v1361 = vpack.c.b16 %v1332, %v1331
      %v1362 = vpack.c.b16 %v1334, %v1333
      %v1363 = vpack.c.b16 %v1336, %v1335
      %v1364 = vpack.c.b16 %v1338, %v1337
      %v1365 = vpack.c.b16 %v1340, %v1339
      %v1366 = vpack.c.b16 %v1342, %v1341
      %v1367 = vpack.c.b16 %v1344, %v1343
      %v1368 = vpack.c.b16 %v1346, %v1345
      %v1369 = vpack.c.b16 %v1348, %v1347
      %v1370 = vpack.c.b16 %v1350, %v1349
      %v1371 = vpack.c.b16 %v1352, %v1351
      %v1372 = vpack.c.b16 %v1354, %v1353
      %v1373 = vpack.c.b16 %v1356, %v1355
      %v1374 = vpack.c.b16 %v1358, %v1357
      %1391 = vmatprep.subr.bf16.mxu0 0
      %1392 = vmatpush1.bf16.msra.mxu0 %v1359
      %1393 = vmatprep.subr.bf16.mxu0 0
      %1394 = vmatpush1.bf16.msra.mxu0 %v1360
      %1395 = vmatprep.subr.bf16.mxu0 0
      %1396 = vmatpush1.bf16.msra.mxu0 %v1361
      %1397 = vmatprep.subr.bf16.mxu0 0
      %1398 = vmatpush1.bf16.msra.mxu0 %v1362
      %1399 = vmatprep.subr.bf16.mxu0 0
      %1400 = vmatpush1.bf16.msra.mxu0 %v1363
      %1401 = vmatprep.subr.bf16.mxu0 0
      %1402 = vmatpush1.bf16.msra.mxu0 %v1364
      %1403 = vmatprep.subr.bf16.mxu0 0
      %1404 = vmatpush1.bf16.msra.mxu0 %v1365
      %1405 = vmatprep.subr.bf16.mxu0 0
      %1406 = vmatpush1.bf16.msra.mxu0 %v1366
      %1407 = vmatprep.subr.bf16.mxu0 0
      %1408 = vmatpush1.bf16.msra.mxu0 %v1367
      %1409 = vmatprep.subr.bf16.mxu0 0
      %1410 = vmatpush1.bf16.msra.mxu0 %v1368
      %1411 = vmatprep.subr.bf16.mxu0 0
      %1412 = vmatpush1.bf16.msra.mxu0 %v1369
      %1413 = vmatprep.subr.bf16.mxu0 0
      %1414 = vmatpush1.bf16.msra.mxu0 %v1370
      %1415 = vmatprep.subr.bf16.mxu0 0
      %1416 = vmatpush1.bf16.msra.mxu0 %v1371
      %1417 = vmatprep.subr.bf16.mxu0 0
      %1418 = vmatpush1.bf16.msra.mxu0 %v1372
      %1419 = vmatprep.subr.bf16.mxu0 0
      %1420 = vmatpush1.bf16.msra.mxu0 %v1373
      %1421 = vmatprep.subr.bf16.mxu0 0
      %1422 = vmatpush1.bf16.msra.mxu0 %v1374
      %1423 = vmatprep.mubr.bf16.mxu0 %v1291
      %1424 = vmatmul.mubr.bf16.gmra.mrb[0].mxu0 %v1288
      %v1425 = vpop.f32.mrb[0].mxu0
      %v1426 = vadd.f32 0.0, %v1425
      %v1427 = vpop.f32.mrb[0].mxu0
      %v1428 = vpop.f32.mrb[0].mxu0
      %v1429 = vpop.f32.mrb[0].mxu0
      %1430 = vdwg.mxu0
      %v1431 = vadd.f32 %v1229, %v1426
      %s1432 = scalar_lea.vmem %s255, 2
      %v1433 = vld [vmem:[%s1432] sm:$0x3]
      %s1434 = scalar_lea.vmem %s2, 768
      %v1435 = vld [vmem:[%s1434] sm:$0xf]
      %v1436 = vld [vmem:[%s1434 + $0x4] sm:$0xf]
      %v1437 = vld [vmem:[%s1434 + $0x8] sm:$0xf]
      %v1438 = vld [vmem:[%s1434 + $0xc] sm:$0xf]
      %v1439 = vld [vmem:[%s1434 + $0x10] sm:$0xf]
      %v1440 = vld [vmem:[%s1434 + $0x14] sm:$0xf]
      %v1441 = vld [vmem:[%s1434 + $0x18] sm:$0xf]
      %v1442 = vld [vmem:[%s1434 + $0x1c] sm:$0xf]
      %v1443 = vld [vmem:[%s1434 + $0x20] sm:$0xf]
      %v1444 = vld [vmem:[%s1434 + $0x24] sm:$0xf]
      %v1445 = vld [vmem:[%s1434 + $0x28] sm:$0xf]
      %v1446 = vld [vmem:[%s1434 + $0x2c] sm:$0xf]
      %v1447 = vld [vmem:[%s1434 + $0x30] sm:$0xf]
      %v1448 = vld [vmem:[%s1434 + $0x34] sm:$0xf]
      %v1449 = vld [vmem:[%s1434 + $0x38] sm:$0xf]
      %v1450 = vld [vmem:[%s1434 + $0x3c] sm:$0xf]
      %v1451 = vld [vmem:[%s1434 + $0x40] sm:$0xf]
      %v1452 = vld [vmem:[%s1434 + $0x44] sm:$0xf]
      %v1453 = vld [vmem:[%s1434 + $0x48] sm:$0xf]
      %v1454 = vld [vmem:[%s1434 + $0x4c] sm:$0xf]
      %v1455 = vld [vmem:[%s1434 + $0x50] sm:$0xf]
      %v1456 = vld [vmem:[%s1434 + $0x54] sm:$0xf]
      %v1457 = vld [vmem:[%s1434 + $0x58] sm:$0xf]
      %v1458 = vld [vmem:[%s1434 + $0x5c] sm:$0xf]
      %v1459 = vld [vmem:[%s1434 + $0x60] sm:$0xf]
      %v1460 = vld [vmem:[%s1434 + $0x64] sm:$0xf]
      %v1461 = vld [vmem:[%s1434 + $0x68] sm:$0xf]
      %v1462 = vld [vmem:[%s1434 + $0x6c] sm:$0xf]
      %v1463 = vld [vmem:[%s1434 + $0x70] sm:$0xf]
      %v1464 = vld [vmem:[%s1434 + $0x74] sm:$0xf]
      %v1465 = vld [vmem:[%s1434 + $0x78] sm:$0xf]
      %v1466 = vld [vmem:[%s1434 + $0x7c] sm:$0xf]
      %v1469 = vunpack.c.l.s4 1966171168
      %v1470 = vunpack.c.0.s8 %v1469
      %v1471 = vlaneseq
      %v1472 = vshrl.u32 %v1471, 7
      %v1473 = vsub.s32 %v1470, %v1472
      %v1474 = vrot.slane %v1433, %v1473
      %v1475 = vcombine.high %v1474, %v1474
      %v1477 = vunpack.c.l.s4 1966171168
      %v1478 = vunpack.c.0.s8 %v1477
      %v1479 = vlaneseq
      %v1480 = vshrl.u32 %v1479, 7
      %v1481 = vsub.s32 %v1478, %v1480
      %v1482 = vrot.slane %v1474, %v1481
      %v1484 = vunpack.c.l.s4 1966171168
      %v1485 = vunpack.c.0.s8 %v1484
      %v1486 = vlaneseq
      %v1487 = vshrl.u32 %v1486, 7
      %v1488 = vsub.s32 %v1485, %v1487
      %v1489 = vrot.slane %v1475, %v1488
      %v1524 = vunpack.c.l.b16 %v1435
      %v1525 = vunpack.c.l.b16 %v1436
      %v1526 = vunpack.c.l.b16 %v1437
      %v1527 = vunpack.c.l.b16 %v1438
      %v1528 = vunpack.c.l.b16 %v1439
      %v1529 = vunpack.c.l.b16 %v1440
      %v1530 = vunpack.c.l.b16 %v1441
      %v1531 = vunpack.c.l.b16 %v1442
      %v1532 = vunpack.c.l.b16 %v1443
      %v1533 = vunpack.c.l.b16 %v1444
      %v1534 = vunpack.c.l.b16 %v1445
      %v1535 = vunpack.c.l.b16 %v1446
      %v1536 = vunpack.c.l.b16 %v1447
      %v1537 = vunpack.c.l.b16 %v1448
      %v1538 = vunpack.c.l.b16 %v1449
      %v1539 = vunpack.c.l.b16 %v1450
      %v1540 = vunpack.c.l.b16 %v1451
      %v1541 = vunpack.c.l.b16 %v1452
      %v1542 = vunpack.c.l.b16 %v1453
      %v1543 = vunpack.c.l.b16 %v1454
      %v1544 = vunpack.c.l.b16 %v1455
      %v1545 = vunpack.c.l.b16 %v1456
      %v1546 = vunpack.c.l.b16 %v1457
      %v1547 = vunpack.c.l.b16 %v1458
      %v1548 = vunpack.c.l.b16 %v1459
      %v1549 = vunpack.c.l.b16 %v1460
      %v1550 = vunpack.c.l.b16 %v1461
      %v1551 = vunpack.c.l.b16 %v1462
      %v1552 = vunpack.c.l.b16 %v1463
      %v1553 = vunpack.c.l.b16 %v1464
      %v1554 = vunpack.c.l.b16 %v1465
      %v1555 = vunpack.c.l.b16 %v1466
      %v1556 = vpack.c.b16 %v1525, %v1524
      %v1557 = vpack.c.b16 %v1527, %v1526
      %v1558 = vpack.c.b16 %v1529, %v1528
      %v1559 = vpack.c.b16 %v1531, %v1530
      %v1560 = vpack.c.b16 %v1533, %v1532
      %v1561 = vpack.c.b16 %v1535, %v1534
      %v1562 = vpack.c.b16 %v1537, %v1536
      %v1563 = vpack.c.b16 %v1539, %v1538
      %v1564 = vpack.c.b16 %v1541, %v1540
      %v1565 = vpack.c.b16 %v1543, %v1542
      %v1566 = vpack.c.b16 %v1545, %v1544
      %v1567 = vpack.c.b16 %v1547, %v1546
      %v1568 = vpack.c.b16 %v1549, %v1548
      %v1569 = vpack.c.b16 %v1551, %v1550
      %v1570 = vpack.c.b16 %v1553, %v1552
      %v1571 = vpack.c.b16 %v1555, %v1554
      %1588 = vmatprep.subr.bf16.mxu0 0
      %1589 = vmatpush1.bf16.msra.mxu0 %v1556
      %1590 = vmatprep.subr.bf16.mxu0 0
      %1591 = vmatpush1.bf16.msra.mxu0 %v1557
      %1592 = vmatprep.subr.bf16.mxu0 0
      %1593 = vmatpush1.bf16.msra.mxu0 %v1558
      %1594 = vmatprep.subr.bf16.mxu0 0
      %1595 = vmatpush1.bf16.msra.mxu0 %v1559
      %1596 = vmatprep.subr.bf16.mxu0 0
      %1597 = vmatpush1.bf16.msra.mxu0 %v1560
      %1598 = vmatprep.subr.bf16.mxu0 0
      %1599 = vmatpush1.bf16.msra.mxu0 %v1561
      %1600 = vmatprep.subr.bf16.mxu0 0
      %1601 = vmatpush1.bf16.msra.mxu0 %v1562
      %1602 = vmatprep.subr.bf16.mxu0 0
      %1603 = vmatpush1.bf16.msra.mxu0 %v1563
      %1604 = vmatprep.subr.bf16.mxu0 0
      %1605 = vmatpush1.bf16.msra.mxu0 %v1564
      %1606 = vmatprep.subr.bf16.mxu0 0
      %1607 = vmatpush1.bf16.msra.mxu0 %v1565
      %1608 = vmatprep.subr.bf16.mxu0 0
      %1609 = vmatpush1.bf16.msra.mxu0 %v1566
      %1610 = vmatprep.subr.bf16.mxu0 0
      %1611 = vmatpush1.bf16.msra.mxu0 %v1567
      %1612 = vmatprep.subr.bf16.mxu0 0
      %1613 = vmatpush1.bf16.msra.mxu0 %v1568
      %1614 = vmatprep.subr.bf16.mxu0 0
      %1615 = vmatpush1.bf16.msra.mxu0 %v1569
      %1616 = vmatprep.subr.bf16.mxu0 0
      %1617 = vmatpush1.bf16.msra.mxu0 %v1570
      %1618 = vmatprep.subr.bf16.mxu0 0
      %1619 = vmatpush1.bf16.msra.mxu0 %v1571
      %1620 = vmatprep.mubr.bf16.mxu0 %v1489
      %1621 = vmatmul.mubr.bf16.gmra.mrb[0].mxu0 %v1482
      %v1622 = vpop.f32.mrb[0].mxu0
      %v1623 = vadd.f32 0.0, %v1622
      %v1624 = vpop.f32.mrb[0].mxu0
      %v1625 = vpop.f32.mrb[0].mxu0
      %v1626 = vpop.f32.mrb[0].mxu0
      %1627 = vdwg.mxu0
      %v1628 = vadd.f32 %v1431, %v1623
      %v1629 = vld [vmem:[%s1432] sm:$0x3]
      %s1630 = scalar_lea.vmem %s2, 896
      %v1631 = vld [vmem:[%s1630] sm:$0xf]
      %v1632 = vld [vmem:[%s1630 + $0x4] sm:$0xf]
      %v1633 = vld [vmem:[%s1630 + $0x8] sm:$0xf]
      %v1634 = vld [vmem:[%s1630 + $0xc] sm:$0xf]
      %v1635 = vld [vmem:[%s1630 + $0x10] sm:$0xf]
      %v1636 = vld [vmem:[%s1630 + $0x14] sm:$0xf]
      %v1637 = vld [vmem:[%s1630 + $0x18] sm:$0xf]
      %v1638 = vld [vmem:[%s1630 + $0x1c] sm:$0xf]
      %v1639 = vld [vmem:[%s1630 + $0x20] sm:$0xf]
      %v1640 = vld [vmem:[%s1630 + $0x24] sm:$0xf]
      %v1641 = vld [vmem:[%s1630 + $0x28] sm:$0xf]
      %v1642 = vld [vmem:[%s1630 + $0x2c] sm:$0xf]
      %v1643 = vld [vmem:[%s1630 + $0x30] sm:$0xf]
      %v1644 = vld [vmem:[%s1630 + $0x34] sm:$0xf]
      %v1645 = vld [vmem:[%s1630 + $0x38] sm:$0xf]
      %v1646 = vld [vmem:[%s1630 + $0x3c] sm:$0xf]
      %v1647 = vld [vmem:[%s1630 + $0x40] sm:$0xf]
      %v1648 = vld [vmem:[%s1630 + $0x44] sm:$0xf]
      %v1649 = vld [vmem:[%s1630 + $0x48] sm:$0xf]
      %v1650 = vld [vmem:[%s1630 + $0x4c] sm:$0xf]
      %v1651 = vld [vmem:[%s1630 + $0x50] sm:$0xf]
      %v1652 = vld [vmem:[%s1630 + $0x54] sm:$0xf]
      %v1653 = vld [vmem:[%s1630 + $0x58] sm:$0xf]
      %v1654 = vld [vmem:[%s1630 + $0x5c] sm:$0xf]
      %v1655 = vld [vmem:[%s1630 + $0x60] sm:$0xf]
      %v1656 = vld [vmem:[%s1630 + $0x64] sm:$0xf]
      %v1657 = vld [vmem:[%s1630 + $0x68] sm:$0xf]
      %v1658 = vld [vmem:[%s1630 + $0x6c] sm:$0xf]
      %v1659 = vld [vmem:[%s1630 + $0x70] sm:$0xf]
      %v1660 = vld [vmem:[%s1630 + $0x74] sm:$0xf]
      %v1661 = vld [vmem:[%s1630 + $0x78] sm:$0xf]
      %v1662 = vld [vmem:[%s1630 + $0x7c] sm:$0xf]
      %v1665 = vunpack.c.l.s4 1966171168
      %v1666 = vunpack.c.0.s8 %v1665
      %v1667 = vlaneseq
      %v1668 = vshrl.u32 %v1667, 7
      %v1669 = vsub.s32 %v1666, %v1668
      %v1670 = vrot.slane %v1629, %v1669
      %v1671 = vcombine.high %v1670, %v1670
      %v1673 = vunpack.c.l.s4 1966171168
      %v1674 = vunpack.c.0.s8 %v1673
      %v1675 = vlaneseq
      %v1676 = vshrl.u32 %v1675, 7
      %v1677 = vsub.s32 %v1674, %v1676
      %v1678 = vrot.slane %v1670, %v1677
      %v1680 = vunpack.c.l.s4 1966171168
      %v1681 = vunpack.c.0.s8 %v1680
      %v1682 = vlaneseq
      %v1683 = vshrl.u32 %v1682, 7
      %v1684 = vsub.s32 %v1681, %v1683
      %v1685 = vrot.slane %v1671, %v1684
      %v1687 = vshrl.u32 %v1678, 16
      %v1690 = vshrl.u32 %v1685, 16
      %v1726 = vunpack.c.l.b16 %v1631
      %v1727 = vunpack.c.l.b16 %v1632
      %v1728 = vunpack.c.l.b16 %v1633
      %v1729 = vunpack.c.l.b16 %v1634
      %v1730 = vunpack.c.l.b16 %v1635
      %v1731 = vunpack.c.l.b16 %v1636
      %v1732 = vunpack.c.l.b16 %v1637
      %v1733 = vunpack.c.l.b16 %v1638
      %v1734 = vunpack.c.l.b16 %v1639
      %v1735 = vunpack.c.l.b16 %v1640
      %v1736 = vunpack.c.l.b16 %v1641
      %v1737 = vunpack.c.l.b16 %v1642
      %v1738 = vunpack.c.l.b16 %v1643
      %v1739 = vunpack.c.l.b16 %v1644
      %v1740 = vunpack.c.l.b16 %v1645
      %v1741 = vunpack.c.l.b16 %v1646
      %v1742 = vunpack.c.l.b16 %v1647
      %v1743 = vunpack.c.l.b16 %v1648
      %v1744 = vunpack.c.l.b16 %v1649
      %v1745 = vunpack.c.l.b16 %v1650
      %v1746 = vunpack.c.l.b16 %v1651
      %v1747 = vunpack.c.l.b16 %v1652
      %v1748 = vunpack.c.l.b16 %v1653
      %v1749 = vunpack.c.l.b16 %v1654
      %v1750 = vunpack.c.l.b16 %v1655
      %v1751 = vunpack.c.l.b16 %v1656
      %v1752 = vunpack.c.l.b16 %v1657
      %v1753 = vunpack.c.l.b16 %v1658
      %v1754 = vunpack.c.l.b16 %v1659
      %v1755 = vunpack.c.l.b16 %v1660
      %v1756 = vunpack.c.l.b16 %v1661
      %v1757 = vunpack.c.l.b16 %v1662
      %v1758 = vpack.c.b16 %v1727, %v1726
      %v1759 = vpack.c.b16 %v1729, %v1728
      %v1760 = vpack.c.b16 %v1731, %v1730
      %v1761 = vpack.c.b16 %v1733, %v1732
      %v1762 = vpack.c.b16 %v1735, %v1734
      %v1763 = vpack.c.b16 %v1737, %v1736
      %v1764 = vpack.c.b16 %v1739, %v1738
      %v1765 = vpack.c.b16 %v1741, %v1740
      %v1766 = vpack.c.b16 %v1743, %v1742
      %v1767 = vpack.c.b16 %v1745, %v1744
      %v1768 = vpack.c.b16 %v1747, %v1746
      %v1769 = vpack.c.b16 %v1749, %v1748
      %v1770 = vpack.c.b16 %v1751, %v1750
      %v1771 = vpack.c.b16 %v1753, %v1752
      %v1772 = vpack.c.b16 %v1755, %v1754
      %v1773 = vpack.c.b16 %v1757, %v1756
      %1790 = vmatprep.subr.bf16.mxu0 0
      %1791 = vmatpush1.bf16.msra.mxu0 %v1758
      %1792 = vmatprep.subr.bf16.mxu0 0
      %1793 = vmatpush1.bf16.msra.mxu0 %v1759
      %1794 = vmatprep.subr.bf16.mxu0 0
      %1795 = vmatpush1.bf16.msra.mxu0 %v1760
      %1796 = vmatprep.subr.bf16.mxu0 0
      %1797 = vmatpush1.bf16.msra.mxu0 %v1761
      %1798 = vmatprep.subr.bf16.mxu0 0
      %1799 = vmatpush1.bf16.msra.mxu0 %v1762
      %1800 = vmatprep.subr.bf16.mxu0 0
      %1801 = vmatpush1.bf16.msra.mxu0 %v1763
      %1802 = vmatprep.subr.bf16.mxu0 0
      %1803 = vmatpush1.bf16.msra.mxu0 %v1764
      %1804 = vmatprep.subr.bf16.mxu0 0
      %1805 = vmatpush1.bf16.msra.mxu0 %v1765
      %1806 = vmatprep.subr.bf16.mxu0 0
      %1807 = vmatpush1.bf16.msra.mxu0 %v1766
      %1808 = vmatprep.subr.bf16.mxu0 0
      %1809 = vmatpush1.bf16.msra.mxu0 %v1767
      %1810 = vmatprep.subr.bf16.mxu0 0
      %1811 = vmatpush1.bf16.msra.mxu0 %v1768
      %1812 = vmatprep.subr.bf16.mxu0 0
      %1813 = vmatpush1.bf16.msra.mxu0 %v1769
      %1814 = vmatprep.subr.bf16.mxu0 0
      %1815 = vmatpush1.bf16.msra.mxu0 %v1770
      %1816 = vmatprep.subr.bf16.mxu0 0
      %1817 = vmatpush1.bf16.msra.mxu0 %v1771
      %1818 = vmatprep.subr.bf16.mxu0 0
      %1819 = vmatpush1.bf16.msra.mxu0 %v1772
      %1820 = vmatprep.subr.bf16.mxu0 0
      %1821 = vmatpush1.bf16.msra.mxu0 %v1773
      %1822 = vmatprep.mubr.bf16.mxu0 %v1690
      %1823 = vmatmul.mubr.bf16.gmra.mrb[0].mxu0 %v1687
      %v1824 = vpop.f32.mrb[0].mxu0
      %v1825 = vadd.f32 0.0, %v1824
      %v1826 = vpop.f32.mrb[0].mxu0
      %v1827 = vpop.f32.mrb[0].mxu0
      %v1828 = vpop.f32.mrb[0].mxu0
      %1829 = vdwg.mxu0
      %v1830 = vadd.f32 %v1628, %v1825
      %v1831 = vld [vmem:[%s3] sm:$0x1]
      %v1832 = vadd.f32 %v1830, %v1831
      %v1833 = vpack.c.bf16 %v1832, %v1832
      %vm1834 = vcmask 1040384
      %vm1835 = vsmask.f32 256
      %vm1836 = vmand %vm1834, %vm1835
      %v1837 = vld [vmem:[%s262] sm:$0x1]
      %v1838 = vsel %vm1836, %v1833, %v1837
      %1839 = vst [vmem:[%s262] sm:$0x1] %v1838
      %p1840 = scmp.lt.s32.totalorder %s19, 1
      %s1841 = scalar_select %p1840, %s19, 1
      %p1842 = scmp.lt.s32.totalorder %s20, 0
      %s1843 = scalar_select %p1842, %s20, 0
      %s1844 = sadd.s32 %s1843, %s1841
      %s1845 = scalar_lea.vmem %s4, %s1844
      // Predicated region
      $region37: #{fc_discriminator_forward.9} parent=35 // pred_check
        %p1846 = pneg %p147
      $region38: #{fc_discriminator_forward.9} parent=35 // pred_check_branch
        %1848 = sbr.rel (%p1846) target = $region40
      $region39: #{fc_discriminator_forward.9} parent=35 // pred_region
        _
      $region40: #{fc_discriminator_forward.9} parent=35 // pred_fallthru
        _
    $region36: #{fc_discriminator_forward.9} parent=5 // pred_fallthru
      _
    %p1849 = scmp.le.s32.totalorder 2, %s10
    // Predicated region
    $region41: #{fc_discriminator_forward.9} parent=5 // pred_check
      %p1850 = pneg %p1849
    $region42: #{fc_discriminator_forward.9} parent=5 // pred_check_branch
      %1852 = sbr.rel (%p1850) target = $region44
    $region43: #{fc_discriminator_forward.9} parent=5 // pred_region
      %s1853 = ssub.s32 %s10, 2
      // Predicated region
      $region45: #{fc_discriminator_forward.9} parent=43 // pred_check
        %p1854 = pneg %p153
      $region46: #{fc_discriminator_forward.9} parent=43 // pred_check_branch
        %1856 = sbr.rel (%p1854) target = $region48
      $region47: #{fc_discriminator_forward.9} parent=43 // pred_region
        %p1857 = scmp.lt.s32.totalorder %s21, 1
        %s1858 = scalar_select %p1857, %s21, 1
        %p1859 = scmp.lt.s32.totalorder %s22, 0
        %s1860 = scalar_select %p1859, %s22, 0
        %s1861 = sadd.s32 %s1860, %s1858
        %s1862 = scalar_lea.vmem %s4, %s1861
      $region48: #{fc_discriminator_forward.9} parent=43 // pred_fallthru
        _
    $region44: #{fc_discriminator_forward.9} parent=5 // pred_fallthru
      _
  $region6: #{fc_discriminator_forward.9} parent=0 // loop_footer
    %s14 = sadd.s32 1, %s10
  $region7: #{fc_discriminator_forward.9} parent=0 // loop_footer_branch
    %9 = sbr.rel target = $region3
  $region8: #{fc_discriminator_forward.9} parent=0 // loop_exit
    _

</llo_original>
